<compile_context>
chip_gen: v6e
topology: v6e:2x2x1
jax: 0.10.0
libtpu: 0.0.40
codegen_flags: <defaults>
</compile_context>

<pallas_src>
import jax
import jax.numpy as jnp
from jax import lax
from jax.experimental import pallas as pl
from jax.experimental.pallas import tpu as pltpu

HIDDEN = 256          # self.hidden_dim in the PyTorch module
H = HIDDEN // 2       # per-direction hidden size = 128
NUM_TAGS_PAD = 128    # classifier output padded to a full lane group

# Matmul-operand dtype.  jnp.float32 everywhere is safest (v5e has no bf16 VPU);
# on v6e/v7x set to jnp.bfloat16 to double MXU throughput (accumulation stays f32).
MXU_DTYPE = jnp.float32


# ----------------------------------------------------------------------------
# In-kernel building blocks (operate on values, not refs)
# ----------------------------------------------------------------------------
def _lstm_cell(gx, h_prev, c_prev, whh_m):
    """One LSTM step.  gx = x_t @ W_ih + b (precomputed), gate order i|f|g|o."""
    gates = gx + jnp.dot(h_prev.astype(MXU_DTYPE), whh_m,
                         preferred_element_type=jnp.float32)     # (Bp, 4H) f32
    i = jax.nn.sigmoid(gates[:, 0 * H:1 * H])
    f = jax.nn.sigmoid(gates[:, 1 * H:2 * H])
    g = jnp.tanh(gates[:, 2 * H:3 * H])
    o = jax.nn.sigmoid(gates[:, 3 * H:4 * H])
    c = f * c_prev + i * g
    h = o * jnp.tanh(c)
    return h, c


def _bilstm_layer(x2d, n_t, bp, wih_f, whh_f, b_f, wih_b, whh_b, b_b):
    """One bidirectional layer.  x2d: (T*Bp, I) -> (T*Bp, 2H), fwd in lanes 0:H,
    bwd in lanes H:2H.  The x @ W_ih projection is hoisted: one big matmul per
    direction; the per-step recurrence only does h_prev @ W_hh."""
    xm = x2d.astype(MXU_DTYPE)
    gx_f = jnp.dot(xm, wih_f.astype(MXU_DTYPE),
                   preferred_element_type=jnp.float32) + b_f      # (T*Bp, 4H)
    gx_b = jnp.dot(xm, wih_b.astype(MXU_DTYPE),
                   preferred_element_type=jnp.float32) + b_b
    whh_fm = whh_f.astype(MXU_DTYPE)
    whh_bm = whh_b.astype(MXU_DTYPE)

    h_f = jnp.zeros((bp, H), jnp.float32)
    c_f = jnp.zeros((bp, H), jnp.float32)
    h_b = jnp.zeros((bp, H), jnp.float32)
    c_b = jnp.zeros((bp, H), jnp.float32)

    outs_f = [None] * n_t
    outs_b = [None] * n_t
    # Static (unrolled) time loop; fwd and bwd recurrences interleaved for ILP.
    for s in range(n_t):
        tf, tb = s, n_t - 1 - s
        h_f, c_f = _lstm_cell(gx_f[tf * bp:(tf + 1) * bp], h_f, c_f, whh_fm)
        h_b, c_b = _lstm_cell(gx_b[tb * bp:(tb + 1) * bp], h_b, c_b, whh_bm)
        outs_f[tf] = h_f
        outs_b[tb] = h_b

    rows = [jnp.concatenate([outs_f[t], outs_b[t]], axis=-1) for t in range(n_t)]
    return jnp.concatenate(rows, axis=0)                          # (T*Bp, 2H)


def _make_fused_kernel(n_t, bp):
    def kernel(x_ref,
               wih0f, whh0f, b0f, wih0b, whh0b, b0b,
               wih1f, whh1f, b1f, wih1b, whh1b, b1b,
               clsw, clsb,
               pred_ref, lstm_out_ref):
        # Layer 0 (input = embeddings)
        l0 = _bilstm_layer(x_ref[...], n_t, bp,
                           wih0f[...], whh0f[...], b0f[...],
                           wih0b[...], whh0b[...], b0b[...])
        # Layer 1 (input = layer-0 output, still VMEM/vreg resident)
        l1 = _bilstm_layer(l0, n_t, bp,
                           wih1f[...], whh1f[...], b1f[...],
                           wih1b[...], whh1b[...], b1b[...])
        # One bulk, lane-dense (256-wide) store of the LSTM output.
        lstm_out_ref[...] = l1

        # Classifier + argmax (tags padded to 128 lanes; pad bias = -1e30).
        logits = (jnp.dot(l1.astype(MXU_DTYPE), clsw[...].astype(MXU_DTYPE),
                          preferred_element_type=jnp.float32) + clsb[...])
        n = logits.shape[-1]
        ids = lax.broadcasted_iota(jnp.int32, logits.shape, 1)
        maxv = jnp.max(logits, axis=-1, keepdims=True)
        # first index achieving the max (matches the reference argmax tie-break)
        first = jnp.min(jnp.where(logits == maxv, ids, n), axis=-1, keepdims=True)
        pred_ref[...] = first.astype(jnp.int32)
    return kernel


# ----------------------------------------------------------------------------
# Full forward pass
# ----------------------------------------------------------------------------
def bilstm_forward(params, input_ids):
    T, B = input_ids.shape
    Bp = ((B + 7) // 8) * 8                    # pad batch to 8 sublanes
    E = params["word_emb"].shape[1]
    num_tags = params["cls_w"].shape[1]

    # Embedding lookup (glue) + batch padding with zero rows.
    embeds = jnp.take(params["word_emb"], input_ids, axis=0)      # (T, B, E)
    embeds = jnp.pad(embeds, ((0, 0), (0, Bp - B), (0, 0)))
    x2d = embeds.reshape(T * Bp, E)

    # Pad classifier to 128 lanes: zero weights, -1e30 bias so pads never win argmax.
    clsw = jnp.pad(params["cls_w"], ((0, 0), (0, NUM_TAGS_PAD - num_tags)))
    clsb = jnp.pad(params["cls_b"], ((0, 0), (0, NUM_TAGS_PAD - num_tags)),
                   constant_values=-1e30)

    vmem = pl.BlockSpec(memory_space=pltpu.MemorySpace.VMEM)
    kernel = _make_fused_kernel(T, Bp)
    pred2d, lstm2d = pl.pallas_call(
        kernel,
        out_shape=(jax.ShapeDtypeStruct((T * Bp, 1), jnp.int32),
                   jax.ShapeDtypeStruct((T * Bp, HIDDEN), jnp.float32)),
        in_specs=[vmem] * 15,
        out_specs=(vmem, vmem),
        compiler_params=pltpu.CompilerParams(vmem_limit_bytes=64 * 1024 * 1024),
    )(x2d,
      params["wih_l0"], params["whh_l0"], params["b_l0"],
      params["wih_l0r"], params["whh_l0r"], params["b_l0r"],
      params["wih_l1"], params["whh_l1"], params["b_l1"],
      params["wih_l1r"], params["whh_l1r"], params["b_l1r"],
      clsw, clsb)

    pred = pred2d.reshape(T, Bp)[:, :B]
    lstm_out = lstm2d.reshape(T, Bp, HIDDEN)[:, :B, :]
    return pred, lstm_out   # pred is the module's forward output (labels=None path)


# ----------------------------------------------------------------------------
# Deterministic parameter init (shapes mirror nn.Embedding / nn.LSTM / nn.Linear)
# Weights stored pre-transposed as (in_features, 4H) so kernels compute x @ W.
# ----------------------------------------------------------------------------
def init_params(key, vocab_size, num_ent_tags, ent_emb_dim):
    ks = iter(jax.random.split(key, 20))
    s = 1.0 / jnp.sqrt(H)

    def u(k, shape):
        return jax.random.uniform(k, shape, jnp.float32, -s, s)

    params = {"word_emb": jax.random.normal(next(ks), (vocab_size, ent_emb_dim),
                                            jnp.float32)}
    in_sizes = [ent_emb_dim, 2 * H]
    for layer in range(2):
        I = in_sizes[layer]
        for suf in ["", "r"]:
            params[f"wih_l{layer}{suf}"] = u(next(ks), (I, 4 * H))
            params[f"whh_l{layer}{suf}"] = u(next(ks), (H, 4 * H))
            params[f"b_l{layer}{suf}"] = u(next(ks), (1, 4 * H))  # b_ih + b_hh folded
    params["cls_w"] = u(next(ks), (2 * H, num_ent_tags))
    params["cls_b"] = u(next(ks), (1, num_ent_tags))
    return params


# ----------------------------------------------------------------------------
# Pure-JAX reference (for sanity check)
# ----------------------------------------------------------------------------
def _lstm_dir_ref(x, wih_t, whh_t, b, reverse):
    T, B, _ = x.shape

    def step(carry, xt):
        h, c = carry
        gates = xt @ wih_t + h @ whh_t + b[0]
        i = jax.nn.sigmoid(gates[:, 0 * H:1 * H])
        f = jax.nn.sigmoid(gates[:, 1 * H:2 * H])
        g = jnp.tanh(gates[:, 2 * H:3 * H])
        o = jax.nn.sigmoid(gates[:, 3 * H:4 * H])
        c = f * c + i * g
        h = o * jnp.tanh(c)
        return (h, c), h

    xs = x[::-1] if reverse else x
    init = (jnp.zeros((B, H), jnp.float32), jnp.zeros((B, H), jnp.float32))
    _, hs = lax.scan(step, init, xs)
    return hs[::-1] if reverse else hs


def bilstm_ref(params, input_ids):
    x = jnp.take(params["word_emb"], input_ids, axis=0)
    for layer in range(2):
        fwd = _lstm_dir_ref(x, params[f"wih_l{layer}"], params[f"whh_l{layer}"],
                            params[f"b_l{layer}"], False)
        bwd = _lstm_dir_ref(x, params[f"wih_l{layer}r"], params[f"whh_l{layer}r"],
                            params[f"b_l{layer}r"], True)
        x = jnp.concatenate([fwd, bwd], axis=-1)
    logits = x @ params["cls_w"] + params["cls_b"][0]
    return jnp.argmax(logits, axis=-1), x


if __name__ == "__main__":
    T, B = 8, 2
    vocab_size, num_ent_tags, ent_emb_dim = 50, 7, 32

    key = jax.random.PRNGKey(0)
    kp, kx = jax.random.split(key)
    params = init_params(kp, vocab_size, num_ent_tags, ent_emb_dim)
    input_ids = jax.random.randint(kx, (T, B), 0, vocab_size, dtype=jnp.int32)

    pred, lstm_out = jax.jit(bilstm_forward)(params, input_ids)
    pred = jax.block_until_ready(pred)
    lstm_out = jax.block_until_ready(lstm_out)

    # sanity check against pure-JAX reference (lenient tol for MXU rounding)
    ref_pred, ref_lstm = bilstm_ref(params, input_ids)
    assert pred.shape == (T, B)
    assert jnp.allclose(lstm_out, ref_lstm, atol=5e-2, rtol=5e-2)
    assert bool(jnp.mean((pred == ref_pred).astype(jnp.float32)) >= 0.9)

    print("KERNEL_OK")
</pallas_src>

<mosaic_0001>
module attributes {stable_mosaic.version = 11 : i64} {
  func.func @kernel(%arg0: memref<64x32xf32, #tpu.memory_space<vmem>>, %arg1: memref<32x512xf32, #tpu.memory_space<vmem>>, %arg2: memref<128x512xf32, #tpu.memory_space<vmem>>, %arg3: memref<1x512xf32, #tpu.memory_space<vmem>>, %arg4: memref<32x512xf32, #tpu.memory_space<vmem>>, %arg5: memref<128x512xf32, #tpu.memory_space<vmem>>, %arg6: memref<1x512xf32, #tpu.memory_space<vmem>>, %arg7: memref<256x512xf32, #tpu.memory_space<vmem>>, %arg8: memref<128x512xf32, #tpu.memory_space<vmem>>, %arg9: memref<1x512xf32, #tpu.memory_space<vmem>>, %arg10: memref<256x512xf32, #tpu.memory_space<vmem>>, %arg11: memref<128x512xf32, #tpu.memory_space<vmem>>, %arg12: memref<1x512xf32, #tpu.memory_space<vmem>>, %arg13: memref<256x128xf32, #tpu.memory_space<vmem>>, %arg14: memref<1x128xf32, #tpu.memory_space<vmem>>, %arg15: memref<64x1xi32, #tpu.memory_space<vmem>>, %arg16: memref<64x256xf32, #tpu.memory_space<vmem>>) attributes {dimension_semantics = [], scalar_prefetch = 0 : i64, scratch_operands = 0 : i64, tpu.core_type = #tpu.core_type<tc>} {
    %c0 = arith.constant 0 : index
    %c0_0 = arith.constant 0 : index
    %0 = vector.load %arg0[%c0, %c0_0] : memref<64x32xf32, #tpu.memory_space<vmem>>, vector<64x32xf32>
    %c0_1 = arith.constant 0 : index
    %c0_2 = arith.constant 0 : index
    %1 = vector.load %arg1[%c0_1, %c0_2] : memref<32x512xf32, #tpu.memory_space<vmem>>, vector<32x512xf32>
    %c0_3 = arith.constant 0 : index
    %c0_4 = arith.constant 0 : index
    %2 = vector.load %arg2[%c0_3, %c0_4] : memref<128x512xf32, #tpu.memory_space<vmem>>, vector<128x512xf32>
    %c0_5 = arith.constant 0 : index
    %c0_6 = arith.constant 0 : index
    %3 = vector.load %arg3[%c0_5, %c0_6] : memref<1x512xf32, #tpu.memory_space<vmem>>, vector<1x512xf32>
    %c0_7 = arith.constant 0 : index
    %c0_8 = arith.constant 0 : index
    %4 = vector.load %arg4[%c0_7, %c0_8] : memref<32x512xf32, #tpu.memory_space<vmem>>, vector<32x512xf32>
    %c0_9 = arith.constant 0 : index
    %c0_10 = arith.constant 0 : index
    %5 = vector.load %arg5[%c0_9, %c0_10] : memref<128x512xf32, #tpu.memory_space<vmem>>, vector<128x512xf32>
    %c0_11 = arith.constant 0 : index
    %c0_12 = arith.constant 0 : index
    %6 = vector.load %arg6[%c0_11, %c0_12] : memref<1x512xf32, #tpu.memory_space<vmem>>, vector<1x512xf32>
    %cst = arith.constant dense<0.000000e+00> : vector<64x512xf32>
    %7 = tpu.matmul %0, %1, %cst {dimension_numbers = #tpu.dot_dimension_numbers<[1], [0], [0], [1], [0, 0, 1, 1], [], []>} : vector<64x32xf32>, vector<32x512xf32>, vector<64x512xf32> -> vector<64x512xf32>
    %8 = vector.broadcast %3 : vector<1x512xf32> to vector<64x512xf32>
    %9 = arith.addf %7, %8 : vector<64x512xf32>
    %cst_13 = arith.constant dense<0.000000e+00> : vector<64x512xf32>
    %10 = tpu.matmul %0, %4, %cst_13 {dimension_numbers = #tpu.dot_dimension_numbers<[1], [0], [0], [1], [0, 0, 1, 1], [], []>} : vector<64x32xf32>, vector<32x512xf32>, vector<64x512xf32> -> vector<64x512xf32>
    %11 = vector.broadcast %6 : vector<1x512xf32> to vector<64x512xf32>
    %12 = arith.addf %10, %11 : vector<64x512xf32>
    %cst_14 = arith.constant 0.000000e+00 : f32
    %13 = vector.broadcast %cst_14 : f32 to vector<8x128xf32>
    %cst_15 = arith.constant 0.000000e+00 : f32
    %14 = vector.broadcast %cst_15 : f32 to vector<8x128xf32>
    %cst_16 = arith.constant 0.000000e+00 : f32
    %15 = vector.broadcast %cst_16 : f32 to vector<8x128xf32>
    %cst_17 = arith.constant 0.000000e+00 : f32
    %16 = vector.broadcast %cst_17 : f32 to vector<8x128xf32>
    %17 = vector.extract_strided_slice %9 {offsets = [0, 0], sizes = [8, 512], strides = [1, 1]} : vector<64x512xf32> to vector<8x512xf32>
    %cst_18 = arith.constant dense<0.000000e+00> : vector<8x512xf32>
    %18 = tpu.matmul %13, %2, %cst_18 {dimension_numbers = #tpu.dot_dimension_numbers<[1], [0], [0], [1], [0, 0, 1, 1], [], []>} : vector<8x128xf32>, vector<128x512xf32>, vector<8x512xf32> -> vector<8x512xf32>
    %19 = arith.addf %17, %18 : vector<8x512xf32>
    %20 = vector.extract_strided_slice %19 {offsets = [0, 0], sizes = [8, 128], strides = [1, 1]} : vector<8x512xf32> to vector<8x128xf32>
    %21 = arith.negf %20 : vector<8x128xf32>
    %22 = math.exp %21 : vector<8x128xf32>
    %cst_19 = arith.constant 1.000000e+00 : f32
    %23 = vector.broadcast %cst_19 : f32 to vector<8x128xf32>
    %24 = arith.addf %23, %22 : vector<8x128xf32>
    %25 = arith.divf %23, %24 : vector<8x128xf32>
    %26 = vector.extract_strided_slice %19 {offsets = [0, 128], sizes = [8, 128], strides = [1, 1]} : vector<8x512xf32> to vector<8x128xf32>
    %27 = arith.negf %26 : vector<8x128xf32>
    %28 = math.exp %27 : vector<8x128xf32>
    %cst_20 = arith.constant 1.000000e+00 : f32
    %29 = vector.broadcast %cst_20 : f32 to vector<8x128xf32>
    %30 = arith.addf %29, %28 : vector<8x128xf32>
    %31 = arith.divf %29, %30 : vector<8x128xf32>
    %32 = vector.extract_strided_slice %19 {offsets = [0, 256], sizes = [8, 128], strides = [1, 1]} : vector<8x512xf32> to vector<8x128xf32>
    %33 = math.tanh %32 : vector<8x128xf32>
    %34 = vector.extract_strided_slice %19 {offsets = [0, 384], sizes = [8, 128], strides = [1, 1]} : vector<8x512xf32> to vector<8x128xf32>
    %35 = arith.negf %34 : vector<8x128xf32>
    %36 = math.exp %35 : vector<8x128xf32>
    %cst_21 = arith.constant 1.000000e+00 : f32
    %37 = vector.broadcast %cst_21 : f32 to vector<8x128xf32>
    %38 = arith.addf %37, %36 : vector<8x128xf32>
    %39 = arith.divf %37, %38 : vector<8x128xf32>
    %40 = arith.mulf %31, %14 : vector<8x128xf32>
    %41 = arith.mulf %25, %33 : vector<8x128xf32>
    %42 = arith.addf %40, %41 : vector<8x128xf32>
    %43 = math.tanh %42 : vector<8x128xf32>
    %44 = arith.mulf %39, %43 : vector<8x128xf32>
    %45 = vector.extract_strided_slice %12 {offsets = [56, 0], sizes = [8, 512], strides = [1, 1]} : vector<64x512xf32> to vector<8x512xf32>
    %cst_22 = arith.constant dense<0.000000e+00> : vector<8x512xf32>
    %46 = tpu.matmul %15, %5, %cst_22 {dimension_numbers = #tpu.dot_dimension_numbers<[1], [0], [0], [1], [0, 0, 1, 1], [], []>} : vector<8x128xf32>, vector<128x512xf32>, vector<8x512xf32> -> vector<8x512xf32>
    %47 = arith.addf %45, %46 : vector<8x512xf32>
    %48 = vector.extract_strided_slice %47 {offsets = [0, 0], sizes = [8, 128], strides = [1, 1]} : vector<8x512xf32> to vector<8x128xf32>
    %49 = arith.negf %48 : vector<8x128xf32>
    %50 = math.exp %49 : vector<8x128xf32>
    %cst_23 = arith.constant 1.000000e+00 : f32
    %51 = vector.broadcast %cst_23 : f32 to vector<8x128xf32>
    %52 = arith.addf %51, %50 : vector<8x128xf32>
    %53 = arith.divf %51, %52 : vector<8x128xf32>
    %54 = vector.extract_strided_slice %47 {offsets = [0, 128], sizes = [8, 128], strides = [1, 1]} : vector<8x512xf32> to vector<8x128xf32>
    %55 = arith.negf %54 : vector<8x128xf32>
    %56 = math.exp %55 : vector<8x128xf32>
    %cst_24 = arith.constant 1.000000e+00 : f32
    %57 = vector.broadcast %cst_24 : f32 to vector<8x128xf32>
    %58 = arith.addf %57, %56 : vector<8x128xf32>
    %59 = arith.divf %57, %58 : vector<8x128xf32>
    %60 = vector.extract_strided_slice %47 {offsets = [0, 256], sizes = [8, 128], strides = [1, 1]} : vector<8x512xf32> to vector<8x128xf32>
    %61 = math.tanh %60 : vector<8x128xf32>
    %62 = vector.extract_strided_slice %47 {offsets = [0, 384], sizes = [8, 128], strides = [1, 1]} : vector<8x512xf32> to vector<8x128xf32>
    %63 = arith.negf %62 : vector<8x128xf32>
    %64 = math.exp %63 : vector<8x128xf32>
    %cst_25 = arith.constant 1.000000e+00 : f32
    %65 = vector.broadcast %cst_25 : f32 to vector<8x128xf32>
    %66 = arith.addf %65, %64 : vector<8x128xf32>
    %67 = arith.divf %65, %66 : vector<8x128xf32>
    %68 = arith.mulf %59, %16 : vector<8x128xf32>
    %69 = arith.mulf %53, %61 : vector<8x128xf32>
    %70 = arith.addf %68, %69 : vector<8x128xf32>
    %71 = math.tanh %70 : vector<8x128xf32>
    %72 = arith.mulf %67, %71 : vector<8x128xf32>
    %73 = vector.extract_strided_slice %9 {offsets = [8, 0], sizes = [8, 512], strides = [1, 1]} : vector<64x512xf32> to vector<8x512xf32>
    %cst_26 = arith.constant dense<0.000000e+00> : vector<8x512xf32>
    %74 = tpu.matmul %44, %2, %cst_26 {dimension_numbers = #tpu.dot_dimension_numbers<[1], [0], [0], [1], [0, 0, 1, 1], [], []>} : vector<8x128xf32>, vector<128x512xf32>, vector<8x512xf32> -> vector<8x512xf32>
    %75 = arith.addf %73, %74 : vector<8x512xf32>
    %76 = vector.extract_strided_slice %75 {offsets = [0, 0], sizes = [8, 128], strides = [1, 1]} : vector<8x512xf32> to vector<8x128xf32>
    %77 = arith.negf %76 : vector<8x128xf32>
    %78 = math.exp %77 : vector<8x128xf32>
    %cst_27 = arith.constant 1.000000e+00 : f32
    %79 = vector.broadcast %cst_27 : f32 to vector<8x128xf32>
    %80 = arith.addf %79, %78 : vector<8x128xf32>
    %81 = arith.divf %79, %80 : vector<8x128xf32>
    %82 = vector.extract_strided_slice %75 {offsets = [0, 128], sizes = [8, 128], strides = [1, 1]} : vector<8x512xf32> to vector<8x128xf32>
    %83 = arith.negf %82 : vector<8x128xf32>
    %84 = math.exp %83 : vector<8x128xf32>
    %cst_28 = arith.constant 1.000000e+00 : f32
    %85 = vector.broadcast %cst_28 : f32 to vector<8x128xf32>
    %86 = arith.addf %85, %84 : vector<8x128xf32>
    %87 = arith.divf %85, %86 : vector<8x128xf32>
    %88 = vector.extract_strided_slice %75 {offsets = [0, 256], sizes = [8, 128], strides = [1, 1]} : vector<8x512xf32> to vector<8x128xf32>
    %89 = math.tanh %88 : vector<8x128xf32>
    %90 = vector.extract_strided_slice %75 {offsets = [0, 384], sizes = [8, 128], strides = [1, 1]} : vector<8x512xf32> to vector<8x128xf32>
    %91 = arith.negf %90 : vector<8x128xf32>
    %92 = math.exp %91 : vector<8x128xf32>
    %cst_29 = arith.constant 1.000000e+00 : f32
    %93 = vector.broadcast %cst_29 : f32 to vector<8x128xf32>
    %94 = arith.addf %93, %92 : vector<8x128xf32>
    %95 = arith.divf %93, %94 : vector<8x128xf32>
    %96 = arith.mulf %87, %42 : vector<8x128xf32>
    %97 = arith.mulf %81, %89 : vector<8x128xf32>
    %98 = arith.addf %96, %97 : vector<8x128xf32>
    %99 = math.tanh %98 : vector<8x128xf32>
    %100 = arith.mulf %95, %99 : vector<8x128xf32>
    %101 = vector.extract_strided_slice %12 {offsets = [48, 0], sizes = [8, 512], strides = [1, 1]} : vector<64x512xf32> to vector<8x512xf32>
    %cst_30 = arith.constant dense<0.000000e+00> : vector<8x512xf32>
    %102 = tpu.matmul %72, %5, %cst_30 {dimension_numbers = #tpu.dot_dimension_numbers<[1], [0], [0], [1], [0, 0, 1, 1], [], []>} : vector<8x128xf32>, vector<128x512xf32>, vector<8x512xf32> -> vector<8x512xf32>
    %103 = arith.addf %101, %102 : vector<8x512xf32>
    %104 = vector.extract_strided_slice %103 {offsets = [0, 0], sizes = [8, 128], strides = [1, 1]} : vector<8x512xf32> to vector<8x128xf32>
    %105 = arith.negf %104 : vector<8x128xf32>
    %106 = math.exp %105 : vector<8x128xf32>
    %cst_31 = arith.constant 1.000000e+00 : f32
    %107 = vector.broadcast %cst_31 : f32 to vector<8x128xf32>
    %108 = arith.addf %107, %106 : vector<8x128xf32>
    %109 = arith.divf %107, %108 : vector<8x128xf32>
    %110 = vector.extract_strided_slice %103 {offsets = [0, 128], sizes = [8, 128], strides = [1, 1]} : vector<8x512xf32> to vector<8x128xf32>
    %111 = arith.negf %110 : vector<8x128xf32>
    %112 = math.exp %111 : vector<8x128xf32>
    %cst_32 = arith.constant 1.000000e+00 : f32
    %113 = vector.broadcast %cst_32 : f32 to vector<8x128xf32>
    %114 = arith.addf %113, %112 : vector<8x128xf32>
    %115 = arith.divf %113, %114 : vector<8x128xf32>
    %116 = vector.extract_strided_slice %103 {offsets = [0, 256], sizes = [8, 128], strides = [1, 1]} : vector<8x512xf32> to vector<8x128xf32>
    %117 = math.tanh %116 : vector<8x128xf32>
    %118 = vector.extract_strided_slice %103 {offsets = [0, 384], sizes = [8, 128], strides = [1, 1]} : vector<8x512xf32> to vector<8x128xf32>
    %119 = arith.negf %118 : vector<8x128xf32>
    %120 = math.exp %119 : vector<8x128xf32>
    %cst_33 = arith.constant 1.000000e+00 : f32
    %121 = vector.broadcast %cst_33 : f32 to vector<8x128xf32>
    %122 = arith.addf %121, %120 : vector<8x128xf32>
    %123 = arith.divf %121, %122 : vector<8x128xf32>
    %124 = arith.mulf %115, %70 : vector<8x128xf32>
    %125 = arith.mulf %109, %117 : vector<8x128xf32>
    %126 = arith.addf %124, %125 : vector<8x128xf32>
    %127 = math.tanh %126 : vector<8x128xf32>
    %128 = arith.mulf %123, %127 : vector<8x128xf32>
    %129 = vector.extract_strided_slice %9 {offsets = [16, 0], sizes = [8, 512], strides = [1, 1]} : vector<64x512xf32> to vector<8x512xf32>
    %cst_34 = arith.constant dense<0.000000e+00> : vector<8x512xf32>
    %130 = tpu.matmul %100, %2, %cst_34 {dimension_numbers = #tpu.dot_dimension_numbers<[1], [0], [0], [1], [0, 0, 1, 1], [], []>} : vector<8x128xf32>, vector<128x512xf32>, vector<8x512xf32> -> vector<8x512xf32>
    %131 = arith.addf %129, %130 : vector<8x512xf32>
    %132 = vector.extract_strided_slice %131 {offsets = [0, 0], sizes = [8, 128], strides = [1, 1]} : vector<8x512xf32> to vector<8x128xf32>
    %133 = arith.negf %132 : vector<8x128xf32>
    %134 = math.exp %133 : vector<8x128xf32>
    %cst_35 = arith.constant 1.000000e+00 : f32
    %135 = vector.broadcast %cst_35 : f32 to vector<8x128xf32>
    %136 = arith.addf %135, %134 : vector<8x128xf32>
    %137 = arith.divf %135, %136 : vector<8x128xf32>
    %138 = vector.extract_strided_slice %131 {offsets = [0, 128], sizes = [8, 128], strides = [1, 1]} : vector<8x512xf32> to vector<8x128xf32>
    %139 = arith.negf %138 : vector<8x128xf32>
    %140 = math.exp %139 : vector<8x128xf32>
    %cst_36 = arith.constant 1.000000e+00 : f32
    %141 = vector.broadcast %cst_36 : f32 to vector<8x128xf32>
    %142 = arith.addf %141, %140 : vector<8x128xf32>
    %143 = arith.divf %141, %142 : vector<8x128xf32>
    %144 = vector.extract_strided_slice %131 {offsets = [0, 256], sizes = [8, 128], strides = [1, 1]} : vector<8x512xf32> to vector<8x128xf32>
    %145 = math.tanh %144 : vector<8x128xf32>
    %146 = vector.extract_strided_slice %131 {offsets = [0, 384], sizes = [8, 128], strides = [1, 1]} : vector<8x512xf32> to vector<8x128xf32>
    %147 = arith.negf %146 : vector<8x128xf32>
    %148 = math.exp %147 : vector<8x128xf32>
    %cst_37 = arith.constant 1.000000e+00 : f32
    %149 = vector.broadcast %cst_37 : f32 to vector<8x128xf32>
    %150 = arith.addf %149, %148 : vector<8x128xf32>
    %151 = arith.divf %149, %150 : vector<8x128xf32>
    %152 = arith.mulf %143, %98 : vector<8x128xf32>
    %153 = arith.mulf %137, %145 : vector<8x128xf32>
    %154 = arith.addf %152, %153 : vector<8x128xf32>
    %155 = math.tanh %154 : vector<8x128xf32>
    %156 = arith.mulf %151, %155 : vector<8x128xf32>
    %157 = vector.extract_strided_slice %12 {offsets = [40, 0], sizes = [8, 512], strides = [1, 1]} : vector<64x512xf32> to vector<8x512xf32>
    %cst_38 = arith.constant dense<0.000000e+00> : vector<8x512xf32>
    %158 = tpu.matmul %128, %5, %cst_38 {dimension_numbers = #tpu.dot_dimension_numbers<[1], [0], [0], [1], [0, 0, 1, 1], [], []>} : vector<8x128xf32>, vector<128x512xf32>, vector<8x512xf32> -> vector<8x512xf32>
    %159 = arith.addf %157, %158 : vector<8x512xf32>
    %160 = vector.extract_strided_slice %159 {offsets = [0, 0], sizes = [8, 128], strides = [1, 1]} : vector<8x512xf32> to vector<8x128xf32>
    %161 = arith.negf %160 : vector<8x128xf32>
    %162 = math.exp %161 : vector<8x128xf32>
    %cst_39 = arith.constant 1.000000e+00 : f32
    %163 = vector.broadcast %cst_39 : f32 to vector<8x128xf32>
    %164 = arith.addf %163, %162 : vector<8x128xf32>
    %165 = arith.divf %163, %164 : vector<8x128xf32>
    %166 = vector.extract_strided_slice %159 {offsets = [0, 128], sizes = [8, 128], strides = [1, 1]} : vector<8x512xf32> to vector<8x128xf32>
    %167 = arith.negf %166 : vector<8x128xf32>
    %168 = math.exp %167 : vector<8x128xf32>
    %cst_40 = arith.constant 1.000000e+00 : f32
    %169 = vector.broadcast %cst_40 : f32 to vector<8x128xf32>
    %170 = arith.addf %169, %168 : vector<8x128xf32>
    %171 = arith.divf %169, %170 : vector<8x128xf32>
    %172 = vector.extract_strided_slice %159 {offsets = [0, 256], sizes = [8, 128], strides = [1, 1]} : vector<8x512xf32> to vector<8x128xf32>
    %173 = math.tanh %172 : vector<8x128xf32>
    %174 = vector.extract_strided_slice %159 {offsets = [0, 384], sizes = [8, 128], strides = [1, 1]} : vector<8x512xf32> to vector<8x128xf32>
    %175 = arith.negf %174 : vector<8x128xf32>
    %176 = math.exp %175 : vector<8x128xf32>
    %cst_41 = arith.constant 1.000000e+00 : f32
    %177 = vector.broadcast %cst_41 : f32 to vector<8x128xf32>
    %178 = arith.addf %177, %176 : vector<8x128xf32>
    %179 = arith.divf %177, %178 : vector<8x128xf32>
    %180 = arith.mulf %171, %126 : vector<8x128xf32>
    %181 = arith.mulf %165, %173 : vector<8x128xf32>
    %182 = arith.addf %180, %181 : vector<8x128xf32>
    %183 = math.tanh %182 : vector<8x128xf32>
    %184 = arith.mulf %179, %183 : vector<8x128xf32>
    %185 = vector.extract_strided_slice %9 {offsets = [24, 0], sizes = [8, 512], strides = [1, 1]} : vector<64x512xf32> to vector<8x512xf32>
    %cst_42 = arith.constant dense<0.000000e+00> : vector<8x512xf32>
    %186 = tpu.matmul %156, %2, %cst_42 {dimension_numbers = #tpu.dot_dimension_numbers<[1], [0], [0], [1], [0, 0, 1, 1], [], []>} : vector<8x128xf32>, vector<128x512xf32>, vector<8x512xf32> -> vector<8x512xf32>
    %187 = arith.addf %185, %186 : vector<8x512xf32>
    %188 = vector.extract_strided_slice %187 {offsets = [0, 0], sizes = [8, 128], strides = [1, 1]} : vector<8x512xf32> to vector<8x128xf32>
    %189 = arith.negf %188 : vector<8x128xf32>
    %190 = math.exp %189 : vector<8x128xf32>
    %cst_43 = arith.constant 1.000000e+00 : f32
    %191 = vector.broadcast %cst_43 : f32 to vector<8x128xf32>
    %192 = arith.addf %191, %190 : vector<8x128xf32>
    %193 = arith.divf %191, %192 : vector<8x128xf32>
    %194 = vector.extract_strided_slice %187 {offsets = [0, 128], sizes = [8, 128], strides = [1, 1]} : vector<8x512xf32> to vector<8x128xf32>
    %195 = arith.negf %194 : vector<8x128xf32>
    %196 = math.exp %195 : vector<8x128xf32>
    %cst_44 = arith.constant 1.000000e+00 : f32
    %197 = vector.broadcast %cst_44 : f32 to vector<8x128xf32>
    %198 = arith.addf %197, %196 : vector<8x128xf32>
    %199 = arith.divf %197, %198 : vector<8x128xf32>
    %200 = vector.extract_strided_slice %187 {offsets = [0, 256], sizes = [8, 128], strides = [1, 1]} : vector<8x512xf32> to vector<8x128xf32>
    %201 = math.tanh %200 : vector<8x128xf32>
    %202 = vector.extract_strided_slice %187 {offsets = [0, 384], sizes = [8, 128], strides = [1, 1]} : vector<8x512xf32> to vector<8x128xf32>
    %203 = arith.negf %202 : vector<8x128xf32>
    %204 = math.exp %203 : vector<8x128xf32>
    %cst_45 = arith.constant 1.000000e+00 : f32
    %205 = vector.broadcast %cst_45 : f32 to vector<8x128xf32>
    %206 = arith.addf %205, %204 : vector<8x128xf32>
    %207 = arith.divf %205, %206 : vector<8x128xf32>
    %208 = arith.mulf %199, %154 : vector<8x128xf32>
    %209 = arith.mulf %193, %201 : vector<8x128xf32>
    %210 = arith.addf %208, %209 : vector<8x128xf32>
    %211 = math.tanh %210 : vector<8x128xf32>
    %212 = arith.mulf %207, %211 : vector<8x128xf32>
    %213 = vector.extract_strided_slice %12 {offsets = [32, 0], sizes = [8, 512], strides = [1, 1]} : vector<64x512xf32> to vector<8x512xf32>
    %cst_46 = arith.constant dense<0.000000e+00> : vector<8x512xf32>
    %214 = tpu.matmul %184, %5, %cst_46 {dimension_numbers = #tpu.dot_dimension_numbers<[1], [0], [0], [1], [0, 0, 1, 1], [], []>} : vector<8x128xf32>, vector<128x512xf32>, vector<8x512xf32> -> vector<8x512xf32>
    %215 = arith.addf %213, %214 : vector<8x512xf32>
    %216 = vector.extract_strided_slice %215 {offsets = [0, 0], sizes = [8, 128], strides = [1, 1]} : vector<8x512xf32> to vector<8x128xf32>
    %217 = arith.negf %216 : vector<8x128xf32>
    %218 = math.exp %217 : vector<8x128xf32>
    %cst_47 = arith.constant 1.000000e+00 : f32
    %219 = vector.broadcast %cst_47 : f32 to vector<8x128xf32>
    %220 = arith.addf %219, %218 : vector<8x128xf32>
    %221 = arith.divf %219, %220 : vector<8x128xf32>
    %222 = vector.extract_strided_slice %215 {offsets = [0, 128], sizes = [8, 128], strides = [1, 1]} : vector<8x512xf32> to vector<8x128xf32>
    %223 = arith.negf %222 : vector<8x128xf32>
    %224 = math.exp %223 : vector<8x128xf32>
    %cst_48 = arith.constant 1.000000e+00 : f32
    %225 = vector.broadcast %cst_48 : f32 to vector<8x128xf32>
    %226 = arith.addf %225, %224 : vector<8x128xf32>
    %227 = arith.divf %225, %226 : vector<8x128xf32>
    %228 = vector.extract_strided_slice %215 {offsets = [0, 256], sizes = [8, 128], strides = [1, 1]} : vector<8x512xf32> to vector<8x128xf32>
    %229 = math.tanh %228 : vector<8x128xf32>
    %230 = vector.extract_strided_slice %215 {offsets = [0, 384], sizes = [8, 128], strides = [1, 1]} : vector<8x512xf32> to vector<8x128xf32>
    %231 = arith.negf %230 : vector<8x128xf32>
    %232 = math.exp %231 : vector<8x128xf32>
    %cst_49 = arith.constant 1.000000e+00 : f32
    %233 = vector.broadcast %cst_49 : f32 to vector<8x128xf32>
    %234 = arith.addf %233, %232 : vector<8x128xf32>
    %235 = arith.divf %233, %234 : vector<8x128xf32>
    %236 = arith.mulf %227, %182 : vector<8x128xf32>
    %237 = arith.mulf %221, %229 : vector<8x128xf32>
    %238 = arith.addf %236, %237 : vector<8x128xf32>
    %239 = math.tanh %238 : vector<8x128xf32>
    %240 = arith.mulf %235, %239 : vector<8x128xf32>
    %241 = vector.extract_strided_slice %9 {offsets = [32, 0], sizes = [8, 512], strides = [1, 1]} : vector<64x512xf32> to vector<8x512xf32>
    %cst_50 = arith.constant dense<0.000000e+00> : vector<8x512xf32>
    %242 = tpu.matmul %212, %2, %cst_50 {dimension_numbers = #tpu.dot_dimension_numbers<[1], [0], [0], [1], [0, 0, 1, 1], [], []>} : vector<8x128xf32>, vector<128x512xf32>, vector<8x512xf32> -> vector<8x512xf32>
    %243 = arith.addf %241, %242 : vector<8x512xf32>
    %244 = vector.extract_strided_slice %243 {offsets = [0, 0], sizes = [8, 128], strides = [1, 1]} : vector<8x512xf32> to vector<8x128xf32>
    %245 = arith.negf %244 : vector<8x128xf32>
    %246 = math.exp %245 : vector<8x128xf32>
    %cst_51 = arith.constant 1.000000e+00 : f32
    %247 = vector.broadcast %cst_51 : f32 to vector<8x128xf32>
    %248 = arith.addf %247, %246 : vector<8x128xf32>
    %249 = arith.divf %247, %248 : vector<8x128xf32>
    %250 = vector.extract_strided_slice %243 {offsets = [0, 128], sizes = [8, 128], strides = [1, 1]} : vector<8x512xf32> to vector<8x128xf32>
    %251 = arith.negf %250 : vector<8x128xf32>
    %252 = math.exp %251 : vector<8x128xf32>
    %cst_52 = arith.constant 1.000000e+00 : f32
    %253 = vector.broadcast %cst_52 : f32 to vector<8x128xf32>
    %254 = arith.addf %253, %252 : vector<8x128xf32>
    %255 = arith.divf %253, %254 : vector<8x128xf32>
    %256 = vector.extract_strided_slice %243 {offsets = [0, 256], sizes = [8, 128], strides = [1, 1]} : vector<8x512xf32> to vector<8x128xf32>
    %257 = math.tanh %256 : vector<8x128xf32>
    %258 = vector.extract_strided_slice %243 {offsets = [0, 384], sizes = [8, 128], strides = [1, 1]} : vector<8x512xf32> to vector<8x128xf32>
    %259 = arith.negf %258 : vector<8x128xf32>
    %260 = math.exp %259 : vector<8x128xf32>
    %cst_53 = arith.constant 1.000000e+00 : f32
    %261 = vector.broadcast %cst_53 : f32 to vector<8x128xf32>
    %262 = arith.addf %261, %260 : vector<8x128xf32>
    %263 = arith.divf %261, %262 : vector<8x128xf32>
    %264 = arith.mulf %255, %210 : vector<8x128xf32>
    %265 = arith.mulf %249, %257 : vector<8x128xf32>
    %266 = arith.addf %264, %265 : vector<8x128xf32>
    %267 = math.tanh %266 : vector<8x128xf32>
    %268 = arith.mulf %263, %267 : vector<8x128xf32>
    %269 = vector.extract_strided_slice %12 {offsets = [24, 0], sizes = [8, 512], strides = [1, 1]} : vector<64x512xf32> to vector<8x512xf32>
    %cst_54 = arith.constant dense<0.000000e+00> : vector<8x512xf32>
    %270 = tpu.matmul %240, %5, %cst_54 {dimension_numbers = #tpu.dot_dimension_numbers<[1], [0], [0], [1], [0, 0, 1, 1], [], []>} : vector<8x128xf32>, vector<128x512xf32>, vector<8x512xf32> -> vector<8x512xf32>
    %271 = arith.addf %269, %270 : vector<8x512xf32>
    %272 = vector.extract_strided_slice %271 {offsets = [0, 0], sizes = [8, 128], strides = [1, 1]} : vector<8x512xf32> to vector<8x128xf32>
    %273 = arith.negf %272 : vector<8x128xf32>
    %274 = math.exp %273 : vector<8x128xf32>
    %cst_55 = arith.constant 1.000000e+00 : f32
    %275 = vector.broadcast %cst_55 : f32 to vector<8x128xf32>
    %276 = arith.addf %275, %274 : vector<8x128xf32>
    %277 = arith.divf %275, %276 : vector<8x128xf32>
    %278 = vector.extract_strided_slice %271 {offsets = [0, 128], sizes = [8, 128], strides = [1, 1]} : vector<8x512xf32> to vector<8x128xf32>
    %279 = arith.negf %278 : vector<8x128xf32>
    %280 = math.exp %279 : vector<8x128xf32>
    %cst_56 = arith.constant 1.000000e+00 : f32
    %281 = vector.broadcast %cst_56 : f32 to vector<8x128xf32>
    %282 = arith.addf %281, %280 : vector<8x128xf32>
    %283 = arith.divf %281, %282 : vector<8x128xf32>
    %284 = vector.extract_strided_slice %271 {offsets = [0, 256], sizes = [8, 128], strides = [1, 1]} : vector<8x512xf32> to vector<8x128xf32>
    %285 = math.tanh %284 : vector<8x128xf32>
    %286 = vector.extract_strided_slice %271 {offsets = [0, 384], sizes = [8, 128], strides = [1, 1]} : vector<8x512xf32> to vector<8x128xf32>
    %287 = arith.negf %286 : vector<8x128xf32>
    %288 = math.exp %287 : vector<8x128xf32>
    %cst_57 = arith.constant 1.000000e+00 : f32
    %289 = vector.broadcast %cst_57 : f32 to vector<8x128xf32>
    %290 = arith.addf %289, %288 : vector<8x128xf32>
    %291 = arith.divf %289, %290 : vector<8x128xf32>
    %292 = arith.mulf %283, %238 : vector<8x128xf32>
    %293 = arith.mulf %277, %285 : vector<8x128xf32>
    %294 = arith.addf %292, %293 : vector<8x128xf32>
    %295 = math.tanh %294 : vector<8x128xf32>
    %296 = arith.mulf %291, %295 : vector<8x128xf32>
    %297 = vector.extract_strided_slice %9 {offsets = [40, 0], sizes = [8, 512], strides = [1, 1]} : vector<64x512xf32> to vector<8x512xf32>
    %cst_58 = arith.constant dense<0.000000e+00> : vector<8x512xf32>
    %298 = tpu.matmul %268, %2, %cst_58 {dimension_numbers = #tpu.dot_dimension_numbers<[1], [0], [0], [1], [0, 0, 1, 1], [], []>} : vector<8x128xf32>, vector<128x512xf32>, vector<8x512xf32> -> vector<8x512xf32>
    %299 = arith.addf %297, %298 : vector<8x512xf32>
    %300 = vector.extract_strided_slice %299 {offsets = [0, 0], sizes = [8, 128], strides = [1, 1]} : vector<8x512xf32> to vector<8x128xf32>
    %301 = arith.negf %300 : vector<8x128xf32>
    %302 = math.exp %301 : vector<8x128xf32>
    %cst_59 = arith.constant 1.000000e+00 : f32
    %303 = vector.broadcast %cst_59 : f32 to vector<8x128xf32>
    %304 = arith.addf %303, %302 : vector<8x128xf32>
    %305 = arith.divf %303, %304 : vector<8x128xf32>
    %306 = vector.extract_strided_slice %299 {offsets = [0, 128], sizes = [8, 128], strides = [1, 1]} : vector<8x512xf32> to vector<8x128xf32>
    %307 = arith.negf %306 : vector<8x128xf32>
    %308 = math.exp %307 : vector<8x128xf32>
    %cst_60 = arith.constant 1.000000e+00 : f32
    %309 = vector.broadcast %cst_60 : f32 to vector<8x128xf32>
    %310 = arith.addf %309, %308 : vector<8x128xf32>
    %311 = arith.divf %309, %310 : vector<8x128xf32>
    %312 = vector.extract_strided_slice %299 {offsets = [0, 256], sizes = [8, 128], strides = [1, 1]} : vector<8x512xf32> to vector<8x128xf32>
    %313 = math.tanh %312 : vector<8x128xf32>
    %314 = vector.extract_strided_slice %299 {offsets = [0, 384], sizes = [8, 128], strides = [1, 1]} : vector<8x512xf32> to vector<8x128xf32>
    %315 = arith.negf %314 : vector<8x128xf32>
    %316 = math.exp %315 : vector<8x128xf32>
    %cst_61 = arith.constant 1.000000e+00 : f32
    %317 = vector.broadcast %cst_61 : f32 to vector<8x128xf32>
    %318 = arith.addf %317, %316 : vector<8x128xf32>
    %319 = arith.divf %317, %318 : vector<8x128xf32>
    %320 = arith.mulf %311, %266 : vector<8x128xf32>
    %321 = arith.mulf %305, %313 : vector<8x128xf32>
    %322 = arith.addf %320, %321 : vector<8x128xf32>
    %323 = math.tanh %322 : vector<8x128xf32>
    %324 = arith.mulf %319, %323 : vector<8x128xf32>
    %325 = vector.extract_strided_slice %12 {offsets = [16, 0], sizes = [8, 512], strides = [1, 1]} : vector<64x512xf32> to vector<8x512xf32>
    %cst_62 = arith.constant dense<0.000000e+00> : vector<8x512xf32>
    %326 = tpu.matmul %296, %5, %cst_62 {dimension_numbers = #tpu.dot_dimension_numbers<[1], [0], [0], [1], [0, 0, 1, 1], [], []>} : vector<8x128xf32>, vector<128x512xf32>, vector<8x512xf32> -> vector<8x512xf32>
    %327 = arith.addf %325, %326 : vector<8x512xf32>
    %328 = vector.extract_strided_slice %327 {offsets = [0, 0], sizes = [8, 128], strides = [1, 1]} : vector<8x512xf32> to vector<8x128xf32>
    %329 = arith.negf %328 : vector<8x128xf32>
    %330 = math.exp %329 : vector<8x128xf32>
    %cst_63 = arith.constant 1.000000e+00 : f32
    %331 = vector.broadcast %cst_63 : f32 to vector<8x128xf32>
    %332 = arith.addf %331, %330 : vector<8x128xf32>
    %333 = arith.divf %331, %332 : vector<8x128xf32>
    %334 = vector.extract_strided_slice %327 {offsets = [0, 128], sizes = [8, 128], strides = [1, 1]} : vector<8x512xf32> to vector<8x128xf32>
    %335 = arith.negf %334 : vector<8x128xf32>
    %336 = math.exp %335 : vector<8x128xf32>
    %cst_64 = arith.constant 1.000000e+00 : f32
    %337 = vector.broadcast %cst_64 : f32 to vector<8x128xf32>
    %338 = arith.addf %337, %336 : vector<8x128xf32>
    %339 = arith.divf %337, %338 : vector<8x128xf32>
    %340 = vector.extract_strided_slice %327 {offsets = [0, 256], sizes = [8, 128], strides = [1, 1]} : vector<8x512xf32> to vector<8x128xf32>
    %341 = math.tanh %340 : vector<8x128xf32>
    %342 = vector.extract_strided_slice %327 {offsets = [0, 384], sizes = [8, 128], strides = [1, 1]} : vector<8x512xf32> to vector<8x128xf32>
    %343 = arith.negf %342 : vector<8x128xf32>
    %344 = math.exp %343 : vector<8x128xf32>
    %cst_65 = arith.constant 1.000000e+00 : f32
    %345 = vector.broadcast %cst_65 : f32 to vector<8x128xf32>
    %346 = arith.addf %345, %344 : vector<8x128xf32>
    %347 = arith.divf %345, %346 : vector<8x128xf32>
    %348 = arith.mulf %339, %294 : vector<8x128xf32>
    %349 = arith.mulf %333, %341 : vector<8x128xf32>
    %350 = arith.addf %348, %349 : vector<8x128xf32>
    %351 = math.tanh %350 : vector<8x128xf32>
    %352 = arith.mulf %347, %351 : vector<8x128xf32>
    %353 = vector.extract_strided_slice %9 {offsets = [48, 0], sizes = [8, 512], strides = [1, 1]} : vector<64x512xf32> to vector<8x512xf32>
    %cst_66 = arith.constant dense<0.000000e+00> : vector<8x512xf32>
    %354 = tpu.matmul %324, %2, %cst_66 {dimension_numbers = #tpu.dot_dimension_numbers<[1], [0], [0], [1], [0, 0, 1, 1], [], []>} : vector<8x128xf32>, vector<128x512xf32>, vector<8x512xf32> -> vector<8x512xf32>
    %355 = arith.addf %353, %354 : vector<8x512xf32>
    %356 = vector.extract_strided_slice %355 {offsets = [0, 0], sizes = [8, 128], strides = [1, 1]} : vector<8x512xf32> to vector<8x128xf32>
    %357 = arith.negf %356 : vector<8x128xf32>
    %358 = math.exp %357 : vector<8x128xf32>
    %cst_67 = arith.constant 1.000000e+00 : f32
    %359 = vector.broadcast %cst_67 : f32 to vector<8x128xf32>
    %360 = arith.addf %359, %358 : vector<8x128xf32>
    %361 = arith.divf %359, %360 : vector<8x128xf32>
    %362 = vector.extract_strided_slice %355 {offsets = [0, 128], sizes = [8, 128], strides = [1, 1]} : vector<8x512xf32> to vector<8x128xf32>
    %363 = arith.negf %362 : vector<8x128xf32>
    %364 = math.exp %363 : vector<8x128xf32>
    %cst_68 = arith.constant 1.000000e+00 : f32
    %365 = vector.broadcast %cst_68 : f32 to vector<8x128xf32>
    %366 = arith.addf %365, %364 : vector<8x128xf32>
    %367 = arith.divf %365, %366 : vector<8x128xf32>
    %368 = vector.extract_strided_slice %355 {offsets = [0, 256], sizes = [8, 128], strides = [1, 1]} : vector<8x512xf32> to vector<8x128xf32>
    %369 = math.tanh %368 : vector<8x128xf32>
    %370 = vector.extract_strided_slice %355 {offsets = [0, 384], sizes = [8, 128], strides = [1, 1]} : vector<8x512xf32> to vector<8x128xf32>
    %371 = arith.negf %370 : vector<8x128xf32>
    %372 = math.exp %371 : vector<8x128xf32>
    %cst_69 = arith.constant 1.000000e+00 : f32
    %373 = vector.broadcast %cst_69 : f32 to vector<8x128xf32>
    %374 = arith.addf %373, %372 : vector<8x128xf32>
    %375 = arith.divf %373, %374 : vector<8x128xf32>
    %376 = arith.mulf %367, %322 : vector<8x128xf32>
    %377 = arith.mulf %361, %369 : vector<8x128xf32>
    %378 = arith.addf %376, %377 : vector<8x128xf32>
    %379 = math.tanh %378 : vector<8x128xf32>
    %380 = arith.mulf %375, %379 : vector<8x128xf32>
    %381 = vector.extract_strided_slice %12 {offsets = [8, 0], sizes = [8, 512], strides = [1, 1]} : vector<64x512xf32> to vector<8x512xf32>
    %cst_70 = arith.constant dense<0.000000e+00> : vector<8x512xf32>
    %382 = tpu.matmul %352, %5, %cst_70 {dimension_numbers = #tpu.dot_dimension_numbers<[1], [0], [0], [1], [0, 0, 1, 1], [], []>} : vector<8x128xf32>, vector<128x512xf32>, vector<8x512xf32> -> vector<8x512xf32>
    %383 = arith.addf %381, %382 : vector<8x512xf32>
    %384 = vector.extract_strided_slice %383 {offsets = [0, 0], sizes = [8, 128], strides = [1, 1]} : vector<8x512xf32> to vector<8x128xf32>
    %385 = arith.negf %384 : vector<8x128xf32>
    %386 = math.exp %385 : vector<8x128xf32>
    %cst_71 = arith.constant 1.000000e+00 : f32
    %387 = vector.broadcast %cst_71 : f32 to vector<8x128xf32>
    %388 = arith.addf %387, %386 : vector<8x128xf32>
    %389 = arith.divf %387, %388 : vector<8x128xf32>
    %390 = vector.extract_strided_slice %383 {offsets = [0, 128], sizes = [8, 128], strides = [1, 1]} : vector<8x512xf32> to vector<8x128xf32>
    %391 = arith.negf %390 : vector<8x128xf32>
    %392 = math.exp %391 : vector<8x128xf32>
    %cst_72 = arith.constant 1.000000e+00 : f32
    %393 = vector.broadcast %cst_72 : f32 to vector<8x128xf32>
    %394 = arith.addf %393, %392 : vector<8x128xf32>
    %395 = arith.divf %393, %394 : vector<8x128xf32>
    %396 = vector.extract_strided_slice %383 {offsets = [0, 256], sizes = [8, 128], strides = [1, 1]} : vector<8x512xf32> to vector<8x128xf32>
    %397 = math.tanh %396 : vector<8x128xf32>
    %398 = vector.extract_strided_slice %383 {offsets = [0, 384], sizes = [8, 128], strides = [1, 1]} : vector<8x512xf32> to vector<8x128xf32>
    %399 = arith.negf %398 : vector<8x128xf32>
    %400 = math.exp %399 : vector<8x128xf32>
    %cst_73 = arith.constant 1.000000e+00 : f32
    %401 = vector.broadcast %cst_73 : f32 to vector<8x128xf32>
    %402 = arith.addf %401, %400 : vector<8x128xf32>
    %403 = arith.divf %401, %402 : vector<8x128xf32>
    %404 = arith.mulf %395, %350 : vector<8x128xf32>
    %405 = arith.mulf %389, %397 : vector<8x128xf32>
    %406 = arith.addf %404, %405 : vector<8x128xf32>
    %407 = math.tanh %406 : vector<8x128xf32>
    %408 = arith.mulf %403, %407 : vector<8x128xf32>
    %409 = vector.extract_strided_slice %9 {offsets = [56, 0], sizes = [8, 512], strides = [1, 1]} : vector<64x512xf32> to vector<8x512xf32>
    %cst_74 = arith.constant dense<0.000000e+00> : vector<8x512xf32>
    %410 = tpu.matmul %380, %2, %cst_74 {dimension_numbers = #tpu.dot_dimension_numbers<[1], [0], [0], [1], [0, 0, 1, 1], [], []>} : vector<8x128xf32>, vector<128x512xf32>, vector<8x512xf32> -> vector<8x512xf32>
    %411 = arith.addf %409, %410 : vector<8x512xf32>
    %412 = vector.extract_strided_slice %411 {offsets = [0, 0], sizes = [8, 128], strides = [1, 1]} : vector<8x512xf32> to vector<8x128xf32>
    %413 = arith.negf %412 : vector<8x128xf32>
    %414 = math.exp %413 : vector<8x128xf32>
    %cst_75 = arith.constant 1.000000e+00 : f32
    %415 = vector.broadcast %cst_75 : f32 to vector<8x128xf32>
    %416 = arith.addf %415, %414 : vector<8x128xf32>
    %417 = arith.divf %415, %416 : vector<8x128xf32>
    %418 = vector.extract_strided_slice %411 {offsets = [0, 128], sizes = [8, 128], strides = [1, 1]} : vector<8x512xf32> to vector<8x128xf32>
    %419 = arith.negf %418 : vector<8x128xf32>
    %420 = math.exp %419 : vector<8x128xf32>
    %cst_76 = arith.constant 1.000000e+00 : f32
    %421 = vector.broadcast %cst_76 : f32 to vector<8x128xf32>
    %422 = arith.addf %421, %420 : vector<8x128xf32>
    %423 = arith.divf %421, %422 : vector<8x128xf32>
    %424 = vector.extract_strided_slice %411 {offsets = [0, 256], sizes = [8, 128], strides = [1, 1]} : vector<8x512xf32> to vector<8x128xf32>
    %425 = math.tanh %424 : vector<8x128xf32>
    %426 = vector.extract_strided_slice %411 {offsets = [0, 384], sizes = [8, 128], strides = [1, 1]} : vector<8x512xf32> to vector<8x128xf32>
    %427 = arith.negf %426 : vector<8x128xf32>
    %428 = math.exp %427 : vector<8x128xf32>
    %cst_77 = arith.constant 1.000000e+00 : f32
    %429 = vector.broadcast %cst_77 : f32 to vector<8x128xf32>
    %430 = arith.addf %429, %428 : vector<8x128xf32>
    %431 = arith.divf %429, %430 : vector<8x128xf32>
    %432 = arith.mulf %423, %378 : vector<8x128xf32>
    %433 = arith.mulf %417, %425 : vector<8x128xf32>
    %434 = arith.addf %432, %433 : vector<8x128xf32>
    %435 = math.tanh %434 : vector<8x128xf32>
    %436 = arith.mulf %431, %435 : vector<8x128xf32>
    %437 = vector.extract_strided_slice %12 {offsets = [0, 0], sizes = [8, 512], strides = [1, 1]} : vector<64x512xf32> to vector<8x512xf32>
    %cst_78 = arith.constant dense<0.000000e+00> : vector<8x512xf32>
    %438 = tpu.matmul %408, %5, %cst_78 {dimension_numbers = #tpu.dot_dimension_numbers<[1], [0], [0], [1], [0, 0, 1, 1], [], []>} : vector<8x128xf32>, vector<128x512xf32>, vector<8x512xf32> -> vector<8x512xf32>
    %439 = arith.addf %437, %438 : vector<8x512xf32>
    %440 = vector.extract_strided_slice %439 {offsets = [0, 0], sizes = [8, 128], strides = [1, 1]} : vector<8x512xf32> to vector<8x128xf32>
    %441 = arith.negf %440 : vector<8x128xf32>
    %442 = math.exp %441 : vector<8x128xf32>
    %cst_79 = arith.constant 1.000000e+00 : f32
    %443 = vector.broadcast %cst_79 : f32 to vector<8x128xf32>
    %444 = arith.addf %443, %442 : vector<8x128xf32>
    %445 = arith.divf %443, %444 : vector<8x128xf32>
    %446 = vector.extract_strided_slice %439 {offsets = [0, 128], sizes = [8, 128], strides = [1, 1]} : vector<8x512xf32> to vector<8x128xf32>
    %447 = arith.negf %446 : vector<8x128xf32>
    %448 = math.exp %447 : vector<8x128xf32>
    %cst_80 = arith.constant 1.000000e+00 : f32
    %449 = vector.broadcast %cst_80 : f32 to vector<8x128xf32>
    %450 = arith.addf %449, %448 : vector<8x128xf32>
    %451 = arith.divf %449, %450 : vector<8x128xf32>
    %452 = vector.extract_strided_slice %439 {offsets = [0, 256], sizes = [8, 128], strides = [1, 1]} : vector<8x512xf32> to vector<8x128xf32>
    %453 = math.tanh %452 : vector<8x128xf32>
    %454 = vector.extract_strided_slice %439 {offsets = [0, 384], sizes = [8, 128], strides = [1, 1]} : vector<8x512xf32> to vector<8x128xf32>
    %455 = arith.negf %454 : vector<8x128xf32>
    %456 = math.exp %455 : vector<8x128xf32>
    %cst_81 = arith.constant 1.000000e+00 : f32
    %457 = vector.broadcast %cst_81 : f32 to vector<8x128xf32>
    %458 = arith.addf %457, %456 : vector<8x128xf32>
    %459 = arith.divf %457, %458 : vector<8x128xf32>
    %460 = arith.mulf %451, %406 : vector<8x128xf32>
    %461 = arith.mulf %445, %453 : vector<8x128xf32>
    %462 = arith.addf %460, %461 : vector<8x128xf32>
    %463 = math.tanh %462 : vector<8x128xf32>
    %464 = arith.mulf %459, %463 : vector<8x128xf32>
    %465 = tpu.concatenate %44, %464 in 1 : vector<8x128xf32>, vector<8x128xf32> -> vector<8x256xf32>
    %466 = tpu.concatenate %100, %408 in 1 : vector<8x128xf32>, vector<8x128xf32> -> vector<8x256xf32>
    %467 = tpu.concatenate %156, %352 in 1 : vector<8x128xf32>, vector<8x128xf32> -> vector<8x256xf32>
    %468 = tpu.concatenate %212, %296 in 1 : vector<8x128xf32>, vector<8x128xf32> -> vector<8x256xf32>
    %469 = tpu.concatenate %268, %240 in 1 : vector<8x128xf32>, vector<8x128xf32> -> vector<8x256xf32>
    %470 = tpu.concatenate %324, %184 in 1 : vector<8x128xf32>, vector<8x128xf32> -> vector<8x256xf32>
    %471 = tpu.concatenate %380, %128 in 1 : vector<8x128xf32>, vector<8x128xf32> -> vector<8x256xf32>
    %472 = tpu.concatenate %436, %72 in 1 : vector<8x128xf32>, vector<8x128xf32> -> vector<8x256xf32>
    %473 = tpu.concatenate %465, %466, %467, %468, %469, %470, %471, %472 in 0 : vector<8x256xf32>, vector<8x256xf32>, vector<8x256xf32>, vector<8x256xf32>, vector<8x256xf32>, vector<8x256xf32>, vector<8x256xf32>, vector<8x256xf32> -> vector<64x256xf32>
    %c0_82 = arith.constant 0 : index
    %c0_83 = arith.constant 0 : index
    %474 = vector.load %arg7[%c0_82, %c0_83] : memref<256x512xf32, #tpu.memory_space<vmem>>, vector<256x512xf32>
    %c0_84 = arith.constant 0 : index
    %c0_85 = arith.constant 0 : index
    %475 = vector.load %arg8[%c0_84, %c0_85] : memref<128x512xf32, #tpu.memory_space<vmem>>, vector<128x512xf32>
    %c0_86 = arith.constant 0 : index
    %c0_87 = arith.constant 0 : index
    %476 = vector.load %arg9[%c0_86, %c0_87] : memref<1x512xf32, #tpu.memory_space<vmem>>, vector<1x512xf32>
    %c0_88 = arith.constant 0 : index
    %c0_89 = arith.constant 0 : index
    %477 = vector.load %arg10[%c0_88, %c0_89] : memref<256x512xf32, #tpu.memory_space<vmem>>, vector<256x512xf32>
    %c0_90 = arith.constant 0 : index
    %c0_91 = arith.constant 0 : index
    %478 = vector.load %arg11[%c0_90, %c0_91] : memref<128x512xf32, #tpu.memory_space<vmem>>, vector<128x512xf32>
    %c0_92 = arith.constant 0 : index
    %c0_93 = arith.constant 0 : index
    %479 = vector.load %arg12[%c0_92, %c0_93] : memref<1x512xf32, #tpu.memory_space<vmem>>, vector<1x512xf32>
    %cst_94 = arith.constant dense<0.000000e+00> : vector<64x512xf32>
    %480 = tpu.matmul %473, %474, %cst_94 {dimension_numbers = #tpu.dot_dimension_numbers<[1], [0], [0], [1], [0, 0, 1, 1], [], []>} : vector<64x256xf32>, vector<256x512xf32>, vector<64x512xf32> -> vector<64x512xf32>
    %481 = vector.broadcast %476 : vector<1x512xf32> to vector<64x512xf32>
    %482 = arith.addf %480, %481 : vector<64x512xf32>
    %cst_95 = arith.constant dense<0.000000e+00> : vector<64x512xf32>
    %483 = tpu.matmul %473, %477, %cst_95 {dimension_numbers = #tpu.dot_dimension_numbers<[1], [0], [0], [1], [0, 0, 1, 1], [], []>} : vector<64x256xf32>, vector<256x512xf32>, vector<64x512xf32> -> vector<64x512xf32>
    %484 = vector.broadcast %479 : vector<1x512xf32> to vector<64x512xf32>
    %485 = arith.addf %483, %484 : vector<64x512xf32>
    %cst_96 = arith.constant 0.000000e+00 : f32
    %486 = vector.broadcast %cst_96 : f32 to vector<8x128xf32>
    %cst_97 = arith.constant 0.000000e+00 : f32
    %487 = vector.broadcast %cst_97 : f32 to vector<8x128xf32>
    %cst_98 = arith.constant 0.000000e+00 : f32
    %488 = vector.broadcast %cst_98 : f32 to vector<8x128xf32>
    %cst_99 = arith.constant 0.000000e+00 : f32
    %489 = vector.broadcast %cst_99 : f32 to vector<8x128xf32>
    %490 = vector.extract_strided_slice %482 {offsets = [0, 0], sizes = [8, 512], strides = [1, 1]} : vector<64x512xf32> to vector<8x512xf32>
    %cst_100 = arith.constant dense<0.000000e+00> : vector<8x512xf32>
    %491 = tpu.matmul %486, %475, %cst_100 {dimension_numbers = #tpu.dot_dimension_numbers<[1], [0], [0], [1], [0, 0, 1, 1], [], []>} : vector<8x128xf32>, vector<128x512xf32>, vector<8x512xf32> -> vector<8x512xf32>
    %492 = arith.addf %490, %491 : vector<8x512xf32>
    %493 = vector.extract_strided_slice %492 {offsets = [0, 0], sizes = [8, 128], strides = [1, 1]} : vector<8x512xf32> to vector<8x128xf32>
    %494 = arith.negf %493 : vector<8x128xf32>
    %495 = math.exp %494 : vector<8x128xf32>
    %cst_101 = arith.constant 1.000000e+00 : f32
    %496 = vector.broadcast %cst_101 : f32 to vector<8x128xf32>
    %497 = arith.addf %496, %495 : vector<8x128xf32>
    %498 = arith.divf %496, %497 : vector<8x128xf32>
    %499 = vector.extract_strided_slice %492 {offsets = [0, 128], sizes = [8, 128], strides = [1, 1]} : vector<8x512xf32> to vector<8x128xf32>
    %500 = arith.negf %499 : vector<8x128xf32>
    %501 = math.exp %500 : vector<8x128xf32>
    %cst_102 = arith.constant 1.000000e+00 : f32
    %502 = vector.broadcast %cst_102 : f32 to vector<8x128xf32>
    %503 = arith.addf %502, %501 : vector<8x128xf32>
    %504 = arith.divf %502, %503 : vector<8x128xf32>
    %505 = vector.extract_strided_slice %492 {offsets = [0, 256], sizes = [8, 128], strides = [1, 1]} : vector<8x512xf32> to vector<8x128xf32>
    %506 = math.tanh %505 : vector<8x128xf32>
    %507 = vector.extract_strided_slice %492 {offsets = [0, 384], sizes = [8, 128], strides = [1, 1]} : vector<8x512xf32> to vector<8x128xf32>
    %508 = arith.negf %507 : vector<8x128xf32>
    %509 = math.exp %508 : vector<8x128xf32>
    %cst_103 = arith.constant 1.000000e+00 : f32
    %510 = vector.broadcast %cst_103 : f32 to vector<8x128xf32>
    %511 = arith.addf %510, %509 : vector<8x128xf32>
    %512 = arith.divf %510, %511 : vector<8x128xf32>
    %513 = arith.mulf %504, %487 : vector<8x128xf32>
    %514 = arith.mulf %498, %506 : vector<8x128xf32>
    %515 = arith.addf %513, %514 : vector<8x128xf32>
    %516 = math.tanh %515 : vector<8x128xf32>
    %517 = arith.mulf %512, %516 : vector<8x128xf32>
    %518 = vector.extract_strided_slice %485 {offsets = [56, 0], sizes = [8, 512], strides = [1, 1]} : vector<64x512xf32> to vector<8x512xf32>
    %cst_104 = arith.constant dense<0.000000e+00> : vector<8x512xf32>
    %519 = tpu.matmul %488, %478, %cst_104 {dimension_numbers = #tpu.dot_dimension_numbers<[1], [0], [0], [1], [0, 0, 1, 1], [], []>} : vector<8x128xf32>, vector<128x512xf32>, vector<8x512xf32> -> vector<8x512xf32>
    %520 = arith.addf %518, %519 : vector<8x512xf32>
    %521 = vector.extract_strided_slice %520 {offsets = [0, 0], sizes = [8, 128], strides = [1, 1]} : vector<8x512xf32> to vector<8x128xf32>
    %522 = arith.negf %521 : vector<8x128xf32>
    %523 = math.exp %522 : vector<8x128xf32>
    %cst_105 = arith.constant 1.000000e+00 : f32
    %524 = vector.broadcast %cst_105 : f32 to vector<8x128xf32>
    %525 = arith.addf %524, %523 : vector<8x128xf32>
    %526 = arith.divf %524, %525 : vector<8x128xf32>
    %527 = vector.extract_strided_slice %520 {offsets = [0, 128], sizes = [8, 128], strides = [1, 1]} : vector<8x512xf32> to vector<8x128xf32>
    %528 = arith.negf %527 : vector<8x128xf32>
    %529 = math.exp %528 : vector<8x128xf32>
    %cst_106 = arith.constant 1.000000e+00 : f32
    %530 = vector.broadcast %cst_106 : f32 to vector<8x128xf32>
    %531 = arith.addf %530, %529 : vector<8x128xf32>
    %532 = arith.divf %530, %531 : vector<8x128xf32>
    %533 = vector.extract_strided_slice %520 {offsets = [0, 256], sizes = [8, 128], strides = [1, 1]} : vector<8x512xf32> to vector<8x128xf32>
    %534 = math.tanh %533 : vector<8x128xf32>
    %535 = vector.extract_strided_slice %520 {offsets = [0, 384], sizes = [8, 128], strides = [1, 1]} : vector<8x512xf32> to vector<8x128xf32>
    %536 = arith.negf %535 : vector<8x128xf32>
    %537 = math.exp %536 : vector<8x128xf32>
    %cst_107 = arith.constant 1.000000e+00 : f32
    %538 = vector.broadcast %cst_107 : f32 to vector<8x128xf32>
    %539 = arith.addf %538, %537 : vector<8x128xf32>
    %540 = arith.divf %538, %539 : vector<8x128xf32>
    %541 = arith.mulf %532, %489 : vector<8x128xf32>
    %542 = arith.mulf %526, %534 : vector<8x128xf32>
    %543 = arith.addf %541, %542 : vector<8x128xf32>
    %544 = math.tanh %543 : vector<8x128xf32>
    %545 = arith.mulf %540, %544 : vector<8x128xf32>
    %546 = vector.extract_strided_slice %482 {offsets = [8, 0], sizes = [8, 512], strides = [1, 1]} : vector<64x512xf32> to vector<8x512xf32>
    %cst_108 = arith.constant dense<0.000000e+00> : vector<8x512xf32>
    %547 = tpu.matmul %517, %475, %cst_108 {dimension_numbers = #tpu.dot_dimension_numbers<[1], [0], [0], [1], [0, 0, 1, 1], [], []>} : vector<8x128xf32>, vector<128x512xf32>, vector<8x512xf32> -> vector<8x512xf32>
    %548 = arith.addf %546, %547 : vector<8x512xf32>
    %549 = vector.extract_strided_slice %548 {offsets = [0, 0], sizes = [8, 128], strides = [1, 1]} : vector<8x512xf32> to vector<8x128xf32>
    %550 = arith.negf %549 : vector<8x128xf32>
    %551 = math.exp %550 : vector<8x128xf32>
    %cst_109 = arith.constant 1.000000e+00 : f32
    %552 = vector.broadcast %cst_109 : f32 to vector<8x128xf32>
    %553 = arith.addf %552, %551 : vector<8x128xf32>
    %554 = arith.divf %552, %553 : vector<8x128xf32>
    %555 = vector.extract_strided_slice %548 {offsets = [0, 128], sizes = [8, 128], strides = [1, 1]} : vector<8x512xf32> to vector<8x128xf32>
    %556 = arith.negf %555 : vector<8x128xf32>
    %557 = math.exp %556 : vector<8x128xf32>
    %cst_110 = arith.constant 1.000000e+00 : f32
    %558 = vector.broadcast %cst_110 : f32 to vector<8x128xf32>
    %559 = arith.addf %558, %557 : vector<8x128xf32>
    %560 = arith.divf %558, %559 : vector<8x128xf32>
    %561 = vector.extract_strided_slice %548 {offsets = [0, 256], sizes = [8, 128], strides = [1, 1]} : vector<8x512xf32> to vector<8x128xf32>
    %562 = math.tanh %561 : vector<8x128xf32>
    %563 = vector.extract_strided_slice %548 {offsets = [0, 384], sizes = [8, 128], strides = [1, 1]} : vector<8x512xf32> to vector<8x128xf32>
    %564 = arith.negf %563 : vector<8x128xf32>
    %565 = math.exp %564 : vector<8x128xf32>
    %cst_111 = arith.constant 1.000000e+00 : f32
    %566 = vector.broadcast %cst_111 : f32 to vector<8x128xf32>
    %567 = arith.addf %566, %565 : vector<8x128xf32>
    %568 = arith.divf %566, %567 : vector<8x128xf32>
    %569 = arith.mulf %560, %515 : vector<8x128xf32>
    %570 = arith.mulf %554, %562 : vector<8x128xf32>
    %571 = arith.addf %569, %570 : vector<8x128xf32>
    %572 = math.tanh %571 : vector<8x128xf32>
    %573 = arith.mulf %568, %572 : vector<8x128xf32>
    %574 = vector.extract_strided_slice %485 {offsets = [48, 0], sizes = [8, 512], strides = [1, 1]} : vector<64x512xf32> to vector<8x512xf32>
    %cst_112 = arith.constant dense<0.000000e+00> : vector<8x512xf32>
    %575 = tpu.matmul %545, %478, %cst_112 {dimension_numbers = #tpu.dot_dimension_numbers<[1], [0], [0], [1], [0, 0, 1, 1], [], []>} : vector<8x128xf32>, vector<128x512xf32>, vector<8x512xf32> -> vector<8x512xf32>
    %576 = arith.addf %574, %575 : vector<8x512xf32>
    %577 = vector.extract_strided_slice %576 {offsets = [0, 0], sizes = [8, 128], strides = [1, 1]} : vector<8x512xf32> to vector<8x128xf32>
    %578 = arith.negf %577 : vector<8x128xf32>
    %579 = math.exp %578 : vector<8x128xf32>
    %cst_113 = arith.constant 1.000000e+00 : f32
    %580 = vector.broadcast %cst_113 : f32 to vector<8x128xf32>
    %581 = arith.addf %580, %579 : vector<8x128xf32>
    %582 = arith.divf %580, %581 : vector<8x128xf32>
    %583 = vector.extract_strided_slice %576 {offsets = [0, 128], sizes = [8, 128], strides = [1, 1]} : vector<8x512xf32> to vector<8x128xf32>
    %584 = arith.negf %583 : vector<8x128xf32>
    %585 = math.exp %584 : vector<8x128xf32>
    %cst_114 = arith.constant 1.000000e+00 : f32
    %586 = vector.broadcast %cst_114 : f32 to vector<8x128xf32>
    %587 = arith.addf %586, %585 : vector<8x128xf32>
    %588 = arith.divf %586, %587 : vector<8x128xf32>
    %589 = vector.extract_strided_slice %576 {offsets = [0, 256], sizes = [8, 128], strides = [1, 1]} : vector<8x512xf32> to vector<8x128xf32>
    %590 = math.tanh %589 : vector<8x128xf32>
    %591 = vector.extract_strided_slice %576 {offsets = [0, 384], sizes = [8, 128], strides = [1, 1]} : vector<8x512xf32> to vector<8x128xf32>
    %592 = arith.negf %591 : vector<8x128xf32>
    %593 = math.exp %592 : vector<8x128xf32>
    %cst_115 = arith.constant 1.000000e+00 : f32
    %594 = vector.broadcast %cst_115 : f32 to vector<8x128xf32>
    %595 = arith.addf %594, %593 : vector<8x128xf32>
    %596 = arith.divf %594, %595 : vector<8x128xf32>
    %597 = arith.mulf %588, %543 : vector<8x128xf32>
    %598 = arith.mulf %582, %590 : vector<8x128xf32>
    %599 = arith.addf %597, %598 : vector<8x128xf32>
    %600 = math.tanh %599 : vector<8x128xf32>
    %601 = arith.mulf %596, %600 : vector<8x128xf32>
    %602 = vector.extract_strided_slice %482 {offsets = [16, 0], sizes = [8, 512], strides = [1, 1]} : vector<64x512xf32> to vector<8x512xf32>
    %cst_116 = arith.constant dense<0.000000e+00> : vector<8x512xf32>
    %603 = tpu.matmul %573, %475, %cst_116 {dimension_numbers = #tpu.dot_dimension_numbers<[1], [0], [0], [1], [0, 0, 1, 1], [], []>} : vector<8x128xf32>, vector<128x512xf32>, vector<8x512xf32> -> vector<8x512xf32>
    %604 = arith.addf %602, %603 : vector<8x512xf32>
    %605 = vector.extract_strided_slice %604 {offsets = [0, 0], sizes = [8, 128], strides = [1, 1]} : vector<8x512xf32> to vector<8x128xf32>
    %606 = arith.negf %605 : vector<8x128xf32>
    %607 = math.exp %606 : vector<8x128xf32>
    %cst_117 = arith.constant 1.000000e+00 : f32
    %608 = vector.broadcast %cst_117 : f32 to vector<8x128xf32>
    %609 = arith.addf %608, %607 : vector<8x128xf32>
    %610 = arith.divf %608, %609 : vector<8x128xf32>
    %611 = vector.extract_strided_slice %604 {offsets = [0, 128], sizes = [8, 128], strides = [1, 1]} : vector<8x512xf32> to vector<8x128xf32>
    %612 = arith.negf %611 : vector<8x128xf32>
    %613 = math.exp %612 : vector<8x128xf32>
    %cst_118 = arith.constant 1.000000e+00 : f32
    %614 = vector.broadcast %cst_118 : f32 to vector<8x128xf32>
    %615 = arith.addf %614, %613 : vector<8x128xf32>
    %616 = arith.divf %614, %615 : vector<8x128xf32>
    %617 = vector.extract_strided_slice %604 {offsets = [0, 256], sizes = [8, 128], strides = [1, 1]} : vector<8x512xf32> to vector<8x128xf32>
    %618 = math.tanh %617 : vector<8x128xf32>
    %619 = vector.extract_strided_slice %604 {offsets = [0, 384], sizes = [8, 128], strides = [1, 1]} : vector<8x512xf32> to vector<8x128xf32>
    %620 = arith.negf %619 : vector<8x128xf32>
    %621 = math.exp %620 : vector<8x128xf32>
    %cst_119 = arith.constant 1.000000e+00 : f32
    %622 = vector.broadcast %cst_119 : f32 to vector<8x128xf32>
    %623 = arith.addf %622, %621 : vector<8x128xf32>
    %624 = arith.divf %622, %623 : vector<8x128xf32>
    %625 = arith.mulf %616, %571 : vector<8x128xf32>
    %626 = arith.mulf %610, %618 : vector<8x128xf32>
    %627 = arith.addf %625, %626 : vector<8x128xf32>
    %628 = math.tanh %627 : vector<8x128xf32>
    %629 = arith.mulf %624, %628 : vector<8x128xf32>
    %630 = vector.extract_strided_slice %485 {offsets = [40, 0], sizes = [8, 512], strides = [1, 1]} : vector<64x512xf32> to vector<8x512xf32>
    %cst_120 = arith.constant dense<0.000000e+00> : vector<8x512xf32>
    %631 = tpu.matmul %601, %478, %cst_120 {dimension_numbers = #tpu.dot_dimension_numbers<[1], [0], [0], [1], [0, 0, 1, 1], [], []>} : vector<8x128xf32>, vector<128x512xf32>, vector<8x512xf32> -> vector<8x512xf32>
    %632 = arith.addf %630, %631 : vector<8x512xf32>
    %633 = vector.extract_strided_slice %632 {offsets = [0, 0], sizes = [8, 128], strides = [1, 1]} : vector<8x512xf32> to vector<8x128xf32>
    %634 = arith.negf %633 : vector<8x128xf32>
    %635 = math.exp %634 : vector<8x128xf32>
    %cst_121 = arith.constant 1.000000e+00 : f32
    %636 = vector.broadcast %cst_121 : f32 to vector<8x128xf32>
    %637 = arith.addf %636, %635 : vector<8x128xf32>
    %638 = arith.divf %636, %637 : vector<8x128xf32>
    %639 = vector.extract_strided_slice %632 {offsets = [0, 128], sizes = [8, 128], strides = [1, 1]} : vector<8x512xf32> to vector<8x128xf32>
    %640 = arith.negf %639 : vector<8x128xf32>
    %641 = math.exp %640 : vector<8x128xf32>
    %cst_122 = arith.constant 1.000000e+00 : f32
    %642 = vector.broadcast %cst_122 : f32 to vector<8x128xf32>
    %643 = arith.addf %642, %641 : vector<8x128xf32>
    %644 = arith.divf %642, %643 : vector<8x128xf32>
    %645 = vector.extract_strided_slice %632 {offsets = [0, 256], sizes = [8, 128], strides = [1, 1]} : vector<8x512xf32> to vector<8x128xf32>
    %646 = math.tanh %645 : vector<8x128xf32>
    %647 = vector.extract_strided_slice %632 {offsets = [0, 384], sizes = [8, 128], strides = [1, 1]} : vector<8x512xf32> to vector<8x128xf32>
    %648 = arith.negf %647 : vector<8x128xf32>
    %649 = math.exp %648 : vector<8x128xf32>
    %cst_123 = arith.constant 1.000000e+00 : f32
    %650 = vector.broadcast %cst_123 : f32 to vector<8x128xf32>
    %651 = arith.addf %650, %649 : vector<8x128xf32>
    %652 = arith.divf %650, %651 : vector<8x128xf32>
    %653 = arith.mulf %644, %599 : vector<8x128xf32>
    %654 = arith.mulf %638, %646 : vector<8x128xf32>
    %655 = arith.addf %653, %654 : vector<8x128xf32>
    %656 = math.tanh %655 : vector<8x128xf32>
    %657 = arith.mulf %652, %656 : vector<8x128xf32>
    %658 = vector.extract_strided_slice %482 {offsets = [24, 0], sizes = [8, 512], strides = [1, 1]} : vector<64x512xf32> to vector<8x512xf32>
    %cst_124 = arith.constant dense<0.000000e+00> : vector<8x512xf32>
    %659 = tpu.matmul %629, %475, %cst_124 {dimension_numbers = #tpu.dot_dimension_numbers<[1], [0], [0], [1], [0, 0, 1, 1], [], []>} : vector<8x128xf32>, vector<128x512xf32>, vector<8x512xf32> -> vector<8x512xf32>
    %660 = arith.addf %658, %659 : vector<8x512xf32>
    %661 = vector.extract_strided_slice %660 {offsets = [0, 0], sizes = [8, 128], strides = [1, 1]} : vector<8x512xf32> to vector<8x128xf32>
    %662 = arith.negf %661 : vector<8x128xf32>
    %663 = math.exp %662 : vector<8x128xf32>
    %cst_125 = arith.constant 1.000000e+00 : f32
    %664 = vector.broadcast %cst_125 : f32 to vector<8x128xf32>
    %665 = arith.addf %664, %663 : vector<8x128xf32>
    %666 = arith.divf %664, %665 : vector<8x128xf32>
    %667 = vector.extract_strided_slice %660 {offsets = [0, 128], sizes = [8, 128], strides = [1, 1]} : vector<8x512xf32> to vector<8x128xf32>
    %668 = arith.negf %667 : vector<8x128xf32>
    %669 = math.exp %668 : vector<8x128xf32>
    %cst_126 = arith.constant 1.000000e+00 : f32
    %670 = vector.broadcast %cst_126 : f32 to vector<8x128xf32>
    %671 = arith.addf %670, %669 : vector<8x128xf32>
    %672 = arith.divf %670, %671 : vector<8x128xf32>
    %673 = vector.extract_strided_slice %660 {offsets = [0, 256], sizes = [8, 128], strides = [1, 1]} : vector<8x512xf32> to vector<8x128xf32>
    %674 = math.tanh %673 : vector<8x128xf32>
    %675 = vector.extract_strided_slice %660 {offsets = [0, 384], sizes = [8, 128], strides = [1, 1]} : vector<8x512xf32> to vector<8x128xf32>
    %676 = arith.negf %675 : vector<8x128xf32>
    %677 = math.exp %676 : vector<8x128xf32>
    %cst_127 = arith.constant 1.000000e+00 : f32
    %678 = vector.broadcast %cst_127 : f32 to vector<8x128xf32>
    %679 = arith.addf %678, %677 : vector<8x128xf32>
    %680 = arith.divf %678, %679 : vector<8x128xf32>
    %681 = arith.mulf %672, %627 : vector<8x128xf32>
    %682 = arith.mulf %666, %674 : vector<8x128xf32>
    %683 = arith.addf %681, %682 : vector<8x128xf32>
    %684 = math.tanh %683 : vector<8x128xf32>
    %685 = arith.mulf %680, %684 : vector<8x128xf32>
    %686 = vector.extract_strided_slice %485 {offsets = [32, 0], sizes = [8, 512], strides = [1, 1]} : vector<64x512xf32> to vector<8x512xf32>
    %cst_128 = arith.constant dense<0.000000e+00> : vector<8x512xf32>
    %687 = tpu.matmul %657, %478, %cst_128 {dimension_numbers = #tpu.dot_dimension_numbers<[1], [0], [0], [1], [0, 0, 1, 1], [], []>} : vector<8x128xf32>, vector<128x512xf32>, vector<8x512xf32> -> vector<8x512xf32>
    %688 = arith.addf %686, %687 : vector<8x512xf32>
    %689 = vector.extract_strided_slice %688 {offsets = [0, 0], sizes = [8, 128], strides = [1, 1]} : vector<8x512xf32> to vector<8x128xf32>
    %690 = arith.negf %689 : vector<8x128xf32>
    %691 = math.exp %690 : vector<8x128xf32>
    %cst_129 = arith.constant 1.000000e+00 : f32
    %692 = vector.broadcast %cst_129 : f32 to vector<8x128xf32>
    %693 = arith.addf %692, %691 : vector<8x128xf32>
    %694 = arith.divf %692, %693 : vector<8x128xf32>
    %695 = vector.extract_strided_slice %688 {offsets = [0, 128], sizes = [8, 128], strides = [1, 1]} : vector<8x512xf32> to vector<8x128xf32>
    %696 = arith.negf %695 : vector<8x128xf32>
    %697 = math.exp %696 : vector<8x128xf32>
    %cst_130 = arith.constant 1.000000e+00 : f32
    %698 = vector.broadcast %cst_130 : f32 to vector<8x128xf32>
    %699 = arith.addf %698, %697 : vector<8x128xf32>
    %700 = arith.divf %698, %699 : vector<8x128xf32>
    %701 = vector.extract_strided_slice %688 {offsets = [0, 256], sizes = [8, 128], strides = [1, 1]} : vector<8x512xf32> to vector<8x128xf32>
    %702 = math.tanh %701 : vector<8x128xf32>
    %703 = vector.extract_strided_slice %688 {offsets = [0, 384], sizes = [8, 128], strides = [1, 1]} : vector<8x512xf32> to vector<8x128xf32>
    %704 = arith.negf %703 : vector<8x128xf32>
    %705 = math.exp %704 : vector<8x128xf32>
    %cst_131 = arith.constant 1.000000e+00 : f32
    %706 = vector.broadcast %cst_131 : f32 to vector<8x128xf32>
    %707 = arith.addf %706, %705 : vector<8x128xf32>
    %708 = arith.divf %706, %707 : vector<8x128xf32>
    %709 = arith.mulf %700, %655 : vector<8x128xf32>
    %710 = arith.mulf %694, %702 : vector<8x128xf32>
    %711 = arith.addf %709, %710 : vector<8x128xf32>
    %712 = math.tanh %711 : vector<8x128xf32>
    %713 = arith.mulf %708, %712 : vector<8x128xf32>
    %714 = vector.extract_strided_slice %482 {offsets = [32, 0], sizes = [8, 512], strides = [1, 1]} : vector<64x512xf32> to vector<8x512xf32>
    %cst_132 = arith.constant dense<0.000000e+00> : vector<8x512xf32>
    %715 = tpu.matmul %685, %475, %cst_132 {dimension_numbers = #tpu.dot_dimension_numbers<[1], [0], [0], [1], [0, 0, 1, 1], [], []>} : vector<8x128xf32>, vector<128x512xf32>, vector<8x512xf32> -> vector<8x512xf32>
    %716 = arith.addf %714, %715 : vector<8x512xf32>
    %717 = vector.extract_strided_slice %716 {offsets = [0, 0], sizes = [8, 128], strides = [1, 1]} : vector<8x512xf32> to vector<8x128xf32>
    %718 = arith.negf %717 : vector<8x128xf32>
    %719 = math.exp %718 : vector<8x128xf32>
    %cst_133 = arith.constant 1.000000e+00 : f32
    %720 = vector.broadcast %cst_133 : f32 to vector<8x128xf32>
    %721 = arith.addf %720, %719 : vector<8x128xf32>
    %722 = arith.divf %720, %721 : vector<8x128xf32>
    %723 = vector.extract_strided_slice %716 {offsets = [0, 128], sizes = [8, 128], strides = [1, 1]} : vector<8x512xf32> to vector<8x128xf32>
    %724 = arith.negf %723 : vector<8x128xf32>
    %725 = math.exp %724 : vector<8x128xf32>
    %cst_134 = arith.constant 1.000000e+00 : f32
    %726 = vector.broadcast %cst_134 : f32 to vector<8x128xf32>
    %727 = arith.addf %726, %725 : vector<8x128xf32>
    %728 = arith.divf %726, %727 : vector<8x128xf32>
    %729 = vector.extract_strided_slice %716 {offsets = [0, 256], sizes = [8, 128], strides = [1, 1]} : vector<8x512xf32> to vector<8x128xf32>
    %730 = math.tanh %729 : vector<8x128xf32>
    %731 = vector.extract_strided_slice %716 {offsets = [0, 384], sizes = [8, 128], strides = [1, 1]} : vector<8x512xf32> to vector<8x128xf32>
    %732 = arith.negf %731 : vector<8x128xf32>
    %733 = math.exp %732 : vector<8x128xf32>
    %cst_135 = arith.constant 1.000000e+00 : f32
    %734 = vector.broadcast %cst_135 : f32 to vector<8x128xf32>
    %735 = arith.addf %734, %733 : vector<8x128xf32>
    %736 = arith.divf %734, %735 : vector<8x128xf32>
    %737 = arith.mulf %728, %683 : vector<8x128xf32>
    %738 = arith.mulf %722, %730 : vector<8x128xf32>
    %739 = arith.addf %737, %738 : vector<8x128xf32>
    %740 = math.tanh %739 : vector<8x128xf32>
    %741 = arith.mulf %736, %740 : vector<8x128xf32>
    %742 = vector.extract_strided_slice %485 {offsets = [24, 0], sizes = [8, 512], strides = [1, 1]} : vector<64x512xf32> to vector<8x512xf32>
    %cst_136 = arith.constant dense<0.000000e+00> : vector<8x512xf32>
    %743 = tpu.matmul %713, %478, %cst_136 {dimension_numbers = #tpu.dot_dimension_numbers<[1], [0], [0], [1], [0, 0, 1, 1], [], []>} : vector<8x128xf32>, vector<128x512xf32>, vector<8x512xf32> -> vector<8x512xf32>
    %744 = arith.addf %742, %743 : vector<8x512xf32>
    %745 = vector.extract_strided_slice %744 {offsets = [0, 0], sizes = [8, 128], strides = [1, 1]} : vector<8x512xf32> to vector<8x128xf32>
    %746 = arith.negf %745 : vector<8x128xf32>
    %747 = math.exp %746 : vector<8x128xf32>
    %cst_137 = arith.constant 1.000000e+00 : f32
    %748 = vector.broadcast %cst_137 : f32 to vector<8x128xf32>
    %749 = arith.addf %748, %747 : vector<8x128xf32>
    %750 = arith.divf %748, %749 : vector<8x128xf32>
    %751 = vector.extract_strided_slice %744 {offsets = [0, 128], sizes = [8, 128], strides = [1, 1]} : vector<8x512xf32> to vector<8x128xf32>
    %752 = arith.negf %751 : vector<8x128xf32>
    %753 = math.exp %752 : vector<8x128xf32>
    %cst_138 = arith.constant 1.000000e+00 : f32
    %754 = vector.broadcast %cst_138 : f32 to vector<8x128xf32>
    %755 = arith.addf %754, %753 : vector<8x128xf32>
    %756 = arith.divf %754, %755 : vector<8x128xf32>
    %757 = vector.extract_strided_slice %744 {offsets = [0, 256], sizes = [8, 128], strides = [1, 1]} : vector<8x512xf32> to vector<8x128xf32>
    %758 = math.tanh %757 : vector<8x128xf32>
    %759 = vector.extract_strided_slice %744 {offsets = [0, 384], sizes = [8, 128], strides = [1, 1]} : vector<8x512xf32> to vector<8x128xf32>
    %760 = arith.negf %759 : vector<8x128xf32>
    %761 = math.exp %760 : vector<8x128xf32>
    %cst_139 = arith.constant 1.000000e+00 : f32
    %762 = vector.broadcast %cst_139 : f32 to vector<8x128xf32>
    %763 = arith.addf %762, %761 : vector<8x128xf32>
    %764 = arith.divf %762, %763 : vector<8x128xf32>
    %765 = arith.mulf %756, %711 : vector<8x128xf32>
    %766 = arith.mulf %750, %758 : vector<8x128xf32>
    %767 = arith.addf %765, %766 : vector<8x128xf32>
    %768 = math.tanh %767 : vector<8x128xf32>
    %769 = arith.mulf %764, %768 : vector<8x128xf32>
    %770 = vector.extract_strided_slice %482 {offsets = [40, 0], sizes = [8, 512], strides = [1, 1]} : vector<64x512xf32> to vector<8x512xf32>
    %cst_140 = arith.constant dense<0.000000e+00> : vector<8x512xf32>
    %771 = tpu.matmul %741, %475, %cst_140 {dimension_numbers = #tpu.dot_dimension_numbers<[1], [0], [0], [1], [0, 0, 1, 1], [], []>} : vector<8x128xf32>, vector<128x512xf32>, vector<8x512xf32> -> vector<8x512xf32>
    %772 = arith.addf %770, %771 : vector<8x512xf32>
    %773 = vector.extract_strided_slice %772 {offsets = [0, 0], sizes = [8, 128], strides = [1, 1]} : vector<8x512xf32> to vector<8x128xf32>
    %774 = arith.negf %773 : vector<8x128xf32>
    %775 = math.exp %774 : vector<8x128xf32>
    %cst_141 = arith.constant 1.000000e+00 : f32
    %776 = vector.broadcast %cst_141 : f32 to vector<8x128xf32>
    %777 = arith.addf %776, %775 : vector<8x128xf32>
    %778 = arith.divf %776, %777 : vector<8x128xf32>
    %779 = vector.extract_strided_slice %772 {offsets = [0, 128], sizes = [8, 128], strides = [1, 1]} : vector<8x512xf32> to vector<8x128xf32>
    %780 = arith.negf %779 : vector<8x128xf32>
    %781 = math.exp %780 : vector<8x128xf32>
    %cst_142 = arith.constant 1.000000e+00 : f32
    %782 = vector.broadcast %cst_142 : f32 to vector<8x128xf32>
    %783 = arith.addf %782, %781 : vector<8x128xf32>
    %784 = arith.divf %782, %783 : vector<8x128xf32>
    %785 = vector.extract_strided_slice %772 {offsets = [0, 256], sizes = [8, 128], strides = [1, 1]} : vector<8x512xf32> to vector<8x128xf32>
    %786 = math.tanh %785 : vector<8x128xf32>
    %787 = vector.extract_strided_slice %772 {offsets = [0, 384], sizes = [8, 128], strides = [1, 1]} : vector<8x512xf32> to vector<8x128xf32>
    %788 = arith.negf %787 : vector<8x128xf32>
    %789 = math.exp %788 : vector<8x128xf32>
    %cst_143 = arith.constant 1.000000e+00 : f32
    %790 = vector.broadcast %cst_143 : f32 to vector<8x128xf32>
    %791 = arith.addf %790, %789 : vector<8x128xf32>
    %792 = arith.divf %790, %791 : vector<8x128xf32>
    %793 = arith.mulf %784, %739 : vector<8x128xf32>
    %794 = arith.mulf %778, %786 : vector<8x128xf32>
    %795 = arith.addf %793, %794 : vector<8x128xf32>
    %796 = math.tanh %795 : vector<8x128xf32>
    %797 = arith.mulf %792, %796 : vector<8x128xf32>
    %798 = vector.extract_strided_slice %485 {offsets = [16, 0], sizes = [8, 512], strides = [1, 1]} : vector<64x512xf32> to vector<8x512xf32>
    %cst_144 = arith.constant dense<0.000000e+00> : vector<8x512xf32>
    %799 = tpu.matmul %769, %478, %cst_144 {dimension_numbers = #tpu.dot_dimension_numbers<[1], [0], [0], [1], [0, 0, 1, 1], [], []>} : vector<8x128xf32>, vector<128x512xf32>, vector<8x512xf32> -> vector<8x512xf32>
    %800 = arith.addf %798, %799 : vector<8x512xf32>
    %801 = vector.extract_strided_slice %800 {offsets = [0, 0], sizes = [8, 128], strides = [1, 1]} : vector<8x512xf32> to vector<8x128xf32>
    %802 = arith.negf %801 : vector<8x128xf32>
    %803 = math.exp %802 : vector<8x128xf32>
    %cst_145 = arith.constant 1.000000e+00 : f32
    %804 = vector.broadcast %cst_145 : f32 to vector<8x128xf32>
    %805 = arith.addf %804, %803 : vector<8x128xf32>
    %806 = arith.divf %804, %805 : vector<8x128xf32>
    %807 = vector.extract_strided_slice %800 {offsets = [0, 128], sizes = [8, 128], strides = [1, 1]} : vector<8x512xf32> to vector<8x128xf32>
    %808 = arith.negf %807 : vector<8x128xf32>
    %809 = math.exp %808 : vector<8x128xf32>
    %cst_146 = arith.constant 1.000000e+00 : f32
    %810 = vector.broadcast %cst_146 : f32 to vector<8x128xf32>
    %811 = arith.addf %810, %809 : vector<8x128xf32>
    %812 = arith.divf %810, %811 : vector<8x128xf32>
    %813 = vector.extract_strided_slice %800 {offsets = [0, 256], sizes = [8, 128], strides = [1, 1]} : vector<8x512xf32> to vector<8x128xf32>
    %814 = math.tanh %813 : vector<8x128xf32>
    %815 = vector.extract_strided_slice %800 {offsets = [0, 384], sizes = [8, 128], strides = [1, 1]} : vector<8x512xf32> to vector<8x128xf32>
    %816 = arith.negf %815 : vector<8x128xf32>
    %817 = math.exp %816 : vector<8x128xf32>
    %cst_147 = arith.constant 1.000000e+00 : f32
    %818 = vector.broadcast %cst_147 : f32 to vector<8x128xf32>
    %819 = arith.addf %818, %817 : vector<8x128xf32>
    %820 = arith.divf %818, %819 : vector<8x128xf32>
    %821 = arith.mulf %812, %767 : vector<8x128xf32>
    %822 = arith.mulf %806, %814 : vector<8x128xf32>
    %823 = arith.addf %821, %822 : vector<8x128xf32>
    %824 = math.tanh %823 : vector<8x128xf32>
    %825 = arith.mulf %820, %824 : vector<8x128xf32>
    %826 = vector.extract_strided_slice %482 {offsets = [48, 0], sizes = [8, 512], strides = [1, 1]} : vector<64x512xf32> to vector<8x512xf32>
    %cst_148 = arith.constant dense<0.000000e+00> : vector<8x512xf32>
    %827 = tpu.matmul %797, %475, %cst_148 {dimension_numbers = #tpu.dot_dimension_numbers<[1], [0], [0], [1], [0, 0, 1, 1], [], []>} : vector<8x128xf32>, vector<128x512xf32>, vector<8x512xf32> -> vector<8x512xf32>
    %828 = arith.addf %826, %827 : vector<8x512xf32>
    %829 = vector.extract_strided_slice %828 {offsets = [0, 0], sizes = [8, 128], strides = [1, 1]} : vector<8x512xf32> to vector<8x128xf32>
    %830 = arith.negf %829 : vector<8x128xf32>
    %831 = math.exp %830 : vector<8x128xf32>
    %cst_149 = arith.constant 1.000000e+00 : f32
    %832 = vector.broadcast %cst_149 : f32 to vector<8x128xf32>
    %833 = arith.addf %832, %831 : vector<8x128xf32>
    %834 = arith.divf %832, %833 : vector<8x128xf32>
    %835 = vector.extract_strided_slice %828 {offsets = [0, 128], sizes = [8, 128], strides = [1, 1]} : vector<8x512xf32> to vector<8x128xf32>
    %836 = arith.negf %835 : vector<8x128xf32>
    %837 = math.exp %836 : vector<8x128xf32>
    %cst_150 = arith.constant 1.000000e+00 : f32
    %838 = vector.broadcast %cst_150 : f32 to vector<8x128xf32>
    %839 = arith.addf %838, %837 : vector<8x128xf32>
    %840 = arith.divf %838, %839 : vector<8x128xf32>
    %841 = vector.extract_strided_slice %828 {offsets = [0, 256], sizes = [8, 128], strides = [1, 1]} : vector<8x512xf32> to vector<8x128xf32>
    %842 = math.tanh %841 : vector<8x128xf32>
    %843 = vector.extract_strided_slice %828 {offsets = [0, 384], sizes = [8, 128], strides = [1, 1]} : vector<8x512xf32> to vector<8x128xf32>
    %844 = arith.negf %843 : vector<8x128xf32>
    %845 = math.exp %844 : vector<8x128xf32>
    %cst_151 = arith.constant 1.000000e+00 : f32
    %846 = vector.broadcast %cst_151 : f32 to vector<8x128xf32>
    %847 = arith.addf %846, %845 : vector<8x128xf32>
    %848 = arith.divf %846, %847 : vector<8x128xf32>
    %849 = arith.mulf %840, %795 : vector<8x128xf32>
    %850 = arith.mulf %834, %842 : vector<8x128xf32>
    %851 = arith.addf %849, %850 : vector<8x128xf32>
    %852 = math.tanh %851 : vector<8x128xf32>
    %853 = arith.mulf %848, %852 : vector<8x128xf32>
    %854 = vector.extract_strided_slice %485 {offsets = [8, 0], sizes = [8, 512], strides = [1, 1]} : vector<64x512xf32> to vector<8x512xf32>
    %cst_152 = arith.constant dense<0.000000e+00> : vector<8x512xf32>
    %855 = tpu.matmul %825, %478, %cst_152 {dimension_numbers = #tpu.dot_dimension_numbers<[1], [0], [0], [1], [0, 0, 1, 1], [], []>} : vector<8x128xf32>, vector<128x512xf32>, vector<8x512xf32> -> vector<8x512xf32>
    %856 = arith.addf %854, %855 : vector<8x512xf32>
    %857 = vector.extract_strided_slice %856 {offsets = [0, 0], sizes = [8, 128], strides = [1, 1]} : vector<8x512xf32> to vector<8x128xf32>
    %858 = arith.negf %857 : vector<8x128xf32>
    %859 = math.exp %858 : vector<8x128xf32>
    %cst_153 = arith.constant 1.000000e+00 : f32
    %860 = vector.broadcast %cst_153 : f32 to vector<8x128xf32>
    %861 = arith.addf %860, %859 : vector<8x128xf32>
    %862 = arith.divf %860, %861 : vector<8x128xf32>
    %863 = vector.extract_strided_slice %856 {offsets = [0, 128], sizes = [8, 128], strides = [1, 1]} : vector<8x512xf32> to vector<8x128xf32>
    %864 = arith.negf %863 : vector<8x128xf32>
    %865 = math.exp %864 : vector<8x128xf32>
    %cst_154 = arith.constant 1.000000e+00 : f32
    %866 = vector.broadcast %cst_154 : f32 to vector<8x128xf32>
    %867 = arith.addf %866, %865 : vector<8x128xf32>
    %868 = arith.divf %866, %867 : vector<8x128xf32>
    %869 = vector.extract_strided_slice %856 {offsets = [0, 256], sizes = [8, 128], strides = [1, 1]} : vector<8x512xf32> to vector<8x128xf32>
    %870 = math.tanh %869 : vector<8x128xf32>
    %871 = vector.extract_strided_slice %856 {offsets = [0, 384], sizes = [8, 128], strides = [1, 1]} : vector<8x512xf32> to vector<8x128xf32>
    %872 = arith.negf %871 : vector<8x128xf32>
    %873 = math.exp %872 : vector<8x128xf32>
    %cst_155 = arith.constant 1.000000e+00 : f32
    %874 = vector.broadcast %cst_155 : f32 to vector<8x128xf32>
    %875 = arith.addf %874, %873 : vector<8x128xf32>
    %876 = arith.divf %874, %875 : vector<8x128xf32>
    %877 = arith.mulf %868, %823 : vector<8x128xf32>
    %878 = arith.mulf %862, %870 : vector<8x128xf32>
    %879 = arith.addf %877, %878 : vector<8x128xf32>
    %880 = math.tanh %879 : vector<8x128xf32>
    %881 = arith.mulf %876, %880 : vector<8x128xf32>
    %882 = vector.extract_strided_slice %482 {offsets = [56, 0], sizes = [8, 512], strides = [1, 1]} : vector<64x512xf32> to vector<8x512xf32>
    %cst_156 = arith.constant dense<0.000000e+00> : vector<8x512xf32>
    %883 = tpu.matmul %853, %475, %cst_156 {dimension_numbers = #tpu.dot_dimension_numbers<[1], [0], [0], [1], [0, 0, 1, 1], [], []>} : vector<8x128xf32>, vector<128x512xf32>, vector<8x512xf32> -> vector<8x512xf32>
    %884 = arith.addf %882, %883 : vector<8x512xf32>
    %885 = vector.extract_strided_slice %884 {offsets = [0, 0], sizes = [8, 128], strides = [1, 1]} : vector<8x512xf32> to vector<8x128xf32>
    %886 = arith.negf %885 : vector<8x128xf32>
    %887 = math.exp %886 : vector<8x128xf32>
    %cst_157 = arith.constant 1.000000e+00 : f32
    %888 = vector.broadcast %cst_157 : f32 to vector<8x128xf32>
    %889 = arith.addf %888, %887 : vector<8x128xf32>
    %890 = arith.divf %888, %889 : vector<8x128xf32>
    %891 = vector.extract_strided_slice %884 {offsets = [0, 128], sizes = [8, 128], strides = [1, 1]} : vector<8x512xf32> to vector<8x128xf32>
    %892 = arith.negf %891 : vector<8x128xf32>
    %893 = math.exp %892 : vector<8x128xf32>
    %cst_158 = arith.constant 1.000000e+00 : f32
    %894 = vector.broadcast %cst_158 : f32 to vector<8x128xf32>
    %895 = arith.addf %894, %893 : vector<8x128xf32>
    %896 = arith.divf %894, %895 : vector<8x128xf32>
    %897 = vector.extract_strided_slice %884 {offsets = [0, 256], sizes = [8, 128], strides = [1, 1]} : vector<8x512xf32> to vector<8x128xf32>
    %898 = math.tanh %897 : vector<8x128xf32>
    %899 = vector.extract_strided_slice %884 {offsets = [0, 384], sizes = [8, 128], strides = [1, 1]} : vector<8x512xf32> to vector<8x128xf32>
    %900 = arith.negf %899 : vector<8x128xf32>
    %901 = math.exp %900 : vector<8x128xf32>
    %cst_159 = arith.constant 1.000000e+00 : f32
    %902 = vector.broadcast %cst_159 : f32 to vector<8x128xf32>
    %903 = arith.addf %902, %901 : vector<8x128xf32>
    %904 = arith.divf %902, %903 : vector<8x128xf32>
    %905 = arith.mulf %896, %851 : vector<8x128xf32>
    %906 = arith.mulf %890, %898 : vector<8x128xf32>
    %907 = arith.addf %905, %906 : vector<8x128xf32>
    %908 = math.tanh %907 : vector<8x128xf32>
    %909 = arith.mulf %904, %908 : vector<8x128xf32>
    %910 = vector.extract_strided_slice %485 {offsets = [0, 0], sizes = [8, 512], strides = [1, 1]} : vector<64x512xf32> to vector<8x512xf32>
    %cst_160 = arith.constant dense<0.000000e+00> : vector<8x512xf32>
    %911 = tpu.matmul %881, %478, %cst_160 {dimension_numbers = #tpu.dot_dimension_numbers<[1], [0], [0], [1], [0, 0, 1, 1], [], []>} : vector<8x128xf32>, vector<128x512xf32>, vector<8x512xf32> -> vector<8x512xf32>
    %912 = arith.addf %910, %911 : vector<8x512xf32>
    %913 = vector.extract_strided_slice %912 {offsets = [0, 0], sizes = [8, 128], strides = [1, 1]} : vector<8x512xf32> to vector<8x128xf32>
    %914 = arith.negf %913 : vector<8x128xf32>
    %915 = math.exp %914 : vector<8x128xf32>
    %cst_161 = arith.constant 1.000000e+00 : f32
    %916 = vector.broadcast %cst_161 : f32 to vector<8x128xf32>
    %917 = arith.addf %916, %915 : vector<8x128xf32>
    %918 = arith.divf %916, %917 : vector<8x128xf32>
    %919 = vector.extract_strided_slice %912 {offsets = [0, 128], sizes = [8, 128], strides = [1, 1]} : vector<8x512xf32> to vector<8x128xf32>
    %920 = arith.negf %919 : vector<8x128xf32>
    %921 = math.exp %920 : vector<8x128xf32>
    %cst_162 = arith.constant 1.000000e+00 : f32
    %922 = vector.broadcast %cst_162 : f32 to vector<8x128xf32>
    %923 = arith.addf %922, %921 : vector<8x128xf32>
    %924 = arith.divf %922, %923 : vector<8x128xf32>
    %925 = vector.extract_strided_slice %912 {offsets = [0, 256], sizes = [8, 128], strides = [1, 1]} : vector<8x512xf32> to vector<8x128xf32>
    %926 = math.tanh %925 : vector<8x128xf32>
    %927 = vector.extract_strided_slice %912 {offsets = [0, 384], sizes = [8, 128], strides = [1, 1]} : vector<8x512xf32> to vector<8x128xf32>
    %928 = arith.negf %927 : vector<8x128xf32>
    %929 = math.exp %928 : vector<8x128xf32>
    %cst_163 = arith.constant 1.000000e+00 : f32
    %930 = vector.broadcast %cst_163 : f32 to vector<8x128xf32>
    %931 = arith.addf %930, %929 : vector<8x128xf32>
    %932 = arith.divf %930, %931 : vector<8x128xf32>
    %933 = arith.mulf %924, %879 : vector<8x128xf32>
    %934 = arith.mulf %918, %926 : vector<8x128xf32>
    %935 = arith.addf %933, %934 : vector<8x128xf32>
    %936 = math.tanh %935 : vector<8x128xf32>
    %937 = arith.mulf %932, %936 : vector<8x128xf32>
    %938 = tpu.concatenate %517, %937 in 1 : vector<8x128xf32>, vector<8x128xf32> -> vector<8x256xf32>
    %939 = tpu.concatenate %573, %881 in 1 : vector<8x128xf32>, vector<8x128xf32> -> vector<8x256xf32>
    %940 = tpu.concatenate %629, %825 in 1 : vector<8x128xf32>, vector<8x128xf32> -> vector<8x256xf32>
    %941 = tpu.concatenate %685, %769 in 1 : vector<8x128xf32>, vector<8x128xf32> -> vector<8x256xf32>
    %942 = tpu.concatenate %741, %713 in 1 : vector<8x128xf32>, vector<8x128xf32> -> vector<8x256xf32>
    %943 = tpu.concatenate %797, %657 in 1 : vector<8x128xf32>, vector<8x128xf32> -> vector<8x256xf32>
    %944 = tpu.concatenate %853, %601 in 1 : vector<8x128xf32>, vector<8x128xf32> -> vector<8x256xf32>
    %945 = tpu.concatenate %909, %545 in 1 : vector<8x128xf32>, vector<8x128xf32> -> vector<8x256xf32>
    %946 = tpu.concatenate %938, %939, %940, %941, %942, %943, %944, %945 in 0 : vector<8x256xf32>, vector<8x256xf32>, vector<8x256xf32>, vector<8x256xf32>, vector<8x256xf32>, vector<8x256xf32>, vector<8x256xf32>, vector<8x256xf32> -> vector<64x256xf32>
    %c0_164 = arith.constant 0 : index
    %c0_165 = arith.constant 0 : index
    %947 = vector.load %arg16[%c0_164, %c0_165] : memref<64x256xf32, #tpu.memory_space<vmem>>, vector<64x256xf32>
    tpu.vector_store %arg16[%c0_164, %c0_165], %946 {strides = array<i32>} : memref<64x256xf32, #tpu.memory_space<vmem>>, vector<64x256xf32>,
    %c0_166 = arith.constant 0 : index
    %c0_167 = arith.constant 0 : index
    %948 = vector.load %arg13[%c0_166, %c0_167] : memref<256x128xf32, #tpu.memory_space<vmem>>, vector<256x128xf32>
    %cst_168 = arith.constant dense<0.000000e+00> : vector<64x128xf32>
    %949 = tpu.matmul %946, %948, %cst_168 {dimension_numbers = #tpu.dot_dimension_numbers<[1], [0], [0], [1], [0, 0, 1, 1], [], []>} : vector<64x256xf32>, vector<256x128xf32>, vector<64x128xf32> -> vector<64x128xf32>
    %c0_169 = arith.constant 0 : index
    %c0_170 = arith.constant 0 : index
    %950 = vector.load %arg14[%c0_169, %c0_170] : memref<1x128xf32, #tpu.memory_space<vmem>>, vector<1x128xf32>
    %951 = vector.broadcast %950 : vector<1x128xf32> to vector<64x128xf32>
    %952 = arith.addf %949, %951 : vector<64x128xf32>
    %953 = tpu.iota {dimensions = array<i32: 1>} : vector<64x128xi32>
    %cst_171 = arith.constant dense<0xFF800000> : vector<64xf32>
    %954 = vector.multi_reduction <maximumf>, %952, %cst_171 [1] : vector<64x128xf32> to vector<64xf32>
    %955 = vector.shape_cast %954 : vector<64xf32> to vector<64x1xf32>
    %956 = vector.broadcast %955 : vector<64x1xf32> to vector<64x128xf32>
    %957 = arith.cmpf oeq, %952, %956 : vector<64x128xf32>
    %c128_i32 = arith.constant 128 : i32
    %958 = vector.broadcast %c128_i32 : i32 to vector<64x128xi32>
    %959 = arith.select %957, %953, %958 : vector<64x128xi1>, vector<64x128xi32>
    %cst_172 = arith.constant dense<2147483647> : vector<64xi32>
    %960 = vector.multi_reduction <minsi>, %959, %cst_172 [1] : vector<64x128xi32> to vector<64xi32>
    %961 = vector.shape_cast %960 : vector<64xi32> to vector<64x1xi32>
    %c0_173 = arith.constant 0 : index
    %c0_174 = arith.constant 0 : index
    %962 = vector.load %arg15[%c0_173, %c0_174] : memref<64x1xi32, #tpu.memory_space<vmem>>, vector<64x1xi32>
    tpu.vector_store %arg15[%c0_173, %c0_174], %961 {strides = array<i32>} : memref<64x1xi32, #tpu.memory_space<vmem>>, vector<64x1xi32>,
    return
  }
}

</mosaic_0001>

<llo_original>
// kernel: bilstm_forward.1
$region0: #{bilstm_forward.1}
  #allocation0 [shape = 'u32[]', space=smem, size = 0x4, offset = 0x4, fixed_abs, tag = 'smem constant byte address 0x4 - core index']
  #allocation1 [shape = 'u32[144,128]{1,0:T(1,128)}', space=vmem, size = 0x12000, scoped, tag = 'internal scratch']
  %s0 = inlined_call_operand.vmem [shape: f32[64,32], index: 0, kind: input, shape index: {}]
  %s1 = inlined_call_operand.vmem [shape: f32[32,512], index: 1, kind: input, shape index: {}]
  %s2 = inlined_call_operand.hbm [shape: f32[128,512], index: 2, kind: input, shape index: {}]
  %s3 = inlined_call_operand.vmem [shape: f32[1,512], index: 3, kind: input, shape index: {}]
  %s4 = inlined_call_operand.hbm [shape: f32[32,512], index: 4, kind: input, shape index: {}]
  %s5 = inlined_call_operand.hbm [shape: f32[128,512], index: 5, kind: input, shape index: {}]
  %s6 = inlined_call_operand.hbm [shape: f32[1,512], index: 6, kind: input, shape index: {}]
  %s7 = inlined_call_operand.vmem [shape: f32[256,512], index: 7, kind: input, shape index: {}]
  %s8 = inlined_call_operand.hbm [shape: f32[128,512], index: 8, kind: input, shape index: {}]
  %s9 = inlined_call_operand.hbm [shape: f32[1,512], index: 9, kind: input, shape index: {}]
  %s10 = inlined_call_operand.hbm [shape: f32[256,512], index: 10, kind: input, shape index: {}]
  %s11 = inlined_call_operand.hbm [shape: f32[128,512], index: 11, kind: input, shape index: {}]
  %s12 = inlined_call_operand.hbm [shape: f32[1,512], index: 12, kind: input, shape index: {}]
  %s13 = inlined_call_operand.vmem [shape: f32[256,128], index: 13, kind: input, shape index: {}]
  %s14 = inlined_call_operand.vmem [shape: f32[1,128], index: 14, kind: input, shape index: {}]
  %s15 = inlined_call_operand.vmem [shape: s32[64,1], index: 15, kind: output, shape index: {0}]
  %s16 = inlined_call_operand.vmem [shape: f32[64,256], index: 16, kind: output, shape index: {1}]
  %17 = xla_tuple %s15, %s16
  %s18 = sld [smem:[#allocation0]]
  $region114: #{bilstm_forward.1} parent=0
    _
  %s20 = ssub.s32 1, %s18
  %s21 = scalar_select 0, %s20, %s18
  $region1: #{bilstm_forward.1} parent=0
    #allocation2 [shape = 'u8[262144]{0}', space=vmem, size = 0x40000, scoped, tag = 'input window, operand 2, single buffered']
    #allocation3 [shape = 's32[1]{0}', space=sflag, size = 0x4, scoped, tag = 'scoped memory for bilstm_forward.1']
    #allocation4 [shape = 'u8[65536]{0}', space=vmem, size = 0x10000, scoped, tag = 'input window, operand 4, single buffered']
    #allocation5 [shape = 's32[1]{0}', space=sflag, size = 0x4, scoped, tag = 'scoped memory for bilstm_forward.1']
    #allocation6 [shape = 'u8[262144]{0}', space=vmem, size = 0x40000, scoped, tag = 'input window, operand 5, single buffered']
    #allocation7 [shape = 'u8[2048]{0}', space=vmem, size = 0x800, scoped, tag = 'input window, operand 6, single buffered']
    #allocation8 [shape = 's32[1]{0}', space=sflag, size = 0x4, scoped, tag = 'scoped memory for bilstm_forward.1']
    #allocation9 [shape = 'u8[262144]{0}', space=vmem, size = 0x40000, scoped, tag = 'input window, operand 8, single buffered']
    #allocation10 [shape = 'u8[2048]{0}', space=vmem, size = 0x800, scoped, tag = 'input window, operand 9, single buffered']
    #allocation11 [shape = 's32[1]{0}', space=sflag, size = 0x4, scoped, tag = 'scoped memory for bilstm_forward.1']
    #allocation12 [shape = 'u8[524288]{0}', space=vmem, size = 0x80000, scoped, tag = 'input window, operand 10, single buffered']
    #allocation13 [shape = 'u8[262144]{0}', space=vmem, size = 0x40000, scoped, tag = 'input window, operand 11, single buffered']
    #allocation14 [shape = 's32[1]{0}', space=sflag, size = 0x4, scoped, tag = 'scoped memory for bilstm_forward.1']
    #allocation15 [shape = 'u8[2048]{0}', space=vmem, size = 0x800, scoped, tag = 'input window, operand 12, single buffered']
    %22 = vsyncpa [#allocation3], 0
    %23 = vsyncpa [#allocation5], 0
    %24 = vsyncpa [#allocation8], 0
    %25 = vsyncpa [#allocation11], 0
    %26 = vsyncpa [#allocation14], 0
    // Predicated region
    $region2: #{bilstm_forward.1} parent=1 // pred_check
      _
    $region3: #{bilstm_forward.1} parent=1 // pred_check_branch
      %28 = sbr.rel (0) target = $region5
    $region4: #{bilstm_forward.1} parent=1 // pred_region
      _
    $region5: #{bilstm_forward.1} parent=1 // pred_fallthru
      _
    // Predicated region
    $region6: #{bilstm_forward.1} parent=1 // pred_check
      _
    $region7: #{bilstm_forward.1} parent=1 // pred_check_branch
      %30 = sbr.rel (0) target = $region9
    $region8: #{bilstm_forward.1} parent=1 // pred_region
      _
    $region9: #{bilstm_forward.1} parent=1 // pred_fallthru
      _
    // Predicated region
    $region10: #{bilstm_forward.1} parent=1 // pred_check
      _
    $region11: #{bilstm_forward.1} parent=1 // pred_check_branch
      %32 = sbr.rel (0) target = $region13
    $region12: #{bilstm_forward.1} parent=1 // pred_region
      %s34 = ssub.s32 8192, 8192
      %35 = vsyncadd [#allocation3], %s34
      %s36 = sshll.u32 [#allocation2], 4
      %s37 = int_to_ptr.vmem [resolvable:$true] %s36
      %42 = dma.hbm_to_vmem [thread:$0]  %s2, 8192, %s37, [#allocation3], 512, 512, 32
    $region13: #{bilstm_forward.1} parent=1 // pred_fallthru
      _
    // Predicated region
    $region14: #{bilstm_forward.1} parent=1 // pred_check
      _
    $region15: #{bilstm_forward.1} parent=1 // pred_check_branch
      %44 = sbr.rel (0) target = $region17
    $region16: #{bilstm_forward.1} parent=1 // pred_region
      _
    $region17: #{bilstm_forward.1} parent=1 // pred_fallthru
      _
    // Predicated region
    $region18: #{bilstm_forward.1} parent=1 // pred_check
      _
    $region19: #{bilstm_forward.1} parent=1 // pred_check_branch
      %46 = sbr.rel (0) target = $region21
    $region20: #{bilstm_forward.1} parent=1 // pred_region
      %s48 = ssub.s32 2048, 2048
      %49 = vsyncadd [#allocation5], %s48
      %s50 = sshll.u32 [#allocation4], 4
      %s51 = int_to_ptr.vmem [resolvable:$true] %s50
      %56 = dma.hbm_to_vmem [thread:$0]  %s4, 2048, %s51, [#allocation5], 512, 512, 32
    $region21: #{bilstm_forward.1} parent=1 // pred_fallthru
      _
    // Predicated region
    $region22: #{bilstm_forward.1} parent=1 // pred_check
      _
    $region23: #{bilstm_forward.1} parent=1 // pred_check_branch
      %58 = sbr.rel (0) target = $region25
    $region24: #{bilstm_forward.1} parent=1 // pred_region
      %s60 = ssub.s32 8192, 8192
      %61 = vsyncadd [#allocation5], %s60
      %s62 = sshll.u32 [#allocation6], 4
      %s63 = int_to_ptr.vmem [resolvable:$true] %s62
      %68 = dma.hbm_to_vmem [thread:$0]  %s5, 8192, %s63, [#allocation5], 512, 512, 32
    $region25: #{bilstm_forward.1} parent=1 // pred_fallthru
      _
    // Predicated region
    $region26: #{bilstm_forward.1} parent=1 // pred_check
      _
    $region27: #{bilstm_forward.1} parent=1 // pred_check_branch
      %70 = sbr.rel (0) target = $region29
    $region28: #{bilstm_forward.1} parent=1 // pred_region
      %s72 = ssub.s32 64, 64
      %73 = vsyncadd [#allocation8], %s72
      %s75 = sshll.u32 [#allocation7], 4
      %s76 = int_to_ptr.vmem [resolvable:$true] %s75
      %78 = dma.hbm_to_vmem [thread:$0]  %s6, 64, %s76, [#allocation8]
    $region29: #{bilstm_forward.1} parent=1 // pred_fallthru
      _
    // Predicated region
    $region30: #{bilstm_forward.1} parent=1 // pred_check
      _
    $region31: #{bilstm_forward.1} parent=1 // pred_check_branch
      %80 = sbr.rel (0) target = $region33
    $region32: #{bilstm_forward.1} parent=1 // pred_region
      _
    $region33: #{bilstm_forward.1} parent=1 // pred_fallthru
      _
    // Predicated region
    $region34: #{bilstm_forward.1} parent=1 // pred_check
      _
    $region35: #{bilstm_forward.1} parent=1 // pred_check_branch
      %82 = sbr.rel (0) target = $region37
    $region36: #{bilstm_forward.1} parent=1 // pred_region
      %s84 = ssub.s32 8192, 8192
      %85 = vsyncadd [#allocation8], %s84
      %s86 = sshll.u32 [#allocation9], 4
      %s87 = int_to_ptr.vmem [resolvable:$true] %s86
      %92 = dma.hbm_to_vmem [thread:$0]  %s8, 8192, %s87, [#allocation8], 512, 512, 32
    $region37: #{bilstm_forward.1} parent=1 // pred_fallthru
      _
    // Predicated region
    $region38: #{bilstm_forward.1} parent=1 // pred_check
      _
    $region39: #{bilstm_forward.1} parent=1 // pred_check_branch
      %94 = sbr.rel (0) target = $region41
    $region40: #{bilstm_forward.1} parent=1 // pred_region
      %s96 = ssub.s32 64, 64
      %97 = vsyncadd [#allocation11], %s96
      %s99 = sshll.u32 [#allocation10], 4
      %s100 = int_to_ptr.vmem [resolvable:$true] %s99
      %102 = dma.hbm_to_vmem [thread:$0]  %s9, 64, %s100, [#allocation11]
    $region41: #{bilstm_forward.1} parent=1 // pred_fallthru
      _
    // Predicated region
    $region42: #{bilstm_forward.1} parent=1 // pred_check
      _
    $region43: #{bilstm_forward.1} parent=1 // pred_check_branch
      %104 = sbr.rel (0) target = $region45
    $region44: #{bilstm_forward.1} parent=1 // pred_region
      %s106 = ssub.s32 16384, 16384
      %107 = vsyncadd [#allocation11], %s106
      %s108 = sshll.u32 [#allocation12], 4
      %s109 = int_to_ptr.vmem [resolvable:$true] %s108
      %114 = dma.hbm_to_vmem [thread:$0]  %s10, 16384, %s109, [#allocation11], 512, 512, 32
    $region45: #{bilstm_forward.1} parent=1 // pred_fallthru
      _
    // Predicated region
    $region46: #{bilstm_forward.1} parent=1 // pred_check
      _
    $region47: #{bilstm_forward.1} parent=1 // pred_check_branch
      %116 = sbr.rel (0) target = $region49
    $region48: #{bilstm_forward.1} parent=1 // pred_region
      %s118 = ssub.s32 8192, 8192
      %119 = vsyncadd [#allocation14], %s118
      %s120 = sshll.u32 [#allocation13], 4
      %s121 = int_to_ptr.vmem [resolvable:$true] %s120
      %126 = dma.hbm_to_vmem [thread:$0]  %s11, 8192, %s121, [#allocation14], 512, 512, 32
    $region49: #{bilstm_forward.1} parent=1 // pred_fallthru
      _
    // Predicated region
    $region50: #{bilstm_forward.1} parent=1 // pred_check
      _
    $region51: #{bilstm_forward.1} parent=1 // pred_check_branch
      %128 = sbr.rel (0) target = $region53
    $region52: #{bilstm_forward.1} parent=1 // pred_region
      %s130 = ssub.s32 64, 64
      %131 = vsyncadd [#allocation14], %s130
      %s133 = sshll.u32 [#allocation15], 4
      %s134 = int_to_ptr.vmem [resolvable:$true] %s133
      %136 = dma.hbm_to_vmem [thread:$0]  %s12, 64, %s134, [#allocation14]
    $region53: #{bilstm_forward.1} parent=1 // pred_fallthru
      _
    // Predicated region
    $region54: #{bilstm_forward.1} parent=1 // pred_check
      _
    $region55: #{bilstm_forward.1} parent=1 // pred_check_branch
      %138 = sbr.rel (0) target = $region57
    $region56: #{bilstm_forward.1} parent=1 // pred_region
      _
    $region57: #{bilstm_forward.1} parent=1 // pred_fallthru
      _
    // Predicated region
    $region58: #{bilstm_forward.1} parent=1 // pred_check
      _
    $region59: #{bilstm_forward.1} parent=1 // pred_check_branch
      %140 = sbr.rel (0) target = $region61
    $region60: #{bilstm_forward.1} parent=1 // pred_region
      _
    $region61: #{bilstm_forward.1} parent=1 // pred_fallthru
      _
    // Predicated region
    $region62: #{bilstm_forward.1} parent=1 // pred_check
      _
    $region63: #{bilstm_forward.1} parent=1 // pred_check_branch
      %142 = sbr.rel (0) target = $region65
    $region64: #{bilstm_forward.1} parent=1 // pred_region
      %143 = dma.done [#allocation3], 8192
    $region65: #{bilstm_forward.1} parent=1 // pred_fallthru
      _
    // Predicated region
    $region66: #{bilstm_forward.1} parent=1 // pred_check
      _
    $region67: #{bilstm_forward.1} parent=1 // pred_check_branch
      %145 = sbr.rel (0) target = $region69
    $region68: #{bilstm_forward.1} parent=1 // pred_region
      %146 = dma.done [#allocation5], 2048
    $region69: #{bilstm_forward.1} parent=1 // pred_fallthru
      _
    // Predicated region
    $region70: #{bilstm_forward.1} parent=1 // pred_check
      _
    $region71: #{bilstm_forward.1} parent=1 // pred_check_branch
      %148 = sbr.rel (0) target = $region73
    $region72: #{bilstm_forward.1} parent=1 // pred_region
      %149 = dma.done [#allocation5], 8192
    $region73: #{bilstm_forward.1} parent=1 // pred_fallthru
      _
    // Predicated region
    $region74: #{bilstm_forward.1} parent=1 // pred_check
      _
    $region75: #{bilstm_forward.1} parent=1 // pred_check_branch
      %151 = sbr.rel (0) target = $region77
    $region76: #{bilstm_forward.1} parent=1 // pred_region
      %152 = dma.done [#allocation8], 64
    $region77: #{bilstm_forward.1} parent=1 // pred_fallthru
      _
    // Predicated region
    $region78: #{bilstm_forward.1} parent=1 // pred_check
      _
    $region79: #{bilstm_forward.1} parent=1 // pred_check_branch
      %154 = sbr.rel (0) target = $region81
    $region80: #{bilstm_forward.1} parent=1 // pred_region
      %155 = dma.done [#allocation8], 8192
    $region81: #{bilstm_forward.1} parent=1 // pred_fallthru
      _
    // Predicated region
    $region82: #{bilstm_forward.1} parent=1 // pred_check
      _
    $region83: #{bilstm_forward.1} parent=1 // pred_check_branch
      %157 = sbr.rel (0) target = $region85
    $region84: #{bilstm_forward.1} parent=1 // pred_region
      %158 = dma.done [#allocation11], 64
    $region85: #{bilstm_forward.1} parent=1 // pred_fallthru
      _
    // Predicated region
    $region86: #{bilstm_forward.1} parent=1 // pred_check
      _
    $region87: #{bilstm_forward.1} parent=1 // pred_check_branch
      %160 = sbr.rel (0) target = $region89
    $region88: #{bilstm_forward.1} parent=1 // pred_region
      %161 = dma.done [#allocation11], 16384
    $region89: #{bilstm_forward.1} parent=1 // pred_fallthru
      _
    // Predicated region
    $region90: #{bilstm_forward.1} parent=1 // pred_check
      _
    $region91: #{bilstm_forward.1} parent=1 // pred_check_branch
      %163 = sbr.rel (0) target = $region93
    $region92: #{bilstm_forward.1} parent=1 // pred_region
      %164 = dma.done [#allocation14], 8192
    $region93: #{bilstm_forward.1} parent=1 // pred_fallthru
      _
    // Predicated region
    $region94: #{bilstm_forward.1} parent=1 // pred_check
      _
    $region95: #{bilstm_forward.1} parent=1 // pred_check_branch
      %166 = sbr.rel (0) target = $region97
    $region96: #{bilstm_forward.1} parent=1 // pred_region
      %167 = dma.done [#allocation14], 64
    $region97: #{bilstm_forward.1} parent=1 // pred_fallthru
      _
    %v168 = vld [vmem:[%s0] sm:$0xff]
    %v169 = vld [vmem:[%s0 + $0x8] sm:$0xff]
    %v170 = vld [vmem:[%s0 + $0x10] sm:$0xff]
    %v171 = vld [vmem:[%s0 + $0x18] sm:$0xff]
    %v172 = vld [vmem:[%s0 + $0x20] sm:$0xff]
    %v173 = vld [vmem:[%s0 + $0x28] sm:$0xff]
    %v174 = vld [vmem:[%s0 + $0x30] sm:$0xff]
    %v175 = vld [vmem:[%s0 + $0x38] sm:$0xff]
    %v176 = vld [vmem:[%s1] sm:$0xff]
    %v177 = vld [vmem:[%s1 + $0x8] sm:$0xff]
    %v178 = vld [vmem:[%s1 + $0x10] sm:$0xff]
    %v179 = vld [vmem:[%s1 + $0x18] sm:$0xff]
    %v180 = vld [vmem:[%s1 + $0x20] sm:$0xff]
    %v181 = vld [vmem:[%s1 + $0x28] sm:$0xff]
    %v182 = vld [vmem:[%s1 + $0x30] sm:$0xff]
    %v183 = vld [vmem:[%s1 + $0x38] sm:$0xff]
    %v184 = vld [vmem:[%s1 + $0x40] sm:$0xff]
    %v185 = vld [vmem:[%s1 + $0x48] sm:$0xff]
    %v186 = vld [vmem:[%s1 + $0x50] sm:$0xff]
    %v187 = vld [vmem:[%s1 + $0x58] sm:$0xff]
    %v188 = vld [vmem:[%s1 + $0x60] sm:$0xff]
    %v189 = vld [vmem:[%s1 + $0x68] sm:$0xff]
    %v190 = vld [vmem:[%s1 + $0x70] sm:$0xff]
    %v191 = vld [vmem:[%s1 + $0x78] sm:$0xff]
    %v192 = vld [vmem:[#allocation2] sm:$0xff]
    %v193 = vld [vmem:[#allocation2 + $0x8] sm:$0xff]
    %v194 = vld [vmem:[#allocation2 + $0x10] sm:$0xff]
    %v195 = vld [vmem:[#allocation2 + $0x18] sm:$0xff]
    %v196 = vld [vmem:[#allocation2 + $0x20] sm:$0xff]
    %v197 = vld [vmem:[#allocation2 + $0x28] sm:$0xff]
    %v198 = vld [vmem:[#allocation2 + $0x30] sm:$0xff]
    %v199 = vld [vmem:[#allocation2 + $0x38] sm:$0xff]
    %v200 = vld [vmem:[#allocation2 + $0x40] sm:$0xff]
    %v201 = vld [vmem:[#allocation2 + $0x48] sm:$0xff]
    %v202 = vld [vmem:[#allocation2 + $0x50] sm:$0xff]
    %v203 = vld [vmem:[#allocation2 + $0x58] sm:$0xff]
    %v204 = vld [vmem:[#allocation2 + $0x60] sm:$0xff]
    %v205 = vld [vmem:[#allocation2 + $0x68] sm:$0xff]
    %v206 = vld [vmem:[#allocation2 + $0x70] sm:$0xff]
    %v207 = vld [vmem:[#allocation2 + $0x78] sm:$0xff]
    %v208 = vld [vmem:[#allocation2 + $0x80] sm:$0xff]
    %v209 = vld [vmem:[#allocation2 + $0x88] sm:$0xff]
    %v210 = vld [vmem:[#allocation2 + $0x90] sm:$0xff]
    %v211 = vld [vmem:[#allocation2 + $0x98] sm:$0xff]
    %v212 = vld [vmem:[#allocation2 + $0xa0] sm:$0xff]
    %v213 = vld [vmem:[#allocation2 + $0xa8] sm:$0xff]
    %v214 = vld [vmem:[#allocation2 + $0xb0] sm:$0xff]
    %v215 = vld [vmem:[#allocation2 + $0xb8] sm:$0xff]
    %v216 = vld [vmem:[#allocation2 + $0xc0] sm:$0xff]
    %v217 = vld [vmem:[#allocation2 + $0xc8] sm:$0xff]
    %v218 = vld [vmem:[#allocation2 + $0xd0] sm:$0xff]
    %v219 = vld [vmem:[#allocation2 + $0xd8] sm:$0xff]
    %v220 = vld [vmem:[#allocation2 + $0xe0] sm:$0xff]
    %v221 = vld [vmem:[#allocation2 + $0xe8] sm:$0xff]
    %v222 = vld [vmem:[#allocation2 + $0xf0] sm:$0xff]
    %v223 = vld [vmem:[#allocation2 + $0xf8] sm:$0xff]
    %v224 = vld [vmem:[#allocation2 + $0x100] sm:$0xff]
    %v225 = vld [vmem:[#allocation2 + $0x108] sm:$0xff]
    %v226 = vld [vmem:[#allocation2 + $0x110] sm:$0xff]
    %v227 = vld [vmem:[#allocation2 + $0x118] sm:$0xff]
    %v228 = vld [vmem:[#allocation2 + $0x120] sm:$0xff]
    %v229 = vld [vmem:[#allocation2 + $0x128] sm:$0xff]
    %v230 = vld [vmem:[#allocation2 + $0x130] sm:$0xff]
    %v231 = vld [vmem:[#allocation2 + $0x138] sm:$0xff]
    %v232 = vld [vmem:[#allocation2 + $0x140] sm:$0xff]
    %v233 = vld [vmem:[#allocation2 + $0x148] sm:$0xff]
    %v234 = vld [vmem:[#allocation2 + $0x150] sm:$0xff]
    %v235 = vld [vmem:[#allocation2 + $0x158] sm:$0xff]
    %v236 = vld [vmem:[#allocation2 + $0x160] sm:$0xff]
    %v237 = vld [vmem:[#allocation2 + $0x168] sm:$0xff]
    %v238 = vld [vmem:[#allocation2 + $0x170] sm:$0xff]
    %v239 = vld [vmem:[#allocation2 + $0x178] sm:$0xff]
    %v240 = vld [vmem:[#allocation2 + $0x180] sm:$0xff]
    %v241 = vld [vmem:[#allocation2 + $0x188] sm:$0xff]
    %v242 = vld [vmem:[#allocation2 + $0x190] sm:$0xff]
    %v243 = vld [vmem:[#allocation2 + $0x198] sm:$0xff]
    %v244 = vld [vmem:[#allocation2 + $0x1a0] sm:$0xff]
    %v245 = vld [vmem:[#allocation2 + $0x1a8] sm:$0xff]
    %v246 = vld [vmem:[#allocation2 + $0x1b0] sm:$0xff]
    %v247 = vld [vmem:[#allocation2 + $0x1b8] sm:$0xff]
    %v248 = vld [vmem:[#allocation2 + $0x1c0] sm:$0xff]
    %v249 = vld [vmem:[#allocation2 + $0x1c8] sm:$0xff]
    %v250 = vld [vmem:[#allocation2 + $0x1d0] sm:$0xff]
    %v251 = vld [vmem:[#allocation2 + $0x1d8] sm:$0xff]
    %v252 = vld [vmem:[#allocation2 + $0x1e0] sm:$0xff]
    %v253 = vld [vmem:[#allocation2 + $0x1e8] sm:$0xff]
    %v254 = vld [vmem:[#allocation2 + $0x1f0] sm:$0xff]
    %v255 = vld [vmem:[#allocation2 + $0x1f8] sm:$0xff]
    %v256 = vld [vmem:[%s3] sm:$0xf]
    %v257 = vld [vmem:[#allocation4] sm:$0xff]
    %v258 = vld [vmem:[#allocation4 + $0x8] sm:$0xff]
    %v259 = vld [vmem:[#allocation4 + $0x10] sm:$0xff]
    %v260 = vld [vmem:[#allocation4 + $0x18] sm:$0xff]
    %v261 = vld [vmem:[#allocation4 + $0x20] sm:$0xff]
    %v262 = vld [vmem:[#allocation4 + $0x28] sm:$0xff]
    %v263 = vld [vmem:[#allocation4 + $0x30] sm:$0xff]
    %v264 = vld [vmem:[#allocation4 + $0x38] sm:$0xff]
    %v265 = vld [vmem:[#allocation4 + $0x40] sm:$0xff]
    %v266 = vld [vmem:[#allocation4 + $0x48] sm:$0xff]
    %v267 = vld [vmem:[#allocation4 + $0x50] sm:$0xff]
    %v268 = vld [vmem:[#allocation4 + $0x58] sm:$0xff]
    %v269 = vld [vmem:[#allocation4 + $0x60] sm:$0xff]
    %v270 = vld [vmem:[#allocation4 + $0x68] sm:$0xff]
    %v271 = vld [vmem:[#allocation4 + $0x70] sm:$0xff]
    %v272 = vld [vmem:[#allocation4 + $0x78] sm:$0xff]
    %v273 = vld [vmem:[#allocation6] sm:$0xff]
    %v274 = vld [vmem:[#allocation6 + $0x8] sm:$0xff]
    %v275 = vld [vmem:[#allocation6 + $0x10] sm:$0xff]
    %v276 = vld [vmem:[#allocation6 + $0x18] sm:$0xff]
    %v277 = vld [vmem:[#allocation6 + $0x20] sm:$0xff]
    %v278 = vld [vmem:[#allocation6 + $0x28] sm:$0xff]
    %v279 = vld [vmem:[#allocation6 + $0x30] sm:$0xff]
    %v280 = vld [vmem:[#allocation6 + $0x38] sm:$0xff]
    %v281 = vld [vmem:[#allocation6 + $0x40] sm:$0xff]
    %v282 = vld [vmem:[#allocation6 + $0x48] sm:$0xff]
    %v283 = vld [vmem:[#allocation6 + $0x50] sm:$0xff]
    %v284 = vld [vmem:[#allocation6 + $0x58] sm:$0xff]
    %v285 = vld [vmem:[#allocation6 + $0x60] sm:$0xff]
    %v286 = vld [vmem:[#allocation6 + $0x68] sm:$0xff]
    %v287 = vld [vmem:[#allocation6 + $0x70] sm:$0xff]
    %v288 = vld [vmem:[#allocation6 + $0x78] sm:$0xff]
    %v289 = vld [vmem:[#allocation6 + $0x80] sm:$0xff]
    %v290 = vld [vmem:[#allocation6 + $0x88] sm:$0xff]
    %v291 = vld [vmem:[#allocation6 + $0x90] sm:$0xff]
    %v292 = vld [vmem:[#allocation6 + $0x98] sm:$0xff]
    %v293 = vld [vmem:[#allocation6 + $0xa0] sm:$0xff]
    %v294 = vld [vmem:[#allocation6 + $0xa8] sm:$0xff]
    %v295 = vld [vmem:[#allocation6 + $0xb0] sm:$0xff]
    %v296 = vld [vmem:[#allocation6 + $0xb8] sm:$0xff]
    %v297 = vld [vmem:[#allocation6 + $0xc0] sm:$0xff]
    %v298 = vld [vmem:[#allocation6 + $0xc8] sm:$0xff]
    %v299 = vld [vmem:[#allocation6 + $0xd0] sm:$0xff]
    %v300 = vld [vmem:[#allocation6 + $0xd8] sm:$0xff]
    %v301 = vld [vmem:[#allocation6 + $0xe0] sm:$0xff]
    %v302 = vld [vmem:[#allocation6 + $0xe8] sm:$0xff]
    %v303 = vld [vmem:[#allocation6 + $0xf0] sm:$0xff]
    %v304 = vld [vmem:[#allocation6 + $0xf8] sm:$0xff]
    %v305 = vld [vmem:[#allocation6 + $0x100] sm:$0xff]
    %v306 = vld [vmem:[#allocation6 + $0x108] sm:$0xff]
    %v307 = vld [vmem:[#allocation6 + $0x110] sm:$0xff]
    %v308 = vld [vmem:[#allocation6 + $0x118] sm:$0xff]
    %v309 = vld [vmem:[#allocation6 + $0x120] sm:$0xff]
    %v310 = vld [vmem:[#allocation6 + $0x128] sm:$0xff]
    %v311 = vld [vmem:[#allocation6 + $0x130] sm:$0xff]
    %v312 = vld [vmem:[#allocation6 + $0x138] sm:$0xff]
    %v313 = vld [vmem:[#allocation6 + $0x140] sm:$0xff]
    %v314 = vld [vmem:[#allocation6 + $0x148] sm:$0xff]
    %v315 = vld [vmem:[#allocation6 + $0x150] sm:$0xff]
    %v316 = vld [vmem:[#allocation6 + $0x158] sm:$0xff]
    %v317 = vld [vmem:[#allocation6 + $0x160] sm:$0xff]
    %v318 = vld [vmem:[#allocation6 + $0x168] sm:$0xff]
    %v319 = vld [vmem:[#allocation6 + $0x170] sm:$0xff]
    %v320 = vld [vmem:[#allocation6 + $0x178] sm:$0xff]
    %v321 = vld [vmem:[#allocation6 + $0x180] sm:$0xff]
    %v322 = vld [vmem:[#allocation6 + $0x188] sm:$0xff]
    %v323 = vld [vmem:[#allocation6 + $0x190] sm:$0xff]
    %v324 = vld [vmem:[#allocation6 + $0x198] sm:$0xff]
    %v325 = vld [vmem:[#allocation6 + $0x1a0] sm:$0xff]
    %v326 = vld [vmem:[#allocation6 + $0x1a8] sm:$0xff]
    %v327 = vld [vmem:[#allocation6 + $0x1b0] sm:$0xff]
    %v328 = vld [vmem:[#allocation6 + $0x1b8] sm:$0xff]
    %v329 = vld [vmem:[#allocation6 + $0x1c0] sm:$0xff]
    %v330 = vld [vmem:[#allocation6 + $0x1c8] sm:$0xff]
    %v331 = vld [vmem:[#allocation6 + $0x1d0] sm:$0xff]
    %v332 = vld [vmem:[#allocation6 + $0x1d8] sm:$0xff]
    %v333 = vld [vmem:[#allocation6 + $0x1e0] sm:$0xff]
    %v334 = vld [vmem:[#allocation6 + $0x1e8] sm:$0xff]
    %v335 = vld [vmem:[#allocation6 + $0x1f0] sm:$0xff]
    %v336 = vld [vmem:[#allocation6 + $0x1f8] sm:$0xff]
    %v337 = vld [vmem:[#allocation7] sm:$0xf]
    %v339 = vlaneseq
    %v340 = vshrl.u32 %v339, 7
    %v341 = vsub.s32 0, %v340
    %v342 = vrot.slane %v256, %v341
    %v343 = vlaneseq
    %v344 = vshrl.u32 %v343, 7
    %v345 = vsub.s32 1, %v344
    %v346 = vrot.slane %v256, %v345
    %v347 = vlaneseq
    %v348 = vshrl.u32 %v347, 7
    %v349 = vsub.s32 2, %v348
    %v350 = vrot.slane %v256, %v349
    %v351 = vlaneseq
    %v352 = vshrl.u32 %v351, 7
    %v353 = vsub.s32 3, %v352
    %v354 = vrot.slane %v256, %v353
    %vm359 = vcmask 261120
    %v361 = vsel %vm359, %v168, 0
    %v364 = vsel %vm359, %v169, 0
    %v367 = vsel %vm359, %v170, 0
    %v370 = vsel %vm359, %v171, 0
    %v373 = vsel %vm359, %v172, 0
    %v376 = vsel %vm359, %v173, 0
    %v379 = vsel %vm359, %v174, 0
    %v382 = vsel %vm359, %v175, 0
    %384 = vmatprep.subr.mxu0 0.0
    %385 = vmatpush1.msra.mxu0 0.0
    %386 = vmatprep.subr.mxu0 0.0
    %387 = vmatpush1.msra.mxu0 0.0
    %388 = vmatprep.subr.mxu0 0.0
    %389 = vmatpush1.msra.mxu0 0.0
    %390 = vmatprep.subr.mxu0 0.0
    %391 = vmatpush1.msra.mxu0 0.0
    %392 = vmatprep.subr.mxu0 0.0
    %393 = vmatpush1.msra.mxu0 0.0
    %394 = vmatprep.subr.mxu0 0.0
    %395 = vmatpush1.msra.mxu0 0.0
    %396 = vmatprep.subr.mxu0 0.0
    %397 = vmatpush1.msra.mxu0 0.0
    %398 = vmatprep.subr.mxu0 0.0
    %399 = vmatpush1.msra.mxu0 0.0
    %400 = vmatprep.subr.mxu0 0.0
    %401 = vmatpush1.msra.mxu0 0.0
    %402 = vmatprep.subr.mxu0 0.0
    %403 = vmatpush1.msra.mxu0 0.0
    %404 = vmatprep.subr.mxu0 0.0
    %405 = vmatpush1.msra.mxu0 0.0
    %406 = vmatprep.subr.mxu0 0.0
    %407 = vmatpush1.msra.mxu0 0.0
    %408 = vmatprep.subr.mxu0 %v189
    %409 = vmatpush1.msra.mxu0 %v188
    %410 = vmatprep.subr.mxu0 %v185
    %411 = vmatpush1.msra.mxu0 %v184
    %412 = vmatprep.subr.mxu0 %v181
    %413 = vmatpush1.msra.mxu0 %v180
    %414 = vmatprep.subr.mxu0 %v177
    %415 = vmatpush1.msra.mxu0 %v176
    %416 = vmatprep.subr.mxu0 0.0
    %417 = vmatpush2.msra.mxu0 0.0
    %418 = vmatprep.subr.mxu0 0.0
    %419 = vmatpush2.msra.mxu0 0.0
    %420 = vmatprep.subr.mxu0 0.0
    %421 = vmatpush2.msra.mxu0 0.0
    %422 = vmatprep.subr.mxu0 0.0
    %423 = vmatpush2.msra.mxu0 0.0
    %424 = vmatprep.subr.mxu0 0.0
    %425 = vmatpush2.msra.mxu0 0.0
    %426 = vmatprep.subr.mxu0 0.0
    %427 = vmatpush2.msra.mxu0 0.0
    %428 = vmatprep.subr.mxu0 0.0
    %429 = vmatpush2.msra.mxu0 0.0
    %430 = vmatprep.subr.mxu0 0.0
    %431 = vmatpush2.msra.mxu0 0.0
    %432 = vmatprep.subr.mxu0 0.0
    %433 = vmatpush2.msra.mxu0 0.0
    %434 = vmatprep.subr.mxu0 0.0
    %435 = vmatpush2.msra.mxu0 0.0
    %436 = vmatprep.subr.mxu0 0.0
    %437 = vmatpush2.msra.mxu0 0.0
    %438 = vmatprep.subr.mxu0 0.0
    %439 = vmatpush2.msra.mxu0 0.0
    %440 = vmatprep.subr.mxu0 0.0
    %441 = vmatpush2.msra.mxu0 0.0
    %442 = vmatprep.subr.mxu0 0.0
    %443 = vmatpush2.msra.mxu0 0.0
    %444 = vmatprep.subr.mxu0 0.0
    %445 = vmatpush2.msra.mxu0 0.0
    %446 = vmatprep.subr.mxu0 0.0
    %447 = vmatpush2.msra.mxu0 0.0
    %448 = vmatprep.mubr.f32.mxu0 0.0
    %449 = vmatmul.mubr.f32.gmra.mxu0 %v361
    %v450 = vpop.f32.mrf.mxu0
    %v451 = vadd.f32 %v342, %v450
    %v452 = vpop.f32.mrf.mxu0
    %v453 = vadd.f32 %v346, %v452
    %454 = vmatprep.mubr.f32.mxu0 0.0
    %455 = vmatmul.mubr.f32.gmra.mxu0 %v364
    %v456 = vpop.f32.mrf.mxu0
    %v457 = vadd.f32 %v342, %v456
    %v458 = vpop.f32.mrf.mxu0
    %v459 = vadd.f32 %v346, %v458
    %460 = vmatprep.mubr.f32.mxu0 0.0
    %461 = vmatmul.mubr.f32.gmra.mxu0 %v367
    %v462 = vpop.f32.mrf.mxu0
    %v463 = vadd.f32 %v342, %v462
    %v464 = vpop.f32.mrf.mxu0
    %v465 = vadd.f32 %v346, %v464
    %466 = vmatprep.mubr.f32.mxu0 0.0
    %467 = vmatmul.mubr.f32.gmra.mxu0 %v370
    %v468 = vpop.f32.mrf.mxu0
    %v469 = vadd.f32 %v342, %v468
    %v470 = vpop.f32.mrf.mxu0
    %v471 = vadd.f32 %v346, %v470
    %472 = vmatprep.mubr.f32.mxu0 0.0
    %473 = vmatmul.mubr.f32.gmra.mxu0 %v373
    %v474 = vpop.f32.mrf.mxu0
    %v475 = vadd.f32 %v342, %v474
    %v476 = vpop.f32.mrf.mxu0
    %v477 = vadd.f32 %v346, %v476
    %478 = vmatprep.mubr.f32.mxu0 0.0
    %479 = vmatmul.mubr.f32.gmra.mxu0 %v376
    %v480 = vpop.f32.mrf.mxu0
    %v481 = vadd.f32 %v342, %v480
    %v482 = vpop.f32.mrf.mxu0
    %v483 = vadd.f32 %v346, %v482
    %484 = vmatprep.mubr.f32.mxu0 0.0
    %485 = vmatmul.mubr.f32.gmra.mxu0 %v379
    %v486 = vpop.f32.mrf.mxu0
    %v487 = vadd.f32 %v342, %v486
    %v488 = vpop.f32.mrf.mxu0
    %v489 = vadd.f32 %v346, %v488
    %490 = vmatprep.mubr.f32.mxu0 0.0
    %491 = vmatmul.mubr.f32.gmra.mxu0 %v382
    %v492 = vpop.f32.mrf.mxu0
    %v493 = vadd.f32 %v342, %v492
    %v494 = vpop.f32.mrf.mxu0
    %v495 = vadd.f32 %v346, %v494
    %496 = vdwg.mxu0
    %497 = vmatprep.subr.mxu0 0.0
    %498 = vmatpush1.msra.mxu0 0.0
    %499 = vmatprep.subr.mxu0 0.0
    %500 = vmatpush1.msra.mxu0 0.0
    %501 = vmatprep.subr.mxu0 0.0
    %502 = vmatpush1.msra.mxu0 0.0
    %503 = vmatprep.subr.mxu0 0.0
    %504 = vmatpush1.msra.mxu0 0.0
    %505 = vmatprep.subr.mxu0 0.0
    %506 = vmatpush1.msra.mxu0 0.0
    %507 = vmatprep.subr.mxu0 0.0
    %508 = vmatpush1.msra.mxu0 0.0
    %509 = vmatprep.subr.mxu0 0.0
    %510 = vmatpush1.msra.mxu0 0.0
    %511 = vmatprep.subr.mxu0 0.0
    %512 = vmatpush1.msra.mxu0 0.0
    %513 = vmatprep.subr.mxu0 0.0
    %514 = vmatpush1.msra.mxu0 0.0
    %515 = vmatprep.subr.mxu0 0.0
    %516 = vmatpush1.msra.mxu0 0.0
    %517 = vmatprep.subr.mxu0 0.0
    %518 = vmatpush1.msra.mxu0 0.0
    %519 = vmatprep.subr.mxu0 0.0
    %520 = vmatpush1.msra.mxu0 0.0
    %521 = vmatprep.subr.mxu0 %v191
    %522 = vmatpush1.msra.mxu0 %v190
    %523 = vmatprep.subr.mxu0 %v187
    %524 = vmatpush1.msra.mxu0 %v186
    %525 = vmatprep.subr.mxu0 %v183
    %526 = vmatpush1.msra.mxu0 %v182
    %527 = vmatprep.subr.mxu0 %v179
    %528 = vmatpush1.msra.mxu0 %v178
    %529 = vmatprep.subr.mxu0 0.0
    %530 = vmatpush2.msra.mxu0 0.0
    %531 = vmatprep.subr.mxu0 0.0
    %532 = vmatpush2.msra.mxu0 0.0
    %533 = vmatprep.subr.mxu0 0.0
    %534 = vmatpush2.msra.mxu0 0.0
    %535 = vmatprep.subr.mxu0 0.0
    %536 = vmatpush2.msra.mxu0 0.0
    %537 = vmatprep.subr.mxu0 0.0
    %538 = vmatpush2.msra.mxu0 0.0
    %539 = vmatprep.subr.mxu0 0.0
    %540 = vmatpush2.msra.mxu0 0.0
    %541 = vmatprep.subr.mxu0 0.0
    %542 = vmatpush2.msra.mxu0 0.0
    %543 = vmatprep.subr.mxu0 0.0
    %544 = vmatpush2.msra.mxu0 0.0
    %545 = vmatprep.subr.mxu0 0.0
    %546 = vmatpush2.msra.mxu0 0.0
    %547 = vmatprep.subr.mxu0 0.0
    %548 = vmatpush2.msra.mxu0 0.0
    %549 = vmatprep.subr.mxu0 0.0
    %550 = vmatpush2.msra.mxu0 0.0
    %551 = vmatprep.subr.mxu0 0.0
    %552 = vmatpush2.msra.mxu0 0.0
    %553 = vmatprep.subr.mxu0 0.0
    %554 = vmatpush2.msra.mxu0 0.0
    %555 = vmatprep.subr.mxu0 0.0
    %556 = vmatpush2.msra.mxu0 0.0
    %557 = vmatprep.subr.mxu0 0.0
    %558 = vmatpush2.msra.mxu0 0.0
    %559 = vmatprep.subr.mxu0 0.0
    %560 = vmatpush2.msra.mxu0 0.0
    %561 = vmatprep.mubr.f32.mxu0 0.0
    %562 = vmatmul.mubr.f32.gmra.mxu0 %v361
    %v563 = vpop.f32.mrf.mxu0
    %v564 = vadd.f32 %v350, %v563
    %v565 = vpop.f32.mrf.mxu0
    %v566 = vadd.f32 %v354, %v565
    %567 = vmatprep.mubr.f32.mxu0 0.0
    %568 = vmatmul.mubr.f32.gmra.mxu0 %v364
    %v569 = vpop.f32.mrf.mxu0
    %v570 = vadd.f32 %v350, %v569
    %v571 = vpop.f32.mrf.mxu0
    %v572 = vadd.f32 %v354, %v571
    %573 = vmatprep.mubr.f32.mxu0 0.0
    %574 = vmatmul.mubr.f32.gmra.mxu0 %v367
    %v575 = vpop.f32.mrf.mxu0
    %v576 = vadd.f32 %v350, %v575
    %v577 = vpop.f32.mrf.mxu0
    %v578 = vadd.f32 %v354, %v577
    %579 = vmatprep.mubr.f32.mxu0 0.0
    %580 = vmatmul.mubr.f32.gmra.mxu0 %v370
    %v581 = vpop.f32.mrf.mxu0
    %v582 = vadd.f32 %v350, %v581
    %v583 = vpop.f32.mrf.mxu0
    %v584 = vadd.f32 %v354, %v583
    %585 = vmatprep.mubr.f32.mxu0 0.0
    %586 = vmatmul.mubr.f32.gmra.mxu0 %v373
    %v587 = vpop.f32.mrf.mxu0
    %v588 = vadd.f32 %v350, %v587
    %v589 = vpop.f32.mrf.mxu0
    %v590 = vadd.f32 %v354, %v589
    %591 = vmatprep.mubr.f32.mxu0 0.0
    %592 = vmatmul.mubr.f32.gmra.mxu0 %v376
    %v593 = vpop.f32.mrf.mxu0
    %v594 = vadd.f32 %v350, %v593
    %v595 = vpop.f32.mrf.mxu0
    %v596 = vadd.f32 %v354, %v595
    %597 = vmatprep.mubr.f32.mxu0 0.0
    %598 = vmatmul.mubr.f32.gmra.mxu0 %v379
    %v599 = vpop.f32.mrf.mxu0
    %v600 = vadd.f32 %v350, %v599
    %v601 = vpop.f32.mrf.mxu0
    %v602 = vadd.f32 %v354, %v601
    %603 = vmatprep.mubr.f32.mxu0 0.0
    %604 = vmatmul.mubr.f32.gmra.mxu0 %v382
    %v605 = vpop.f32.mrf.mxu0
    %v606 = vadd.f32 %v350, %v605
    %v607 = vpop.f32.mrf.mxu0
    %v608 = vadd.f32 %v354, %v607
    %609 = vdwg.mxu0
    %v611 = vlaneseq
    %v612 = vshrl.u32 %v611, 7
    %v613 = vsub.s32 0, %v612
    %v614 = vrot.slane %v337, %v613
    %v615 = vlaneseq
    %v616 = vshrl.u32 %v615, 7
    %v617 = vsub.s32 1, %v616
    %v618 = vrot.slane %v337, %v617
    %v619 = vlaneseq
    %v620 = vshrl.u32 %v619, 7
    %v621 = vsub.s32 2, %v620
    %v622 = vrot.slane %v337, %v621
    %v623 = vlaneseq
    %v624 = vshrl.u32 %v623, 7
    %v625 = vsub.s32 3, %v624
    %v626 = vrot.slane %v337, %v625
    %631 = vmatprep.subr.mxu0 0.0
    %632 = vmatpush1.msra.mxu0 0.0
    %633 = vmatprep.subr.mxu0 0.0
    %634 = vmatpush1.msra.mxu0 0.0
    %635 = vmatprep.subr.mxu0 0.0
    %636 = vmatpush1.msra.mxu0 0.0
    %637 = vmatprep.subr.mxu0 0.0
    %638 = vmatpush1.msra.mxu0 0.0
    %639 = vmatprep.subr.mxu0 0.0
    %640 = vmatpush1.msra.mxu0 0.0
    %641 = vmatprep.subr.mxu0 0.0
    %642 = vmatpush1.msra.mxu0 0.0
    %643 = vmatprep.subr.mxu0 0.0
    %644 = vmatpush1.msra.mxu0 0.0
    %645 = vmatprep.subr.mxu0 0.0
    %646 = vmatpush1.msra.mxu0 0.0
    %647 = vmatprep.subr.mxu0 0.0
    %648 = vmatpush1.msra.mxu0 0.0
    %649 = vmatprep.subr.mxu0 0.0
    %650 = vmatpush1.msra.mxu0 0.0
    %651 = vmatprep.subr.mxu0 0.0
    %652 = vmatpush1.msra.mxu0 0.0
    %653 = vmatprep.subr.mxu0 0.0
    %654 = vmatpush1.msra.mxu0 0.0
    %655 = vmatprep.subr.mxu0 %v270
    %656 = vmatpush1.msra.mxu0 %v269
    %657 = vmatprep.subr.mxu0 %v266
    %658 = vmatpush1.msra.mxu0 %v265
    %659 = vmatprep.subr.mxu0 %v262
    %660 = vmatpush1.msra.mxu0 %v261
    %661 = vmatprep.subr.mxu0 %v258
    %662 = vmatpush1.msra.mxu0 %v257
    %663 = vmatprep.subr.mxu0 0.0
    %664 = vmatpush2.msra.mxu0 0.0
    %665 = vmatprep.subr.mxu0 0.0
    %666 = vmatpush2.msra.mxu0 0.0
    %667 = vmatprep.subr.mxu0 0.0
    %668 = vmatpush2.msra.mxu0 0.0
    %669 = vmatprep.subr.mxu0 0.0
    %670 = vmatpush2.msra.mxu0 0.0
    %671 = vmatprep.subr.mxu0 0.0
    %672 = vmatpush2.msra.mxu0 0.0
    %673 = vmatprep.subr.mxu0 0.0
    %674 = vmatpush2.msra.mxu0 0.0
    %675 = vmatprep.subr.mxu0 0.0
    %676 = vmatpush2.msra.mxu0 0.0
    %677 = vmatprep.subr.mxu0 0.0
    %678 = vmatpush2.msra.mxu0 0.0
    %679 = vmatprep.subr.mxu0 0.0
    %680 = vmatpush2.msra.mxu0 0.0
    %681 = vmatprep.subr.mxu0 0.0
    %682 = vmatpush2.msra.mxu0 0.0
    %683 = vmatprep.subr.mxu0 0.0
    %684 = vmatpush2.msra.mxu0 0.0
    %685 = vmatprep.subr.mxu0 0.0
    %686 = vmatpush2.msra.mxu0 0.0
    %687 = vmatprep.subr.mxu0 0.0
    %688 = vmatpush2.msra.mxu0 0.0
    %689 = vmatprep.subr.mxu0 0.0
    %690 = vmatpush2.msra.mxu0 0.0
    %691 = vmatprep.subr.mxu0 0.0
    %692 = vmatpush2.msra.mxu0 0.0
    %693 = vmatprep.subr.mxu0 0.0
    %694 = vmatpush2.msra.mxu0 0.0
    %695 = vmatprep.mubr.f32.mxu0 0.0
    %696 = vmatmul.mubr.f32.gmra.mxu0 %v361
    %v697 = vpop.f32.mrf.mxu0
    %v698 = vadd.f32 %v614, %v697
    %v699 = vpop.f32.mrf.mxu0
    %v700 = vadd.f32 %v618, %v699
    %701 = vmatprep.mubr.f32.mxu0 0.0
    %702 = vmatmul.mubr.f32.gmra.mxu0 %v364
    %v703 = vpop.f32.mrf.mxu0
    %v704 = vadd.f32 %v614, %v703
    %v705 = vpop.f32.mrf.mxu0
    %v706 = vadd.f32 %v618, %v705
    %707 = vmatprep.mubr.f32.mxu0 0.0
    %708 = vmatmul.mubr.f32.gmra.mxu0 %v367
    %v709 = vpop.f32.mrf.mxu0
    %v710 = vadd.f32 %v614, %v709
    %v711 = vpop.f32.mrf.mxu0
    %v712 = vadd.f32 %v618, %v711
    %713 = vmatprep.mubr.f32.mxu0 0.0
    %714 = vmatmul.mubr.f32.gmra.mxu0 %v370
    %v715 = vpop.f32.mrf.mxu0
    %v716 = vadd.f32 %v614, %v715
    %v717 = vpop.f32.mrf.mxu0
    %v718 = vadd.f32 %v618, %v717
    %719 = vmatprep.mubr.f32.mxu0 0.0
    %720 = vmatmul.mubr.f32.gmra.mxu0 %v373
    %v721 = vpop.f32.mrf.mxu0
    %v722 = vadd.f32 %v614, %v721
    %v723 = vpop.f32.mrf.mxu0
    %v724 = vadd.f32 %v618, %v723
    %725 = vmatprep.mubr.f32.mxu0 0.0
    %726 = vmatmul.mubr.f32.gmra.mxu0 %v376
    %v727 = vpop.f32.mrf.mxu0
    %v728 = vadd.f32 %v614, %v727
    %v729 = vpop.f32.mrf.mxu0
    %v730 = vadd.f32 %v618, %v729
    %731 = vmatprep.mubr.f32.mxu0 0.0
    %732 = vmatmul.mubr.f32.gmra.mxu0 %v379
    %v733 = vpop.f32.mrf.mxu0
    %v734 = vadd.f32 %v614, %v733
    %v735 = vpop.f32.mrf.mxu0
    %v736 = vadd.f32 %v618, %v735
    %737 = vmatprep.mubr.f32.mxu0 0.0
    %738 = vmatmul.mubr.f32.gmra.mxu0 %v382
    %v739 = vpop.f32.mrf.mxu0
    %v740 = vadd.f32 %v614, %v739
    %v741 = vpop.f32.mrf.mxu0
    %v742 = vadd.f32 %v618, %v741
    %743 = vdwg.mxu0
    %744 = vmatprep.subr.mxu0 0.0
    %745 = vmatpush1.msra.mxu0 0.0
    %746 = vmatprep.subr.mxu0 0.0
    %747 = vmatpush1.msra.mxu0 0.0
    %748 = vmatprep.subr.mxu0 0.0
    %749 = vmatpush1.msra.mxu0 0.0
    %750 = vmatprep.subr.mxu0 0.0
    %751 = vmatpush1.msra.mxu0 0.0
    %752 = vmatprep.subr.mxu0 0.0
    %753 = vmatpush1.msra.mxu0 0.0
    %754 = vmatprep.subr.mxu0 0.0
    %755 = vmatpush1.msra.mxu0 0.0
    %756 = vmatprep.subr.mxu0 0.0
    %757 = vmatpush1.msra.mxu0 0.0
    %758 = vmatprep.subr.mxu0 0.0
    %759 = vmatpush1.msra.mxu0 0.0
    %760 = vmatprep.subr.mxu0 0.0
    %761 = vmatpush1.msra.mxu0 0.0
    %762 = vmatprep.subr.mxu0 0.0
    %763 = vmatpush1.msra.mxu0 0.0
    %764 = vmatprep.subr.mxu0 0.0
    %765 = vmatpush1.msra.mxu0 0.0
    %766 = vmatprep.subr.mxu0 0.0
    %767 = vmatpush1.msra.mxu0 0.0
    %768 = vmatprep.subr.mxu0 %v272
    %769 = vmatpush1.msra.mxu0 %v271
    %770 = vmatprep.subr.mxu0 %v268
    %771 = vmatpush1.msra.mxu0 %v267
    %772 = vmatprep.subr.mxu0 %v264
    %773 = vmatpush1.msra.mxu0 %v263
    %774 = vmatprep.subr.mxu0 %v260
    %775 = vmatpush1.msra.mxu0 %v259
    %776 = vmatprep.subr.mxu0 0.0
    %777 = vmatpush2.msra.mxu0 0.0
    %778 = vmatprep.subr.mxu0 0.0
    %779 = vmatpush2.msra.mxu0 0.0
    %780 = vmatprep.subr.mxu0 0.0
    %781 = vmatpush2.msra.mxu0 0.0
    %782 = vmatprep.subr.mxu0 0.0
    %783 = vmatpush2.msra.mxu0 0.0
    %784 = vmatprep.subr.mxu0 0.0
    %785 = vmatpush2.msra.mxu0 0.0
    %786 = vmatprep.subr.mxu0 0.0
    %787 = vmatpush2.msra.mxu0 0.0
    %788 = vmatprep.subr.mxu0 0.0
    %789 = vmatpush2.msra.mxu0 0.0
    %790 = vmatprep.subr.mxu0 0.0
    %791 = vmatpush2.msra.mxu0 0.0
    %792 = vmatprep.subr.mxu0 0.0
    %793 = vmatpush2.msra.mxu0 0.0
    %794 = vmatprep.subr.mxu0 0.0
    %795 = vmatpush2.msra.mxu0 0.0
    %796 = vmatprep.subr.mxu0 0.0
    %797 = vmatpush2.msra.mxu0 0.0
    %798 = vmatprep.subr.mxu0 0.0
    %799 = vmatpush2.msra.mxu0 0.0
    %800 = vmatprep.subr.mxu0 0.0
    %801 = vmatpush2.msra.mxu0 0.0
    %802 = vmatprep.subr.mxu0 0.0
    %803 = vmatpush2.msra.mxu0 0.0
    %804 = vmatprep.subr.mxu0 0.0
    %805 = vmatpush2.msra.mxu0 0.0
    %806 = vmatprep.subr.mxu0 0.0
    %807 = vmatpush2.msra.mxu0 0.0
    %808 = vmatprep.mubr.f32.mxu0 0.0
    %809 = vmatmul.mubr.f32.gmra.mxu0 %v361
    %v810 = vpop.f32.mrf.mxu0
    %v811 = vadd.f32 %v622, %v810
    %v812 = vpop.f32.mrf.mxu0
    %v813 = vadd.f32 %v626, %v812
    %814 = vmatprep.mubr.f32.mxu0 0.0
    %815 = vmatmul.mubr.f32.gmra.mxu0 %v364
    %v816 = vpop.f32.mrf.mxu0
    %v817 = vadd.f32 %v622, %v816
    %v818 = vpop.f32.mrf.mxu0
    %v819 = vadd.f32 %v626, %v818
    %820 = vmatprep.mubr.f32.mxu0 0.0
    %821 = vmatmul.mubr.f32.gmra.mxu0 %v367
    %v822 = vpop.f32.mrf.mxu0
    %v823 = vadd.f32 %v622, %v822
    %v824 = vpop.f32.mrf.mxu0
    %v825 = vadd.f32 %v626, %v824
    %826 = vmatprep.mubr.f32.mxu0 0.0
    %827 = vmatmul.mubr.f32.gmra.mxu0 %v370
    %v828 = vpop.f32.mrf.mxu0
    %v829 = vadd.f32 %v622, %v828
    %v830 = vpop.f32.mrf.mxu0
    %v831 = vadd.f32 %v626, %v830
    %832 = vmatprep.mubr.f32.mxu0 0.0
    %833 = vmatmul.mubr.f32.gmra.mxu0 %v373
    %v834 = vpop.f32.mrf.mxu0
    %v835 = vadd.f32 %v622, %v834
    %v836 = vpop.f32.mrf.mxu0
    %v837 = vadd.f32 %v626, %v836
    %838 = vmatprep.mubr.f32.mxu0 0.0
    %839 = vmatmul.mubr.f32.gmra.mxu0 %v376
    %v840 = vpop.f32.mrf.mxu0
    %v841 = vadd.f32 %v622, %v840
    %v842 = vpop.f32.mrf.mxu0
    %v843 = vadd.f32 %v626, %v842
    %844 = vmatprep.mubr.f32.mxu0 0.0
    %845 = vmatmul.mubr.f32.gmra.mxu0 %v379
    %v846 = vpop.f32.mrf.mxu0
    %v847 = vadd.f32 %v622, %v846
    %v848 = vpop.f32.mrf.mxu0
    %v849 = vadd.f32 %v626, %v848
    %850 = vmatprep.mubr.f32.mxu0 0.0
    %851 = vmatmul.mubr.f32.gmra.mxu0 %v382
    %v852 = vpop.f32.mrf.mxu0
    %v853 = vadd.f32 %v622, %v852
    %v854 = vpop.f32.mrf.mxu0
    %v855 = vadd.f32 %v626, %v854
    %856 = vdwg.mxu0
    %857 = vmatprep.subr.mxu0 %v253
    %858 = vmatpush1.msra.mxu0 %v252
    %859 = vmatprep.subr.mxu0 %v249
    %860 = vmatpush1.msra.mxu0 %v248
    %861 = vmatprep.subr.mxu0 %v245
    %862 = vmatpush1.msra.mxu0 %v244
    %863 = vmatprep.subr.mxu0 %v241
    %864 = vmatpush1.msra.mxu0 %v240
    %865 = vmatprep.subr.mxu0 %v237
    %866 = vmatpush1.msra.mxu0 %v236
    %867 = vmatprep.subr.mxu0 %v233
    %868 = vmatpush1.msra.mxu0 %v232
    %869 = vmatprep.subr.mxu0 %v229
    %870 = vmatpush1.msra.mxu0 %v228
    %871 = vmatprep.subr.mxu0 %v225
    %872 = vmatpush1.msra.mxu0 %v224
    %873 = vmatprep.subr.mxu0 %v221
    %874 = vmatpush1.msra.mxu0 %v220
    %875 = vmatprep.subr.mxu0 %v217
    %876 = vmatpush1.msra.mxu0 %v216
    %877 = vmatprep.subr.mxu0 %v213
    %878 = vmatpush1.msra.mxu0 %v212
    %879 = vmatprep.subr.mxu0 %v209
    %880 = vmatpush1.msra.mxu0 %v208
    %881 = vmatprep.subr.mxu0 %v205
    %882 = vmatpush1.msra.mxu0 %v204
    %883 = vmatprep.subr.mxu0 %v201
    %884 = vmatpush1.msra.mxu0 %v200
    %885 = vmatprep.subr.mxu0 %v197
    %886 = vmatpush1.msra.mxu0 %v196
    %887 = vmatprep.subr.mxu0 %v193
    %888 = vmatpush1.msra.mxu0 %v192
    %889 = vmatprep.subr.mxu0 0.0
    %890 = vmatpush2.msra.mxu0 0.0
    %891 = vmatprep.subr.mxu0 0.0
    %892 = vmatpush2.msra.mxu0 0.0
    %893 = vmatprep.subr.mxu0 0.0
    %894 = vmatpush2.msra.mxu0 0.0
    %895 = vmatprep.subr.mxu0 0.0
    %896 = vmatpush2.msra.mxu0 0.0
    %897 = vmatprep.subr.mxu0 0.0
    %898 = vmatpush2.msra.mxu0 0.0
    %899 = vmatprep.subr.mxu0 0.0
    %900 = vmatpush2.msra.mxu0 0.0
    %901 = vmatprep.subr.mxu0 0.0
    %902 = vmatpush2.msra.mxu0 0.0
    %903 = vmatprep.subr.mxu0 0.0
    %904 = vmatpush2.msra.mxu0 0.0
    %905 = vmatprep.subr.mxu0 0.0
    %906 = vmatpush2.msra.mxu0 0.0
    %907 = vmatprep.subr.mxu0 0.0
    %908 = vmatpush2.msra.mxu0 0.0
    %909 = vmatprep.subr.mxu0 0.0
    %910 = vmatpush2.msra.mxu0 0.0
    %911 = vmatprep.subr.mxu0 0.0
    %912 = vmatpush2.msra.mxu0 0.0
    %913 = vmatprep.subr.mxu0 0.0
    %914 = vmatpush2.msra.mxu0 0.0
    %915 = vmatprep.subr.mxu0 0.0
    %916 = vmatpush2.msra.mxu0 0.0
    %917 = vmatprep.subr.mxu0 0.0
    %918 = vmatpush2.msra.mxu0 0.0
    %919 = vmatprep.subr.mxu0 0.0
    %920 = vmatpush2.msra.mxu0 0.0
    %921 = vmatprep.mubr.f32.mxu0 0.0
    %922 = vmatmul.mubr.f32.gmra.mxu0 0.0
    %v923 = vpop.f32.mrf.mxu0
    %v924 = vadd.f32 0.0, %v923
    %v925 = vpop.f32.mrf.mxu0
    %v926 = vadd.f32 0.0, %v925
    %927 = vdwg.mxu0
    %928 = vmatprep.subr.mxu0 %v255
    %929 = vmatpush1.msra.mxu0 %v254
    %930 = vmatprep.subr.mxu0 %v251
    %931 = vmatpush1.msra.mxu0 %v250
    %932 = vmatprep.subr.mxu0 %v247
    %933 = vmatpush1.msra.mxu0 %v246
    %934 = vmatprep.subr.mxu0 %v243
    %935 = vmatpush1.msra.mxu0 %v242
    %936 = vmatprep.subr.mxu0 %v239
    %937 = vmatpush1.msra.mxu0 %v238
    %938 = vmatprep.subr.mxu0 %v235
    %939 = vmatpush1.msra.mxu0 %v234
    %940 = vmatprep.subr.mxu0 %v231
    %941 = vmatpush1.msra.mxu0 %v230
    %942 = vmatprep.subr.mxu0 %v227
    %943 = vmatpush1.msra.mxu0 %v226
    %944 = vmatprep.subr.mxu0 %v223
    %945 = vmatpush1.msra.mxu0 %v222
    %946 = vmatprep.subr.mxu0 %v219
    %947 = vmatpush1.msra.mxu0 %v218
    %948 = vmatprep.subr.mxu0 %v215
    %949 = vmatpush1.msra.mxu0 %v214
    %950 = vmatprep.subr.mxu0 %v211
    %951 = vmatpush1.msra.mxu0 %v210
    %952 = vmatprep.subr.mxu0 %v207
    %953 = vmatpush1.msra.mxu0 %v206
    %954 = vmatprep.subr.mxu0 %v203
    %955 = vmatpush1.msra.mxu0 %v202
    %956 = vmatprep.subr.mxu0 %v199
    %957 = vmatpush1.msra.mxu0 %v198
    %958 = vmatprep.subr.mxu0 %v195
    %959 = vmatpush1.msra.mxu0 %v194
    %960 = vmatprep.subr.mxu0 0.0
    %961 = vmatpush2.msra.mxu0 0.0
    %962 = vmatprep.subr.mxu0 0.0
    %963 = vmatpush2.msra.mxu0 0.0
    %964 = vmatprep.subr.mxu0 0.0
    %965 = vmatpush2.msra.mxu0 0.0
    %966 = vmatprep.subr.mxu0 0.0
    %967 = vmatpush2.msra.mxu0 0.0
    %968 = vmatprep.subr.mxu0 0.0
    %969 = vmatpush2.msra.mxu0 0.0
    %970 = vmatprep.subr.mxu0 0.0
    %971 = vmatpush2.msra.mxu0 0.0
    %972 = vmatprep.subr.mxu0 0.0
    %973 = vmatpush2.msra.mxu0 0.0
    %974 = vmatprep.subr.mxu0 0.0
    %975 = vmatpush2.msra.mxu0 0.0
    %976 = vmatprep.subr.mxu0 0.0
    %977 = vmatpush2.msra.mxu0 0.0
    %978 = vmatprep.subr.mxu0 0.0
    %979 = vmatpush2.msra.mxu0 0.0
    %980 = vmatprep.subr.mxu0 0.0
    %981 = vmatpush2.msra.mxu0 0.0
    %982 = vmatprep.subr.mxu0 0.0
    %983 = vmatpush2.msra.mxu0 0.0
    %984 = vmatprep.subr.mxu0 0.0
    %985 = vmatpush2.msra.mxu0 0.0
    %986 = vmatprep.subr.mxu0 0.0
    %987 = vmatpush2.msra.mxu0 0.0
    %988 = vmatprep.subr.mxu0 0.0
    %989 = vmatpush2.msra.mxu0 0.0
    %990 = vmatprep.subr.mxu0 0.0
    %991 = vmatpush2.msra.mxu0 0.0
    %992 = vmatprep.mubr.f32.mxu0 0.0
    %993 = vmatmul.mubr.f32.gmra.mxu0 0.0
    %v994 = vpop.f32.mrf.mxu0
    %v995 = vadd.f32 0.0, %v994
    %v996 = vpop.f32.mrf.mxu0
    %v997 = vadd.f32 0.0, %v996
    %998 = vdwg.mxu0
    %v999 = vadd.f32 %v451, %v924
    %v1000 = vadd.f32 %v453, %v926
    %v1001 = vadd.f32 %v564, %v995
    %v1002 = vadd.f32 %v566, %v997
    %v1003 = vxor.u32 %v999, 2147483648
    %v1004 = vmul.f32 %v1003, 1.442695
    %v1005 = vpow.pop %v1004
    %v1006 = vadd.f32 %v1005, 1.0
    %v1007 = vrcp.pop %v1006
    %v1008 = vmul.f32 1.0, %v1007
    %v1009 = vxor.u32 %v1000, 2147483648
    %v1010 = vmul.f32 %v1009, 1.442695
    %v1011 = vpow.pop %v1010
    %v1012 = vadd.f32 %v1011, 1.0
    %v1013 = vrcp.pop %v1012
    %v1014 = vmul.f32 1.0, %v1013
    %v1015 = vtanh.pop %v1001
    %v1016 = vxor.u32 %v1002, 2147483648
    %v1017 = vmul.f32 %v1016, 1.442695
    %v1018 = vpow.pop %v1017
    %v1019 = vadd.f32 %v1018, 1.0
    %v1020 = vrcp.pop %v1019
    %v1021 = vmul.f32 1.0, %v1020
    %v1022 = vmul.f32 %v1014, 0.0
    %v1023 = vmul.f32 %v1008, %v1015
    %v1024 = vadd.f32 %v1022, %v1023
    %v1025 = vtanh.pop %v1024
    %v1026 = vmul.f32 %v1021, %v1025
    %1027 = vmatprep.subr.mxu0 %v334
    %1028 = vmatpush1.msra.mxu0 %v333
    %1029 = vmatprep.subr.mxu0 %v330
    %1030 = vmatpush1.msra.mxu0 %v329
    %1031 = vmatprep.subr.mxu0 %v326
    %1032 = vmatpush1.msra.mxu0 %v325
    %1033 = vmatprep.subr.mxu0 %v322
    %1034 = vmatpush1.msra.mxu0 %v321
    %1035 = vmatprep.subr.mxu0 %v318
    %1036 = vmatpush1.msra.mxu0 %v317
    %1037 = vmatprep.subr.mxu0 %v314
    %1038 = vmatpush1.msra.mxu0 %v313
    %1039 = vmatprep.subr.mxu0 %v310
    %1040 = vmatpush1.msra.mxu0 %v309
    %1041 = vmatprep.subr.mxu0 %v306
    %1042 = vmatpush1.msra.mxu0 %v305
    %1043 = vmatprep.subr.mxu0 %v302
    %1044 = vmatpush1.msra.mxu0 %v301
    %1045 = vmatprep.subr.mxu0 %v298
    %1046 = vmatpush1.msra.mxu0 %v297
    %1047 = vmatprep.subr.mxu0 %v294
    %1048 = vmatpush1.msra.mxu0 %v293
    %1049 = vmatprep.subr.mxu0 %v290
    %1050 = vmatpush1.msra.mxu0 %v289
    %1051 = vmatprep.subr.mxu0 %v286
    %1052 = vmatpush1.msra.mxu0 %v285
    %1053 = vmatprep.subr.mxu0 %v282
    %1054 = vmatpush1.msra.mxu0 %v281
    %1055 = vmatprep.subr.mxu0 %v278
    %1056 = vmatpush1.msra.mxu0 %v277
    %1057 = vmatprep.subr.mxu0 %v274
    %1058 = vmatpush1.msra.mxu0 %v273
    %1059 = vmatprep.subr.mxu0 0.0
    %1060 = vmatpush2.msra.mxu0 0.0
    %1061 = vmatprep.subr.mxu0 0.0
    %1062 = vmatpush2.msra.mxu0 0.0
    %1063 = vmatprep.subr.mxu0 0.0
    %1064 = vmatpush2.msra.mxu0 0.0
    %1065 = vmatprep.subr.mxu0 0.0
    %1066 = vmatpush2.msra.mxu0 0.0
    %1067 = vmatprep.subr.mxu0 0.0
    %1068 = vmatpush2.msra.mxu0 0.0
    %1069 = vmatprep.subr.mxu0 0.0
    %1070 = vmatpush2.msra.mxu0 0.0
    %1071 = vmatprep.subr.mxu0 0.0
    %1072 = vmatpush2.msra.mxu0 0.0
    %1073 = vmatprep.subr.mxu0 0.0
    %1074 = vmatpush2.msra.mxu0 0.0
    %1075 = vmatprep.subr.mxu0 0.0
    %1076 = vmatpush2.msra.mxu0 0.0
    %1077 = vmatprep.subr.mxu0 0.0
    %1078 = vmatpush2.msra.mxu0 0.0
    %1079 = vmatprep.subr.mxu0 0.0
    %1080 = vmatpush2.msra.mxu0 0.0
    %1081 = vmatprep.subr.mxu0 0.0
    %1082 = vmatpush2.msra.mxu0 0.0
    %1083 = vmatprep.subr.mxu0 0.0
    %1084 = vmatpush2.msra.mxu0 0.0
    %1085 = vmatprep.subr.mxu0 0.0
    %1086 = vmatpush2.msra.mxu0 0.0
    %1087 = vmatprep.subr.mxu0 0.0
    %1088 = vmatpush2.msra.mxu0 0.0
    %1089 = vmatprep.subr.mxu0 0.0
    %1090 = vmatpush2.msra.mxu0 0.0
    %1091 = vmatprep.mubr.f32.mxu0 0.0
    %1092 = vmatmul.mubr.f32.gmra.mxu0 0.0
    %v1093 = vpop.f32.mrf.mxu0
    %v1094 = vadd.f32 0.0, %v1093
    %v1095 = vpop.f32.mrf.mxu0
    %v1096 = vadd.f32 0.0, %v1095
    %1097 = vdwg.mxu0
    %1098 = vmatprep.subr.mxu0 %v336
    %1099 = vmatpush1.msra.mxu0 %v335
    %1100 = vmatprep.subr.mxu0 %v332
    %1101 = vmatpush1.msra.mxu0 %v331
    %1102 = vmatprep.subr.mxu0 %v328
    %1103 = vmatpush1.msra.mxu0 %v327
    %1104 = vmatprep.subr.mxu0 %v324
    %1105 = vmatpush1.msra.mxu0 %v323
    %1106 = vmatprep.subr.mxu0 %v320
    %1107 = vmatpush1.msra.mxu0 %v319
    %1108 = vmatprep.subr.mxu0 %v316
    %1109 = vmatpush1.msra.mxu0 %v315
    %1110 = vmatprep.subr.mxu0 %v312
    %1111 = vmatpush1.msra.mxu0 %v311
    %1112 = vmatprep.subr.mxu0 %v308
    %1113 = vmatpush1.msra.mxu0 %v307
    %1114 = vmatprep.subr.mxu0 %v304
    %1115 = vmatpush1.msra.mxu0 %v303
    %1116 = vmatprep.subr.mxu0 %v300
    %1117 = vmatpush1.msra.mxu0 %v299
    %1118 = vmatprep.subr.mxu0 %v296
    %1119 = vmatpush1.msra.mxu0 %v295
    %1120 = vmatprep.subr.mxu0 %v292
    %1121 = vmatpush1.msra.mxu0 %v291
    %1122 = vmatprep.subr.mxu0 %v288
    %1123 = vmatpush1.msra.mxu0 %v287
    %1124 = vmatprep.subr.mxu0 %v284
    %1125 = vmatpush1.msra.mxu0 %v283
    %1126 = vmatprep.subr.mxu0 %v280
    %1127 = vmatpush1.msra.mxu0 %v279
    %1128 = vmatprep.subr.mxu0 %v276
    %1129 = vmatpush1.msra.mxu0 %v275
    %1130 = vmatprep.subr.mxu0 0.0
    %1131 = vmatpush2.msra.mxu0 0.0
    %1132 = vmatprep.subr.mxu0 0.0
    %1133 = vmatpush2.msra.mxu0 0.0
    %1134 = vmatprep.subr.mxu0 0.0
    %1135 = vmatpush2.msra.mxu0 0.0
    %1136 = vmatprep.subr.mxu0 0.0
    %1137 = vmatpush2.msra.mxu0 0.0
    %1138 = vmatprep.subr.mxu0 0.0
    %1139 = vmatpush2.msra.mxu0 0.0
    %1140 = vmatprep.subr.mxu0 0.0
    %1141 = vmatpush2.msra.mxu0 0.0
    %1142 = vmatprep.subr.mxu0 0.0
    %1143 = vmatpush2.msra.mxu0 0.0
    %1144 = vmatprep.subr.mxu0 0.0
    %1145 = vmatpush2.msra.mxu0 0.0
    %1146 = vmatprep.subr.mxu0 0.0
    %1147 = vmatpush2.msra.mxu0 0.0
    %1148 = vmatprep.subr.mxu0 0.0
    %1149 = vmatpush2.msra.mxu0 0.0
    %1150 = vmatprep.subr.mxu0 0.0
    %1151 = vmatpush2.msra.mxu0 0.0
    %1152 = vmatprep.subr.mxu0 0.0
    %1153 = vmatpush2.msra.mxu0 0.0
    %1154 = vmatprep.subr.mxu0 0.0
    %1155 = vmatpush2.msra.mxu0 0.0
    %1156 = vmatprep.subr.mxu0 0.0
    %1157 = vmatpush2.msra.mxu0 0.0
    %1158 = vmatprep.subr.mxu0 0.0
    %1159 = vmatpush2.msra.mxu0 0.0
    %1160 = vmatprep.subr.mxu0 0.0
    %1161 = vmatpush2.msra.mxu0 0.0
    %1162 = vmatprep.mubr.f32.mxu0 0.0
    %1163 = vmatmul.mubr.f32.gmra.mxu0 0.0
    %v1164 = vpop.f32.mrf.mxu0
    %v1165 = vadd.f32 0.0, %v1164
    %v1166 = vpop.f32.mrf.mxu0
    %v1167 = vadd.f32 0.0, %v1166
    %1168 = vdwg.mxu0
    %v1169 = vadd.f32 %v740, %v1094
    %v1170 = vadd.f32 %v742, %v1096
    %v1171 = vadd.f32 %v853, %v1165
    %v1172 = vadd.f32 %v855, %v1167
    %v1173 = vxor.u32 %v1169, 2147483648
    %v1174 = vmul.f32 %v1173, 1.442695
    %v1175 = vpow.pop %v1174
    %v1176 = vadd.f32 %v1175, 1.0
    %v1177 = vrcp.pop %v1176
    %v1178 = vmul.f32 1.0, %v1177
    %v1179 = vxor.u32 %v1170, 2147483648
    %v1180 = vmul.f32 %v1179, 1.442695
    %v1181 = vpow.pop %v1180
    %v1182 = vadd.f32 %v1181, 1.0
    %v1183 = vrcp.pop %v1182
    %v1184 = vmul.f32 1.0, %v1183
    %v1185 = vtanh.pop %v1171
    %v1186 = vxor.u32 %v1172, 2147483648
    %v1187 = vmul.f32 %v1186, 1.442695
    %v1188 = vpow.pop %v1187
    %v1189 = vadd.f32 %v1188, 1.0
    %v1190 = vrcp.pop %v1189
    %v1191 = vmul.f32 1.0, %v1190
    %v1192 = vmul.f32 %v1184, 0.0
    %v1193 = vmul.f32 %v1178, %v1185
    %v1194 = vadd.f32 %v1192, %v1193
    %v1195 = vtanh.pop %v1194
    %v1196 = vmul.f32 %v1191, %v1195
    %1197 = vmatprep.subr.mxu0 %v253
    %1198 = vmatpush1.msra.mxu0 %v252
    %1199 = vmatprep.subr.mxu0 %v249
    %1200 = vmatpush1.msra.mxu0 %v248
    %1201 = vmatprep.subr.mxu0 %v245
    %1202 = vmatpush1.msra.mxu0 %v244
    %1203 = vmatprep.subr.mxu0 %v241
    %1204 = vmatpush1.msra.mxu0 %v240
    %1205 = vmatprep.subr.mxu0 %v237
    %1206 = vmatpush1.msra.mxu0 %v236
    %1207 = vmatprep.subr.mxu0 %v233
    %1208 = vmatpush1.msra.mxu0 %v232
    %1209 = vmatprep.subr.mxu0 %v229
    %1210 = vmatpush1.msra.mxu0 %v228
    %1211 = vmatprep.subr.mxu0 %v225
    %1212 = vmatpush1.msra.mxu0 %v224
    %1213 = vmatprep.subr.mxu0 %v221
    %1214 = vmatpush1.msra.mxu0 %v220
    %1215 = vmatprep.subr.mxu0 %v217
    %1216 = vmatpush1.msra.mxu0 %v216
    %1217 = vmatprep.subr.mxu0 %v213
    %1218 = vmatpush1.msra.mxu0 %v212
    %1219 = vmatprep.subr.mxu0 %v209
    %1220 = vmatpush1.msra.mxu0 %v208
    %1221 = vmatprep.subr.mxu0 %v205
    %1222 = vmatpush1.msra.mxu0 %v204
    %1223 = vmatprep.subr.mxu0 %v201
    %1224 = vmatpush1.msra.mxu0 %v200
    %1225 = vmatprep.subr.mxu0 %v197
    %1226 = vmatpush1.msra.mxu0 %v196
    %1227 = vmatprep.subr.mxu0 %v193
    %1228 = vmatpush1.msra.mxu0 %v192
    %1229 = vmatprep.subr.mxu0 0.0
    %1230 = vmatpush2.msra.mxu0 0.0
    %1231 = vmatprep.subr.mxu0 0.0
    %1232 = vmatpush2.msra.mxu0 0.0
    %1233 = vmatprep.subr.mxu0 0.0
    %1234 = vmatpush2.msra.mxu0 0.0
    %1235 = vmatprep.subr.mxu0 0.0
    %1236 = vmatpush2.msra.mxu0 0.0
    %1237 = vmatprep.subr.mxu0 0.0
    %1238 = vmatpush2.msra.mxu0 0.0
    %1239 = vmatprep.subr.mxu0 0.0
    %1240 = vmatpush2.msra.mxu0 0.0
    %1241 = vmatprep.subr.mxu0 0.0
    %1242 = vmatpush2.msra.mxu0 0.0
    %1243 = vmatprep.subr.mxu0 0.0
    %1244 = vmatpush2.msra.mxu0 0.0
    %1245 = vmatprep.subr.mxu0 0.0
    %1246 = vmatpush2.msra.mxu0 0.0
    %1247 = vmatprep.subr.mxu0 0.0
    %1248 = vmatpush2.msra.mxu0 0.0
    %1249 = vmatprep.subr.mxu0 0.0
    %1250 = vmatpush2.msra.mxu0 0.0
    %1251 = vmatprep.subr.mxu0 0.0
    %1252 = vmatpush2.msra.mxu0 0.0
    %1253 = vmatprep.subr.mxu0 0.0
    %1254 = vmatpush2.msra.mxu0 0.0
    %1255 = vmatprep.subr.mxu0 0.0
    %1256 = vmatpush2.msra.mxu0 0.0
    %1257 = vmatprep.subr.mxu0 0.0
    %1258 = vmatpush2.msra.mxu0 0.0
    %1259 = vmatprep.subr.mxu0 0.0
    %1260 = vmatpush2.msra.mxu0 0.0
    %1261 = vmatprep.mubr.f32.mxu0 0.0
    %1262 = vmatmul.mubr.f32.gmra.mxu0 %v1026
    %v1263 = vpop.f32.mrf.mxu0
    %v1264 = vadd.f32 0.0, %v1263
    %v1265 = vpop.f32.mrf.mxu0
    %v1266 = vadd.f32 0.0, %v1265
    %1267 = vdwg.mxu0
    %1268 = vmatprep.subr.mxu0 %v255
    %1269 = vmatpush1.msra.mxu0 %v254
    %1270 = vmatprep.subr.mxu0 %v251
    %1271 = vmatpush1.msra.mxu0 %v250
    %1272 = vmatprep.subr.mxu0 %v247
    %1273 = vmatpush1.msra.mxu0 %v246
    %1274 = vmatprep.subr.mxu0 %v243
    %1275 = vmatpush1.msra.mxu0 %v242
    %1276 = vmatprep.subr.mxu0 %v239
    %1277 = vmatpush1.msra.mxu0 %v238
    %1278 = vmatprep.subr.mxu0 %v235
    %1279 = vmatpush1.msra.mxu0 %v234
    %1280 = vmatprep.subr.mxu0 %v231
    %1281 = vmatpush1.msra.mxu0 %v230
    %1282 = vmatprep.subr.mxu0 %v227
    %1283 = vmatpush1.msra.mxu0 %v226
    %1284 = vmatprep.subr.mxu0 %v223
    %1285 = vmatpush1.msra.mxu0 %v222
    %1286 = vmatprep.subr.mxu0 %v219
    %1287 = vmatpush1.msra.mxu0 %v218
    %1288 = vmatprep.subr.mxu0 %v215
    %1289 = vmatpush1.msra.mxu0 %v214
    %1290 = vmatprep.subr.mxu0 %v211
    %1291 = vmatpush1.msra.mxu0 %v210
    %1292 = vmatprep.subr.mxu0 %v207
    %1293 = vmatpush1.msra.mxu0 %v206
    %1294 = vmatprep.subr.mxu0 %v203
    %1295 = vmatpush1.msra.mxu0 %v202
    %1296 = vmatprep.subr.mxu0 %v199
    %1297 = vmatpush1.msra.mxu0 %v198
    %1298 = vmatprep.subr.mxu0 %v195
    %1299 = vmatpush1.msra.mxu0 %v194
    %1300 = vmatprep.subr.mxu0 0.0
    %1301 = vmatpush2.msra.mxu0 0.0
    %1302 = vmatprep.subr.mxu0 0.0
    %1303 = vmatpush2.msra.mxu0 0.0
    %1304 = vmatprep.subr.mxu0 0.0
    %1305 = vmatpush2.msra.mxu0 0.0
    %1306 = vmatprep.subr.mxu0 0.0
    %1307 = vmatpush2.msra.mxu0 0.0
    %1308 = vmatprep.subr.mxu0 0.0
    %1309 = vmatpush2.msra.mxu0 0.0
    %1310 = vmatprep.subr.mxu0 0.0
    %1311 = vmatpush2.msra.mxu0 0.0
    %1312 = vmatprep.subr.mxu0 0.0
    %1313 = vmatpush2.msra.mxu0 0.0
    %1314 = vmatprep.subr.mxu0 0.0
    %1315 = vmatpush2.msra.mxu0 0.0
    %1316 = vmatprep.subr.mxu0 0.0
    %1317 = vmatpush2.msra.mxu0 0.0
    %1318 = vmatprep.subr.mxu0 0.0
    %1319 = vmatpush2.msra.mxu0 0.0
    %1320 = vmatprep.subr.mxu0 0.0
    %1321 = vmatpush2.msra.mxu0 0.0
    %1322 = vmatprep.subr.mxu0 0.0
    %1323 = vmatpush2.msra.mxu0 0.0
    %1324 = vmatprep.subr.mxu0 0.0
    %1325 = vmatpush2.msra.mxu0 0.0
    %1326 = vmatprep.subr.mxu0 0.0
    %1327 = vmatpush2.msra.mxu0 0.0
    %1328 = vmatprep.subr.mxu0 0.0
    %1329 = vmatpush2.msra.mxu0 0.0
    %1330 = vmatprep.subr.mxu0 0.0
    %1331 = vmatpush2.msra.mxu0 0.0
    %1332 = vmatprep.mubr.f32.mxu0 0.0
    %1333 = vmatmul.mubr.f32.gmra.mxu0 %v1026
    %v1334 = vpop.f32.mrf.mxu0
    %v1335 = vadd.f32 0.0, %v1334
    %v1336 = vpop.f32.mrf.mxu0
    %v1337 = vadd.f32 0.0, %v1336
    %1338 = vdwg.mxu0
    %v1339 = vadd.f32 %v457, %v1264
    %v1340 = vadd.f32 %v459, %v1266
    %v1341 = vadd.f32 %v570, %v1335
    %v1342 = vadd.f32 %v572, %v1337
    %v1343 = vxor.u32 %v1339, 2147483648
    %v1344 = vmul.f32 %v1343, 1.442695
    %v1345 = vpow.pop %v1344
    %v1346 = vadd.f32 %v1345, 1.0
    %v1347 = vrcp.pop %v1346
    %v1348 = vmul.f32 1.0, %v1347
    %v1349 = vxor.u32 %v1340, 2147483648
    %v1350 = vmul.f32 %v1349, 1.442695
    %v1351 = vpow.pop %v1350
    %v1352 = vadd.f32 %v1351, 1.0
    %v1353 = vrcp.pop %v1352
    %v1354 = vmul.f32 1.0, %v1353
    %v1355 = vtanh.pop %v1341
    %v1356 = vxor.u32 %v1342, 2147483648
    %v1357 = vmul.f32 %v1356, 1.442695
    %v1358 = vpow.pop %v1357
    %v1359 = vadd.f32 %v1358, 1.0
    %v1360 = vrcp.pop %v1359
    %v1361 = vmul.f32 1.0, %v1360
    %v1362 = vmul.f32 %v1354, %v1024
    %v1363 = vmul.f32 %v1348, %v1355
    %v1364 = vadd.f32 %v1362, %v1363
    %v1365 = vtanh.pop %v1364
    %v1366 = vmul.f32 %v1361, %v1365
    %1367 = vmatprep.subr.mxu0 %v334
    %1368 = vmatpush1.msra.mxu0 %v333
    %1369 = vmatprep.subr.mxu0 %v330
    %1370 = vmatpush1.msra.mxu0 %v329
    %1371 = vmatprep.subr.mxu0 %v326
    %1372 = vmatpush1.msra.mxu0 %v325
    %1373 = vmatprep.subr.mxu0 %v322
    %1374 = vmatpush1.msra.mxu0 %v321
    %1375 = vmatprep.subr.mxu0 %v318
    %1376 = vmatpush1.msra.mxu0 %v317
    %1377 = vmatprep.subr.mxu0 %v314
    %1378 = vmatpush1.msra.mxu0 %v313
    %1379 = vmatprep.subr.mxu0 %v310
    %1380 = vmatpush1.msra.mxu0 %v309
    %1381 = vmatprep.subr.mxu0 %v306
    %1382 = vmatpush1.msra.mxu0 %v305
    %1383 = vmatprep.subr.mxu0 %v302
    %1384 = vmatpush1.msra.mxu0 %v301
    %1385 = vmatprep.subr.mxu0 %v298
    %1386 = vmatpush1.msra.mxu0 %v297
    %1387 = vmatprep.subr.mxu0 %v294
    %1388 = vmatpush1.msra.mxu0 %v293
    %1389 = vmatprep.subr.mxu0 %v290
    %1390 = vmatpush1.msra.mxu0 %v289
    %1391 = vmatprep.subr.mxu0 %v286
    %1392 = vmatpush1.msra.mxu0 %v285
    %1393 = vmatprep.subr.mxu0 %v282
    %1394 = vmatpush1.msra.mxu0 %v281
    %1395 = vmatprep.subr.mxu0 %v278
    %1396 = vmatpush1.msra.mxu0 %v277
    %1397 = vmatprep.subr.mxu0 %v274
    %1398 = vmatpush1.msra.mxu0 %v273
    %1399 = vmatprep.subr.mxu0 0.0
    %1400 = vmatpush2.msra.mxu0 0.0
    %1401 = vmatprep.subr.mxu0 0.0
    %1402 = vmatpush2.msra.mxu0 0.0
    %1403 = vmatprep.subr.mxu0 0.0
    %1404 = vmatpush2.msra.mxu0 0.0
    %1405 = vmatprep.subr.mxu0 0.0
    %1406 = vmatpush2.msra.mxu0 0.0
    %1407 = vmatprep.subr.mxu0 0.0
    %1408 = vmatpush2.msra.mxu0 0.0
    %1409 = vmatprep.subr.mxu0 0.0
    %1410 = vmatpush2.msra.mxu0 0.0
    %1411 = vmatprep.subr.mxu0 0.0
    %1412 = vmatpush2.msra.mxu0 0.0
    %1413 = vmatprep.subr.mxu0 0.0
    %1414 = vmatpush2.msra.mxu0 0.0
    %1415 = vmatprep.subr.mxu0 0.0
    %1416 = vmatpush2.msra.mxu0 0.0
    %1417 = vmatprep.subr.mxu0 0.0
    %1418 = vmatpush2.msra.mxu0 0.0
    %1419 = vmatprep.subr.mxu0 0.0
    %1420 = vmatpush2.msra.mxu0 0.0
    %1421 = vmatprep.subr.mxu0 0.0
    %1422 = vmatpush2.msra.mxu0 0.0
    %1423 = vmatprep.subr.mxu0 0.0
    %1424 = vmatpush2.msra.mxu0 0.0
    %1425 = vmatprep.subr.mxu0 0.0
    %1426 = vmatpush2.msra.mxu0 0.0
    %1427 = vmatprep.subr.mxu0 0.0
    %1428 = vmatpush2.msra.mxu0 0.0
    %1429 = vmatprep.subr.mxu0 0.0
    %1430 = vmatpush2.msra.mxu0 0.0
    %1431 = vmatprep.mubr.f32.mxu0 0.0
    %1432 = vmatmul.mubr.f32.gmra.mxu0 %v1196
    %v1433 = vpop.f32.mrf.mxu0
    %v1434 = vadd.f32 0.0, %v1433
    %v1435 = vpop.f32.mrf.mxu0
    %v1436 = vadd.f32 0.0, %v1435
    %1437 = vdwg.mxu0
    %1438 = vmatprep.subr.mxu0 %v336
    %1439 = vmatpush1.msra.mxu0 %v335
    %1440 = vmatprep.subr.mxu0 %v332
    %1441 = vmatpush1.msra.mxu0 %v331
    %1442 = vmatprep.subr.mxu0 %v328
    %1443 = vmatpush1.msra.mxu0 %v327
    %1444 = vmatprep.subr.mxu0 %v324
    %1445 = vmatpush1.msra.mxu0 %v323
    %1446 = vmatprep.subr.mxu0 %v320
    %1447 = vmatpush1.msra.mxu0 %v319
    %1448 = vmatprep.subr.mxu0 %v316
    %1449 = vmatpush1.msra.mxu0 %v315
    %1450 = vmatprep.subr.mxu0 %v312
    %1451 = vmatpush1.msra.mxu0 %v311
    %1452 = vmatprep.subr.mxu0 %v308
    %1453 = vmatpush1.msra.mxu0 %v307
    %1454 = vmatprep.subr.mxu0 %v304
    %1455 = vmatpush1.msra.mxu0 %v303
    %1456 = vmatprep.subr.mxu0 %v300
    %1457 = vmatpush1.msra.mxu0 %v299
    %1458 = vmatprep.subr.mxu0 %v296
    %1459 = vmatpush1.msra.mxu0 %v295
    %1460 = vmatprep.subr.mxu0 %v292
    %1461 = vmatpush1.msra.mxu0 %v291
    %1462 = vmatprep.subr.mxu0 %v288
    %1463 = vmatpush1.msra.mxu0 %v287
    %1464 = vmatprep.subr.mxu0 %v284
    %1465 = vmatpush1.msra.mxu0 %v283
    %1466 = vmatprep.subr.mxu0 %v280
    %1467 = vmatpush1.msra.mxu0 %v279
    %1468 = vmatprep.subr.mxu0 %v276
    %1469 = vmatpush1.msra.mxu0 %v275
    %1470 = vmatprep.subr.mxu0 0.0
    %1471 = vmatpush2.msra.mxu0 0.0
    %1472 = vmatprep.subr.mxu0 0.0
    %1473 = vmatpush2.msra.mxu0 0.0
    %1474 = vmatprep.subr.mxu0 0.0
    %1475 = vmatpush2.msra.mxu0 0.0
    %1476 = vmatprep.subr.mxu0 0.0
    %1477 = vmatpush2.msra.mxu0 0.0
    %1478 = vmatprep.subr.mxu0 0.0
    %1479 = vmatpush2.msra.mxu0 0.0
    %1480 = vmatprep.subr.mxu0 0.0
    %1481 = vmatpush2.msra.mxu0 0.0
    %1482 = vmatprep.subr.mxu0 0.0
    %1483 = vmatpush2.msra.mxu0 0.0
    %1484 = vmatprep.subr.mxu0 0.0
    %1485 = vmatpush2.msra.mxu0 0.0
    %1486 = vmatprep.subr.mxu0 0.0
    %1487 = vmatpush2.msra.mxu0 0.0
    %1488 = vmatprep.subr.mxu0 0.0
    %1489 = vmatpush2.msra.mxu0 0.0
    %1490 = vmatprep.subr.mxu0 0.0
    %1491 = vmatpush2.msra.mxu0 0.0
    %1492 = vmatprep.subr.mxu0 0.0
    %1493 = vmatpush2.msra.mxu0 0.0
    %1494 = vmatprep.subr.mxu0 0.0
    %1495 = vmatpush2.msra.mxu0 0.0
    %1496 = vmatprep.subr.mxu0 0.0
    %1497 = vmatpush2.msra.mxu0 0.0
    %1498 = vmatprep.subr.mxu0 0.0
    %1499 = vmatpush2.msra.mxu0 0.0
    %1500 = vmatprep.subr.mxu0 0.0
    %1501 = vmatpush2.msra.mxu0 0.0
    %1502 = vmatprep.mubr.f32.mxu0 0.0
    %1503 = vmatmul.mubr.f32.gmra.mxu0 %v1196
    %v1504 = vpop.f32.mrf.mxu0
    %v1505 = vadd.f32 0.0, %v1504
    %v1506 = vpop.f32.mrf.mxu0
    %v1507 = vadd.f32 0.0, %v1506
    %1508 = vdwg.mxu0
    %v1509 = vadd.f32 %v734, %v1434
    %v1510 = vadd.f32 %v736, %v1436
    %v1511 = vadd.f32 %v847, %v1505
    %v1512 = vadd.f32 %v849, %v1507
    %v1513 = vxor.u32 %v1509, 2147483648
    %v1514 = vmul.f32 %v1513, 1.442695
    %v1515 = vpow.pop %v1514
    %v1516 = vadd.f32 %v1515, 1.0
    %v1517 = vrcp.pop %v1516
    %v1518 = vmul.f32 1.0, %v1517
    %v1519 = vxor.u32 %v1510, 2147483648
    %v1520 = vmul.f32 %v1519, 1.442695
    %v1521 = vpow.pop %v1520
    %v1522 = vadd.f32 %v1521, 1.0
    %v1523 = vrcp.pop %v1522
    %v1524 = vmul.f32 1.0, %v1523
    %v1525 = vtanh.pop %v1511
    %v1526 = vxor.u32 %v1512, 2147483648
    %v1527 = vmul.f32 %v1526, 1.442695
    %v1528 = vpow.pop %v1527
    %v1529 = vadd.f32 %v1528, 1.0
    %v1530 = vrcp.pop %v1529
    %v1531 = vmul.f32 1.0, %v1530
    %v1532 = vmul.f32 %v1524, %v1194
    %v1533 = vmul.f32 %v1518, %v1525
    %v1534 = vadd.f32 %v1532, %v1533
    %v1535 = vtanh.pop %v1534
    %v1536 = vmul.f32 %v1531, %v1535
    %1537 = vmatprep.subr.mxu0 %v253
    %1538 = vmatpush1.msra.mxu0 %v252
    %1539 = vmatprep.subr.mxu0 %v249
    %1540 = vmatpush1.msra.mxu0 %v248
    %1541 = vmatprep.subr.mxu0 %v245
    %1542 = vmatpush1.msra.mxu0 %v244
    %1543 = vmatprep.subr.mxu0 %v241
    %1544 = vmatpush1.msra.mxu0 %v240
    %1545 = vmatprep.subr.mxu0 %v237
    %1546 = vmatpush1.msra.mxu0 %v236
    %1547 = vmatprep.subr.mxu0 %v233
    %1548 = vmatpush1.msra.mxu0 %v232
    %1549 = vmatprep.subr.mxu0 %v229
    %1550 = vmatpush1.msra.mxu0 %v228
    %1551 = vmatprep.subr.mxu0 %v225
    %1552 = vmatpush1.msra.mxu0 %v224
    %1553 = vmatprep.subr.mxu0 %v221
    %1554 = vmatpush1.msra.mxu0 %v220
    %1555 = vmatprep.subr.mxu0 %v217
    %1556 = vmatpush1.msra.mxu0 %v216
    %1557 = vmatprep.subr.mxu0 %v213
    %1558 = vmatpush1.msra.mxu0 %v212
    %1559 = vmatprep.subr.mxu0 %v209
    %1560 = vmatpush1.msra.mxu0 %v208
    %1561 = vmatprep.subr.mxu0 %v205
    %1562 = vmatpush1.msra.mxu0 %v204
    %1563 = vmatprep.subr.mxu0 %v201
    %1564 = vmatpush1.msra.mxu0 %v200
    %1565 = vmatprep.subr.mxu0 %v197
    %1566 = vmatpush1.msra.mxu0 %v196
    %1567 = vmatprep.subr.mxu0 %v193
    %1568 = vmatpush1.msra.mxu0 %v192
    %1569 = vmatprep.subr.mxu0 0.0
    %1570 = vmatpush2.msra.mxu0 0.0
    %1571 = vmatprep.subr.mxu0 0.0
    %1572 = vmatpush2.msra.mxu0 0.0
    %1573 = vmatprep.subr.mxu0 0.0
    %1574 = vmatpush2.msra.mxu0 0.0
    %1575 = vmatprep.subr.mxu0 0.0
    %1576 = vmatpush2.msra.mxu0 0.0
    %1577 = vmatprep.subr.mxu0 0.0
    %1578 = vmatpush2.msra.mxu0 0.0
    %1579 = vmatprep.subr.mxu0 0.0
    %1580 = vmatpush2.msra.mxu0 0.0
    %1581 = vmatprep.subr.mxu0 0.0
    %1582 = vmatpush2.msra.mxu0 0.0
    %1583 = vmatprep.subr.mxu0 0.0
    %1584 = vmatpush2.msra.mxu0 0.0
    %1585 = vmatprep.subr.mxu0 0.0
    %1586 = vmatpush2.msra.mxu0 0.0
    %1587 = vmatprep.subr.mxu0 0.0
    %1588 = vmatpush2.msra.mxu0 0.0
    %1589 = vmatprep.subr.mxu0 0.0
    %1590 = vmatpush2.msra.mxu0 0.0
    %1591 = vmatprep.subr.mxu0 0.0
    %1592 = vmatpush2.msra.mxu0 0.0
    %1593 = vmatprep.subr.mxu0 0.0
    %1594 = vmatpush2.msra.mxu0 0.0
    %1595 = vmatprep.subr.mxu0 0.0
    %1596 = vmatpush2.msra.mxu0 0.0
    %1597 = vmatprep.subr.mxu0 0.0
    %1598 = vmatpush2.msra.mxu0 0.0
    %1599 = vmatprep.subr.mxu0 0.0
    %1600 = vmatpush2.msra.mxu0 0.0
    %1601 = vmatprep.mubr.f32.mxu0 0.0
    %1602 = vmatmul.mubr.f32.gmra.mxu0 %v1366
    %v1603 = vpop.f32.mrf.mxu0
    %v1604 = vadd.f32 0.0, %v1603
    %v1605 = vpop.f32.mrf.mxu0
    %v1606 = vadd.f32 0.0, %v1605
    %1607 = vdwg.mxu0
    %1608 = vmatprep.subr.mxu0 %v255
    %1609 = vmatpush1.msra.mxu0 %v254
    %1610 = vmatprep.subr.mxu0 %v251
    %1611 = vmatpush1.msra.mxu0 %v250
    %1612 = vmatprep.subr.mxu0 %v247
    %1613 = vmatpush1.msra.mxu0 %v246
    %1614 = vmatprep.subr.mxu0 %v243
    %1615 = vmatpush1.msra.mxu0 %v242
    %1616 = vmatprep.subr.mxu0 %v239
    %1617 = vmatpush1.msra.mxu0 %v238
    %1618 = vmatprep.subr.mxu0 %v235
    %1619 = vmatpush1.msra.mxu0 %v234
    %1620 = vmatprep.subr.mxu0 %v231
    %1621 = vmatpush1.msra.mxu0 %v230
    %1622 = vmatprep.subr.mxu0 %v227
    %1623 = vmatpush1.msra.mxu0 %v226
    %1624 = vmatprep.subr.mxu0 %v223
    %1625 = vmatpush1.msra.mxu0 %v222
    %1626 = vmatprep.subr.mxu0 %v219
    %1627 = vmatpush1.msra.mxu0 %v218
    %1628 = vmatprep.subr.mxu0 %v215
    %1629 = vmatpush1.msra.mxu0 %v214
    %1630 = vmatprep.subr.mxu0 %v211
    %1631 = vmatpush1.msra.mxu0 %v210
    %1632 = vmatprep.subr.mxu0 %v207
    %1633 = vmatpush1.msra.mxu0 %v206
    %1634 = vmatprep.subr.mxu0 %v203
    %1635 = vmatpush1.msra.mxu0 %v202
    %1636 = vmatprep.subr.mxu0 %v199
    %1637 = vmatpush1.msra.mxu0 %v198
    %1638 = vmatprep.subr.mxu0 %v195
    %1639 = vmatpush1.msra.mxu0 %v194
    %1640 = vmatprep.subr.mxu0 0.0
    %1641 = vmatpush2.msra.mxu0 0.0
    %1642 = vmatprep.subr.mxu0 0.0
    %1643 = vmatpush2.msra.mxu0 0.0
    %1644 = vmatprep.subr.mxu0 0.0
    %1645 = vmatpush2.msra.mxu0 0.0
    %1646 = vmatprep.subr.mxu0 0.0
    %1647 = vmatpush2.msra.mxu0 0.0
    %1648 = vmatprep.subr.mxu0 0.0
    %1649 = vmatpush2.msra.mxu0 0.0
    %1650 = vmatprep.subr.mxu0 0.0
    %1651 = vmatpush2.msra.mxu0 0.0
    %1652 = vmatprep.subr.mxu0 0.0
    %1653 = vmatpush2.msra.mxu0 0.0
    %1654 = vmatprep.subr.mxu0 0.0
    %1655 = vmatpush2.msra.mxu0 0.0
    %1656 = vmatprep.subr.mxu0 0.0
    %1657 = vmatpush2.msra.mxu0 0.0
    %1658 = vmatprep.subr.mxu0 0.0
    %1659 = vmatpush2.msra.mxu0 0.0
    %1660 = vmatprep.subr.mxu0 0.0
    %1661 = vmatpush2.msra.mxu0 0.0
    %1662 = vmatprep.subr.mxu0 0.0
    %1663 = vmatpush2.msra.mxu0 0.0
    %1664 = vmatprep.subr.mxu0 0.0
    %1665 = vmatpush2.msra.mxu0 0.0
    %1666 = vmatprep.subr.mxu0 0.0
    %1667 = vmatpush2.msra.mxu0 0.0
    %1668 = vmatprep.subr.mxu0 0.0
    %1669 = vmatpush2.msra.mxu0 0.0
    %1670 = vmatprep.subr.mxu0 0.0
    %1671 = vmatpush2.msra.mxu0 0.0
    %1672 = vmatprep.mubr.f32.mxu0 0.0
    %1673 = vmatmul.mubr.f32.gmra.mxu0 %v1366
    %v1674 = vpop.f32.mrf.mxu0
    %v1675 = vadd.f32 0.0, %v1674
    %v1676 = vpop.f32.mrf.mxu0
    %v1677 = vadd.f32 0.0, %v1676
    %1678 = vdwg.mxu0
    %v1679 = vadd.f32 %v463, %v1604
    %v1680 = vadd.f32 %v465, %v1606
    %v1681 = vadd.f32 %v576, %v1675
    %v1682 = vadd.f32 %v578, %v1677
    %v1683 = vxor.u32 %v1679, 2147483648
    %v1684 = vmul.f32 %v1683, 1.442695
    %v1685 = vpow.pop %v1684
    %v1686 = vadd.f32 %v1685, 1.0
    %v1687 = vrcp.pop %v1686
    %v1688 = vmul.f32 1.0, %v1687
    %v1689 = vxor.u32 %v1680, 2147483648
    %v1690 = vmul.f32 %v1689, 1.442695
    %v1691 = vpow.pop %v1690
    %v1692 = vadd.f32 %v1691, 1.0
    %v1693 = vrcp.pop %v1692
    %v1694 = vmul.f32 1.0, %v1693
    %v1695 = vtanh.pop %v1681
    %v1696 = vxor.u32 %v1682, 2147483648
    %v1697 = vmul.f32 %v1696, 1.442695
    %v1698 = vpow.pop %v1697
    %v1699 = vadd.f32 %v1698, 1.0
    %v1700 = vrcp.pop %v1699
    %v1701 = vmul.f32 1.0, %v1700
    %v1702 = vmul.f32 %v1694, %v1364
    %v1703 = vmul.f32 %v1688, %v1695
    %v1704 = vadd.f32 %v1702, %v1703
    %v1705 = vtanh.pop %v1704
    %v1706 = vmul.f32 %v1701, %v1705
    %1707 = vmatprep.subr.mxu0 %v334
    %1708 = vmatpush1.msra.mxu0 %v333
    %1709 = vmatprep.subr.mxu0 %v330
    %1710 = vmatpush1.msra.mxu0 %v329
    %1711 = vmatprep.subr.mxu0 %v326
    %1712 = vmatpush1.msra.mxu0 %v325
    %1713 = vmatprep.subr.mxu0 %v322
    %1714 = vmatpush1.msra.mxu0 %v321
    %1715 = vmatprep.subr.mxu0 %v318
    %1716 = vmatpush1.msra.mxu0 %v317
    %1717 = vmatprep.subr.mxu0 %v314
    %1718 = vmatpush1.msra.mxu0 %v313
    %1719 = vmatprep.subr.mxu0 %v310
    %1720 = vmatpush1.msra.mxu0 %v309
    %1721 = vmatprep.subr.mxu0 %v306
    %1722 = vmatpush1.msra.mxu0 %v305
    %1723 = vmatprep.subr.mxu0 %v302
    %1724 = vmatpush1.msra.mxu0 %v301
    %1725 = vmatprep.subr.mxu0 %v298
    %1726 = vmatpush1.msra.mxu0 %v297
    %1727 = vmatprep.subr.mxu0 %v294
    %1728 = vmatpush1.msra.mxu0 %v293
    %1729 = vmatprep.subr.mxu0 %v290
    %1730 = vmatpush1.msra.mxu0 %v289
    %1731 = vmatprep.subr.mxu0 %v286
    %1732 = vmatpush1.msra.mxu0 %v285
    %1733 = vmatprep.subr.mxu0 %v282
    %1734 = vmatpush1.msra.mxu0 %v281
    %1735 = vmatprep.subr.mxu0 %v278
    %1736 = vmatpush1.msra.mxu0 %v277
    %1737 = vmatprep.subr.mxu0 %v274
    %1738 = vmatpush1.msra.mxu0 %v273
    %1739 = vmatprep.subr.mxu0 0.0
    %1740 = vmatpush2.msra.mxu0 0.0
    %1741 = vmatprep.subr.mxu0 0.0
    %1742 = vmatpush2.msra.mxu0 0.0
    %1743 = vmatprep.subr.mxu0 0.0
    %1744 = vmatpush2.msra.mxu0 0.0
    %1745 = vmatprep.subr.mxu0 0.0
    %1746 = vmatpush2.msra.mxu0 0.0
    %1747 = vmatprep.subr.mxu0 0.0
    %1748 = vmatpush2.msra.mxu0 0.0
    %1749 = vmatprep.subr.mxu0 0.0
    %1750 = vmatpush2.msra.mxu0 0.0
    %1751 = vmatprep.subr.mxu0 0.0
    %1752 = vmatpush2.msra.mxu0 0.0
    %1753 = vmatprep.subr.mxu0 0.0
    %1754 = vmatpush2.msra.mxu0 0.0
    %1755 = vmatprep.subr.mxu0 0.0
    %1756 = vmatpush2.msra.mxu0 0.0
    %1757 = vmatprep.subr.mxu0 0.0
    %1758 = vmatpush2.msra.mxu0 0.0
    %1759 = vmatprep.subr.mxu0 0.0
    %1760 = vmatpush2.msra.mxu0 0.0
    %1761 = vmatprep.subr.mxu0 0.0
    %1762 = vmatpush2.msra.mxu0 0.0
    %1763 = vmatprep.subr.mxu0 0.0
    %1764 = vmatpush2.msra.mxu0 0.0
    %1765 = vmatprep.subr.mxu0 0.0
    %1766 = vmatpush2.msra.mxu0 0.0
    %1767 = vmatprep.subr.mxu0 0.0
    %1768 = vmatpush2.msra.mxu0 0.0
    %1769 = vmatprep.subr.mxu0 0.0
    %1770 = vmatpush2.msra.mxu0 0.0
    %1771 = vmatprep.mubr.f32.mxu0 0.0
    %1772 = vmatmul.mubr.f32.gmra.mxu0 %v1536
    %v1773 = vpop.f32.mrf.mxu0
    %v1774 = vadd.f32 0.0, %v1773
    %v1775 = vpop.f32.mrf.mxu0
    %v1776 = vadd.f32 0.0, %v1775
    %1777 = vdwg.mxu0
    %1778 = vmatprep.subr.mxu0 %v336
    %1779 = vmatpush1.msra.mxu0 %v335
    %1780 = vmatprep.subr.mxu0 %v332
    %1781 = vmatpush1.msra.mxu0 %v331
    %1782 = vmatprep.subr.mxu0 %v328
    %1783 = vmatpush1.msra.mxu0 %v327
    %1784 = vmatprep.subr.mxu0 %v324
    %1785 = vmatpush1.msra.mxu0 %v323
    %1786 = vmatprep.subr.mxu0 %v320
    %1787 = vmatpush1.msra.mxu0 %v319
    %1788 = vmatprep.subr.mxu0 %v316
    %1789 = vmatpush1.msra.mxu0 %v315
    %1790 = vmatprep.subr.mxu0 %v312
    %1791 = vmatpush1.msra.mxu0 %v311
    %1792 = vmatprep.subr.mxu0 %v308
    %1793 = vmatpush1.msra.mxu0 %v307
    %1794 = vmatprep.subr.mxu0 %v304
    %1795 = vmatpush1.msra.mxu0 %v303
    %1796 = vmatprep.subr.mxu0 %v300
    %1797 = vmatpush1.msra.mxu0 %v299
    %1798 = vmatprep.subr.mxu0 %v296
    %1799 = vmatpush1.msra.mxu0 %v295
    %1800 = vmatprep.subr.mxu0 %v292
    %1801 = vmatpush1.msra.mxu0 %v291
    %1802 = vmatprep.subr.mxu0 %v288
    %1803 = vmatpush1.msra.mxu0 %v287
    %1804 = vmatprep.subr.mxu0 %v284
    %1805 = vmatpush1.msra.mxu0 %v283
    %1806 = vmatprep.subr.mxu0 %v280
    %1807 = vmatpush1.msra.mxu0 %v279
    %1808 = vmatprep.subr.mxu0 %v276
    %1809 = vmatpush1.msra.mxu0 %v275
    %1810 = vmatprep.subr.mxu0 0.0
    %1811 = vmatpush2.msra.mxu0 0.0
    %1812 = vmatprep.subr.mxu0 0.0
    %1813 = vmatpush2.msra.mxu0 0.0
    %1814 = vmatprep.subr.mxu0 0.0
    %1815 = vmatpush2.msra.mxu0 0.0
    %1816 = vmatprep.subr.mxu0 0.0
    %1817 = vmatpush2.msra.mxu0 0.0
    %1818 = vmatprep.subr.mxu0 0.0
    %1819 = vmatpush2.msra.mxu0 0.0
    %1820 = vmatprep.subr.mxu0 0.0
    %1821 = vmatpush2.msra.mxu0 0.0
    %1822 = vmatprep.subr.mxu0 0.0
    %1823 = vmatpush2.msra.mxu0 0.0
    %1824 = vmatprep.subr.mxu0 0.0
    %1825 = vmatpush2.msra.mxu0 0.0
    %1826 = vmatprep.subr.mxu0 0.0
    %1827 = vmatpush2.msra.mxu0 0.0
    %1828 = vmatprep.subr.mxu0 0.0
    %1829 = vmatpush2.msra.mxu0 0.0
    %1830 = vmatprep.subr.mxu0 0.0
    %1831 = vmatpush2.msra.mxu0 0.0
    %1832 = vmatprep.subr.mxu0 0.0
    %1833 = vmatpush2.msra.mxu0 0.0
    %1834 = vmatprep.subr.mxu0 0.0
    %1835 = vmatpush2.msra.mxu0 0.0
    %1836 = vmatprep.subr.mxu0 0.0
    %1837 = vmatpush2.msra.mxu0 0.0
    %1838 = vmatprep.subr.mxu0 0.0
    %1839 = vmatpush2.msra.mxu0 0.0
    %1840 = vmatprep.subr.mxu0 0.0
    %1841 = vmatpush2.msra.mxu0 0.0
    %1842 = vmatprep.mubr.f32.mxu0 0.0
    %1843 = vmatmul.mubr.f32.gmra.mxu0 %v1536
    %v1844 = vpop.f32.mrf.mxu0
    %v1845 = vadd.f32 0.0, %v1844
    %v1846 = vpop.f32.mrf.mxu0
    %v1847 = vadd.f32 0.0, %v1846
    %1848 = vdwg.mxu0
    %v1849 = vadd.f32 %v728, %v1774
    %v1850 = vadd.f32 %v730, %v1776
    %v1851 = vadd.f32 %v841, %v1845
    %v1852 = vadd.f32 %v843, %v1847
    %v1853 = vxor.u32 %v1849, 2147483648
    %v1854 = vmul.f32 %v1853, 1.442695
    %v1855 = vpow.pop %v1854
    %v1856 = vadd.f32 %v1855, 1.0
    %v1857 = vrcp.pop %v1856
    %v1858 = vmul.f32 1.0, %v1857
    %v1859 = vxor.u32 %v1850, 2147483648
    %v1860 = vmul.f32 %v1859, 1.442695
    %v1861 = vpow.pop %v1860
    %v1862 = vadd.f32 %v1861, 1.0
    %v1863 = vrcp.pop %v1862
    %v1864 = vmul.f32 1.0, %v1863
    %v1865 = vtanh.pop %v1851
    %v1866 = vxor.u32 %v1852, 2147483648
    %v1867 = vmul.f32 %v1866, 1.442695
    %v1868 = vpow.pop %v1867
    %v1869 = vadd.f32 %v1868, 1.0
    %v1870 = vrcp.pop %v1869
    %v1871 = vmul.f32 1.0, %v1870
    %v1872 = vmul.f32 %v1864, %v1534
    %v1873 = vmul.f32 %v1858, %v1865
    %v1874 = vadd.f32 %v1872, %v1873
    %v1875 = vtanh.pop %v1874
    %v1876 = vmul.f32 %v1871, %v1875
    %1877 = vmatprep.subr.mxu0 %v253
    %1878 = vmatpush1.msra.mxu0 %v252
    %1879 = vmatprep.subr.mxu0 %v249
    %1880 = vmatpush1.msra.mxu0 %v248
    %1881 = vmatprep.subr.mxu0 %v245
    %1882 = vmatpush1.msra.mxu0 %v244
    %1883 = vmatprep.subr.mxu0 %v241
    %1884 = vmatpush1.msra.mxu0 %v240
    %1885 = vmatprep.subr.mxu0 %v237
    %1886 = vmatpush1.msra.mxu0 %v236
    %1887 = vmatprep.subr.mxu0 %v233
    %1888 = vmatpush1.msra.mxu0 %v232
    %1889 = vmatprep.subr.mxu0 %v229
    %1890 = vmatpush1.msra.mxu0 %v228
    %1891 = vmatprep.subr.mxu0 %v225
    %1892 = vmatpush1.msra.mxu0 %v224
    %1893 = vmatprep.subr.mxu0 %v221
    %1894 = vmatpush1.msra.mxu0 %v220
    %1895 = vmatprep.subr.mxu0 %v217
    %1896 = vmatpush1.msra.mxu0 %v216
    %1897 = vmatprep.subr.mxu0 %v213
    %1898 = vmatpush1.msra.mxu0 %v212
    %1899 = vmatprep.subr.mxu0 %v209
    %1900 = vmatpush1.msra.mxu0 %v208
    %1901 = vmatprep.subr.mxu0 %v205
    %1902 = vmatpush1.msra.mxu0 %v204
    %1903 = vmatprep.subr.mxu0 %v201
    %1904 = vmatpush1.msra.mxu0 %v200
    %1905 = vmatprep.subr.mxu0 %v197
    %1906 = vmatpush1.msra.mxu0 %v196
    %1907 = vmatprep.subr.mxu0 %v193
    %1908 = vmatpush1.msra.mxu0 %v192
    %1909 = vmatprep.subr.mxu0 0.0
    %1910 = vmatpush2.msra.mxu0 0.0
    %1911 = vmatprep.subr.mxu0 0.0
    %1912 = vmatpush2.msra.mxu0 0.0
    %1913 = vmatprep.subr.mxu0 0.0
    %1914 = vmatpush2.msra.mxu0 0.0
    %1915 = vmatprep.subr.mxu0 0.0
    %1916 = vmatpush2.msra.mxu0 0.0
    %1917 = vmatprep.subr.mxu0 0.0
    %1918 = vmatpush2.msra.mxu0 0.0
    %1919 = vmatprep.subr.mxu0 0.0
    %1920 = vmatpush2.msra.mxu0 0.0
    %1921 = vmatprep.subr.mxu0 0.0
    %1922 = vmatpush2.msra.mxu0 0.0
    %1923 = vmatprep.subr.mxu0 0.0
    %1924 = vmatpush2.msra.mxu0 0.0
    %1925 = vmatprep.subr.mxu0 0.0
    %1926 = vmatpush2.msra.mxu0 0.0
    %1927 = vmatprep.subr.mxu0 0.0
    %1928 = vmatpush2.msra.mxu0 0.0
    %1929 = vmatprep.subr.mxu0 0.0
    %1930 = vmatpush2.msra.mxu0 0.0
    %1931 = vmatprep.subr.mxu0 0.0
    %1932 = vmatpush2.msra.mxu0 0.0
    %1933 = vmatprep.subr.mxu0 0.0
    %1934 = vmatpush2.msra.mxu0 0.0
    %1935 = vmatprep.subr.mxu0 0.0
    %1936 = vmatpush2.msra.mxu0 0.0
    %1937 = vmatprep.subr.mxu0 0.0
    %1938 = vmatpush2.msra.mxu0 0.0
    %1939 = vmatprep.subr.mxu0 0.0
    %1940 = vmatpush2.msra.mxu0 0.0
    %1941 = vmatprep.mubr.f32.mxu0 0.0
    %1942 = vmatmul.mubr.f32.gmra.mxu0 %v1706
    %v1943 = vpop.f32.mrf.mxu0
    %v1944 = vadd.f32 0.0, %v1943
    %v1945 = vpop.f32.mrf.mxu0
    %v1946 = vadd.f32 0.0, %v1945
    %1947 = vdwg.mxu0
    %1948 = vmatprep.subr.mxu0 %v255
    %1949 = vmatpush1.msra.mxu0 %v254
    %1950 = vmatprep.subr.mxu0 %v251
    %1951 = vmatpush1.msra.mxu0 %v250
    %1952 = vmatprep.subr.mxu0 %v247
    %1953 = vmatpush1.msra.mxu0 %v246
    %1954 = vmatprep.subr.mxu0 %v243
    %1955 = vmatpush1.msra.mxu0 %v242
    %1956 = vmatprep.subr.mxu0 %v239
    %1957 = vmatpush1.msra.mxu0 %v238
    %1958 = vmatprep.subr.mxu0 %v235
    %1959 = vmatpush1.msra.mxu0 %v234
    %1960 = vmatprep.subr.mxu0 %v231
    %1961 = vmatpush1.msra.mxu0 %v230
    %1962 = vmatprep.subr.mxu0 %v227
    %1963 = vmatpush1.msra.mxu0 %v226
    %1964 = vmatprep.subr.mxu0 %v223
    %1965 = vmatpush1.msra.mxu0 %v222
    %1966 = vmatprep.subr.mxu0 %v219
    %1967 = vmatpush1.msra.mxu0 %v218
    %1968 = vmatprep.subr.mxu0 %v215
    %1969 = vmatpush1.msra.mxu0 %v214
    %1970 = vmatprep.subr.mxu0 %v211
    %1971 = vmatpush1.msra.mxu0 %v210
    %1972 = vmatprep.subr.mxu0 %v207
    %1973 = vmatpush1.msra.mxu0 %v206
    %1974 = vmatprep.subr.mxu0 %v203
    %1975 = vmatpush1.msra.mxu0 %v202
    %1976 = vmatprep.subr.mxu0 %v199
    %1977 = vmatpush1.msra.mxu0 %v198
    %1978 = vmatprep.subr.mxu0 %v195
    %1979 = vmatpush1.msra.mxu0 %v194
    %1980 = vmatprep.subr.mxu0 0.0
    %1981 = vmatpush2.msra.mxu0 0.0
    %1982 = vmatprep.subr.mxu0 0.0
    %1983 = vmatpush2.msra.mxu0 0.0
    %1984 = vmatprep.subr.mxu0 0.0
    %1985 = vmatpush2.msra.mxu0 0.0
    %1986 = vmatprep.subr.mxu0 0.0
    %1987 = vmatpush2.msra.mxu0 0.0
    %1988 = vmatprep.subr.mxu0 0.0
    %1989 = vmatpush2.msra.mxu0 0.0
    %1990 = vmatprep.subr.mxu0 0.0
    %1991 = vmatpush2.msra.mxu0 0.0
    %1992 = vmatprep.subr.mxu0 0.0
    %1993 = vmatpush2.msra.mxu0 0.0
    %1994 = vmatprep.subr.mxu0 0.0
    %1995 = vmatpush2.msra.mxu0 0.0
    %1996 = vmatprep.subr.mxu0 0.0
    %1997 = vmatpush2.msra.mxu0 0.0
    %1998 = vmatprep.subr.mxu0 0.0
    %1999 = vmatpush2.msra.mxu0 0.0
    %2000 = vmatprep.subr.mxu0 0.0
    %2001 = vmatpush2.msra.mxu0 0.0
    %2002 = vmatprep.subr.mxu0 0.0
    %2003 = vmatpush2.msra.mxu0 0.0
    %2004 = vmatprep.subr.mxu0 0.0
    %2005 = vmatpush2.msra.mxu0 0.0
    %2006 = vmatprep.subr.mxu0 0.0
    %2007 = vmatpush2.msra.mxu0 0.0
    %2008 = vmatprep.subr.mxu0 0.0
    %2009 = vmatpush2.msra.mxu0 0.0
    %2010 = vmatprep.subr.mxu0 0.0
    %2011 = vmatpush2.msra.mxu0 0.0
    %2012 = vmatprep.mubr.f32.mxu0 0.0
    %2013 = vmatmul.mubr.f32.gmra.mxu0 %v1706
    %v2014 = vpop.f32.mrf.mxu0
    %v2015 = vadd.f32 0.0, %v2014
    %v2016 = vpop.f32.mrf.mxu0
    %v2017 = vadd.f32 0.0, %v2016
    %2018 = vdwg.mxu0
    %v2019 = vadd.f32 %v469, %v1944
    %v2020 = vadd.f32 %v471, %v1946
    %v2021 = vadd.f32 %v582, %v2015
    %v2022 = vadd.f32 %v584, %v2017
    %v2023 = vxor.u32 %v2019, 2147483648
    %v2024 = vmul.f32 %v2023, 1.442695
    %v2025 = vpow.pop %v2024
    %v2026 = vadd.f32 %v2025, 1.0
    %v2027 = vrcp.pop %v2026
    %v2028 = vmul.f32 1.0, %v2027
    %v2029 = vxor.u32 %v2020, 2147483648
    %v2030 = vmul.f32 %v2029, 1.442695
    %v2031 = vpow.pop %v2030
    %v2032 = vadd.f32 %v2031, 1.0
    %v2033 = vrcp.pop %v2032
    %v2034 = vmul.f32 1.0, %v2033
    %v2035 = vtanh.pop %v2021
    %v2036 = vxor.u32 %v2022, 2147483648
    %v2037 = vmul.f32 %v2036, 1.442695
    %v2038 = vpow.pop %v2037
    %v2039 = vadd.f32 %v2038, 1.0
    %v2040 = vrcp.pop %v2039
    %v2041 = vmul.f32 1.0, %v2040
    %v2042 = vmul.f32 %v2034, %v1704
    %v2043 = vmul.f32 %v2028, %v2035
    %v2044 = vadd.f32 %v2042, %v2043
    %v2045 = vtanh.pop %v2044
    %v2046 = vmul.f32 %v2041, %v2045
    %2047 = vmatprep.subr.mxu0 %v334
    %2048 = vmatpush1.msra.mxu0 %v333
    %2049 = vmatprep.subr.mxu0 %v330
    %2050 = vmatpush1.msra.mxu0 %v329
    %2051 = vmatprep.subr.mxu0 %v326
    %2052 = vmatpush1.msra.mxu0 %v325
    %2053 = vmatprep.subr.mxu0 %v322
    %2054 = vmatpush1.msra.mxu0 %v321
    %2055 = vmatprep.subr.mxu0 %v318
    %2056 = vmatpush1.msra.mxu0 %v317
    %2057 = vmatprep.subr.mxu0 %v314
    %2058 = vmatpush1.msra.mxu0 %v313
    %2059 = vmatprep.subr.mxu0 %v310
    %2060 = vmatpush1.msra.mxu0 %v309
    %2061 = vmatprep.subr.mxu0 %v306
    %2062 = vmatpush1.msra.mxu0 %v305
    %2063 = vmatprep.subr.mxu0 %v302
    %2064 = vmatpush1.msra.mxu0 %v301
    %2065 = vmatprep.subr.mxu0 %v298
    %2066 = vmatpush1.msra.mxu0 %v297
    %2067 = vmatprep.subr.mxu0 %v294
    %2068 = vmatpush1.msra.mxu0 %v293
    %2069 = vmatprep.subr.mxu0 %v290
    %2070 = vmatpush1.msra.mxu0 %v289
    %2071 = vmatprep.subr.mxu0 %v286
    %2072 = vmatpush1.msra.mxu0 %v285
    %2073 = vmatprep.subr.mxu0 %v282
    %2074 = vmatpush1.msra.mxu0 %v281
    %2075 = vmatprep.subr.mxu0 %v278
    %2076 = vmatpush1.msra.mxu0 %v277
    %2077 = vmatprep.subr.mxu0 %v274
    %2078 = vmatpush1.msra.mxu0 %v273
    %2079 = vmatprep.subr.mxu0 0.0
    %2080 = vmatpush2.msra.mxu0 0.0
    %2081 = vmatprep.subr.mxu0 0.0
    %2082 = vmatpush2.msra.mxu0 0.0
    %2083 = vmatprep.subr.mxu0 0.0
    %2084 = vmatpush2.msra.mxu0 0.0
    %2085 = vmatprep.subr.mxu0 0.0
    %2086 = vmatpush2.msra.mxu0 0.0
    %2087 = vmatprep.subr.mxu0 0.0
    %2088 = vmatpush2.msra.mxu0 0.0
    %2089 = vmatprep.subr.mxu0 0.0
    %2090 = vmatpush2.msra.mxu0 0.0
    %2091 = vmatprep.subr.mxu0 0.0
    %2092 = vmatpush2.msra.mxu0 0.0
    %2093 = vmatprep.subr.mxu0 0.0
    %2094 = vmatpush2.msra.mxu0 0.0
    %2095 = vmatprep.subr.mxu0 0.0
    %2096 = vmatpush2.msra.mxu0 0.0
    %2097 = vmatprep.subr.mxu0 0.0
    %2098 = vmatpush2.msra.mxu0 0.0
    %2099 = vmatprep.subr.mxu0 0.0
    %2100 = vmatpush2.msra.mxu0 0.0
    %2101 = vmatprep.subr.mxu0 0.0
    %2102 = vmatpush2.msra.mxu0 0.0
    %2103 = vmatprep.subr.mxu0 0.0
    %2104 = vmatpush2.msra.mxu0 0.0
    %2105 = vmatprep.subr.mxu0 0.0
    %2106 = vmatpush2.msra.mxu0 0.0
    %2107 = vmatprep.subr.mxu0 0.0
    %2108 = vmatpush2.msra.mxu0 0.0
    %2109 = vmatprep.subr.mxu0 0.0
    %2110 = vmatpush2.msra.mxu0 0.0
    %2111 = vmatprep.mubr.f32.mxu0 0.0
    %2112 = vmatmul.mubr.f32.gmra.mxu0 %v1876
    %v2113 = vpop.f32.mrf.mxu0
    %v2114 = vadd.f32 0.0, %v2113
    %v2115 = vpop.f32.mrf.mxu0
    %v2116 = vadd.f32 0.0, %v2115
    %2117 = vdwg.mxu0
    %2118 = vmatprep.subr.mxu0 %v336
    %2119 = vmatpush1.msra.mxu0 %v335
    %2120 = vmatprep.subr.mxu0 %v332
    %2121 = vmatpush1.msra.mxu0 %v331
    %2122 = vmatprep.subr.mxu0 %v328
    %2123 = vmatpush1.msra.mxu0 %v327
    %2124 = vmatprep.subr.mxu0 %v324
    %2125 = vmatpush1.msra.mxu0 %v323
    %2126 = vmatprep.subr.mxu0 %v320
    %2127 = vmatpush1.msra.mxu0 %v319
    %2128 = vmatprep.subr.mxu0 %v316
    %2129 = vmatpush1.msra.mxu0 %v315
    %2130 = vmatprep.subr.mxu0 %v312
    %2131 = vmatpush1.msra.mxu0 %v311
    %2132 = vmatprep.subr.mxu0 %v308
    %2133 = vmatpush1.msra.mxu0 %v307
    %2134 = vmatprep.subr.mxu0 %v304
    %2135 = vmatpush1.msra.mxu0 %v303
    %2136 = vmatprep.subr.mxu0 %v300
    %2137 = vmatpush1.msra.mxu0 %v299
    %2138 = vmatprep.subr.mxu0 %v296
    %2139 = vmatpush1.msra.mxu0 %v295
    %2140 = vmatprep.subr.mxu0 %v292
    %2141 = vmatpush1.msra.mxu0 %v291
    %2142 = vmatprep.subr.mxu0 %v288
    %2143 = vmatpush1.msra.mxu0 %v287
    %2144 = vmatprep.subr.mxu0 %v284
    %2145 = vmatpush1.msra.mxu0 %v283
    %2146 = vmatprep.subr.mxu0 %v280
    %2147 = vmatpush1.msra.mxu0 %v279
    %2148 = vmatprep.subr.mxu0 %v276
    %2149 = vmatpush1.msra.mxu0 %v275
    %2150 = vmatprep.subr.mxu0 0.0
    %2151 = vmatpush2.msra.mxu0 0.0
    %2152 = vmatprep.subr.mxu0 0.0
    %2153 = vmatpush2.msra.mxu0 0.0
    %2154 = vmatprep.subr.mxu0 0.0
    %2155 = vmatpush2.msra.mxu0 0.0
    %2156 = vmatprep.subr.mxu0 0.0
    %2157 = vmatpush2.msra.mxu0 0.0
    %2158 = vmatprep.subr.mxu0 0.0
    %2159 = vmatpush2.msra.mxu0 0.0
    %2160 = vmatprep.subr.mxu0 0.0
    %2161 = vmatpush2.msra.mxu0 0.0
    %2162 = vmatprep.subr.mxu0 0.0
    %2163 = vmatpush2.msra.mxu0 0.0
    %2164 = vmatprep.subr.mxu0 0.0
    %2165 = vmatpush2.msra.mxu0 0.0
    %2166 = vmatprep.subr.mxu0 0.0
    %2167 = vmatpush2.msra.mxu0 0.0
    %2168 = vmatprep.subr.mxu0 0.0
    %2169 = vmatpush2.msra.mxu0 0.0
    %2170 = vmatprep.subr.mxu0 0.0
    %2171 = vmatpush2.msra.mxu0 0.0
    %2172 = vmatprep.subr.mxu0 0.0
    %2173 = vmatpush2.msra.mxu0 0.0
    %2174 = vmatprep.subr.mxu0 0.0
    %2175 = vmatpush2.msra.mxu0 0.0
    %2176 = vmatprep.subr.mxu0 0.0
    %2177 = vmatpush2.msra.mxu0 0.0
    %2178 = vmatprep.subr.mxu0 0.0
    %2179 = vmatpush2.msra.mxu0 0.0
    %2180 = vmatprep.subr.mxu0 0.0
    %2181 = vmatpush2.msra.mxu0 0.0
    %2182 = vmatprep.mubr.f32.mxu0 0.0
    %2183 = vmatmul.mubr.f32.gmra.mxu0 %v1876
    %v2184 = vpop.f32.mrf.mxu0
    %v2185 = vadd.f32 0.0, %v2184
    %v2186 = vpop.f32.mrf.mxu0
    %v2187 = vadd.f32 0.0, %v2186
    %2188 = vdwg.mxu0
    %v2189 = vadd.f32 %v722, %v2114
    %v2190 = vadd.f32 %v724, %v2116
    %v2191 = vadd.f32 %v835, %v2185
    %v2192 = vadd.f32 %v837, %v2187
    %v2193 = vxor.u32 %v2189, 2147483648
    %v2194 = vmul.f32 %v2193, 1.442695
    %v2195 = vpow.pop %v2194
    %v2196 = vadd.f32 %v2195, 1.0
    %v2197 = vrcp.pop %v2196
    %v2198 = vmul.f32 1.0, %v2197
    %v2199 = vxor.u32 %v2190, 2147483648
    %v2200 = vmul.f32 %v2199, 1.442695
    %v2201 = vpow.pop %v2200
    %v2202 = vadd.f32 %v2201, 1.0
    %v2203 = vrcp.pop %v2202
    %v2204 = vmul.f32 1.0, %v2203
    %v2205 = vtanh.pop %v2191
    %v2206 = vxor.u32 %v2192, 2147483648
    %v2207 = vmul.f32 %v2206, 1.442695
    %v2208 = vpow.pop %v2207
    %v2209 = vadd.f32 %v2208, 1.0
    %v2210 = vrcp.pop %v2209
    %v2211 = vmul.f32 1.0, %v2210
    %v2212 = vmul.f32 %v2204, %v1874
    %v2213 = vmul.f32 %v2198, %v2205
    %v2214 = vadd.f32 %v2212, %v2213
    %v2215 = vtanh.pop %v2214
    %v2216 = vmul.f32 %v2211, %v2215
    %2217 = vmatprep.subr.mxu0 %v253
    %2218 = vmatpush1.msra.mxu0 %v252
    %2219 = vmatprep.subr.mxu0 %v249
    %2220 = vmatpush1.msra.mxu0 %v248
    %2221 = vmatprep.subr.mxu0 %v245
    %2222 = vmatpush1.msra.mxu0 %v244
    %2223 = vmatprep.subr.mxu0 %v241
    %2224 = vmatpush1.msra.mxu0 %v240
    %2225 = vmatprep.subr.mxu0 %v237
    %2226 = vmatpush1.msra.mxu0 %v236
    %2227 = vmatprep.subr.mxu0 %v233
    %2228 = vmatpush1.msra.mxu0 %v232
    %2229 = vmatprep.subr.mxu0 %v229
    %2230 = vmatpush1.msra.mxu0 %v228
    %2231 = vmatprep.subr.mxu0 %v225
    %2232 = vmatpush1.msra.mxu0 %v224
    %2233 = vmatprep.subr.mxu0 %v221
    %2234 = vmatpush1.msra.mxu0 %v220
    %2235 = vmatprep.subr.mxu0 %v217
    %2236 = vmatpush1.msra.mxu0 %v216
    %2237 = vmatprep.subr.mxu0 %v213
    %2238 = vmatpush1.msra.mxu0 %v212
    %2239 = vmatprep.subr.mxu0 %v209
    %2240 = vmatpush1.msra.mxu0 %v208
    %2241 = vmatprep.subr.mxu0 %v205
    %2242 = vmatpush1.msra.mxu0 %v204
    %2243 = vmatprep.subr.mxu0 %v201
    %2244 = vmatpush1.msra.mxu0 %v200
    %2245 = vmatprep.subr.mxu0 %v197
    %2246 = vmatpush1.msra.mxu0 %v196
    %2247 = vmatprep.subr.mxu0 %v193
    %2248 = vmatpush1.msra.mxu0 %v192
    %2249 = vmatprep.subr.mxu0 0.0
    %2250 = vmatpush2.msra.mxu0 0.0
    %2251 = vmatprep.subr.mxu0 0.0
    %2252 = vmatpush2.msra.mxu0 0.0
    %2253 = vmatprep.subr.mxu0 0.0
    %2254 = vmatpush2.msra.mxu0 0.0
    %2255 = vmatprep.subr.mxu0 0.0
    %2256 = vmatpush2.msra.mxu0 0.0
    %2257 = vmatprep.subr.mxu0 0.0
    %2258 = vmatpush2.msra.mxu0 0.0
    %2259 = vmatprep.subr.mxu0 0.0
    %2260 = vmatpush2.msra.mxu0 0.0
    %2261 = vmatprep.subr.mxu0 0.0
    %2262 = vmatpush2.msra.mxu0 0.0
    %2263 = vmatprep.subr.mxu0 0.0
    %2264 = vmatpush2.msra.mxu0 0.0
    %2265 = vmatprep.subr.mxu0 0.0
    %2266 = vmatpush2.msra.mxu0 0.0
    %2267 = vmatprep.subr.mxu0 0.0
    %2268 = vmatpush2.msra.mxu0 0.0
    %2269 = vmatprep.subr.mxu0 0.0
    %2270 = vmatpush2.msra.mxu0 0.0
    %2271 = vmatprep.subr.mxu0 0.0
    %2272 = vmatpush2.msra.mxu0 0.0
    %2273 = vmatprep.subr.mxu0 0.0
    %2274 = vmatpush2.msra.mxu0 0.0
    %2275 = vmatprep.subr.mxu0 0.0
    %2276 = vmatpush2.msra.mxu0 0.0
    %2277 = vmatprep.subr.mxu0 0.0
    %2278 = vmatpush2.msra.mxu0 0.0
    %2279 = vmatprep.subr.mxu0 0.0
    %2280 = vmatpush2.msra.mxu0 0.0
    %2281 = vmatprep.mubr.f32.mxu0 0.0
    %2282 = vmatmul.mubr.f32.gmra.mxu0 %v2046
    %v2283 = vpop.f32.mrf.mxu0
    %v2284 = vadd.f32 0.0, %v2283
    %v2285 = vpop.f32.mrf.mxu0
    %v2286 = vadd.f32 0.0, %v2285
    %2287 = vdwg.mxu0
    %2288 = vmatprep.subr.mxu0 %v255
    %2289 = vmatpush1.msra.mxu0 %v254
    %2290 = vmatprep.subr.mxu0 %v251
    %2291 = vmatpush1.msra.mxu0 %v250
    %2292 = vmatprep.subr.mxu0 %v247
    %2293 = vmatpush1.msra.mxu0 %v246
    %2294 = vmatprep.subr.mxu0 %v243
    %2295 = vmatpush1.msra.mxu0 %v242
    %2296 = vmatprep.subr.mxu0 %v239
    %2297 = vmatpush1.msra.mxu0 %v238
    %2298 = vmatprep.subr.mxu0 %v235
    %2299 = vmatpush1.msra.mxu0 %v234
    %2300 = vmatprep.subr.mxu0 %v231
    %2301 = vmatpush1.msra.mxu0 %v230
    %2302 = vmatprep.subr.mxu0 %v227
    %2303 = vmatpush1.msra.mxu0 %v226
    %2304 = vmatprep.subr.mxu0 %v223
    %2305 = vmatpush1.msra.mxu0 %v222
    %2306 = vmatprep.subr.mxu0 %v219
    %2307 = vmatpush1.msra.mxu0 %v218
    %2308 = vmatprep.subr.mxu0 %v215
    %2309 = vmatpush1.msra.mxu0 %v214
    %2310 = vmatprep.subr.mxu0 %v211
    %2311 = vmatpush1.msra.mxu0 %v210
    %2312 = vmatprep.subr.mxu0 %v207
    %2313 = vmatpush1.msra.mxu0 %v206
    %2314 = vmatprep.subr.mxu0 %v203
    %2315 = vmatpush1.msra.mxu0 %v202
    %2316 = vmatprep.subr.mxu0 %v199
    %2317 = vmatpush1.msra.mxu0 %v198
    %2318 = vmatprep.subr.mxu0 %v195
    %2319 = vmatpush1.msra.mxu0 %v194
    %2320 = vmatprep.subr.mxu0 0.0
    %2321 = vmatpush2.msra.mxu0 0.0
    %2322 = vmatprep.subr.mxu0 0.0
    %2323 = vmatpush2.msra.mxu0 0.0
    %2324 = vmatprep.subr.mxu0 0.0
    %2325 = vmatpush2.msra.mxu0 0.0
    %2326 = vmatprep.subr.mxu0 0.0
    %2327 = vmatpush2.msra.mxu0 0.0
    %2328 = vmatprep.subr.mxu0 0.0
    %2329 = vmatpush2.msra.mxu0 0.0
    %2330 = vmatprep.subr.mxu0 0.0
    %2331 = vmatpush2.msra.mxu0 0.0
    %2332 = vmatprep.subr.mxu0 0.0
    %2333 = vmatpush2.msra.mxu0 0.0
    %2334 = vmatprep.subr.mxu0 0.0
    %2335 = vmatpush2.msra.mxu0 0.0
    %2336 = vmatprep.subr.mxu0 0.0
    %2337 = vmatpush2.msra.mxu0 0.0
    %2338 = vmatprep.subr.mxu0 0.0
    %2339 = vmatpush2.msra.mxu0 0.0
    %2340 = vmatprep.subr.mxu0 0.0
    %2341 = vmatpush2.msra.mxu0 0.0
    %2342 = vmatprep.subr.mxu0 0.0
    %2343 = vmatpush2.msra.mxu0 0.0
    %2344 = vmatprep.subr.mxu0 0.0
    %2345 = vmatpush2.msra.mxu0 0.0
    %2346 = vmatprep.subr.mxu0 0.0
    %2347 = vmatpush2.msra.mxu0 0.0
    %2348 = vmatprep.subr.mxu0 0.0
    %2349 = vmatpush2.msra.mxu0 0.0
    %2350 = vmatprep.subr.mxu0 0.0
    %2351 = vmatpush2.msra.mxu0 0.0
    %2352 = vmatprep.mubr.f32.mxu0 0.0
    %2353 = vmatmul.mubr.f32.gmra.mxu0 %v2046
    %v2354 = vpop.f32.mrf.mxu0
    %v2355 = vadd.f32 0.0, %v2354
    %v2356 = vpop.f32.mrf.mxu0
    %v2357 = vadd.f32 0.0, %v2356
    %2358 = vdwg.mxu0
    %v2359 = vadd.f32 %v475, %v2284
    %v2360 = vadd.f32 %v477, %v2286
    %v2361 = vadd.f32 %v588, %v2355
    %v2362 = vadd.f32 %v590, %v2357
    %v2363 = vxor.u32 %v2359, 2147483648
    %v2364 = vmul.f32 %v2363, 1.442695
    %v2365 = vpow.pop %v2364
    %v2366 = vadd.f32 %v2365, 1.0
    %v2367 = vrcp.pop %v2366
    %v2368 = vmul.f32 1.0, %v2367
    %v2369 = vxor.u32 %v2360, 2147483648
    %v2370 = vmul.f32 %v2369, 1.442695
    %v2371 = vpow.pop %v2370
    %v2372 = vadd.f32 %v2371, 1.0
    %v2373 = vrcp.pop %v2372
    %v2374 = vmul.f32 1.0, %v2373
    %v2375 = vtanh.pop %v2361
    %v2376 = vxor.u32 %v2362, 2147483648
    %v2377 = vmul.f32 %v2376, 1.442695
    %v2378 = vpow.pop %v2377
    %v2379 = vadd.f32 %v2378, 1.0
    %v2380 = vrcp.pop %v2379
    %v2381 = vmul.f32 1.0, %v2380
    %v2382 = vmul.f32 %v2374, %v2044
    %v2383 = vmul.f32 %v2368, %v2375
    %v2384 = vadd.f32 %v2382, %v2383
    %v2385 = vtanh.pop %v2384
    %v2386 = vmul.f32 %v2381, %v2385
    %2387 = vmatprep.subr.mxu0 %v334
    %2388 = vmatpush1.msra.mxu0 %v333
    %2389 = vmatprep.subr.mxu0 %v330
    %2390 = vmatpush1.msra.mxu0 %v329
    %2391 = vmatprep.subr.mxu0 %v326
    %2392 = vmatpush1.msra.mxu0 %v325
    %2393 = vmatprep.subr.mxu0 %v322
    %2394 = vmatpush1.msra.mxu0 %v321
    %2395 = vmatprep.subr.mxu0 %v318
    %2396 = vmatpush1.msra.mxu0 %v317
    %2397 = vmatprep.subr.mxu0 %v314
    %2398 = vmatpush1.msra.mxu0 %v313
    %2399 = vmatprep.subr.mxu0 %v310
    %2400 = vmatpush1.msra.mxu0 %v309
    %2401 = vmatprep.subr.mxu0 %v306
    %2402 = vmatpush1.msra.mxu0 %v305
    %2403 = vmatprep.subr.mxu0 %v302
    %2404 = vmatpush1.msra.mxu0 %v301
    %2405 = vmatprep.subr.mxu0 %v298
    %2406 = vmatpush1.msra.mxu0 %v297
    %2407 = vmatprep.subr.mxu0 %v294
    %2408 = vmatpush1.msra.mxu0 %v293
    %2409 = vmatprep.subr.mxu0 %v290
    %2410 = vmatpush1.msra.mxu0 %v289
    %2411 = vmatprep.subr.mxu0 %v286
    %2412 = vmatpush1.msra.mxu0 %v285
    %2413 = vmatprep.subr.mxu0 %v282
    %2414 = vmatpush1.msra.mxu0 %v281
    %2415 = vmatprep.subr.mxu0 %v278
    %2416 = vmatpush1.msra.mxu0 %v277
    %2417 = vmatprep.subr.mxu0 %v274
    %2418 = vmatpush1.msra.mxu0 %v273
    %2419 = vmatprep.subr.mxu0 0.0
    %2420 = vmatpush2.msra.mxu0 0.0
    %2421 = vmatprep.subr.mxu0 0.0
    %2422 = vmatpush2.msra.mxu0 0.0
    %2423 = vmatprep.subr.mxu0 0.0
    %2424 = vmatpush2.msra.mxu0 0.0
    %2425 = vmatprep.subr.mxu0 0.0
    %2426 = vmatpush2.msra.mxu0 0.0
    %2427 = vmatprep.subr.mxu0 0.0
    %2428 = vmatpush2.msra.mxu0 0.0
    %2429 = vmatprep.subr.mxu0 0.0
    %2430 = vmatpush2.msra.mxu0 0.0
    %2431 = vmatprep.subr.mxu0 0.0
    %2432 = vmatpush2.msra.mxu0 0.0
    %2433 = vmatprep.subr.mxu0 0.0
    %2434 = vmatpush2.msra.mxu0 0.0
    %2435 = vmatprep.subr.mxu0 0.0
    %2436 = vmatpush2.msra.mxu0 0.0
    %2437 = vmatprep.subr.mxu0 0.0
    %2438 = vmatpush2.msra.mxu0 0.0
    %2439 = vmatprep.subr.mxu0 0.0
    %2440 = vmatpush2.msra.mxu0 0.0
    %2441 = vmatprep.subr.mxu0 0.0
    %2442 = vmatpush2.msra.mxu0 0.0
    %2443 = vmatprep.subr.mxu0 0.0
    %2444 = vmatpush2.msra.mxu0 0.0
    %2445 = vmatprep.subr.mxu0 0.0
    %2446 = vmatpush2.msra.mxu0 0.0
    %2447 = vmatprep.subr.mxu0 0.0
    %2448 = vmatpush2.msra.mxu0 0.0
    %2449 = vmatprep.subr.mxu0 0.0
    %2450 = vmatpush2.msra.mxu0 0.0
    %2451 = vmatprep.mubr.f32.mxu0 0.0
    %2452 = vmatmul.mubr.f32.gmra.mxu0 %v2216
    %v2453 = vpop.f32.mrf.mxu0
    %v2454 = vadd.f32 0.0, %v2453
    %v2455 = vpop.f32.mrf.mxu0
    %v2456 = vadd.f32 0.0, %v2455
    %2457 = vdwg.mxu0
    %2458 = vmatprep.subr.mxu0 %v336
    %2459 = vmatpush1.msra.mxu0 %v335
    %2460 = vmatprep.subr.mxu0 %v332
    %2461 = vmatpush1.msra.mxu0 %v331
    %2462 = vmatprep.subr.mxu0 %v328
    %2463 = vmatpush1.msra.mxu0 %v327
    %2464 = vmatprep.subr.mxu0 %v324
    %2465 = vmatpush1.msra.mxu0 %v323
    %2466 = vmatprep.subr.mxu0 %v320
    %2467 = vmatpush1.msra.mxu0 %v319
    %2468 = vmatprep.subr.mxu0 %v316
    %2469 = vmatpush1.msra.mxu0 %v315
    %2470 = vmatprep.subr.mxu0 %v312
    %2471 = vmatpush1.msra.mxu0 %v311
    %2472 = vmatprep.subr.mxu0 %v308
    %2473 = vmatpush1.msra.mxu0 %v307
    %2474 = vmatprep.subr.mxu0 %v304
    %2475 = vmatpush1.msra.mxu0 %v303
    %2476 = vmatprep.subr.mxu0 %v300
    %2477 = vmatpush1.msra.mxu0 %v299
    %2478 = vmatprep.subr.mxu0 %v296
    %2479 = vmatpush1.msra.mxu0 %v295
    %2480 = vmatprep.subr.mxu0 %v292
    %2481 = vmatpush1.msra.mxu0 %v291
    %2482 = vmatprep.subr.mxu0 %v288
    %2483 = vmatpush1.msra.mxu0 %v287
    %2484 = vmatprep.subr.mxu0 %v284
    %2485 = vmatpush1.msra.mxu0 %v283
    %2486 = vmatprep.subr.mxu0 %v280
    %2487 = vmatpush1.msra.mxu0 %v279
    %2488 = vmatprep.subr.mxu0 %v276
    %2489 = vmatpush1.msra.mxu0 %v275
    %2490 = vmatprep.subr.mxu0 0.0
    %2491 = vmatpush2.msra.mxu0 0.0
    %2492 = vmatprep.subr.mxu0 0.0
    %2493 = vmatpush2.msra.mxu0 0.0
    %2494 = vmatprep.subr.mxu0 0.0
    %2495 = vmatpush2.msra.mxu0 0.0
    %2496 = vmatprep.subr.mxu0 0.0
    %2497 = vmatpush2.msra.mxu0 0.0
    %2498 = vmatprep.subr.mxu0 0.0
    %2499 = vmatpush2.msra.mxu0 0.0
    %2500 = vmatprep.subr.mxu0 0.0
    %2501 = vmatpush2.msra.mxu0 0.0
    %2502 = vmatprep.subr.mxu0 0.0
    %2503 = vmatpush2.msra.mxu0 0.0
    %2504 = vmatprep.subr.mxu0 0.0
    %2505 = vmatpush2.msra.mxu0 0.0
    %2506 = vmatprep.subr.mxu0 0.0
    %2507 = vmatpush2.msra.mxu0 0.0
    %2508 = vmatprep.subr.mxu0 0.0
    %2509 = vmatpush2.msra.mxu0 0.0
    %2510 = vmatprep.subr.mxu0 0.0
    %2511 = vmatpush2.msra.mxu0 0.0
    %2512 = vmatprep.subr.mxu0 0.0
    %2513 = vmatpush2.msra.mxu0 0.0
    %2514 = vmatprep.subr.mxu0 0.0
    %2515 = vmatpush2.msra.mxu0 0.0
    %2516 = vmatprep.subr.mxu0 0.0
    %2517 = vmatpush2.msra.mxu0 0.0
    %2518 = vmatprep.subr.mxu0 0.0
    %2519 = vmatpush2.msra.mxu0 0.0
    %2520 = vmatprep.subr.mxu0 0.0
    %2521 = vmatpush2.msra.mxu0 0.0
    %2522 = vmatprep.mubr.f32.mxu0 0.0
    %2523 = vmatmul.mubr.f32.gmra.mxu0 %v2216
    %v2524 = vpop.f32.mrf.mxu0
    %v2525 = vadd.f32 0.0, %v2524
    %v2526 = vpop.f32.mrf.mxu0
    %v2527 = vadd.f32 0.0, %v2526
    %2528 = vdwg.mxu0
    %v2529 = vadd.f32 %v716, %v2454
    %v2530 = vadd.f32 %v718, %v2456
    %v2531 = vadd.f32 %v829, %v2525
    %v2532 = vadd.f32 %v831, %v2527
    %v2533 = vxor.u32 %v2529, 2147483648
    %v2534 = vmul.f32 %v2533, 1.442695
    %v2535 = vpow.pop %v2534
    %v2536 = vadd.f32 %v2535, 1.0
    %v2537 = vrcp.pop %v2536
    %v2538 = vmul.f32 1.0, %v2537
    %v2539 = vxor.u32 %v2530, 2147483648
    %v2540 = vmul.f32 %v2539, 1.442695
    %v2541 = vpow.pop %v2540
    %v2542 = vadd.f32 %v2541, 1.0
    %v2543 = vrcp.pop %v2542
    %v2544 = vmul.f32 1.0, %v2543
    %v2545 = vtanh.pop %v2531
    %v2546 = vxor.u32 %v2532, 2147483648
    %v2547 = vmul.f32 %v2546, 1.442695
    %v2548 = vpow.pop %v2547
    %v2549 = vadd.f32 %v2548, 1.0
    %v2550 = vrcp.pop %v2549
    %v2551 = vmul.f32 1.0, %v2550
    %v2552 = vmul.f32 %v2544, %v2214
    %v2553 = vmul.f32 %v2538, %v2545
    %v2554 = vadd.f32 %v2552, %v2553
    %v2555 = vtanh.pop %v2554
    %v2556 = vmul.f32 %v2551, %v2555
    %2557 = vmatprep.subr.mxu0 %v253
    %2558 = vmatpush1.msra.mxu0 %v252
    %2559 = vmatprep.subr.mxu0 %v249
    %2560 = vmatpush1.msra.mxu0 %v248
    %2561 = vmatprep.subr.mxu0 %v245
    %2562 = vmatpush1.msra.mxu0 %v244
    %2563 = vmatprep.subr.mxu0 %v241
    %2564 = vmatpush1.msra.mxu0 %v240
    %2565 = vmatprep.subr.mxu0 %v237
    %2566 = vmatpush1.msra.mxu0 %v236
    %2567 = vmatprep.subr.mxu0 %v233
    %2568 = vmatpush1.msra.mxu0 %v232
    %2569 = vmatprep.subr.mxu0 %v229
    %2570 = vmatpush1.msra.mxu0 %v228
    %2571 = vmatprep.subr.mxu0 %v225
    %2572 = vmatpush1.msra.mxu0 %v224
    %2573 = vmatprep.subr.mxu0 %v221
    %2574 = vmatpush1.msra.mxu0 %v220
    %2575 = vmatprep.subr.mxu0 %v217
    %2576 = vmatpush1.msra.mxu0 %v216
    %2577 = vmatprep.subr.mxu0 %v213
    %2578 = vmatpush1.msra.mxu0 %v212
    %2579 = vmatprep.subr.mxu0 %v209
    %2580 = vmatpush1.msra.mxu0 %v208
    %2581 = vmatprep.subr.mxu0 %v205
    %2582 = vmatpush1.msra.mxu0 %v204
    %2583 = vmatprep.subr.mxu0 %v201
    %2584 = vmatpush1.msra.mxu0 %v200
    %2585 = vmatprep.subr.mxu0 %v197
    %2586 = vmatpush1.msra.mxu0 %v196
    %2587 = vmatprep.subr.mxu0 %v193
    %2588 = vmatpush1.msra.mxu0 %v192
    %2589 = vmatprep.subr.mxu0 0.0
    %2590 = vmatpush2.msra.mxu0 0.0
    %2591 = vmatprep.subr.mxu0 0.0
    %2592 = vmatpush2.msra.mxu0 0.0
    %2593 = vmatprep.subr.mxu0 0.0
    %2594 = vmatpush2.msra.mxu0 0.0
    %2595 = vmatprep.subr.mxu0 0.0
    %2596 = vmatpush2.msra.mxu0 0.0
    %2597 = vmatprep.subr.mxu0 0.0
    %2598 = vmatpush2.msra.mxu0 0.0
    %2599 = vmatprep.subr.mxu0 0.0
    %2600 = vmatpush2.msra.mxu0 0.0
    %2601 = vmatprep.subr.mxu0 0.0
    %2602 = vmatpush2.msra.mxu0 0.0
    %2603 = vmatprep.subr.mxu0 0.0
    %2604 = vmatpush2.msra.mxu0 0.0
    %2605 = vmatprep.subr.mxu0 0.0
    %2606 = vmatpush2.msra.mxu0 0.0
    %2607 = vmatprep.subr.mxu0 0.0
    %2608 = vmatpush2.msra.mxu0 0.0
    %2609 = vmatprep.subr.mxu0 0.0
    %2610 = vmatpush2.msra.mxu0 0.0
    %2611 = vmatprep.subr.mxu0 0.0
    %2612 = vmatpush2.msra.mxu0 0.0
    %2613 = vmatprep.subr.mxu0 0.0
    %2614 = vmatpush2.msra.mxu0 0.0
    %2615 = vmatprep.subr.mxu0 0.0
    %2616 = vmatpush2.msra.mxu0 0.0
    %2617 = vmatprep.subr.mxu0 0.0
    %2618 = vmatpush2.msra.mxu0 0.0
    %2619 = vmatprep.subr.mxu0 0.0
    %2620 = vmatpush2.msra.mxu0 0.0
    %2621 = vmatprep.mubr.f32.mxu0 0.0
    %2622 = vmatmul.mubr.f32.gmra.mxu0 %v2386
    %v2623 = vpop.f32.mrf.mxu0
    %v2624 = vadd.f32 0.0, %v2623
    %v2625 = vpop.f32.mrf.mxu0
    %v2626 = vadd.f32 0.0, %v2625
    %2627 = vdwg.mxu0
    %2628 = vmatprep.subr.mxu0 %v255
    %2629 = vmatpush1.msra.mxu0 %v254
    %2630 = vmatprep.subr.mxu0 %v251
    %2631 = vmatpush1.msra.mxu0 %v250
    %2632 = vmatprep.subr.mxu0 %v247
    %2633 = vmatpush1.msra.mxu0 %v246
    %2634 = vmatprep.subr.mxu0 %v243
    %2635 = vmatpush1.msra.mxu0 %v242
    %2636 = vmatprep.subr.mxu0 %v239
    %2637 = vmatpush1.msra.mxu0 %v238
    %2638 = vmatprep.subr.mxu0 %v235
    %2639 = vmatpush1.msra.mxu0 %v234
    %2640 = vmatprep.subr.mxu0 %v231
    %2641 = vmatpush1.msra.mxu0 %v230
    %2642 = vmatprep.subr.mxu0 %v227
    %2643 = vmatpush1.msra.mxu0 %v226
    %2644 = vmatprep.subr.mxu0 %v223
    %2645 = vmatpush1.msra.mxu0 %v222
    %2646 = vmatprep.subr.mxu0 %v219
    %2647 = vmatpush1.msra.mxu0 %v218
    %2648 = vmatprep.subr.mxu0 %v215
    %2649 = vmatpush1.msra.mxu0 %v214
    %2650 = vmatprep.subr.mxu0 %v211
    %2651 = vmatpush1.msra.mxu0 %v210
    %2652 = vmatprep.subr.mxu0 %v207
    %2653 = vmatpush1.msra.mxu0 %v206
    %2654 = vmatprep.subr.mxu0 %v203
    %2655 = vmatpush1.msra.mxu0 %v202
    %2656 = vmatprep.subr.mxu0 %v199
    %2657 = vmatpush1.msra.mxu0 %v198
    %2658 = vmatprep.subr.mxu0 %v195
    %2659 = vmatpush1.msra.mxu0 %v194
    %2660 = vmatprep.subr.mxu0 0.0
    %2661 = vmatpush2.msra.mxu0 0.0
    %2662 = vmatprep.subr.mxu0 0.0
    %2663 = vmatpush2.msra.mxu0 0.0
    %2664 = vmatprep.subr.mxu0 0.0
    %2665 = vmatpush2.msra.mxu0 0.0
    %2666 = vmatprep.subr.mxu0 0.0
    %2667 = vmatpush2.msra.mxu0 0.0
    %2668 = vmatprep.subr.mxu0 0.0
    %2669 = vmatpush2.msra.mxu0 0.0
    %2670 = vmatprep.subr.mxu0 0.0
    %2671 = vmatpush2.msra.mxu0 0.0
    %2672 = vmatprep.subr.mxu0 0.0
    %2673 = vmatpush2.msra.mxu0 0.0
    %2674 = vmatprep.subr.mxu0 0.0
    %2675 = vmatpush2.msra.mxu0 0.0
    %2676 = vmatprep.subr.mxu0 0.0
    %2677 = vmatpush2.msra.mxu0 0.0
    %2678 = vmatprep.subr.mxu0 0.0
    %2679 = vmatpush2.msra.mxu0 0.0
    %2680 = vmatprep.subr.mxu0 0.0
    %2681 = vmatpush2.msra.mxu0 0.0
    %2682 = vmatprep.subr.mxu0 0.0
    %2683 = vmatpush2.msra.mxu0 0.0
    %2684 = vmatprep.subr.mxu0 0.0
    %2685 = vmatpush2.msra.mxu0 0.0
    %2686 = vmatprep.subr.mxu0 0.0
    %2687 = vmatpush2.msra.mxu0 0.0
    %2688 = vmatprep.subr.mxu0 0.0
    %2689 = vmatpush2.msra.mxu0 0.0
    %2690 = vmatprep.subr.mxu0 0.0
    %2691 = vmatpush2.msra.mxu0 0.0
    %2692 = vmatprep.mubr.f32.mxu0 0.0
    %2693 = vmatmul.mubr.f32.gmra.mxu0 %v2386
    %v2694 = vpop.f32.mrf.mxu0
    %v2695 = vadd.f32 0.0, %v2694
    %v2696 = vpop.f32.mrf.mxu0
    %v2697 = vadd.f32 0.0, %v2696
    %2698 = vdwg.mxu0
    %v2699 = vadd.f32 %v481, %v2624
    %v2700 = vadd.f32 %v483, %v2626
    %v2701 = vadd.f32 %v594, %v2695
    %v2702 = vadd.f32 %v596, %v2697
    %v2703 = vxor.u32 %v2699, 2147483648
    %v2704 = vmul.f32 %v2703, 1.442695
    %v2705 = vpow.pop %v2704
    %v2706 = vadd.f32 %v2705, 1.0
    %v2707 = vrcp.pop %v2706
    %v2708 = vmul.f32 1.0, %v2707
    %v2709 = vxor.u32 %v2700, 2147483648
    %v2710 = vmul.f32 %v2709, 1.442695
    %v2711 = vpow.pop %v2710
    %v2712 = vadd.f32 %v2711, 1.0
    %v2713 = vrcp.pop %v2712
    %v2714 = vmul.f32 1.0, %v2713
    %v2715 = vtanh.pop %v2701
    %v2716 = vxor.u32 %v2702, 2147483648
    %v2717 = vmul.f32 %v2716, 1.442695
    %v2718 = vpow.pop %v2717
    %v2719 = vadd.f32 %v2718, 1.0
    %v2720 = vrcp.pop %v2719
    %v2721 = vmul.f32 1.0, %v2720
    %v2722 = vmul.f32 %v2714, %v2384
    %v2723 = vmul.f32 %v2708, %v2715
    %v2724 = vadd.f32 %v2722, %v2723
    %v2725 = vtanh.pop %v2724
    %v2726 = vmul.f32 %v2721, %v2725
    %2727 = vmatprep.subr.mxu0 %v334
    %2728 = vmatpush1.msra.mxu0 %v333
    %2729 = vmatprep.subr.mxu0 %v330
    %2730 = vmatpush1.msra.mxu0 %v329
    %2731 = vmatprep.subr.mxu0 %v326
    %2732 = vmatpush1.msra.mxu0 %v325
    %2733 = vmatprep.subr.mxu0 %v322
    %2734 = vmatpush1.msra.mxu0 %v321
    %2735 = vmatprep.subr.mxu0 %v318
    %2736 = vmatpush1.msra.mxu0 %v317
    %2737 = vmatprep.subr.mxu0 %v314
    %2738 = vmatpush1.msra.mxu0 %v313
    %2739 = vmatprep.subr.mxu0 %v310
    %2740 = vmatpush1.msra.mxu0 %v309
    %2741 = vmatprep.subr.mxu0 %v306
    %2742 = vmatpush1.msra.mxu0 %v305
    %2743 = vmatprep.subr.mxu0 %v302
    %2744 = vmatpush1.msra.mxu0 %v301
    %2745 = vmatprep.subr.mxu0 %v298
    %2746 = vmatpush1.msra.mxu0 %v297
    %2747 = vmatprep.subr.mxu0 %v294
    %2748 = vmatpush1.msra.mxu0 %v293
    %2749 = vmatprep.subr.mxu0 %v290
    %2750 = vmatpush1.msra.mxu0 %v289
    %2751 = vmatprep.subr.mxu0 %v286
    %2752 = vmatpush1.msra.mxu0 %v285
    %2753 = vmatprep.subr.mxu0 %v282
    %2754 = vmatpush1.msra.mxu0 %v281
    %2755 = vmatprep.subr.mxu0 %v278
    %2756 = vmatpush1.msra.mxu0 %v277
    %2757 = vmatprep.subr.mxu0 %v274
    %2758 = vmatpush1.msra.mxu0 %v273
    %2759 = vmatprep.subr.mxu0 0.0
    %2760 = vmatpush2.msra.mxu0 0.0
    %2761 = vmatprep.subr.mxu0 0.0
    %2762 = vmatpush2.msra.mxu0 0.0
    %2763 = vmatprep.subr.mxu0 0.0
    %2764 = vmatpush2.msra.mxu0 0.0
    %2765 = vmatprep.subr.mxu0 0.0
    %2766 = vmatpush2.msra.mxu0 0.0
    %2767 = vmatprep.subr.mxu0 0.0
    %2768 = vmatpush2.msra.mxu0 0.0
    %2769 = vmatprep.subr.mxu0 0.0
    %2770 = vmatpush2.msra.mxu0 0.0
    %2771 = vmatprep.subr.mxu0 0.0
    %2772 = vmatpush2.msra.mxu0 0.0
    %2773 = vmatprep.subr.mxu0 0.0
    %2774 = vmatpush2.msra.mxu0 0.0
    %2775 = vmatprep.subr.mxu0 0.0
    %2776 = vmatpush2.msra.mxu0 0.0
    %2777 = vmatprep.subr.mxu0 0.0
    %2778 = vmatpush2.msra.mxu0 0.0
    %2779 = vmatprep.subr.mxu0 0.0
    %2780 = vmatpush2.msra.mxu0 0.0
    %2781 = vmatprep.subr.mxu0 0.0
    %2782 = vmatpush2.msra.mxu0 0.0
    %2783 = vmatprep.subr.mxu0 0.0
    %2784 = vmatpush2.msra.mxu0 0.0
    %2785 = vmatprep.subr.mxu0 0.0
    %2786 = vmatpush2.msra.mxu0 0.0
    %2787 = vmatprep.subr.mxu0 0.0
    %2788 = vmatpush2.msra.mxu0 0.0
    %2789 = vmatprep.subr.mxu0 0.0
    %2790 = vmatpush2.msra.mxu0 0.0
    %2791 = vmatprep.mubr.f32.mxu0 0.0
    %2792 = vmatmul.mubr.f32.gmra.mxu0 %v2556
    %v2793 = vpop.f32.mrf.mxu0
    %v2794 = vadd.f32 0.0, %v2793
    %v2795 = vpop.f32.mrf.mxu0
    %v2796 = vadd.f32 0.0, %v2795
    %2797 = vdwg.mxu0
    %2798 = vmatprep.subr.mxu0 %v336
    %2799 = vmatpush1.msra.mxu0 %v335
    %2800 = vmatprep.subr.mxu0 %v332
    %2801 = vmatpush1.msra.mxu0 %v331
    %2802 = vmatprep.subr.mxu0 %v328
    %2803 = vmatpush1.msra.mxu0 %v327
    %2804 = vmatprep.subr.mxu0 %v324
    %2805 = vmatpush1.msra.mxu0 %v323
    %2806 = vmatprep.subr.mxu0 %v320
    %2807 = vmatpush1.msra.mxu0 %v319
    %2808 = vmatprep.subr.mxu0 %v316
    %2809 = vmatpush1.msra.mxu0 %v315
    %2810 = vmatprep.subr.mxu0 %v312
    %2811 = vmatpush1.msra.mxu0 %v311
    %2812 = vmatprep.subr.mxu0 %v308
    %2813 = vmatpush1.msra.mxu0 %v307
    %2814 = vmatprep.subr.mxu0 %v304
    %2815 = vmatpush1.msra.mxu0 %v303
    %2816 = vmatprep.subr.mxu0 %v300
    %2817 = vmatpush1.msra.mxu0 %v299
    %2818 = vmatprep.subr.mxu0 %v296
    %2819 = vmatpush1.msra.mxu0 %v295
    %2820 = vmatprep.subr.mxu0 %v292
    %2821 = vmatpush1.msra.mxu0 %v291
    %2822 = vmatprep.subr.mxu0 %v288
    %2823 = vmatpush1.msra.mxu0 %v287
    %2824 = vmatprep.subr.mxu0 %v284
    %2825 = vmatpush1.msra.mxu0 %v283
    %2826 = vmatprep.subr.mxu0 %v280
    %2827 = vmatpush1.msra.mxu0 %v279
    %2828 = vmatprep.subr.mxu0 %v276
    %2829 = vmatpush1.msra.mxu0 %v275
    %2830 = vmatprep.subr.mxu0 0.0
    %2831 = vmatpush2.msra.mxu0 0.0
    %2832 = vmatprep.subr.mxu0 0.0
    %2833 = vmatpush2.msra.mxu0 0.0
    %2834 = vmatprep.subr.mxu0 0.0
    %2835 = vmatpush2.msra.mxu0 0.0
    %2836 = vmatprep.subr.mxu0 0.0
    %2837 = vmatpush2.msra.mxu0 0.0
    %2838 = vmatprep.subr.mxu0 0.0
    %2839 = vmatpush2.msra.mxu0 0.0
    %2840 = vmatprep.subr.mxu0 0.0
    %2841 = vmatpush2.msra.mxu0 0.0
    %2842 = vmatprep.subr.mxu0 0.0
    %2843 = vmatpush2.msra.mxu0 0.0
    %2844 = vmatprep.subr.mxu0 0.0
    %2845 = vmatpush2.msra.mxu0 0.0
    %2846 = vmatprep.subr.mxu0 0.0
    %2847 = vmatpush2.msra.mxu0 0.0
    %2848 = vmatprep.subr.mxu0 0.0
    %2849 = vmatpush2.msra.mxu0 0.0
    %2850 = vmatprep.subr.mxu0 0.0
    %2851 = vmatpush2.msra.mxu0 0.0
    %2852 = vmatprep.subr.mxu0 0.0
    %2853 = vmatpush2.msra.mxu0 0.0
    %2854 = vmatprep.subr.mxu0 0.0
    %2855 = vmatpush2.msra.mxu0 0.0
    %2856 = vmatprep.subr.mxu0 0.0
    %2857 = vmatpush2.msra.mxu0 0.0
    %2858 = vmatprep.subr.mxu0 0.0
    %2859 = vmatpush2.msra.mxu0 0.0
    %2860 = vmatprep.subr.mxu0 0.0
    %2861 = vmatpush2.msra.mxu0 0.0
    %2862 = vmatprep.mubr.f32.mxu0 0.0
    %2863 = vmatmul.mubr.f32.gmra.mxu0 %v2556
    %v2864 = vpop.f32.mrf.mxu0
    %v2865 = vadd.f32 0.0, %v2864
    %v2866 = vpop.f32.mrf.mxu0
    %v2867 = vadd.f32 0.0, %v2866
    %2868 = vdwg.mxu0
    %v2869 = vadd.f32 %v710, %v2794
    %v2870 = vadd.f32 %v712, %v2796
    %v2871 = vadd.f32 %v823, %v2865
    %v2872 = vadd.f32 %v825, %v2867
    %v2873 = vxor.u32 %v2869, 2147483648
    %v2874 = vmul.f32 %v2873, 1.442695
    %v2875 = vpow.pop %v2874
    %v2876 = vadd.f32 %v2875, 1.0
    %v2877 = vrcp.pop %v2876
    %v2878 = vmul.f32 1.0, %v2877
    %v2879 = vxor.u32 %v2870, 2147483648
    %v2880 = vmul.f32 %v2879, 1.442695
    %v2881 = vpow.pop %v2880
    %v2882 = vadd.f32 %v2881, 1.0
    %v2883 = vrcp.pop %v2882
    %v2884 = vmul.f32 1.0, %v2883
    %v2885 = vtanh.pop %v2871
    %v2886 = vxor.u32 %v2872, 2147483648
    %v2887 = vmul.f32 %v2886, 1.442695
    %v2888 = vpow.pop %v2887
    %v2889 = vadd.f32 %v2888, 1.0
    %v2890 = vrcp.pop %v2889
    %v2891 = vmul.f32 1.0, %v2890
    %v2892 = vmul.f32 %v2884, %v2554
    %v2893 = vmul.f32 %v2878, %v2885
    %v2894 = vadd.f32 %v2892, %v2893
    %v2895 = vtanh.pop %v2894
    %v2896 = vmul.f32 %v2891, %v2895
    %2897 = vmatprep.subr.mxu0 %v253
    %2898 = vmatpush1.msra.mxu0 %v252
    %2899 = vmatprep.subr.mxu0 %v249
    %2900 = vmatpush1.msra.mxu0 %v248
    %2901 = vmatprep.subr.mxu0 %v245
    %2902 = vmatpush1.msra.mxu0 %v244
    %2903 = vmatprep.subr.mxu0 %v241
    %2904 = vmatpush1.msra.mxu0 %v240
    %2905 = vmatprep.subr.mxu0 %v237
    %2906 = vmatpush1.msra.mxu0 %v236
    %2907 = vmatprep.subr.mxu0 %v233
    %2908 = vmatpush1.msra.mxu0 %v232
    %2909 = vmatprep.subr.mxu0 %v229
    %2910 = vmatpush1.msra.mxu0 %v228
    %2911 = vmatprep.subr.mxu0 %v225
    %2912 = vmatpush1.msra.mxu0 %v224
    %2913 = vmatprep.subr.mxu0 %v221
    %2914 = vmatpush1.msra.mxu0 %v220
    %2915 = vmatprep.subr.mxu0 %v217
    %2916 = vmatpush1.msra.mxu0 %v216
    %2917 = vmatprep.subr.mxu0 %v213
    %2918 = vmatpush1.msra.mxu0 %v212
    %2919 = vmatprep.subr.mxu0 %v209
    %2920 = vmatpush1.msra.mxu0 %v208
    %2921 = vmatprep.subr.mxu0 %v205
    %2922 = vmatpush1.msra.mxu0 %v204
    %2923 = vmatprep.subr.mxu0 %v201
    %2924 = vmatpush1.msra.mxu0 %v200
    %2925 = vmatprep.subr.mxu0 %v197
    %2926 = vmatpush1.msra.mxu0 %v196
    %2927 = vmatprep.subr.mxu0 %v193
    %2928 = vmatpush1.msra.mxu0 %v192
    %2929 = vmatprep.subr.mxu0 0.0
    %2930 = vmatpush2.msra.mxu0 0.0
    %2931 = vmatprep.subr.mxu0 0.0
    %2932 = vmatpush2.msra.mxu0 0.0
    %2933 = vmatprep.subr.mxu0 0.0
    %2934 = vmatpush2.msra.mxu0 0.0
    %2935 = vmatprep.subr.mxu0 0.0
    %2936 = vmatpush2.msra.mxu0 0.0
    %2937 = vmatprep.subr.mxu0 0.0
    %2938 = vmatpush2.msra.mxu0 0.0
    %2939 = vmatprep.subr.mxu0 0.0
    %2940 = vmatpush2.msra.mxu0 0.0
    %2941 = vmatprep.subr.mxu0 0.0
    %2942 = vmatpush2.msra.mxu0 0.0
    %2943 = vmatprep.subr.mxu0 0.0
    %2944 = vmatpush2.msra.mxu0 0.0
    %2945 = vmatprep.subr.mxu0 0.0
    %2946 = vmatpush2.msra.mxu0 0.0
    %2947 = vmatprep.subr.mxu0 0.0
    %2948 = vmatpush2.msra.mxu0 0.0
    %2949 = vmatprep.subr.mxu0 0.0
    %2950 = vmatpush2.msra.mxu0 0.0
    %2951 = vmatprep.subr.mxu0 0.0
    %2952 = vmatpush2.msra.mxu0 0.0
    %2953 = vmatprep.subr.mxu0 0.0
    %2954 = vmatpush2.msra.mxu0 0.0
    %2955 = vmatprep.subr.mxu0 0.0
    %2956 = vmatpush2.msra.mxu0 0.0
    %2957 = vmatprep.subr.mxu0 0.0
    %2958 = vmatpush2.msra.mxu0 0.0
    %2959 = vmatprep.subr.mxu0 0.0
    %2960 = vmatpush2.msra.mxu0 0.0
    %2961 = vmatprep.mubr.f32.mxu0 0.0
    %2962 = vmatmul.mubr.f32.gmra.mxu0 %v2726
    %v2963 = vpop.f32.mrf.mxu0
    %v2964 = vadd.f32 0.0, %v2963
    %v2965 = vpop.f32.mrf.mxu0
    %v2966 = vadd.f32 0.0, %v2965
    %2967 = vdwg.mxu0
    %2968 = vmatprep.subr.mxu0 %v255
    %2969 = vmatpush1.msra.mxu0 %v254
    %2970 = vmatprep.subr.mxu0 %v251
    %2971 = vmatpush1.msra.mxu0 %v250
    %2972 = vmatprep.subr.mxu0 %v247
    %2973 = vmatpush1.msra.mxu0 %v246
    %2974 = vmatprep.subr.mxu0 %v243
    %2975 = vmatpush1.msra.mxu0 %v242
    %2976 = vmatprep.subr.mxu0 %v239
    %2977 = vmatpush1.msra.mxu0 %v238
    %2978 = vmatprep.subr.mxu0 %v235
    %2979 = vmatpush1.msra.mxu0 %v234
    %2980 = vmatprep.subr.mxu0 %v231
    %2981 = vmatpush1.msra.mxu0 %v230
    %2982 = vmatprep.subr.mxu0 %v227
    %2983 = vmatpush1.msra.mxu0 %v226
    %2984 = vmatprep.subr.mxu0 %v223
    %2985 = vmatpush1.msra.mxu0 %v222
    %2986 = vmatprep.subr.mxu0 %v219
    %2987 = vmatpush1.msra.mxu0 %v218
    %2988 = vmatprep.subr.mxu0 %v215
    %2989 = vmatpush1.msra.mxu0 %v214
    %2990 = vmatprep.subr.mxu0 %v211
    %2991 = vmatpush1.msra.mxu0 %v210
    %2992 = vmatprep.subr.mxu0 %v207
    %2993 = vmatpush1.msra.mxu0 %v206
    %2994 = vmatprep.subr.mxu0 %v203
    %2995 = vmatpush1.msra.mxu0 %v202
    %2996 = vmatprep.subr.mxu0 %v199
    %2997 = vmatpush1.msra.mxu0 %v198
    %2998 = vmatprep.subr.mxu0 %v195
    %2999 = vmatpush1.msra.mxu0 %v194
    %3000 = vmatprep.subr.mxu0 0.0
    %3001 = vmatpush2.msra.mxu0 0.0
    %3002 = vmatprep.subr.mxu0 0.0
    %3003 = vmatpush2.msra.mxu0 0.0
    %3004 = vmatprep.subr.mxu0 0.0
    %3005 = vmatpush2.msra.mxu0 0.0
    %3006 = vmatprep.subr.mxu0 0.0
    %3007 = vmatpush2.msra.mxu0 0.0
    %3008 = vmatprep.subr.mxu0 0.0
    %3009 = vmatpush2.msra.mxu0 0.0
    %3010 = vmatprep.subr.mxu0 0.0
    %3011 = vmatpush2.msra.mxu0 0.0
    %3012 = vmatprep.subr.mxu0 0.0
    %3013 = vmatpush2.msra.mxu0 0.0
    %3014 = vmatprep.subr.mxu0 0.0
    %3015 = vmatpush2.msra.mxu0 0.0
    %3016 = vmatprep.subr.mxu0 0.0
    %3017 = vmatpush2.msra.mxu0 0.0
    %3018 = vmatprep.subr.mxu0 0.0
    %3019 = vmatpush2.msra.mxu0 0.0
    %3020 = vmatprep.subr.mxu0 0.0
    %3021 = vmatpush2.msra.mxu0 0.0
    %3022 = vmatprep.subr.mxu0 0.0
    %3023 = vmatpush2.msra.mxu0 0.0
    %3024 = vmatprep.subr.mxu0 0.0
    %3025 = vmatpush2.msra.mxu0 0.0
    %3026 = vmatprep.subr.mxu0 0.0
    %3027 = vmatpush2.msra.mxu0 0.0
    %3028 = vmatprep.subr.mxu0 0.0
    %3029 = vmatpush2.msra.mxu0 0.0
    %3030 = vmatprep.subr.mxu0 0.0
    %3031 = vmatpush2.msra.mxu0 0.0
    %3032 = vmatprep.mubr.f32.mxu0 0.0
    %3033 = vmatmul.mubr.f32.gmra.mxu0 %v2726
    %v3034 = vpop.f32.mrf.mxu0
    %v3035 = vadd.f32 0.0, %v3034
    %v3036 = vpop.f32.mrf.mxu0
    %v3037 = vadd.f32 0.0, %v3036
    %3038 = vdwg.mxu0
    %v3039 = vadd.f32 %v487, %v2964
    %v3040 = vadd.f32 %v489, %v2966
    %v3041 = vadd.f32 %v600, %v3035
    %v3042 = vadd.f32 %v602, %v3037
    %v3043 = vxor.u32 %v3039, 2147483648
    %v3044 = vmul.f32 %v3043, 1.442695
    %v3045 = vpow.pop %v3044
    %v3046 = vadd.f32 %v3045, 1.0
    %v3047 = vrcp.pop %v3046
    %v3048 = vmul.f32 1.0, %v3047
    %v3049 = vxor.u32 %v3040, 2147483648
    %v3050 = vmul.f32 %v3049, 1.442695
    %v3051 = vpow.pop %v3050
    %v3052 = vadd.f32 %v3051, 1.0
    %v3053 = vrcp.pop %v3052
    %v3054 = vmul.f32 1.0, %v3053
    %v3055 = vtanh.pop %v3041
    %v3056 = vxor.u32 %v3042, 2147483648
    %v3057 = vmul.f32 %v3056, 1.442695
    %v3058 = vpow.pop %v3057
    %v3059 = vadd.f32 %v3058, 1.0
    %v3060 = vrcp.pop %v3059
    %v3061 = vmul.f32 1.0, %v3060
    %v3062 = vmul.f32 %v3054, %v2724
    %v3063 = vmul.f32 %v3048, %v3055
    %v3064 = vadd.f32 %v3062, %v3063
    %v3065 = vtanh.pop %v3064
    %v3066 = vmul.f32 %v3061, %v3065
    %3067 = vmatprep.subr.mxu0 %v334
    %3068 = vmatpush1.msra.mxu0 %v333
    %3069 = vmatprep.subr.mxu0 %v330
    %3070 = vmatpush1.msra.mxu0 %v329
    %3071 = vmatprep.subr.mxu0 %v326
    %3072 = vmatpush1.msra.mxu0 %v325
    %3073 = vmatprep.subr.mxu0 %v322
    %3074 = vmatpush1.msra.mxu0 %v321
    %3075 = vmatprep.subr.mxu0 %v318
    %3076 = vmatpush1.msra.mxu0 %v317
    %3077 = vmatprep.subr.mxu0 %v314
    %3078 = vmatpush1.msra.mxu0 %v313
    %3079 = vmatprep.subr.mxu0 %v310
    %3080 = vmatpush1.msra.mxu0 %v309
    %3081 = vmatprep.subr.mxu0 %v306
    %3082 = vmatpush1.msra.mxu0 %v305
    %3083 = vmatprep.subr.mxu0 %v302
    %3084 = vmatpush1.msra.mxu0 %v301
    %3085 = vmatprep.subr.mxu0 %v298
    %3086 = vmatpush1.msra.mxu0 %v297
    %3087 = vmatprep.subr.mxu0 %v294
    %3088 = vmatpush1.msra.mxu0 %v293
    %3089 = vmatprep.subr.mxu0 %v290
    %3090 = vmatpush1.msra.mxu0 %v289
    %3091 = vmatprep.subr.mxu0 %v286
    %3092 = vmatpush1.msra.mxu0 %v285
    %3093 = vmatprep.subr.mxu0 %v282
    %3094 = vmatpush1.msra.mxu0 %v281
    %3095 = vmatprep.subr.mxu0 %v278
    %3096 = vmatpush1.msra.mxu0 %v277
    %3097 = vmatprep.subr.mxu0 %v274
    %3098 = vmatpush1.msra.mxu0 %v273
    %3099 = vmatprep.subr.mxu0 0.0
    %3100 = vmatpush2.msra.mxu0 0.0
    %3101 = vmatprep.subr.mxu0 0.0
    %3102 = vmatpush2.msra.mxu0 0.0
    %3103 = vmatprep.subr.mxu0 0.0
    %3104 = vmatpush2.msra.mxu0 0.0
    %3105 = vmatprep.subr.mxu0 0.0
    %3106 = vmatpush2.msra.mxu0 0.0
    %3107 = vmatprep.subr.mxu0 0.0
    %3108 = vmatpush2.msra.mxu0 0.0
    %3109 = vmatprep.subr.mxu0 0.0
    %3110 = vmatpush2.msra.mxu0 0.0
    %3111 = vmatprep.subr.mxu0 0.0
    %3112 = vmatpush2.msra.mxu0 0.0
    %3113 = vmatprep.subr.mxu0 0.0
    %3114 = vmatpush2.msra.mxu0 0.0
    %3115 = vmatprep.subr.mxu0 0.0
    %3116 = vmatpush2.msra.mxu0 0.0
    %3117 = vmatprep.subr.mxu0 0.0
    %3118 = vmatpush2.msra.mxu0 0.0
    %3119 = vmatprep.subr.mxu0 0.0
    %3120 = vmatpush2.msra.mxu0 0.0
    %3121 = vmatprep.subr.mxu0 0.0
    %3122 = vmatpush2.msra.mxu0 0.0
    %3123 = vmatprep.subr.mxu0 0.0
    %3124 = vmatpush2.msra.mxu0 0.0
    %3125 = vmatprep.subr.mxu0 0.0
    %3126 = vmatpush2.msra.mxu0 0.0
    %3127 = vmatprep.subr.mxu0 0.0
    %3128 = vmatpush2.msra.mxu0 0.0
    %3129 = vmatprep.subr.mxu0 0.0
    %3130 = vmatpush2.msra.mxu0 0.0
    %3131 = vmatprep.mubr.f32.mxu0 0.0
    %3132 = vmatmul.mubr.f32.gmra.mxu0 %v2896
    %v3133 = vpop.f32.mrf.mxu0
    %v3134 = vadd.f32 0.0, %v3133
    %v3135 = vpop.f32.mrf.mxu0
    %v3136 = vadd.f32 0.0, %v3135
    %3137 = vdwg.mxu0
    %3138 = vmatprep.subr.mxu0 %v336
    %3139 = vmatpush1.msra.mxu0 %v335
    %3140 = vmatprep.subr.mxu0 %v332
    %3141 = vmatpush1.msra.mxu0 %v331
    %3142 = vmatprep.subr.mxu0 %v328
    %3143 = vmatpush1.msra.mxu0 %v327
    %3144 = vmatprep.subr.mxu0 %v324
    %3145 = vmatpush1.msra.mxu0 %v323
    %3146 = vmatprep.subr.mxu0 %v320
    %3147 = vmatpush1.msra.mxu0 %v319
    %3148 = vmatprep.subr.mxu0 %v316
    %3149 = vmatpush1.msra.mxu0 %v315
    %3150 = vmatprep.subr.mxu0 %v312
    %3151 = vmatpush1.msra.mxu0 %v311
    %3152 = vmatprep.subr.mxu0 %v308
    %3153 = vmatpush1.msra.mxu0 %v307
    %3154 = vmatprep.subr.mxu0 %v304
    %3155 = vmatpush1.msra.mxu0 %v303
    %3156 = vmatprep.subr.mxu0 %v300
    %3157 = vmatpush1.msra.mxu0 %v299
    %3158 = vmatprep.subr.mxu0 %v296
    %3159 = vmatpush1.msra.mxu0 %v295
    %3160 = vmatprep.subr.mxu0 %v292
    %3161 = vmatpush1.msra.mxu0 %v291
    %3162 = vmatprep.subr.mxu0 %v288
    %3163 = vmatpush1.msra.mxu0 %v287
    %3164 = vmatprep.subr.mxu0 %v284
    %3165 = vmatpush1.msra.mxu0 %v283
    %3166 = vmatprep.subr.mxu0 %v280
    %3167 = vmatpush1.msra.mxu0 %v279
    %3168 = vmatprep.subr.mxu0 %v276
    %3169 = vmatpush1.msra.mxu0 %v275
    %3170 = vmatprep.subr.mxu0 0.0
    %3171 = vmatpush2.msra.mxu0 0.0
    %3172 = vmatprep.subr.mxu0 0.0
    %3173 = vmatpush2.msra.mxu0 0.0
    %3174 = vmatprep.subr.mxu0 0.0
    %3175 = vmatpush2.msra.mxu0 0.0
    %3176 = vmatprep.subr.mxu0 0.0
    %3177 = vmatpush2.msra.mxu0 0.0
    %3178 = vmatprep.subr.mxu0 0.0
    %3179 = vmatpush2.msra.mxu0 0.0
    %3180 = vmatprep.subr.mxu0 0.0
    %3181 = vmatpush2.msra.mxu0 0.0
    %3182 = vmatprep.subr.mxu0 0.0
    %3183 = vmatpush2.msra.mxu0 0.0
    %3184 = vmatprep.subr.mxu0 0.0
    %3185 = vmatpush2.msra.mxu0 0.0
    %3186 = vmatprep.subr.mxu0 0.0
    %3187 = vmatpush2.msra.mxu0 0.0
    %3188 = vmatprep.subr.mxu0 0.0
    %3189 = vmatpush2.msra.mxu0 0.0
    %3190 = vmatprep.subr.mxu0 0.0
    %3191 = vmatpush2.msra.mxu0 0.0
    %3192 = vmatprep.subr.mxu0 0.0
    %3193 = vmatpush2.msra.mxu0 0.0
    %3194 = vmatprep.subr.mxu0 0.0
    %3195 = vmatpush2.msra.mxu0 0.0
    %3196 = vmatprep.subr.mxu0 0.0
    %3197 = vmatpush2.msra.mxu0 0.0
    %3198 = vmatprep.subr.mxu0 0.0
    %3199 = vmatpush2.msra.mxu0 0.0
    %3200 = vmatprep.subr.mxu0 0.0
    %3201 = vmatpush2.msra.mxu0 0.0
    %3202 = vmatprep.mubr.f32.mxu0 0.0
    %3203 = vmatmul.mubr.f32.gmra.mxu0 %v2896
    %v3204 = vpop.f32.mrf.mxu0
    %v3205 = vadd.f32 0.0, %v3204
    %v3206 = vpop.f32.mrf.mxu0
    %v3207 = vadd.f32 0.0, %v3206
    %3208 = vdwg.mxu0
    %v3209 = vadd.f32 %v704, %v3134
    %v3210 = vadd.f32 %v706, %v3136
    %v3211 = vadd.f32 %v817, %v3205
    %v3212 = vadd.f32 %v819, %v3207
    %v3213 = vxor.u32 %v3209, 2147483648
    %v3214 = vmul.f32 %v3213, 1.442695
    %v3215 = vpow.pop %v3214
    %v3216 = vadd.f32 %v3215, 1.0
    %v3217 = vrcp.pop %v3216
    %v3218 = vmul.f32 1.0, %v3217
    %v3219 = vxor.u32 %v3210, 2147483648
    %v3220 = vmul.f32 %v3219, 1.442695
    %v3221 = vpow.pop %v3220
    %v3222 = vadd.f32 %v3221, 1.0
    %v3223 = vrcp.pop %v3222
    %v3224 = vmul.f32 1.0, %v3223
    %v3225 = vtanh.pop %v3211
    %v3226 = vxor.u32 %v3212, 2147483648
    %v3227 = vmul.f32 %v3226, 1.442695
    %v3228 = vpow.pop %v3227
    %v3229 = vadd.f32 %v3228, 1.0
    %v3230 = vrcp.pop %v3229
    %v3231 = vmul.f32 1.0, %v3230
    %v3232 = vmul.f32 %v3224, %v2894
    %v3233 = vmul.f32 %v3218, %v3225
    %v3234 = vadd.f32 %v3232, %v3233
    %v3235 = vtanh.pop %v3234
    %v3236 = vmul.f32 %v3231, %v3235
    %3237 = vmatprep.subr.mxu0 %v253
    %3238 = vmatpush1.msra.mxu0 %v252
    %3239 = vmatprep.subr.mxu0 %v249
    %3240 = vmatpush1.msra.mxu0 %v248
    %3241 = vmatprep.subr.mxu0 %v245
    %3242 = vmatpush1.msra.mxu0 %v244
    %3243 = vmatprep.subr.mxu0 %v241
    %3244 = vmatpush1.msra.mxu0 %v240
    %3245 = vmatprep.subr.mxu0 %v237
    %3246 = vmatpush1.msra.mxu0 %v236
    %3247 = vmatprep.subr.mxu0 %v233
    %3248 = vmatpush1.msra.mxu0 %v232
    %3249 = vmatprep.subr.mxu0 %v229
    %3250 = vmatpush1.msra.mxu0 %v228
    %3251 = vmatprep.subr.mxu0 %v225
    %3252 = vmatpush1.msra.mxu0 %v224
    %3253 = vmatprep.subr.mxu0 %v221
    %3254 = vmatpush1.msra.mxu0 %v220
    %3255 = vmatprep.subr.mxu0 %v217
    %3256 = vmatpush1.msra.mxu0 %v216
    %3257 = vmatprep.subr.mxu0 %v213
    %3258 = vmatpush1.msra.mxu0 %v212
    %3259 = vmatprep.subr.mxu0 %v209
    %3260 = vmatpush1.msra.mxu0 %v208
    %3261 = vmatprep.subr.mxu0 %v205
    %3262 = vmatpush1.msra.mxu0 %v204
    %3263 = vmatprep.subr.mxu0 %v201
    %3264 = vmatpush1.msra.mxu0 %v200
    %3265 = vmatprep.subr.mxu0 %v197
    %3266 = vmatpush1.msra.mxu0 %v196
    %3267 = vmatprep.subr.mxu0 %v193
    %3268 = vmatpush1.msra.mxu0 %v192
    %3269 = vmatprep.subr.mxu0 0.0
    %3270 = vmatpush2.msra.mxu0 0.0
    %3271 = vmatprep.subr.mxu0 0.0
    %3272 = vmatpush2.msra.mxu0 0.0
    %3273 = vmatprep.subr.mxu0 0.0
    %3274 = vmatpush2.msra.mxu0 0.0
    %3275 = vmatprep.subr.mxu0 0.0
    %3276 = vmatpush2.msra.mxu0 0.0
    %3277 = vmatprep.subr.mxu0 0.0
    %3278 = vmatpush2.msra.mxu0 0.0
    %3279 = vmatprep.subr.mxu0 0.0
    %3280 = vmatpush2.msra.mxu0 0.0
    %3281 = vmatprep.subr.mxu0 0.0
    %3282 = vmatpush2.msra.mxu0 0.0
    %3283 = vmatprep.subr.mxu0 0.0
    %3284 = vmatpush2.msra.mxu0 0.0
    %3285 = vmatprep.subr.mxu0 0.0
    %3286 = vmatpush2.msra.mxu0 0.0
    %3287 = vmatprep.subr.mxu0 0.0
    %3288 = vmatpush2.msra.mxu0 0.0
    %3289 = vmatprep.subr.mxu0 0.0
    %3290 = vmatpush2.msra.mxu0 0.0
    %3291 = vmatprep.subr.mxu0 0.0
    %3292 = vmatpush2.msra.mxu0 0.0
    %3293 = vmatprep.subr.mxu0 0.0
    %3294 = vmatpush2.msra.mxu0 0.0
    %3295 = vmatprep.subr.mxu0 0.0
    %3296 = vmatpush2.msra.mxu0 0.0
    %3297 = vmatprep.subr.mxu0 0.0
    %3298 = vmatpush2.msra.mxu0 0.0
    %3299 = vmatprep.subr.mxu0 0.0
    %3300 = vmatpush2.msra.mxu0 0.0
    %3301 = vmatprep.mubr.f32.mxu0 0.0
    %3302 = vmatmul.mubr.f32.gmra.mxu0 %v3066
    %v3303 = vpop.f32.mrf.mxu0
    %v3304 = vadd.f32 0.0, %v3303
    %v3305 = vpop.f32.mrf.mxu0
    %v3306 = vadd.f32 0.0, %v3305
    %3307 = vdwg.mxu0
    %3308 = vmatprep.subr.mxu0 %v255
    %3309 = vmatpush1.msra.mxu0 %v254
    %3310 = vmatprep.subr.mxu0 %v251
    %3311 = vmatpush1.msra.mxu0 %v250
    %3312 = vmatprep.subr.mxu0 %v247
    %3313 = vmatpush1.msra.mxu0 %v246
    %3314 = vmatprep.subr.mxu0 %v243
    %3315 = vmatpush1.msra.mxu0 %v242
    %3316 = vmatprep.subr.mxu0 %v239
    %3317 = vmatpush1.msra.mxu0 %v238
    %3318 = vmatprep.subr.mxu0 %v235
    %3319 = vmatpush1.msra.mxu0 %v234
    %3320 = vmatprep.subr.mxu0 %v231
    %3321 = vmatpush1.msra.mxu0 %v230
    %3322 = vmatprep.subr.mxu0 %v227
    %3323 = vmatpush1.msra.mxu0 %v226
    %3324 = vmatprep.subr.mxu0 %v223
    %3325 = vmatpush1.msra.mxu0 %v222
    %3326 = vmatprep.subr.mxu0 %v219
    %3327 = vmatpush1.msra.mxu0 %v218
    %3328 = vmatprep.subr.mxu0 %v215
    %3329 = vmatpush1.msra.mxu0 %v214
    %3330 = vmatprep.subr.mxu0 %v211
    %3331 = vmatpush1.msra.mxu0 %v210
    %3332 = vmatprep.subr.mxu0 %v207
    %3333 = vmatpush1.msra.mxu0 %v206
    %3334 = vmatprep.subr.mxu0 %v203
    %3335 = vmatpush1.msra.mxu0 %v202
    %3336 = vmatprep.subr.mxu0 %v199
    %3337 = vmatpush1.msra.mxu0 %v198
    %3338 = vmatprep.subr.mxu0 %v195
    %3339 = vmatpush1.msra.mxu0 %v194
    %3340 = vmatprep.subr.mxu0 0.0
    %3341 = vmatpush2.msra.mxu0 0.0
    %3342 = vmatprep.subr.mxu0 0.0
    %3343 = vmatpush2.msra.mxu0 0.0
    %3344 = vmatprep.subr.mxu0 0.0
    %3345 = vmatpush2.msra.mxu0 0.0
    %3346 = vmatprep.subr.mxu0 0.0
    %3347 = vmatpush2.msra.mxu0 0.0
    %3348 = vmatprep.subr.mxu0 0.0
    %3349 = vmatpush2.msra.mxu0 0.0
    %3350 = vmatprep.subr.mxu0 0.0
    %3351 = vmatpush2.msra.mxu0 0.0
    %3352 = vmatprep.subr.mxu0 0.0
    %3353 = vmatpush2.msra.mxu0 0.0
    %3354 = vmatprep.subr.mxu0 0.0
    %3355 = vmatpush2.msra.mxu0 0.0
    %3356 = vmatprep.subr.mxu0 0.0
    %3357 = vmatpush2.msra.mxu0 0.0
    %3358 = vmatprep.subr.mxu0 0.0
    %3359 = vmatpush2.msra.mxu0 0.0
    %3360 = vmatprep.subr.mxu0 0.0
    %3361 = vmatpush2.msra.mxu0 0.0
    %3362 = vmatprep.subr.mxu0 0.0
    %3363 = vmatpush2.msra.mxu0 0.0
    %3364 = vmatprep.subr.mxu0 0.0
    %3365 = vmatpush2.msra.mxu0 0.0
    %3366 = vmatprep.subr.mxu0 0.0
    %3367 = vmatpush2.msra.mxu0 0.0
    %3368 = vmatprep.subr.mxu0 0.0
    %3369 = vmatpush2.msra.mxu0 0.0
    %3370 = vmatprep.subr.mxu0 0.0
    %3371 = vmatpush2.msra.mxu0 0.0
    %3372 = vmatprep.mubr.f32.mxu0 0.0
    %3373 = vmatmul.mubr.f32.gmra.mxu0 %v3066
    %v3374 = vpop.f32.mrf.mxu0
    %v3375 = vadd.f32 0.0, %v3374
    %v3376 = vpop.f32.mrf.mxu0
    %v3377 = vadd.f32 0.0, %v3376
    %3378 = vdwg.mxu0
    %v3379 = vadd.f32 %v493, %v3304
    %v3380 = vadd.f32 %v495, %v3306
    %v3381 = vadd.f32 %v606, %v3375
    %v3382 = vadd.f32 %v608, %v3377
    %v3383 = vxor.u32 %v3379, 2147483648
    %v3384 = vmul.f32 %v3383, 1.442695
    %v3385 = vpow.pop %v3384
    %v3386 = vadd.f32 %v3385, 1.0
    %v3387 = vrcp.pop %v3386
    %v3388 = vmul.f32 1.0, %v3387
    %v3389 = vxor.u32 %v3380, 2147483648
    %v3390 = vmul.f32 %v3389, 1.442695
    %v3391 = vpow.pop %v3390
    %v3392 = vadd.f32 %v3391, 1.0
    %v3393 = vrcp.pop %v3392
    %v3394 = vmul.f32 1.0, %v3393
    %v3395 = vtanh.pop %v3381
    %v3396 = vxor.u32 %v3382, 2147483648
    %v3397 = vmul.f32 %v3396, 1.442695
    %v3398 = vpow.pop %v3397
    %v3399 = vadd.f32 %v3398, 1.0
    %v3400 = vrcp.pop %v3399
    %v3401 = vmul.f32 1.0, %v3400
    %v3402 = vmul.f32 %v3394, %v3064
    %v3403 = vmul.f32 %v3388, %v3395
    %v3404 = vadd.f32 %v3402, %v3403
    %v3405 = vtanh.pop %v3404
    %v3406 = vmul.f32 %v3401, %v3405
    %3407 = vmatprep.subr.mxu0 %v334
    %3408 = vmatpush1.msra.mxu0 %v333
    %3409 = vmatprep.subr.mxu0 %v330
    %3410 = vmatpush1.msra.mxu0 %v329
    %3411 = vmatprep.subr.mxu0 %v326
    %3412 = vmatpush1.msra.mxu0 %v325
    %3413 = vmatprep.subr.mxu0 %v322
    %3414 = vmatpush1.msra.mxu0 %v321
    %3415 = vmatprep.subr.mxu0 %v318
    %3416 = vmatpush1.msra.mxu0 %v317
    %3417 = vmatprep.subr.mxu0 %v314
    %3418 = vmatpush1.msra.mxu0 %v313
    %3419 = vmatprep.subr.mxu0 %v310
    %3420 = vmatpush1.msra.mxu0 %v309
    %3421 = vmatprep.subr.mxu0 %v306
    %3422 = vmatpush1.msra.mxu0 %v305
    %3423 = vmatprep.subr.mxu0 %v302
    %3424 = vmatpush1.msra.mxu0 %v301
    %3425 = vmatprep.subr.mxu0 %v298
    %3426 = vmatpush1.msra.mxu0 %v297
    %3427 = vmatprep.subr.mxu0 %v294
    %3428 = vmatpush1.msra.mxu0 %v293
    %3429 = vmatprep.subr.mxu0 %v290
    %3430 = vmatpush1.msra.mxu0 %v289
    %3431 = vmatprep.subr.mxu0 %v286
    %3432 = vmatpush1.msra.mxu0 %v285
    %3433 = vmatprep.subr.mxu0 %v282
    %3434 = vmatpush1.msra.mxu0 %v281
    %3435 = vmatprep.subr.mxu0 %v278
    %3436 = vmatpush1.msra.mxu0 %v277
    %3437 = vmatprep.subr.mxu0 %v274
    %3438 = vmatpush1.msra.mxu0 %v273
    %3439 = vmatprep.subr.mxu0 0.0
    %3440 = vmatpush2.msra.mxu0 0.0
    %3441 = vmatprep.subr.mxu0 0.0
    %3442 = vmatpush2.msra.mxu0 0.0
    %3443 = vmatprep.subr.mxu0 0.0
    %3444 = vmatpush2.msra.mxu0 0.0
    %3445 = vmatprep.subr.mxu0 0.0
    %3446 = vmatpush2.msra.mxu0 0.0
    %3447 = vmatprep.subr.mxu0 0.0
    %3448 = vmatpush2.msra.mxu0 0.0
    %3449 = vmatprep.subr.mxu0 0.0
    %3450 = vmatpush2.msra.mxu0 0.0
    %3451 = vmatprep.subr.mxu0 0.0
    %3452 = vmatpush2.msra.mxu0 0.0
    %3453 = vmatprep.subr.mxu0 0.0
    %3454 = vmatpush2.msra.mxu0 0.0
    %3455 = vmatprep.subr.mxu0 0.0
    %3456 = vmatpush2.msra.mxu0 0.0
    %3457 = vmatprep.subr.mxu0 0.0
    %3458 = vmatpush2.msra.mxu0 0.0
    %3459 = vmatprep.subr.mxu0 0.0
    %3460 = vmatpush2.msra.mxu0 0.0
    %3461 = vmatprep.subr.mxu0 0.0
    %3462 = vmatpush2.msra.mxu0 0.0
    %3463 = vmatprep.subr.mxu0 0.0
    %3464 = vmatpush2.msra.mxu0 0.0
    %3465 = vmatprep.subr.mxu0 0.0
    %3466 = vmatpush2.msra.mxu0 0.0
    %3467 = vmatprep.subr.mxu0 0.0
    %3468 = vmatpush2.msra.mxu0 0.0
    %3469 = vmatprep.subr.mxu0 0.0
    %3470 = vmatpush2.msra.mxu0 0.0
    %3471 = vmatprep.mubr.f32.mxu0 0.0
    %3472 = vmatmul.mubr.f32.gmra.mxu0 %v3236
    %v3473 = vpop.f32.mrf.mxu0
    %v3474 = vadd.f32 0.0, %v3473
    %v3475 = vpop.f32.mrf.mxu0
    %v3476 = vadd.f32 0.0, %v3475
    %3477 = vdwg.mxu0
    %3478 = vmatprep.subr.mxu0 %v336
    %3479 = vmatpush1.msra.mxu0 %v335
    %3480 = vmatprep.subr.mxu0 %v332
    %3481 = vmatpush1.msra.mxu0 %v331
    %3482 = vmatprep.subr.mxu0 %v328
    %3483 = vmatpush1.msra.mxu0 %v327
    %3484 = vmatprep.subr.mxu0 %v324
    %3485 = vmatpush1.msra.mxu0 %v323
    %3486 = vmatprep.subr.mxu0 %v320
    %3487 = vmatpush1.msra.mxu0 %v319
    %3488 = vmatprep.subr.mxu0 %v316
    %3489 = vmatpush1.msra.mxu0 %v315
    %3490 = vmatprep.subr.mxu0 %v312
    %3491 = vmatpush1.msra.mxu0 %v311
    %3492 = vmatprep.subr.mxu0 %v308
    %3493 = vmatpush1.msra.mxu0 %v307
    %3494 = vmatprep.subr.mxu0 %v304
    %3495 = vmatpush1.msra.mxu0 %v303
    %3496 = vmatprep.subr.mxu0 %v300
    %3497 = vmatpush1.msra.mxu0 %v299
    %3498 = vmatprep.subr.mxu0 %v296
    %3499 = vmatpush1.msra.mxu0 %v295
    %3500 = vmatprep.subr.mxu0 %v292
    %3501 = vmatpush1.msra.mxu0 %v291
    %3502 = vmatprep.subr.mxu0 %v288
    %3503 = vmatpush1.msra.mxu0 %v287
    %3504 = vmatprep.subr.mxu0 %v284
    %3505 = vmatpush1.msra.mxu0 %v283
    %3506 = vmatprep.subr.mxu0 %v280
    %3507 = vmatpush1.msra.mxu0 %v279
    %3508 = vmatprep.subr.mxu0 %v276
    %3509 = vmatpush1.msra.mxu0 %v275
    %3510 = vmatprep.subr.mxu0 0.0
    %3511 = vmatpush2.msra.mxu0 0.0
    %3512 = vmatprep.subr.mxu0 0.0
    %3513 = vmatpush2.msra.mxu0 0.0
    %3514 = vmatprep.subr.mxu0 0.0
    %3515 = vmatpush2.msra.mxu0 0.0
    %3516 = vmatprep.subr.mxu0 0.0
    %3517 = vmatpush2.msra.mxu0 0.0
    %3518 = vmatprep.subr.mxu0 0.0
    %3519 = vmatpush2.msra.mxu0 0.0
    %3520 = vmatprep.subr.mxu0 0.0
    %3521 = vmatpush2.msra.mxu0 0.0
    %3522 = vmatprep.subr.mxu0 0.0
    %3523 = vmatpush2.msra.mxu0 0.0
    %3524 = vmatprep.subr.mxu0 0.0
    %3525 = vmatpush2.msra.mxu0 0.0
    %3526 = vmatprep.subr.mxu0 0.0
    %3527 = vmatpush2.msra.mxu0 0.0
    %3528 = vmatprep.subr.mxu0 0.0
    %3529 = vmatpush2.msra.mxu0 0.0
    %3530 = vmatprep.subr.mxu0 0.0
    %3531 = vmatpush2.msra.mxu0 0.0
    %3532 = vmatprep.subr.mxu0 0.0
    %3533 = vmatpush2.msra.mxu0 0.0
    %3534 = vmatprep.subr.mxu0 0.0
    %3535 = vmatpush2.msra.mxu0 0.0
    %3536 = vmatprep.subr.mxu0 0.0
    %3537 = vmatpush2.msra.mxu0 0.0
    %3538 = vmatprep.subr.mxu0 0.0
    %3539 = vmatpush2.msra.mxu0 0.0
    %3540 = vmatprep.subr.mxu0 0.0
    %3541 = vmatpush2.msra.mxu0 0.0
    %3542 = vmatprep.mubr.f32.mxu0 0.0
    %3543 = vmatmul.mubr.f32.gmra.mxu0 %v3236
    %v3544 = vpop.f32.mrf.mxu0
    %v3545 = vadd.f32 0.0, %v3544
    %v3546 = vpop.f32.mrf.mxu0
    %v3547 = vadd.f32 0.0, %v3546
    %3548 = vdwg.mxu0
    %v3549 = vadd.f32 %v698, %v3474
    %v3550 = vadd.f32 %v700, %v3476
    %v3551 = vadd.f32 %v811, %v3545
    %v3552 = vadd.f32 %v813, %v3547
    %v3553 = vxor.u32 %v3549, 2147483648
    %v3554 = vmul.f32 %v3553, 1.442695
    %v3555 = vpow.pop %v3554
    %v3556 = vadd.f32 %v3555, 1.0
    %v3557 = vrcp.pop %v3556
    %v3558 = vmul.f32 1.0, %v3557
    %v3559 = vxor.u32 %v3550, 2147483648
    %v3560 = vmul.f32 %v3559, 1.442695
    %v3561 = vpow.pop %v3560
    %v3562 = vadd.f32 %v3561, 1.0
    %v3563 = vrcp.pop %v3562
    %v3564 = vmul.f32 1.0, %v3563
    %v3565 = vtanh.pop %v3551
    %v3566 = vxor.u32 %v3552, 2147483648
    %v3567 = vmul.f32 %v3566, 1.442695
    %v3568 = vpow.pop %v3567
    %v3569 = vadd.f32 %v3568, 1.0
    %v3570 = vrcp.pop %v3569
    %v3571 = vmul.f32 1.0, %v3570
    %v3572 = vmul.f32 %v3564, %v3234
    %v3573 = vmul.f32 %v3558, %v3565
    %v3574 = vadd.f32 %v3572, %v3573
    %v3575 = vtanh.pop %v3574
    %v3576 = vmul.f32 %v3571, %v3575
    %v3577 = vld [vmem:[%s7] sm:$0xff]
    %v3578 = vld [vmem:[%s7 + $0x8] sm:$0xff]
    %v3579 = vld [vmem:[%s7 + $0x10] sm:$0xff]
    %v3580 = vld [vmem:[%s7 + $0x18] sm:$0xff]
    %v3581 = vld [vmem:[%s7 + $0x20] sm:$0xff]
    %v3582 = vld [vmem:[%s7 + $0x28] sm:$0xff]
    %v3583 = vld [vmem:[%s7 + $0x30] sm:$0xff]
    %v3584 = vld [vmem:[%s7 + $0x38] sm:$0xff]
    %v3585 = vld [vmem:[%s7 + $0x40] sm:$0xff]
    %v3586 = vld [vmem:[%s7 + $0x48] sm:$0xff]
    %v3587 = vld [vmem:[%s7 + $0x50] sm:$0xff]
    %v3588 = vld [vmem:[%s7 + $0x58] sm:$0xff]
    %v3589 = vld [vmem:[%s7 + $0x60] sm:$0xff]
    %v3590 = vld [vmem:[%s7 + $0x68] sm:$0xff]
    %v3591 = vld [vmem:[%s7 + $0x70] sm:$0xff]
    %v3592 = vld [vmem:[%s7 + $0x78] sm:$0xff]
    %v3593 = vld [vmem:[%s7 + $0x80] sm:$0xff]
    %v3594 = vld [vmem:[%s7 + $0x88] sm:$0xff]
    %v3595 = vld [vmem:[%s7 + $0x90] sm:$0xff]
    %v3596 = vld [vmem:[%s7 + $0x98] sm:$0xff]
    %v3597 = vld [vmem:[%s7 + $0xa0] sm:$0xff]
    %v3598 = vld [vmem:[%s7 + $0xa8] sm:$0xff]
    %v3599 = vld [vmem:[%s7 + $0xb0] sm:$0xff]
    %v3600 = vld [vmem:[%s7 + $0xb8] sm:$0xff]
    %v3601 = vld [vmem:[%s7 + $0xc0] sm:$0xff]
    %v3602 = vld [vmem:[%s7 + $0xc8] sm:$0xff]
    %v3603 = vld [vmem:[%s7 + $0xd0] sm:$0xff]
    %v3604 = vld [vmem:[%s7 + $0xd8] sm:$0xff]
    %v3605 = vld [vmem:[%s7 + $0xe0] sm:$0xff]
    %v3606 = vld [vmem:[%s7 + $0xe8] sm:$0xff]
    %v3607 = vld [vmem:[%s7 + $0xf0] sm:$0xff]
    %v3608 = vld [vmem:[%s7 + $0xf8] sm:$0xff]
    %v3609 = vld [vmem:[%s7 + $0x100] sm:$0xff]
    %v3610 = vld [vmem:[%s7 + $0x108] sm:$0xff]
    %v3611 = vld [vmem:[%s7 + $0x110] sm:$0xff]
    %v3612 = vld [vmem:[%s7 + $0x118] sm:$0xff]
    %v3613 = vld [vmem:[%s7 + $0x120] sm:$0xff]
    %v3614 = vld [vmem:[%s7 + $0x128] sm:$0xff]
    %v3615 = vld [vmem:[%s7 + $0x130] sm:$0xff]
    %v3616 = vld [vmem:[%s7 + $0x138] sm:$0xff]
    %v3617 = vld [vmem:[%s7 + $0x140] sm:$0xff]
    %v3618 = vld [vmem:[%s7 + $0x148] sm:$0xff]
    %v3619 = vld [vmem:[%s7 + $0x150] sm:$0xff]
    %v3620 = vld [vmem:[%s7 + $0x158] sm:$0xff]
    %v3621 = vld [vmem:[%s7 + $0x160] sm:$0xff]
    %v3622 = vld [vmem:[%s7 + $0x168] sm:$0xff]
    %v3623 = vld [vmem:[%s7 + $0x170] sm:$0xff]
    %v3624 = vld [vmem:[%s7 + $0x178] sm:$0xff]
    %v3625 = vld [vmem:[%s7 + $0x180] sm:$0xff]
    %v3626 = vld [vmem:[%s7 + $0x188] sm:$0xff]
    %v3627 = vld [vmem:[%s7 + $0x190] sm:$0xff]
    %v3628 = vld [vmem:[%s7 + $0x198] sm:$0xff]
    %v3629 = vld [vmem:[%s7 + $0x1a0] sm:$0xff]
    %v3630 = vld [vmem:[%s7 + $0x1a8] sm:$0xff]
    %v3631 = vld [vmem:[%s7 + $0x1b0] sm:$0xff]
    %v3632 = vld [vmem:[%s7 + $0x1b8] sm:$0xff]
    %v3633 = vld [vmem:[%s7 + $0x1c0] sm:$0xff]
    %v3634 = vld [vmem:[%s7 + $0x1c8] sm:$0xff]
    %v3635 = vld [vmem:[%s7 + $0x1d0] sm:$0xff]
    %v3636 = vld [vmem:[%s7 + $0x1d8] sm:$0xff]
    %v3637 = vld [vmem:[%s7 + $0x1e0] sm:$0xff]
    %v3638 = vld [vmem:[%s7 + $0x1e8] sm:$0xff]
    %v3639 = vld [vmem:[%s7 + $0x1f0] sm:$0xff]
    %v3640 = vld [vmem:[%s7 + $0x1f8] sm:$0xff]
    %v3641 = vld [vmem:[%s7 + $0x200] sm:$0xff]
    %v3642 = vld [vmem:[%s7 + $0x208] sm:$0xff]
    %v3643 = vld [vmem:[%s7 + $0x210] sm:$0xff]
    %v3644 = vld [vmem:[%s7 + $0x218] sm:$0xff]
    %v3645 = vld [vmem:[%s7 + $0x220] sm:$0xff]
    %v3646 = vld [vmem:[%s7 + $0x228] sm:$0xff]
    %v3647 = vld [vmem:[%s7 + $0x230] sm:$0xff]
    %v3648 = vld [vmem:[%s7 + $0x238] sm:$0xff]
    %v3649 = vld [vmem:[%s7 + $0x240] sm:$0xff]
    %v3650 = vld [vmem:[%s7 + $0x248] sm:$0xff]
    %v3651 = vld [vmem:[%s7 + $0x250] sm:$0xff]
    %v3652 = vld [vmem:[%s7 + $0x258] sm:$0xff]
    %v3653 = vld [vmem:[%s7 + $0x260] sm:$0xff]
    %v3654 = vld [vmem:[%s7 + $0x268] sm:$0xff]
    %v3655 = vld [vmem:[%s7 + $0x270] sm:$0xff]
    %v3656 = vld [vmem:[%s7 + $0x278] sm:$0xff]
    %v3657 = vld [vmem:[%s7 + $0x280] sm:$0xff]
    %v3658 = vld [vmem:[%s7 + $0x288] sm:$0xff]
    %v3659 = vld [vmem:[%s7 + $0x290] sm:$0xff]
    %v3660 = vld [vmem:[%s7 + $0x298] sm:$0xff]
    %v3661 = vld [vmem:[%s7 + $0x2a0] sm:$0xff]
    %v3662 = vld [vmem:[%s7 + $0x2a8] sm:$0xff]
    %v3663 = vld [vmem:[%s7 + $0x2b0] sm:$0xff]
    %v3664 = vld [vmem:[%s7 + $0x2b8] sm:$0xff]
    %v3665 = vld [vmem:[%s7 + $0x2c0] sm:$0xff]
    %v3666 = vld [vmem:[%s7 + $0x2c8] sm:$0xff]
    %v3667 = vld [vmem:[%s7 + $0x2d0] sm:$0xff]
    %v3668 = vld [vmem:[%s7 + $0x2d8] sm:$0xff]
    %v3669 = vld [vmem:[%s7 + $0x2e0] sm:$0xff]
    %v3670 = vld [vmem:[%s7 + $0x2e8] sm:$0xff]
    %v3671 = vld [vmem:[%s7 + $0x2f0] sm:$0xff]
    %v3672 = vld [vmem:[%s7 + $0x2f8] sm:$0xff]
    %v3673 = vld [vmem:[%s7 + $0x300] sm:$0xff]
    %v3674 = vld [vmem:[%s7 + $0x308] sm:$0xff]
    %v3675 = vld [vmem:[%s7 + $0x310] sm:$0xff]
    %v3676 = vld [vmem:[%s7 + $0x318] sm:$0xff]
    %v3677 = vld [vmem:[%s7 + $0x320] sm:$0xff]
    %v3678 = vld [vmem:[%s7 + $0x328] sm:$0xff]
    %v3679 = vld [vmem:[%s7 + $0x330] sm:$0xff]
    %v3680 = vld [vmem:[%s7 + $0x338] sm:$0xff]
    %v3681 = vld [vmem:[%s7 + $0x340] sm:$0xff]
    %v3682 = vld [vmem:[%s7 + $0x348] sm:$0xff]
    %v3683 = vld [vmem:[%s7 + $0x350] sm:$0xff]
    %v3684 = vld [vmem:[%s7 + $0x358] sm:$0xff]
    %v3685 = vld [vmem:[%s7 + $0x360] sm:$0xff]
    %v3686 = vld [vmem:[%s7 + $0x368] sm:$0xff]
    %v3687 = vld [vmem:[%s7 + $0x370] sm:$0xff]
    %v3688 = vld [vmem:[%s7 + $0x378] sm:$0xff]
    %v3689 = vld [vmem:[%s7 + $0x380] sm:$0xff]
    %v3690 = vld [vmem:[%s7 + $0x388] sm:$0xff]
    %v3691 = vld [vmem:[%s7 + $0x390] sm:$0xff]
    %v3692 = vld [vmem:[%s7 + $0x398] sm:$0xff]
    %v3693 = vld [vmem:[%s7 + $0x3a0] sm:$0xff]
    %v3694 = vld [vmem:[%s7 + $0x3a8] sm:$0xff]
    %v3695 = vld [vmem:[%s7 + $0x3b0] sm:$0xff]
    %v3696 = vld [vmem:[%s7 + $0x3b8] sm:$0xff]
    %v3697 = vld [vmem:[%s7 + $0x3c0] sm:$0xff]
    %v3698 = vld [vmem:[%s7 + $0x3c8] sm:$0xff]
    %v3699 = vld [vmem:[%s7 + $0x3d0] sm:$0xff]
    %v3700 = vld [vmem:[%s7 + $0x3d8] sm:$0xff]
    %v3701 = vld [vmem:[%s7 + $0x3e0] sm:$0xff]
    %v3702 = vld [vmem:[%s7 + $0x3e8] sm:$0xff]
    %v3703 = vld [vmem:[%s7 + $0x3f0] sm:$0xff]
    %v3704 = vld [vmem:[%s7 + $0x3f8] sm:$0xff]
    %v3705 = vld [vmem:[#allocation9] sm:$0xff]
    %v3706 = vld [vmem:[#allocation9 + $0x8] sm:$0xff]
    %v3707 = vld [vmem:[#allocation9 + $0x10] sm:$0xff]
    %v3708 = vld [vmem:[#allocation9 + $0x18] sm:$0xff]
    %v3709 = vld [vmem:[#allocation9 + $0x20] sm:$0xff]
    %v3710 = vld [vmem:[#allocation9 + $0x28] sm:$0xff]
    %v3711 = vld [vmem:[#allocation9 + $0x30] sm:$0xff]
    %v3712 = vld [vmem:[#allocation9 + $0x38] sm:$0xff]
    %v3713 = vld [vmem:[#allocation9 + $0x40] sm:$0xff]
    %v3714 = vld [vmem:[#allocation9 + $0x48] sm:$0xff]
    %v3715 = vld [vmem:[#allocation9 + $0x50] sm:$0xff]
    %v3716 = vld [vmem:[#allocation9 + $0x58] sm:$0xff]
    %v3717 = vld [vmem:[#allocation9 + $0x60] sm:$0xff]
    %v3718 = vld [vmem:[#allocation9 + $0x68] sm:$0xff]
    %v3719 = vld [vmem:[#allocation9 + $0x70] sm:$0xff]
    %v3720 = vld [vmem:[#allocation9 + $0x78] sm:$0xff]
    %v3721 = vld [vmem:[#allocation9 + $0x80] sm:$0xff]
    %v3722 = vld [vmem:[#allocation9 + $0x88] sm:$0xff]
    %v3723 = vld [vmem:[#allocation9 + $0x90] sm:$0xff]
    %v3724 = vld [vmem:[#allocation9 + $0x98] sm:$0xff]
    %v3725 = vld [vmem:[#allocation9 + $0xa0] sm:$0xff]
    %v3726 = vld [vmem:[#allocation9 + $0xa8] sm:$0xff]
    %v3727 = vld [vmem:[#allocation9 + $0xb0] sm:$0xff]
    %v3728 = vld [vmem:[#allocation9 + $0xb8] sm:$0xff]
    %v3729 = vld [vmem:[#allocation9 + $0xc0] sm:$0xff]
    %v3730 = vld [vmem:[#allocation9 + $0xc8] sm:$0xff]
    %v3731 = vld [vmem:[#allocation9 + $0xd0] sm:$0xff]
    %v3732 = vld [vmem:[#allocation9 + $0xd8] sm:$0xff]
    %v3733 = vld [vmem:[#allocation9 + $0xe0] sm:$0xff]
    %v3734 = vld [vmem:[#allocation9 + $0xe8] sm:$0xff]
    %v3735 = vld [vmem:[#allocation9 + $0xf0] sm:$0xff]
    %v3736 = vld [vmem:[#allocation9 + $0xf8] sm:$0xff]
    %v3737 = vld [vmem:[#allocation9 + $0x100] sm:$0xff]
    %v3738 = vld [vmem:[#allocation9 + $0x108] sm:$0xff]
    %v3739 = vld [vmem:[#allocation9 + $0x110] sm:$0xff]
    %v3740 = vld [vmem:[#allocation9 + $0x118] sm:$0xff]
    %v3741 = vld [vmem:[#allocation9 + $0x120] sm:$0xff]
    %v3742 = vld [vmem:[#allocation9 + $0x128] sm:$0xff]
    %v3743 = vld [vmem:[#allocation9 + $0x130] sm:$0xff]
    %v3744 = vld [vmem:[#allocation9 + $0x138] sm:$0xff]
    %v3745 = vld [vmem:[#allocation9 + $0x140] sm:$0xff]
    %v3746 = vld [vmem:[#allocation9 + $0x148] sm:$0xff]
    %v3747 = vld [vmem:[#allocation9 + $0x150] sm:$0xff]
    %v3748 = vld [vmem:[#allocation9 + $0x158] sm:$0xff]
    %v3749 = vld [vmem:[#allocation9 + $0x160] sm:$0xff]
    %v3750 = vld [vmem:[#allocation9 + $0x168] sm:$0xff]
    %v3751 = vld [vmem:[#allocation9 + $0x170] sm:$0xff]
    %v3752 = vld [vmem:[#allocation9 + $0x178] sm:$0xff]
    %v3753 = vld [vmem:[#allocation9 + $0x180] sm:$0xff]
    %v3754 = vld [vmem:[#allocation9 + $0x188] sm:$0xff]
    %v3755 = vld [vmem:[#allocation9 + $0x190] sm:$0xff]
    %v3756 = vld [vmem:[#allocation9 + $0x198] sm:$0xff]
    %v3757 = vld [vmem:[#allocation9 + $0x1a0] sm:$0xff]
    %v3758 = vld [vmem:[#allocation9 + $0x1a8] sm:$0xff]
    %v3759 = vld [vmem:[#allocation9 + $0x1b0] sm:$0xff]
    %v3760 = vld [vmem:[#allocation9 + $0x1b8] sm:$0xff]
    %v3761 = vld [vmem:[#allocation9 + $0x1c0] sm:$0xff]
    %v3762 = vld [vmem:[#allocation9 + $0x1c8] sm:$0xff]
    %v3763 = vld [vmem:[#allocation9 + $0x1d0] sm:$0xff]
    %v3764 = vld [vmem:[#allocation9 + $0x1d8] sm:$0xff]
    %v3765 = vld [vmem:[#allocation9 + $0x1e0] sm:$0xff]
    %v3766 = vld [vmem:[#allocation9 + $0x1e8] sm:$0xff]
    %v3767 = vld [vmem:[#allocation9 + $0x1f0] sm:$0xff]
    %v3768 = vld [vmem:[#allocation9 + $0x1f8] sm:$0xff]
    %v3769 = vld [vmem:[#allocation10] sm:$0xf]
    %v3770 = vld [vmem:[#allocation12] sm:$0xff]
    %v3771 = vld [vmem:[#allocation12 + $0x8] sm:$0xff]
    %v3772 = vld [vmem:[#allocation12 + $0x10] sm:$0xff]
    %v3773 = vld [vmem:[#allocation12 + $0x18] sm:$0xff]
    %v3774 = vld [vmem:[#allocation12 + $0x20] sm:$0xff]
    %v3775 = vld [vmem:[#allocation12 + $0x28] sm:$0xff]
    %v3776 = vld [vmem:[#allocation12 + $0x30] sm:$0xff]
    %v3777 = vld [vmem:[#allocation12 + $0x38] sm:$0xff]
    %v3778 = vld [vmem:[#allocation12 + $0x40] sm:$0xff]
    %v3779 = vld [vmem:[#allocation12 + $0x48] sm:$0xff]
    %v3780 = vld [vmem:[#allocation12 + $0x50] sm:$0xff]
    %v3781 = vld [vmem:[#allocation12 + $0x58] sm:$0xff]
    %v3782 = vld [vmem:[#allocation12 + $0x60] sm:$0xff]
    %v3783 = vld [vmem:[#allocation12 + $0x68] sm:$0xff]
    %v3784 = vld [vmem:[#allocation12 + $0x70] sm:$0xff]
    %v3785 = vld [vmem:[#allocation12 + $0x78] sm:$0xff]
    %v3786 = vld [vmem:[#allocation12 + $0x80] sm:$0xff]
    %v3787 = vld [vmem:[#allocation12 + $0x88] sm:$0xff]
    %v3788 = vld [vmem:[#allocation12 + $0x90] sm:$0xff]
    %v3789 = vld [vmem:[#allocation12 + $0x98] sm:$0xff]
    %v3790 = vld [vmem:[#allocation12 + $0xa0] sm:$0xff]
    %v3791 = vld [vmem:[#allocation12 + $0xa8] sm:$0xff]
    %v3792 = vld [vmem:[#allocation12 + $0xb0] sm:$0xff]
    %v3793 = vld [vmem:[#allocation12 + $0xb8] sm:$0xff]
    %v3794 = vld [vmem:[#allocation12 + $0xc0] sm:$0xff]
    %v3795 = vld [vmem:[#allocation12 + $0xc8] sm:$0xff]
    %v3796 = vld [vmem:[#allocation12 + $0xd0] sm:$0xff]
    %v3797 = vld [vmem:[#allocation12 + $0xd8] sm:$0xff]
    %v3798 = vld [vmem:[#allocation12 + $0xe0] sm:$0xff]
    %v3799 = vld [vmem:[#allocation12 + $0xe8] sm:$0xff]
    %v3800 = vld [vmem:[#allocation12 + $0xf0] sm:$0xff]
    %v3801 = vld [vmem:[#allocation12 + $0xf8] sm:$0xff]
    %v3802 = vld [vmem:[#allocation12 + $0x100] sm:$0xff]
    %v3803 = vld [vmem:[#allocation12 + $0x108] sm:$0xff]
    %v3804 = vld [vmem:[#allocation12 + $0x110] sm:$0xff]
    %v3805 = vld [vmem:[#allocation12 + $0x118] sm:$0xff]
    %v3806 = vld [vmem:[#allocation12 + $0x120] sm:$0xff]
    %v3807 = vld [vmem:[#allocation12 + $0x128] sm:$0xff]
    %v3808 = vld [vmem:[#allocation12 + $0x130] sm:$0xff]
    %v3809 = vld [vmem:[#allocation12 + $0x138] sm:$0xff]
    %v3810 = vld [vmem:[#allocation12 + $0x140] sm:$0xff]
    %v3811 = vld [vmem:[#allocation12 + $0x148] sm:$0xff]
    %v3812 = vld [vmem:[#allocation12 + $0x150] sm:$0xff]
    %v3813 = vld [vmem:[#allocation12 + $0x158] sm:$0xff]
    %v3814 = vld [vmem:[#allocation12 + $0x160] sm:$0xff]
    %v3815 = vld [vmem:[#allocation12 + $0x168] sm:$0xff]
    %v3816 = vld [vmem:[#allocation12 + $0x170] sm:$0xff]
    %v3817 = vld [vmem:[#allocation12 + $0x178] sm:$0xff]
    %v3818 = vld [vmem:[#allocation12 + $0x180] sm:$0xff]
    %v3819 = vld [vmem:[#allocation12 + $0x188] sm:$0xff]
    %v3820 = vld [vmem:[#allocation12 + $0x190] sm:$0xff]
    %v3821 = vld [vmem:[#allocation12 + $0x198] sm:$0xff]
    %v3822 = vld [vmem:[#allocation12 + $0x1a0] sm:$0xff]
    %v3823 = vld [vmem:[#allocation12 + $0x1a8] sm:$0xff]
    %v3824 = vld [vmem:[#allocation12 + $0x1b0] sm:$0xff]
    %v3825 = vld [vmem:[#allocation12 + $0x1b8] sm:$0xff]
    %v3826 = vld [vmem:[#allocation12 + $0x1c0] sm:$0xff]
    %v3827 = vld [vmem:[#allocation12 + $0x1c8] sm:$0xff]
    %v3828 = vld [vmem:[#allocation12 + $0x1d0] sm:$0xff]
    %v3829 = vld [vmem:[#allocation12 + $0x1d8] sm:$0xff]
    %v3830 = vld [vmem:[#allocation12 + $0x1e0] sm:$0xff]
    %v3831 = vld [vmem:[#allocation12 + $0x1e8] sm:$0xff]
    %v3832 = vld [vmem:[#allocation12 + $0x1f0] sm:$0xff]
    %v3833 = vld [vmem:[#allocation12 + $0x1f8] sm:$0xff]
    %v3834 = vld [vmem:[#allocation12 + $0x200] sm:$0xff]
    %v3835 = vld [vmem:[#allocation12 + $0x208] sm:$0xff]
    %v3836 = vld [vmem:[#allocation12 + $0x210] sm:$0xff]
    %v3837 = vld [vmem:[#allocation12 + $0x218] sm:$0xff]
    %v3838 = vld [vmem:[#allocation12 + $0x220] sm:$0xff]
    %v3839 = vld [vmem:[#allocation12 + $0x228] sm:$0xff]
    %v3840 = vld [vmem:[#allocation12 + $0x230] sm:$0xff]
    %v3841 = vld [vmem:[#allocation12 + $0x238] sm:$0xff]
    %v3842 = vld [vmem:[#allocation12 + $0x240] sm:$0xff]
    %v3843 = vld [vmem:[#allocation12 + $0x248] sm:$0xff]
    %v3844 = vld [vmem:[#allocation12 + $0x250] sm:$0xff]
    %v3845 = vld [vmem:[#allocation12 + $0x258] sm:$0xff]
    %v3846 = vld [vmem:[#allocation12 + $0x260] sm:$0xff]
    %v3847 = vld [vmem:[#allocation12 + $0x268] sm:$0xff]
    %v3848 = vld [vmem:[#allocation12 + $0x270] sm:$0xff]
    %v3849 = vld [vmem:[#allocation12 + $0x278] sm:$0xff]
    %v3850 = vld [vmem:[#allocation12 + $0x280] sm:$0xff]
    %v3851 = vld [vmem:[#allocation12 + $0x288] sm:$0xff]
    %v3852 = vld [vmem:[#allocation12 + $0x290] sm:$0xff]
    %v3853 = vld [vmem:[#allocation12 + $0x298] sm:$0xff]
    %v3854 = vld [vmem:[#allocation12 + $0x2a0] sm:$0xff]
    %v3855 = vld [vmem:[#allocation12 + $0x2a8] sm:$0xff]
    %v3856 = vld [vmem:[#allocation12 + $0x2b0] sm:$0xff]
    %v3857 = vld [vmem:[#allocation12 + $0x2b8] sm:$0xff]
    %v3858 = vld [vmem:[#allocation12 + $0x2c0] sm:$0xff]
    %v3859 = vld [vmem:[#allocation12 + $0x2c8] sm:$0xff]
    %v3860 = vld [vmem:[#allocation12 + $0x2d0] sm:$0xff]
    %v3861 = vld [vmem:[#allocation12 + $0x2d8] sm:$0xff]
    %v3862 = vld [vmem:[#allocation12 + $0x2e0] sm:$0xff]
    %v3863 = vld [vmem:[#allocation12 + $0x2e8] sm:$0xff]
    %v3864 = vld [vmem:[#allocation12 + $0x2f0] sm:$0xff]
    %v3865 = vld [vmem:[#allocation12 + $0x2f8] sm:$0xff]
    %v3866 = vld [vmem:[#allocation12 + $0x300] sm:$0xff]
    %v3867 = vld [vmem:[#allocation12 + $0x308] sm:$0xff]
    %v3868 = vld [vmem:[#allocation12 + $0x310] sm:$0xff]
    %v3869 = vld [vmem:[#allocation12 + $0x318] sm:$0xff]
    %v3870 = vld [vmem:[#allocation12 + $0x320] sm:$0xff]
    %v3871 = vld [vmem:[#allocation12 + $0x328] sm:$0xff]
    %v3872 = vld [vmem:[#allocation12 + $0x330] sm:$0xff]
    %v3873 = vld [vmem:[#allocation12 + $0x338] sm:$0xff]
    %v3874 = vld [vmem:[#allocation12 + $0x340] sm:$0xff]
    %v3875 = vld [vmem:[#allocation12 + $0x348] sm:$0xff]
    %v3876 = vld [vmem:[#allocation12 + $0x350] sm:$0xff]
    %v3877 = vld [vmem:[#allocation12 + $0x358] sm:$0xff]
    %v3878 = vld [vmem:[#allocation12 + $0x360] sm:$0xff]
    %v3879 = vld [vmem:[#allocation12 + $0x368] sm:$0xff]
    %v3880 = vld [vmem:[#allocation12 + $0x370] sm:$0xff]
    %v3881 = vld [vmem:[#allocation12 + $0x378] sm:$0xff]
    %v3882 = vld [vmem:[#allocation12 + $0x380] sm:$0xff]
    %v3883 = vld [vmem:[#allocation12 + $0x388] sm:$0xff]
    %v3884 = vld [vmem:[#allocation12 + $0x390] sm:$0xff]
    %v3885 = vld [vmem:[#allocation12 + $0x398] sm:$0xff]
    %v3886 = vld [vmem:[#allocation12 + $0x3a0] sm:$0xff]
    %v3887 = vld [vmem:[#allocation12 + $0x3a8] sm:$0xff]
    %v3888 = vld [vmem:[#allocation12 + $0x3b0] sm:$0xff]
    %v3889 = vld [vmem:[#allocation12 + $0x3b8] sm:$0xff]
    %v3890 = vld [vmem:[#allocation12 + $0x3c0] sm:$0xff]
    %v3891 = vld [vmem:[#allocation12 + $0x3c8] sm:$0xff]
    %v3892 = vld [vmem:[#allocation12 + $0x3d0] sm:$0xff]
    %v3893 = vld [vmem:[#allocation12 + $0x3d8] sm:$0xff]
    %v3894 = vld [vmem:[#allocation12 + $0x3e0] sm:$0xff]
    %v3895 = vld [vmem:[#allocation12 + $0x3e8] sm:$0xff]
    %v3896 = vld [vmem:[#allocation12 + $0x3f0] sm:$0xff]
    %v3897 = vld [vmem:[#allocation12 + $0x3f8] sm:$0xff]
    %v3898 = vld [vmem:[#allocation13] sm:$0xff]
    %v3899 = vld [vmem:[#allocation13 + $0x8] sm:$0xff]
    %v3900 = vld [vmem:[#allocation13 + $0x10] sm:$0xff]
    %v3901 = vld [vmem:[#allocation13 + $0x18] sm:$0xff]
    %v3902 = vld [vmem:[#allocation13 + $0x20] sm:$0xff]
    %v3903 = vld [vmem:[#allocation13 + $0x28] sm:$0xff]
    %v3904 = vld [vmem:[#allocation13 + $0x30] sm:$0xff]
    %v3905 = vld [vmem:[#allocation13 + $0x38] sm:$0xff]
    %v3906 = vld [vmem:[#allocation13 + $0x40] sm:$0xff]
    %v3907 = vld [vmem:[#allocation13 + $0x48] sm:$0xff]
    %v3908 = vld [vmem:[#allocation13 + $0x50] sm:$0xff]
    %v3909 = vld [vmem:[#allocation13 + $0x58] sm:$0xff]
    %v3910 = vld [vmem:[#allocation13 + $0x60] sm:$0xff]
    %v3911 = vld [vmem:[#allocation13 + $0x68] sm:$0xff]
    %v3912 = vld [vmem:[#allocation13 + $0x70] sm:$0xff]
    %v3913 = vld [vmem:[#allocation13 + $0x78] sm:$0xff]
    %v3914 = vld [vmem:[#allocation13 + $0x80] sm:$0xff]
    %v3915 = vld [vmem:[#allocation13 + $0x88] sm:$0xff]
    %v3916 = vld [vmem:[#allocation13 + $0x90] sm:$0xff]
    %v3917 = vld [vmem:[#allocation13 + $0x98] sm:$0xff]
    %v3918 = vld [vmem:[#allocation13 + $0xa0] sm:$0xff]
    %v3919 = vld [vmem:[#allocation13 + $0xa8] sm:$0xff]
    %v3920 = vld [vmem:[#allocation13 + $0xb0] sm:$0xff]
    %v3921 = vld [vmem:[#allocation13 + $0xb8] sm:$0xff]
    %v3922 = vld [vmem:[#allocation13 + $0xc0] sm:$0xff]
    %v3923 = vld [vmem:[#allocation13 + $0xc8] sm:$0xff]
    %v3924 = vld [vmem:[#allocation13 + $0xd0] sm:$0xff]
    %v3925 = vld [vmem:[#allocation13 + $0xd8] sm:$0xff]
    %v3926 = vld [vmem:[#allocation13 + $0xe0] sm:$0xff]
    %v3927 = vld [vmem:[#allocation13 + $0xe8] sm:$0xff]
    %v3928 = vld [vmem:[#allocation13 + $0xf0] sm:$0xff]
    %v3929 = vld [vmem:[#allocation13 + $0xf8] sm:$0xff]
    %v3930 = vld [vmem:[#allocation13 + $0x100] sm:$0xff]
    %v3931 = vld [vmem:[#allocation13 + $0x108] sm:$0xff]
    %v3932 = vld [vmem:[#allocation13 + $0x110] sm:$0xff]
    %v3933 = vld [vmem:[#allocation13 + $0x118] sm:$0xff]
    %v3934 = vld [vmem:[#allocation13 + $0x120] sm:$0xff]
    %v3935 = vld [vmem:[#allocation13 + $0x128] sm:$0xff]
    %v3936 = vld [vmem:[#allocation13 + $0x130] sm:$0xff]
    %v3937 = vld [vmem:[#allocation13 + $0x138] sm:$0xff]
    %v3938 = vld [vmem:[#allocation13 + $0x140] sm:$0xff]
    %v3939 = vld [vmem:[#allocation13 + $0x148] sm:$0xff]
    %v3940 = vld [vmem:[#allocation13 + $0x150] sm:$0xff]
    %v3941 = vld [vmem:[#allocation13 + $0x158] sm:$0xff]
    %v3942 = vld [vmem:[#allocation13 + $0x160] sm:$0xff]
    %v3943 = vld [vmem:[#allocation13 + $0x168] sm:$0xff]
    %v3944 = vld [vmem:[#allocation13 + $0x170] sm:$0xff]
    %v3945 = vld [vmem:[#allocation13 + $0x178] sm:$0xff]
    %v3946 = vld [vmem:[#allocation13 + $0x180] sm:$0xff]
    %v3947 = vld [vmem:[#allocation13 + $0x188] sm:$0xff]
    %v3948 = vld [vmem:[#allocation13 + $0x190] sm:$0xff]
    %v3949 = vld [vmem:[#allocation13 + $0x198] sm:$0xff]
    %v3950 = vld [vmem:[#allocation13 + $0x1a0] sm:$0xff]
    %v3951 = vld [vmem:[#allocation13 + $0x1a8] sm:$0xff]
    %v3952 = vld [vmem:[#allocation13 + $0x1b0] sm:$0xff]
    %v3953 = vld [vmem:[#allocation13 + $0x1b8] sm:$0xff]
    %v3954 = vld [vmem:[#allocation13 + $0x1c0] sm:$0xff]
    %v3955 = vld [vmem:[#allocation13 + $0x1c8] sm:$0xff]
    %v3956 = vld [vmem:[#allocation13 + $0x1d0] sm:$0xff]
    %v3957 = vld [vmem:[#allocation13 + $0x1d8] sm:$0xff]
    %v3958 = vld [vmem:[#allocation13 + $0x1e0] sm:$0xff]
    %v3959 = vld [vmem:[#allocation13 + $0x1e8] sm:$0xff]
    %v3960 = vld [vmem:[#allocation13 + $0x1f0] sm:$0xff]
    %v3961 = vld [vmem:[#allocation13 + $0x1f8] sm:$0xff]
    %v3962 = vld [vmem:[#allocation15] sm:$0xf]
    %v3964 = vlaneseq
    %v3965 = vshrl.u32 %v3964, 7
    %v3966 = vsub.s32 0, %v3965
    %v3967 = vrot.slane %v3769, %v3966
    %v3968 = vlaneseq
    %v3969 = vshrl.u32 %v3968, 7
    %v3970 = vsub.s32 1, %v3969
    %v3971 = vrot.slane %v3769, %v3970
    %v3972 = vlaneseq
    %v3973 = vshrl.u32 %v3972, 7
    %v3974 = vsub.s32 2, %v3973
    %v3975 = vrot.slane %v3769, %v3974
    %v3976 = vlaneseq
    %v3977 = vshrl.u32 %v3976, 7
    %v3978 = vsub.s32 3, %v3977
    %v3979 = vrot.slane %v3769, %v3978
    %3984 = vmatprep.subr.mxu0 %v3638
    %3985 = vmatpush1.msra.mxu0 %v3637
    %3986 = vmatprep.subr.mxu0 %v3634
    %3987 = vmatpush1.msra.mxu0 %v3633
    %3988 = vmatprep.subr.mxu0 %v3630
    %3989 = vmatpush1.msra.mxu0 %v3629
    %3990 = vmatprep.subr.mxu0 %v3626
    %3991 = vmatpush1.msra.mxu0 %v3625
    %3992 = vmatprep.subr.mxu0 %v3622
    %3993 = vmatpush1.msra.mxu0 %v3621
    %3994 = vmatprep.subr.mxu0 %v3618
    %3995 = vmatpush1.msra.mxu0 %v3617
    %3996 = vmatprep.subr.mxu0 %v3614
    %3997 = vmatpush1.msra.mxu0 %v3613
    %3998 = vmatprep.subr.mxu0 %v3610
    %3999 = vmatpush1.msra.mxu0 %v3609
    %4000 = vmatprep.subr.mxu0 %v3606
    %4001 = vmatpush1.msra.mxu0 %v3605
    %4002 = vmatprep.subr.mxu0 %v3602
    %4003 = vmatpush1.msra.mxu0 %v3601
    %4004 = vmatprep.subr.mxu0 %v3598
    %4005 = vmatpush1.msra.mxu0 %v3597
    %4006 = vmatprep.subr.mxu0 %v3594
    %4007 = vmatpush1.msra.mxu0 %v3593
    %4008 = vmatprep.subr.mxu0 %v3590
    %4009 = vmatpush1.msra.mxu0 %v3589
    %4010 = vmatprep.subr.mxu0 %v3586
    %4011 = vmatpush1.msra.mxu0 %v3585
    %4012 = vmatprep.subr.mxu0 %v3582
    %4013 = vmatpush1.msra.mxu0 %v3581
    %4014 = vmatprep.subr.mxu0 %v3578
    %4015 = vmatpush1.msra.mxu0 %v3577
    %4016 = vmatprep.subr.mxu0 %v3702
    %4017 = vmatpush2.msra.mxu0 %v3701
    %4018 = vmatprep.subr.mxu0 %v3698
    %4019 = vmatpush2.msra.mxu0 %v3697
    %4020 = vmatprep.subr.mxu0 %v3694
    %4021 = vmatpush2.msra.mxu0 %v3693
    %4022 = vmatprep.subr.mxu0 %v3690
    %4023 = vmatpush2.msra.mxu0 %v3689
    %4024 = vmatprep.subr.mxu0 %v3686
    %4025 = vmatpush2.msra.mxu0 %v3685
    %4026 = vmatprep.subr.mxu0 %v3682
    %4027 = vmatpush2.msra.mxu0 %v3681
    %4028 = vmatprep.subr.mxu0 %v3678
    %4029 = vmatpush2.msra.mxu0 %v3677
    %4030 = vmatprep.subr.mxu0 %v3674
    %4031 = vmatpush2.msra.mxu0 %v3673
    %4032 = vmatprep.subr.mxu0 %v3670
    %4033 = vmatpush2.msra.mxu0 %v3669
    %4034 = vmatprep.subr.mxu0 %v3666
    %4035 = vmatpush2.msra.mxu0 %v3665
    %4036 = vmatprep.subr.mxu0 %v3662
    %4037 = vmatpush2.msra.mxu0 %v3661
    %4038 = vmatprep.subr.mxu0 %v3658
    %4039 = vmatpush2.msra.mxu0 %v3657
    %4040 = vmatprep.subr.mxu0 %v3654
    %4041 = vmatpush2.msra.mxu0 %v3653
    %4042 = vmatprep.subr.mxu0 %v3650
    %4043 = vmatpush2.msra.mxu0 %v3649
    %4044 = vmatprep.subr.mxu0 %v3646
    %4045 = vmatpush2.msra.mxu0 %v3645
    %4046 = vmatprep.subr.mxu0 %v3642
    %4047 = vmatpush2.msra.mxu0 %v3641
    %4048 = vmatprep.mubr.f32.mxu0 %v3576
    %4049 = vmatmul.mubr.f32.gmra.mxu0 %v1026
    %v4050 = vpop.f32.mrf.mxu0
    %v4051 = vadd.f32 %v3967, %v4050
    %v4052 = vpop.f32.mrf.mxu0
    %v4053 = vadd.f32 %v3971, %v4052
    %4054 = vmatprep.mubr.f32.mxu0 %v3236
    %4055 = vmatmul.mubr.f32.gmra.mxu0 %v1366
    %v4056 = vpop.f32.mrf.mxu0
    %v4057 = vadd.f32 %v3967, %v4056
    %v4058 = vpop.f32.mrf.mxu0
    %v4059 = vadd.f32 %v3971, %v4058
    %4060 = vmatprep.mubr.f32.mxu0 %v2896
    %4061 = vmatmul.mubr.f32.gmra.mxu0 %v1706
    %v4062 = vpop.f32.mrf.mxu0
    %v4063 = vadd.f32 %v3967, %v4062
    %v4064 = vpop.f32.mrf.mxu0
    %v4065 = vadd.f32 %v3971, %v4064
    %4066 = vmatprep.mubr.f32.mxu0 %v2556
    %4067 = vmatmul.mubr.f32.gmra.mxu0 %v2046
    %v4068 = vpop.f32.mrf.mxu0
    %v4069 = vadd.f32 %v3967, %v4068
    %v4070 = vpop.f32.mrf.mxu0
    %v4071 = vadd.f32 %v3971, %v4070
    %4072 = vmatprep.mubr.f32.mxu0 %v2216
    %4073 = vmatmul.mubr.f32.gmra.mxu0 %v2386
    %v4074 = vpop.f32.mrf.mxu0
    %v4075 = vadd.f32 %v3967, %v4074
    %v4076 = vpop.f32.mrf.mxu0
    %v4077 = vadd.f32 %v3971, %v4076
    %4078 = vmatprep.mubr.f32.mxu0 %v1876
    %4079 = vmatmul.mubr.f32.gmra.mxu0 %v2726
    %v4080 = vpop.f32.mrf.mxu0
    %v4081 = vadd.f32 %v3967, %v4080
    %v4082 = vpop.f32.mrf.mxu0
    %v4083 = vadd.f32 %v3971, %v4082
    %4084 = vmatprep.mubr.f32.mxu0 %v1536
    %4085 = vmatmul.mubr.f32.gmra.mxu0 %v3066
    %v4086 = vpop.f32.mrf.mxu0
    %v4087 = vadd.f32 %v3967, %v4086
    %v4088 = vpop.f32.mrf.mxu0
    %v4089 = vadd.f32 %v3971, %v4088
    %4090 = vmatprep.mubr.f32.mxu0 %v1196
    %4091 = vmatmul.mubr.f32.gmra.mxu0 %v3406
    %v4092 = vpop.f32.mrf.mxu0
    %v4093 = vadd.f32 %v3967, %v4092
    %v4094 = vpop.f32.mrf.mxu0
    %v4095 = vadd.f32 %v3971, %v4094
    %4096 = vdwg.mxu0
    %4097 = vmatprep.subr.mxu0 %v3640
    %4098 = vmatpush1.msra.mxu0 %v3639
    %4099 = vmatprep.subr.mxu0 %v3636
    %4100 = vmatpush1.msra.mxu0 %v3635
    %4101 = vmatprep.subr.mxu0 %v3632
    %4102 = vmatpush1.msra.mxu0 %v3631
    %4103 = vmatprep.subr.mxu0 %v3628
    %4104 = vmatpush1.msra.mxu0 %v3627
    %4105 = vmatprep.subr.mxu0 %v3624
    %4106 = vmatpush1.msra.mxu0 %v3623
    %4107 = vmatprep.subr.mxu0 %v3620
    %4108 = vmatpush1.msra.mxu0 %v3619
    %4109 = vmatprep.subr.mxu0 %v3616
    %4110 = vmatpush1.msra.mxu0 %v3615
    %4111 = vmatprep.subr.mxu0 %v3612
    %4112 = vmatpush1.msra.mxu0 %v3611
    %4113 = vmatprep.subr.mxu0 %v3608
    %4114 = vmatpush1.msra.mxu0 %v3607
    %4115 = vmatprep.subr.mxu0 %v3604
    %4116 = vmatpush1.msra.mxu0 %v3603
    %4117 = vmatprep.subr.mxu0 %v3600
    %4118 = vmatpush1.msra.mxu0 %v3599
    %4119 = vmatprep.subr.mxu0 %v3596
    %4120 = vmatpush1.msra.mxu0 %v3595
    %4121 = vmatprep.subr.mxu0 %v3592
    %4122 = vmatpush1.msra.mxu0 %v3591
    %4123 = vmatprep.subr.mxu0 %v3588
    %4124 = vmatpush1.msra.mxu0 %v3587
    %4125 = vmatprep.subr.mxu0 %v3584
    %4126 = vmatpush1.msra.mxu0 %v3583
    %4127 = vmatprep.subr.mxu0 %v3580
    %4128 = vmatpush1.msra.mxu0 %v3579
    %4129 = vmatprep.subr.mxu0 %v3704
    %4130 = vmatpush2.msra.mxu0 %v3703
    %4131 = vmatprep.subr.mxu0 %v3700
    %4132 = vmatpush2.msra.mxu0 %v3699
    %4133 = vmatprep.subr.mxu0 %v3696
    %4134 = vmatpush2.msra.mxu0 %v3695
    %4135 = vmatprep.subr.mxu0 %v3692
    %4136 = vmatpush2.msra.mxu0 %v3691
    %4137 = vmatprep.subr.mxu0 %v3688
    %4138 = vmatpush2.msra.mxu0 %v3687
    %4139 = vmatprep.subr.mxu0 %v3684
    %4140 = vmatpush2.msra.mxu0 %v3683
    %4141 = vmatprep.subr.mxu0 %v3680
    %4142 = vmatpush2.msra.mxu0 %v3679
    %4143 = vmatprep.subr.mxu0 %v3676
    %4144 = vmatpush2.msra.mxu0 %v3675
    %4145 = vmatprep.subr.mxu0 %v3672
    %4146 = vmatpush2.msra.mxu0 %v3671
    %4147 = vmatprep.subr.mxu0 %v3668
    %4148 = vmatpush2.msra.mxu0 %v3667
    %4149 = vmatprep.subr.mxu0 %v3664
    %4150 = vmatpush2.msra.mxu0 %v3663
    %4151 = vmatprep.subr.mxu0 %v3660
    %4152 = vmatpush2.msra.mxu0 %v3659
    %4153 = vmatprep.subr.mxu0 %v3656
    %4154 = vmatpush2.msra.mxu0 %v3655
    %4155 = vmatprep.subr.mxu0 %v3652
    %4156 = vmatpush2.msra.mxu0 %v3651
    %4157 = vmatprep.subr.mxu0 %v3648
    %4158 = vmatpush2.msra.mxu0 %v3647
    %4159 = vmatprep.subr.mxu0 %v3644
    %4160 = vmatpush2.msra.mxu0 %v3643
    %4161 = vmatprep.mubr.f32.mxu0 %v3576
    %4162 = vmatmul.mubr.f32.gmra.mxu0 %v1026
    %v4163 = vpop.f32.mrf.mxu0
    %v4164 = vadd.f32 %v3975, %v4163
    %v4165 = vpop.f32.mrf.mxu0
    %v4166 = vadd.f32 %v3979, %v4165
    %4167 = vmatprep.mubr.f32.mxu0 %v3236
    %4168 = vmatmul.mubr.f32.gmra.mxu0 %v1366
    %v4169 = vpop.f32.mrf.mxu0
    %v4170 = vadd.f32 %v3975, %v4169
    %v4171 = vpop.f32.mrf.mxu0
    %v4172 = vadd.f32 %v3979, %v4171
    %4173 = vmatprep.mubr.f32.mxu0 %v2896
    %4174 = vmatmul.mubr.f32.gmra.mxu0 %v1706
    %v4175 = vpop.f32.mrf.mxu0
    %v4176 = vadd.f32 %v3975, %v4175
    %v4177 = vpop.f32.mrf.mxu0
    %v4178 = vadd.f32 %v3979, %v4177
    %4179 = vmatprep.mubr.f32.mxu0 %v2556
    %4180 = vmatmul.mubr.f32.gmra.mxu0 %v2046
    %v4181 = vpop.f32.mrf.mxu0
    %v4182 = vadd.f32 %v3975, %v4181
    %v4183 = vpop.f32.mrf.mxu0
    %v4184 = vadd.f32 %v3979, %v4183
    %4185 = vmatprep.mubr.f32.mxu0 %v2216
    %4186 = vmatmul.mubr.f32.gmra.mxu0 %v2386
    %v4187 = vpop.f32.mrf.mxu0
    %v4188 = vadd.f32 %v3975, %v4187
    %v4189 = vpop.f32.mrf.mxu0
    %v4190 = vadd.f32 %v3979, %v4189
    %4191 = vmatprep.mubr.f32.mxu0 %v1876
    %4192 = vmatmul.mubr.f32.gmra.mxu0 %v2726
    %v4193 = vpop.f32.mrf.mxu0
    %v4194 = vadd.f32 %v3975, %v4193
    %v4195 = vpop.f32.mrf.mxu0
    %v4196 = vadd.f32 %v3979, %v4195
    %4197 = vmatprep.mubr.f32.mxu0 %v1536
    %4198 = vmatmul.mubr.f32.gmra.mxu0 %v3066
    %v4199 = vpop.f32.mrf.mxu0
    %v4200 = vadd.f32 %v3975, %v4199
    %v4201 = vpop.f32.mrf.mxu0
    %v4202 = vadd.f32 %v3979, %v4201
    %4203 = vmatprep.mubr.f32.mxu0 %v1196
    %4204 = vmatmul.mubr.f32.gmra.mxu0 %v3406
    %v4205 = vpop.f32.mrf.mxu0
    %v4206 = vadd.f32 %v3975, %v4205
    %v4207 = vpop.f32.mrf.mxu0
    %v4208 = vadd.f32 %v3979, %v4207
    %4209 = vdwg.mxu0
    %v4211 = vlaneseq
    %v4212 = vshrl.u32 %v4211, 7
    %v4213 = vsub.s32 0, %v4212
    %v4214 = vrot.slane %v3962, %v4213
    %v4215 = vlaneseq
    %v4216 = vshrl.u32 %v4215, 7
    %v4217 = vsub.s32 1, %v4216
    %v4218 = vrot.slane %v3962, %v4217
    %v4219 = vlaneseq
    %v4220 = vshrl.u32 %v4219, 7
    %v4221 = vsub.s32 2, %v4220
    %v4222 = vrot.slane %v3962, %v4221
    %v4223 = vlaneseq
    %v4224 = vshrl.u32 %v4223, 7
    %v4225 = vsub.s32 3, %v4224
    %v4226 = vrot.slane %v3962, %v4225
    %4231 = vmatprep.subr.mxu0 %v3831
    %4232 = vmatpush1.msra.mxu0 %v3830
    %4233 = vmatprep.subr.mxu0 %v3827
    %4234 = vmatpush1.msra.mxu0 %v3826
    %4235 = vmatprep.subr.mxu0 %v3823
    %4236 = vmatpush1.msra.mxu0 %v3822
    %4237 = vmatprep.subr.mxu0 %v3819
    %4238 = vmatpush1.msra.mxu0 %v3818
    %4239 = vmatprep.subr.mxu0 %v3815
    %4240 = vmatpush1.msra.mxu0 %v3814
    %4241 = vmatprep.subr.mxu0 %v3811
    %4242 = vmatpush1.msra.mxu0 %v3810
    %4243 = vmatprep.subr.mxu0 %v3807
    %4244 = vmatpush1.msra.mxu0 %v3806
    %4245 = vmatprep.subr.mxu0 %v3803
    %4246 = vmatpush1.msra.mxu0 %v3802
    %4247 = vmatprep.subr.mxu0 %v3799
    %4248 = vmatpush1.msra.mxu0 %v3798
    %4249 = vmatprep.subr.mxu0 %v3795
    %4250 = vmatpush1.msra.mxu0 %v3794
    %4251 = vmatprep.subr.mxu0 %v3791
    %4252 = vmatpush1.msra.mxu0 %v3790
    %4253 = vmatprep.subr.mxu0 %v3787
    %4254 = vmatpush1.msra.mxu0 %v3786
    %4255 = vmatprep.subr.mxu0 %v3783
    %4256 = vmatpush1.msra.mxu0 %v3782
    %4257 = vmatprep.subr.mxu0 %v3779
    %4258 = vmatpush1.msra.mxu0 %v3778
    %4259 = vmatprep.subr.mxu0 %v3775
    %4260 = vmatpush1.msra.mxu0 %v3774
    %4261 = vmatprep.subr.mxu0 %v3771
    %4262 = vmatpush1.msra.mxu0 %v3770
    %4263 = vmatprep.subr.mxu0 %v3895
    %4264 = vmatpush2.msra.mxu0 %v3894
    %4265 = vmatprep.subr.mxu0 %v3891
    %4266 = vmatpush2.msra.mxu0 %v3890
    %4267 = vmatprep.subr.mxu0 %v3887
    %4268 = vmatpush2.msra.mxu0 %v3886
    %4269 = vmatprep.subr.mxu0 %v3883
    %4270 = vmatpush2.msra.mxu0 %v3882
    %4271 = vmatprep.subr.mxu0 %v3879
    %4272 = vmatpush2.msra.mxu0 %v3878
    %4273 = vmatprep.subr.mxu0 %v3875
    %4274 = vmatpush2.msra.mxu0 %v3874
    %4275 = vmatprep.subr.mxu0 %v3871
    %4276 = vmatpush2.msra.mxu0 %v3870
    %4277 = vmatprep.subr.mxu0 %v3867
    %4278 = vmatpush2.msra.mxu0 %v3866
    %4279 = vmatprep.subr.mxu0 %v3863
    %4280 = vmatpush2.msra.mxu0 %v3862
    %4281 = vmatprep.subr.mxu0 %v3859
    %4282 = vmatpush2.msra.mxu0 %v3858
    %4283 = vmatprep.subr.mxu0 %v3855
    %4284 = vmatpush2.msra.mxu0 %v3854
    %4285 = vmatprep.subr.mxu0 %v3851
    %4286 = vmatpush2.msra.mxu0 %v3850
    %4287 = vmatprep.subr.mxu0 %v3847
    %4288 = vmatpush2.msra.mxu0 %v3846
    %4289 = vmatprep.subr.mxu0 %v3843
    %4290 = vmatpush2.msra.mxu0 %v3842
    %4291 = vmatprep.subr.mxu0 %v3839
    %4292 = vmatpush2.msra.mxu0 %v3838
    %4293 = vmatprep.subr.mxu0 %v3835
    %4294 = vmatpush2.msra.mxu0 %v3834
    %4295 = vmatprep.mubr.f32.mxu0 %v3576
    %4296 = vmatmul.mubr.f32.gmra.mxu0 %v1026
    %v4297 = vpop.f32.mrf.mxu0
    %v4298 = vadd.f32 %v4214, %v4297
    %v4299 = vpop.f32.mrf.mxu0
    %v4300 = vadd.f32 %v4218, %v4299
    %4301 = vmatprep.mubr.f32.mxu0 %v3236
    %4302 = vmatmul.mubr.f32.gmra.mxu0 %v1366
    %v4303 = vpop.f32.mrf.mxu0
    %v4304 = vadd.f32 %v4214, %v4303
    %v4305 = vpop.f32.mrf.mxu0
    %v4306 = vadd.f32 %v4218, %v4305
    %4307 = vmatprep.mubr.f32.mxu0 %v2896
    %4308 = vmatmul.mubr.f32.gmra.mxu0 %v1706
    %v4309 = vpop.f32.mrf.mxu0
    %v4310 = vadd.f32 %v4214, %v4309
    %v4311 = vpop.f32.mrf.mxu0
    %v4312 = vadd.f32 %v4218, %v4311
    %4313 = vmatprep.mubr.f32.mxu0 %v2556
    %4314 = vmatmul.mubr.f32.gmra.mxu0 %v2046
    %v4315 = vpop.f32.mrf.mxu0
    %v4316 = vadd.f32 %v4214, %v4315
    %v4317 = vpop.f32.mrf.mxu0
    %v4318 = vadd.f32 %v4218, %v4317
    %4319 = vmatprep.mubr.f32.mxu0 %v2216
    %4320 = vmatmul.mubr.f32.gmra.mxu0 %v2386
    %v4321 = vpop.f32.mrf.mxu0
    %v4322 = vadd.f32 %v4214, %v4321
    %v4323 = vpop.f32.mrf.mxu0
    %v4324 = vadd.f32 %v4218, %v4323
    %4325 = vmatprep.mubr.f32.mxu0 %v1876
    %4326 = vmatmul.mubr.f32.gmra.mxu0 %v2726
    %v4327 = vpop.f32.mrf.mxu0
    %v4328 = vadd.f32 %v4214, %v4327
    %v4329 = vpop.f32.mrf.mxu0
    %v4330 = vadd.f32 %v4218, %v4329
    %4331 = vmatprep.mubr.f32.mxu0 %v1536
    %4332 = vmatmul.mubr.f32.gmra.mxu0 %v3066
    %v4333 = vpop.f32.mrf.mxu0
    %v4334 = vadd.f32 %v4214, %v4333
    %v4335 = vpop.f32.mrf.mxu0
    %v4336 = vadd.f32 %v4218, %v4335
    %4337 = vmatprep.mubr.f32.mxu0 %v1196
    %4338 = vmatmul.mubr.f32.gmra.mxu0 %v3406
    %v4339 = vpop.f32.mrf.mxu0
    %v4340 = vadd.f32 %v4214, %v4339
    %v4341 = vpop.f32.mrf.mxu0
    %v4342 = vadd.f32 %v4218, %v4341
    %4343 = vdwg.mxu0
    %4344 = vmatprep.subr.mxu0 %v3833
    %4345 = vmatpush1.msra.mxu0 %v3832
    %4346 = vmatprep.subr.mxu0 %v3829
    %4347 = vmatpush1.msra.mxu0 %v3828
    %4348 = vmatprep.subr.mxu0 %v3825
    %4349 = vmatpush1.msra.mxu0 %v3824
    %4350 = vmatprep.subr.mxu0 %v3821
    %4351 = vmatpush1.msra.mxu0 %v3820
    %4352 = vmatprep.subr.mxu0 %v3817
    %4353 = vmatpush1.msra.mxu0 %v3816
    %4354 = vmatprep.subr.mxu0 %v3813
    %4355 = vmatpush1.msra.mxu0 %v3812
    %4356 = vmatprep.subr.mxu0 %v3809
    %4357 = vmatpush1.msra.mxu0 %v3808
    %4358 = vmatprep.subr.mxu0 %v3805
    %4359 = vmatpush1.msra.mxu0 %v3804
    %4360 = vmatprep.subr.mxu0 %v3801
    %4361 = vmatpush1.msra.mxu0 %v3800
    %4362 = vmatprep.subr.mxu0 %v3797
    %4363 = vmatpush1.msra.mxu0 %v3796
    %4364 = vmatprep.subr.mxu0 %v3793
    %4365 = vmatpush1.msra.mxu0 %v3792
    %4366 = vmatprep.subr.mxu0 %v3789
    %4367 = vmatpush1.msra.mxu0 %v3788
    %4368 = vmatprep.subr.mxu0 %v3785
    %4369 = vmatpush1.msra.mxu0 %v3784
    %4370 = vmatprep.subr.mxu0 %v3781
    %4371 = vmatpush1.msra.mxu0 %v3780
    %4372 = vmatprep.subr.mxu0 %v3777
    %4373 = vmatpush1.msra.mxu0 %v3776
    %4374 = vmatprep.subr.mxu0 %v3773
    %4375 = vmatpush1.msra.mxu0 %v3772
    %4376 = vmatprep.subr.mxu0 %v3897
    %4377 = vmatpush2.msra.mxu0 %v3896
    %4378 = vmatprep.subr.mxu0 %v3893
    %4379 = vmatpush2.msra.mxu0 %v3892
    %4380 = vmatprep.subr.mxu0 %v3889
    %4381 = vmatpush2.msra.mxu0 %v3888
    %4382 = vmatprep.subr.mxu0 %v3885
    %4383 = vmatpush2.msra.mxu0 %v3884
    %4384 = vmatprep.subr.mxu0 %v3881
    %4385 = vmatpush2.msra.mxu0 %v3880
    %4386 = vmatprep.subr.mxu0 %v3877
    %4387 = vmatpush2.msra.mxu0 %v3876
    %4388 = vmatprep.subr.mxu0 %v3873
    %4389 = vmatpush2.msra.mxu0 %v3872
    %4390 = vmatprep.subr.mxu0 %v3869
    %4391 = vmatpush2.msra.mxu0 %v3868
    %4392 = vmatprep.subr.mxu0 %v3865
    %4393 = vmatpush2.msra.mxu0 %v3864
    %4394 = vmatprep.subr.mxu0 %v3861
    %4395 = vmatpush2.msra.mxu0 %v3860
    %4396 = vmatprep.subr.mxu0 %v3857
    %4397 = vmatpush2.msra.mxu0 %v3856
    %4398 = vmatprep.subr.mxu0 %v3853
    %4399 = vmatpush2.msra.mxu0 %v3852
    %4400 = vmatprep.subr.mxu0 %v3849
    %4401 = vmatpush2.msra.mxu0 %v3848
    %4402 = vmatprep.subr.mxu0 %v3845
    %4403 = vmatpush2.msra.mxu0 %v3844
    %4404 = vmatprep.subr.mxu0 %v3841
    %4405 = vmatpush2.msra.mxu0 %v3840
    %4406 = vmatprep.subr.mxu0 %v3837
    %4407 = vmatpush2.msra.mxu0 %v3836
    %4408 = vmatprep.mubr.f32.mxu0 %v3576
    %4409 = vmatmul.mubr.f32.gmra.mxu0 %v1026
    %v4410 = vpop.f32.mrf.mxu0
    %v4411 = vadd.f32 %v4222, %v4410
    %v4412 = vpop.f32.mrf.mxu0
    %v4413 = vadd.f32 %v4226, %v4412
    %4414 = vmatprep.mubr.f32.mxu0 %v3236
    %4415 = vmatmul.mubr.f32.gmra.mxu0 %v1366
    %v4416 = vpop.f32.mrf.mxu0
    %v4417 = vadd.f32 %v4222, %v4416
    %v4418 = vpop.f32.mrf.mxu0
    %v4419 = vadd.f32 %v4226, %v4418
    %4420 = vmatprep.mubr.f32.mxu0 %v2896
    %4421 = vmatmul.mubr.f32.gmra.mxu0 %v1706
    %v4422 = vpop.f32.mrf.mxu0
    %v4423 = vadd.f32 %v4222, %v4422
    %v4424 = vpop.f32.mrf.mxu0
    %v4425 = vadd.f32 %v4226, %v4424
    %4426 = vmatprep.mubr.f32.mxu0 %v2556
    %4427 = vmatmul.mubr.f32.gmra.mxu0 %v2046
    %v4428 = vpop.f32.mrf.mxu0
    %v4429 = vadd.f32 %v4222, %v4428
    %v4430 = vpop.f32.mrf.mxu0
    %v4431 = vadd.f32 %v4226, %v4430
    %4432 = vmatprep.mubr.f32.mxu0 %v2216
    %4433 = vmatmul.mubr.f32.gmra.mxu0 %v2386
    %v4434 = vpop.f32.mrf.mxu0
    %v4435 = vadd.f32 %v4222, %v4434
    %v4436 = vpop.f32.mrf.mxu0
    %v4437 = vadd.f32 %v4226, %v4436
    %4438 = vmatprep.mubr.f32.mxu0 %v1876
    %4439 = vmatmul.mubr.f32.gmra.mxu0 %v2726
    %v4440 = vpop.f32.mrf.mxu0
    %v4441 = vadd.f32 %v4222, %v4440
    %v4442 = vpop.f32.mrf.mxu0
    %v4443 = vadd.f32 %v4226, %v4442
    %4444 = vmatprep.mubr.f32.mxu0 %v1536
    %4445 = vmatmul.mubr.f32.gmra.mxu0 %v3066
    %v4446 = vpop.f32.mrf.mxu0
    %v4447 = vadd.f32 %v4222, %v4446
    %v4448 = vpop.f32.mrf.mxu0
    %v4449 = vadd.f32 %v4226, %v4448
    %4450 = vmatprep.mubr.f32.mxu0 %v1196
    %4451 = vmatmul.mubr.f32.gmra.mxu0 %v3406
    %v4452 = vpop.f32.mrf.mxu0
    %v4453 = vadd.f32 %v4222, %v4452
    %v4454 = vpop.f32.mrf.mxu0
    %v4455 = vadd.f32 %v4226, %v4454
    %4456 = vdwg.mxu0
    %4457 = vmatprep.subr.mxu0 %v3766
    %4458 = vmatpush1.msra.mxu0 %v3765
    %4459 = vmatprep.subr.mxu0 %v3762
    %4460 = vmatpush1.msra.mxu0 %v3761
    %4461 = vmatprep.subr.mxu0 %v3758
    %4462 = vmatpush1.msra.mxu0 %v3757
    %4463 = vmatprep.subr.mxu0 %v3754
    %4464 = vmatpush1.msra.mxu0 %v3753
    %4465 = vmatprep.subr.mxu0 %v3750
    %4466 = vmatpush1.msra.mxu0 %v3749
    %4467 = vmatprep.subr.mxu0 %v3746
    %4468 = vmatpush1.msra.mxu0 %v3745
    %4469 = vmatprep.subr.mxu0 %v3742
    %4470 = vmatpush1.msra.mxu0 %v3741
    %4471 = vmatprep.subr.mxu0 %v3738
    %4472 = vmatpush1.msra.mxu0 %v3737
    %4473 = vmatprep.subr.mxu0 %v3734
    %4474 = vmatpush1.msra.mxu0 %v3733
    %4475 = vmatprep.subr.mxu0 %v3730
    %4476 = vmatpush1.msra.mxu0 %v3729
    %4477 = vmatprep.subr.mxu0 %v3726
    %4478 = vmatpush1.msra.mxu0 %v3725
    %4479 = vmatprep.subr.mxu0 %v3722
    %4480 = vmatpush1.msra.mxu0 %v3721
    %4481 = vmatprep.subr.mxu0 %v3718
    %4482 = vmatpush1.msra.mxu0 %v3717
    %4483 = vmatprep.subr.mxu0 %v3714
    %4484 = vmatpush1.msra.mxu0 %v3713
    %4485 = vmatprep.subr.mxu0 %v3710
    %4486 = vmatpush1.msra.mxu0 %v3709
    %4487 = vmatprep.subr.mxu0 %v3706
    %4488 = vmatpush1.msra.mxu0 %v3705
    %4489 = vmatprep.subr.mxu0 0.0
    %4490 = vmatpush2.msra.mxu0 0.0
    %4491 = vmatprep.subr.mxu0 0.0
    %4492 = vmatpush2.msra.mxu0 0.0
    %4493 = vmatprep.subr.mxu0 0.0
    %4494 = vmatpush2.msra.mxu0 0.0
    %4495 = vmatprep.subr.mxu0 0.0
    %4496 = vmatpush2.msra.mxu0 0.0
    %4497 = vmatprep.subr.mxu0 0.0
    %4498 = vmatpush2.msra.mxu0 0.0
    %4499 = vmatprep.subr.mxu0 0.0
    %4500 = vmatpush2.msra.mxu0 0.0
    %4501 = vmatprep.subr.mxu0 0.0
    %4502 = vmatpush2.msra.mxu0 0.0
    %4503 = vmatprep.subr.mxu0 0.0
    %4504 = vmatpush2.msra.mxu0 0.0
    %4505 = vmatprep.subr.mxu0 0.0
    %4506 = vmatpush2.msra.mxu0 0.0
    %4507 = vmatprep.subr.mxu0 0.0
    %4508 = vmatpush2.msra.mxu0 0.0
    %4509 = vmatprep.subr.mxu0 0.0
    %4510 = vmatpush2.msra.mxu0 0.0
    %4511 = vmatprep.subr.mxu0 0.0
    %4512 = vmatpush2.msra.mxu0 0.0
    %4513 = vmatprep.subr.mxu0 0.0
    %4514 = vmatpush2.msra.mxu0 0.0
    %4515 = vmatprep.subr.mxu0 0.0
    %4516 = vmatpush2.msra.mxu0 0.0
    %4517 = vmatprep.subr.mxu0 0.0
    %4518 = vmatpush2.msra.mxu0 0.0
    %4519 = vmatprep.subr.mxu0 0.0
    %4520 = vmatpush2.msra.mxu0 0.0
    %4521 = vmatprep.mubr.f32.mxu0 0.0
    %4522 = vmatmul.mubr.f32.gmra.mxu0 0.0
    %v4523 = vpop.f32.mrf.mxu0
    %v4524 = vadd.f32 0.0, %v4523
    %v4525 = vpop.f32.mrf.mxu0
    %v4526 = vadd.f32 0.0, %v4525
    %4527 = vdwg.mxu0
    %4528 = vmatprep.subr.mxu0 %v3768
    %4529 = vmatpush1.msra.mxu0 %v3767
    %4530 = vmatprep.subr.mxu0 %v3764
    %4531 = vmatpush1.msra.mxu0 %v3763
    %4532 = vmatprep.subr.mxu0 %v3760
    %4533 = vmatpush1.msra.mxu0 %v3759
    %4534 = vmatprep.subr.mxu0 %v3756
    %4535 = vmatpush1.msra.mxu0 %v3755
    %4536 = vmatprep.subr.mxu0 %v3752
    %4537 = vmatpush1.msra.mxu0 %v3751
    %4538 = vmatprep.subr.mxu0 %v3748
    %4539 = vmatpush1.msra.mxu0 %v3747
    %4540 = vmatprep.subr.mxu0 %v3744
    %4541 = vmatpush1.msra.mxu0 %v3743
    %4542 = vmatprep.subr.mxu0 %v3740
    %4543 = vmatpush1.msra.mxu0 %v3739
    %4544 = vmatprep.subr.mxu0 %v3736
    %4545 = vmatpush1.msra.mxu0 %v3735
    %4546 = vmatprep.subr.mxu0 %v3732
    %4547 = vmatpush1.msra.mxu0 %v3731
    %4548 = vmatprep.subr.mxu0 %v3728
    %4549 = vmatpush1.msra.mxu0 %v3727
    %4550 = vmatprep.subr.mxu0 %v3724
    %4551 = vmatpush1.msra.mxu0 %v3723
    %4552 = vmatprep.subr.mxu0 %v3720
    %4553 = vmatpush1.msra.mxu0 %v3719
    %4554 = vmatprep.subr.mxu0 %v3716
    %4555 = vmatpush1.msra.mxu0 %v3715
    %4556 = vmatprep.subr.mxu0 %v3712
    %4557 = vmatpush1.msra.mxu0 %v3711
    %4558 = vmatprep.subr.mxu0 %v3708
    %4559 = vmatpush1.msra.mxu0 %v3707
    %4560 = vmatprep.subr.mxu0 0.0
    %4561 = vmatpush2.msra.mxu0 0.0
    %4562 = vmatprep.subr.mxu0 0.0
    %4563 = vmatpush2.msra.mxu0 0.0
    %4564 = vmatprep.subr.mxu0 0.0
    %4565 = vmatpush2.msra.mxu0 0.0
    %4566 = vmatprep.subr.mxu0 0.0
    %4567 = vmatpush2.msra.mxu0 0.0
    %4568 = vmatprep.subr.mxu0 0.0
    %4569 = vmatpush2.msra.mxu0 0.0
    %4570 = vmatprep.subr.mxu0 0.0
    %4571 = vmatpush2.msra.mxu0 0.0
    %4572 = vmatprep.subr.mxu0 0.0
    %4573 = vmatpush2.msra.mxu0 0.0
    %4574 = vmatprep.subr.mxu0 0.0
    %4575 = vmatpush2.msra.mxu0 0.0
    %4576 = vmatprep.subr.mxu0 0.0
    %4577 = vmatpush2.msra.mxu0 0.0
    %4578 = vmatprep.subr.mxu0 0.0
    %4579 = vmatpush2.msra.mxu0 0.0
    %4580 = vmatprep.subr.mxu0 0.0
    %4581 = vmatpush2.msra.mxu0 0.0
    %4582 = vmatprep.subr.mxu0 0.0
    %4583 = vmatpush2.msra.mxu0 0.0
    %4584 = vmatprep.subr.mxu0 0.0
    %4585 = vmatpush2.msra.mxu0 0.0
    %4586 = vmatprep.subr.mxu0 0.0
    %4587 = vmatpush2.msra.mxu0 0.0
    %4588 = vmatprep.subr.mxu0 0.0
    %4589 = vmatpush2.msra.mxu0 0.0
    %4590 = vmatprep.subr.mxu0 0.0
    %4591 = vmatpush2.msra.mxu0 0.0
    %4592 = vmatprep.mubr.f32.mxu0 0.0
    %4593 = vmatmul.mubr.f32.gmra.mxu0 0.0
    %v4594 = vpop.f32.mrf.mxu0
    %v4595 = vadd.f32 0.0, %v4594
    %v4596 = vpop.f32.mrf.mxu0
    %v4597 = vadd.f32 0.0, %v4596
    %4598 = vdwg.mxu0
    %v4599 = vadd.f32 %v4051, %v4524
    %v4600 = vadd.f32 %v4053, %v4526
    %v4601 = vadd.f32 %v4164, %v4595
    %v4602 = vadd.f32 %v4166, %v4597
    %v4603 = vxor.u32 %v4599, 2147483648
    %v4604 = vmul.f32 %v4603, 1.442695
    %v4605 = vpow.pop %v4604
    %v4606 = vadd.f32 %v4605, 1.0
    %v4607 = vrcp.pop %v4606
    %v4608 = vmul.f32 1.0, %v4607
    %v4609 = vxor.u32 %v4600, 2147483648
    %v4610 = vmul.f32 %v4609, 1.442695
    %v4611 = vpow.pop %v4610
    %v4612 = vadd.f32 %v4611, 1.0
    %v4613 = vrcp.pop %v4612
    %v4614 = vmul.f32 1.0, %v4613
    %v4615 = vtanh.pop %v4601
    %v4616 = vxor.u32 %v4602, 2147483648
    %v4617 = vmul.f32 %v4616, 1.442695
    %v4618 = vpow.pop %v4617
    %v4619 = vadd.f32 %v4618, 1.0
    %v4620 = vrcp.pop %v4619
    %v4621 = vmul.f32 1.0, %v4620
    %v4622 = vmul.f32 %v4614, 0.0
    %v4623 = vmul.f32 %v4608, %v4615
    %v4624 = vadd.f32 %v4622, %v4623
    %v4625 = vtanh.pop %v4624
    %v4626 = vmul.f32 %v4621, %v4625
    %4627 = vmatprep.subr.mxu0 %v3959
    %4628 = vmatpush1.msra.mxu0 %v3958
    %4629 = vmatprep.subr.mxu0 %v3955
    %4630 = vmatpush1.msra.mxu0 %v3954
    %4631 = vmatprep.subr.mxu0 %v3951
    %4632 = vmatpush1.msra.mxu0 %v3950
    %4633 = vmatprep.subr.mxu0 %v3947
    %4634 = vmatpush1.msra.mxu0 %v3946
    %4635 = vmatprep.subr.mxu0 %v3943
    %4636 = vmatpush1.msra.mxu0 %v3942
    %4637 = vmatprep.subr.mxu0 %v3939
    %4638 = vmatpush1.msra.mxu0 %v3938
    %4639 = vmatprep.subr.mxu0 %v3935
    %4640 = vmatpush1.msra.mxu0 %v3934
    %4641 = vmatprep.subr.mxu0 %v3931
    %4642 = vmatpush1.msra.mxu0 %v3930
    %4643 = vmatprep.subr.mxu0 %v3927
    %4644 = vmatpush1.msra.mxu0 %v3926
    %4645 = vmatprep.subr.mxu0 %v3923
    %4646 = vmatpush1.msra.mxu0 %v3922
    %4647 = vmatprep.subr.mxu0 %v3919
    %4648 = vmatpush1.msra.mxu0 %v3918
    %4649 = vmatprep.subr.mxu0 %v3915
    %4650 = vmatpush1.msra.mxu0 %v3914
    %4651 = vmatprep.subr.mxu0 %v3911
    %4652 = vmatpush1.msra.mxu0 %v3910
    %4653 = vmatprep.subr.mxu0 %v3907
    %4654 = vmatpush1.msra.mxu0 %v3906
    %4655 = vmatprep.subr.mxu0 %v3903
    %4656 = vmatpush1.msra.mxu0 %v3902
    %4657 = vmatprep.subr.mxu0 %v3899
    %4658 = vmatpush1.msra.mxu0 %v3898
    %4659 = vmatprep.subr.mxu0 0.0
    %4660 = vmatpush2.msra.mxu0 0.0
    %4661 = vmatprep.subr.mxu0 0.0
    %4662 = vmatpush2.msra.mxu0 0.0
    %4663 = vmatprep.subr.mxu0 0.0
    %4664 = vmatpush2.msra.mxu0 0.0
    %4665 = vmatprep.subr.mxu0 0.0
    %4666 = vmatpush2.msra.mxu0 0.0
    %4667 = vmatprep.subr.mxu0 0.0
    %4668 = vmatpush2.msra.mxu0 0.0
    %4669 = vmatprep.subr.mxu0 0.0
    %4670 = vmatpush2.msra.mxu0 0.0
    %4671 = vmatprep.subr.mxu0 0.0
    %4672 = vmatpush2.msra.mxu0 0.0
    %4673 = vmatprep.subr.mxu0 0.0
    %4674 = vmatpush2.msra.mxu0 0.0
    %4675 = vmatprep.subr.mxu0 0.0
    %4676 = vmatpush2.msra.mxu0 0.0
    %4677 = vmatprep.subr.mxu0 0.0
    %4678 = vmatpush2.msra.mxu0 0.0
    %4679 = vmatprep.subr.mxu0 0.0
    %4680 = vmatpush2.msra.mxu0 0.0
    %4681 = vmatprep.subr.mxu0 0.0
    %4682 = vmatpush2.msra.mxu0 0.0
    %4683 = vmatprep.subr.mxu0 0.0
    %4684 = vmatpush2.msra.mxu0 0.0
    %4685 = vmatprep.subr.mxu0 0.0
    %4686 = vmatpush2.msra.mxu0 0.0
    %4687 = vmatprep.subr.mxu0 0.0
    %4688 = vmatpush2.msra.mxu0 0.0
    %4689 = vmatprep.subr.mxu0 0.0
    %4690 = vmatpush2.msra.mxu0 0.0
    %4691 = vmatprep.mubr.f32.mxu0 0.0
    %4692 = vmatmul.mubr.f32.gmra.mxu0 0.0
    %v4693 = vpop.f32.mrf.mxu0
    %v4694 = vadd.f32 0.0, %v4693
    %v4695 = vpop.f32.mrf.mxu0
    %v4696 = vadd.f32 0.0, %v4695
    %4697 = vdwg.mxu0
    %4698 = vmatprep.subr.mxu0 %v3961
    %4699 = vmatpush1.msra.mxu0 %v3960
    %4700 = vmatprep.subr.mxu0 %v3957
    %4701 = vmatpush1.msra.mxu0 %v3956
    %4702 = vmatprep.subr.mxu0 %v3953
    %4703 = vmatpush1.msra.mxu0 %v3952
    %4704 = vmatprep.subr.mxu0 %v3949
    %4705 = vmatpush1.msra.mxu0 %v3948
    %4706 = vmatprep.subr.mxu0 %v3945
    %4707 = vmatpush1.msra.mxu0 %v3944
    %4708 = vmatprep.subr.mxu0 %v3941
    %4709 = vmatpush1.msra.mxu0 %v3940
    %4710 = vmatprep.subr.mxu0 %v3937
    %4711 = vmatpush1.msra.mxu0 %v3936
    %4712 = vmatprep.subr.mxu0 %v3933
    %4713 = vmatpush1.msra.mxu0 %v3932
    %4714 = vmatprep.subr.mxu0 %v3929
    %4715 = vmatpush1.msra.mxu0 %v3928
    %4716 = vmatprep.subr.mxu0 %v3925
    %4717 = vmatpush1.msra.mxu0 %v3924
    %4718 = vmatprep.subr.mxu0 %v3921
    %4719 = vmatpush1.msra.mxu0 %v3920
    %4720 = vmatprep.subr.mxu0 %v3917
    %4721 = vmatpush1.msra.mxu0 %v3916
    %4722 = vmatprep.subr.mxu0 %v3913
    %4723 = vmatpush1.msra.mxu0 %v3912
    %4724 = vmatprep.subr.mxu0 %v3909
    %4725 = vmatpush1.msra.mxu0 %v3908
    %4726 = vmatprep.subr.mxu0 %v3905
    %4727 = vmatpush1.msra.mxu0 %v3904
    %4728 = vmatprep.subr.mxu0 %v3901
    %4729 = vmatpush1.msra.mxu0 %v3900
    %4730 = vmatprep.subr.mxu0 0.0
    %4731 = vmatpush2.msra.mxu0 0.0
    %4732 = vmatprep.subr.mxu0 0.0
    %4733 = vmatpush2.msra.mxu0 0.0
    %4734 = vmatprep.subr.mxu0 0.0
    %4735 = vmatpush2.msra.mxu0 0.0
    %4736 = vmatprep.subr.mxu0 0.0
    %4737 = vmatpush2.msra.mxu0 0.0
    %4738 = vmatprep.subr.mxu0 0.0
    %4739 = vmatpush2.msra.mxu0 0.0
    %4740 = vmatprep.subr.mxu0 0.0
    %4741 = vmatpush2.msra.mxu0 0.0
    %4742 = vmatprep.subr.mxu0 0.0
    %4743 = vmatpush2.msra.mxu0 0.0
    %4744 = vmatprep.subr.mxu0 0.0
    %4745 = vmatpush2.msra.mxu0 0.0
    %4746 = vmatprep.subr.mxu0 0.0
    %4747 = vmatpush2.msra.mxu0 0.0
    %4748 = vmatprep.subr.mxu0 0.0
    %4749 = vmatpush2.msra.mxu0 0.0
    %4750 = vmatprep.subr.mxu0 0.0
    %4751 = vmatpush2.msra.mxu0 0.0
    %4752 = vmatprep.subr.mxu0 0.0
    %4753 = vmatpush2.msra.mxu0 0.0
    %4754 = vmatprep.subr.mxu0 0.0
    %4755 = vmatpush2.msra.mxu0 0.0
    %4756 = vmatprep.subr.mxu0 0.0
    %4757 = vmatpush2.msra.mxu0 0.0
    %4758 = vmatprep.subr.mxu0 0.0
    %4759 = vmatpush2.msra.mxu0 0.0
    %4760 = vmatprep.subr.mxu0 0.0
    %4761 = vmatpush2.msra.mxu0 0.0
    %4762 = vmatprep.mubr.f32.mxu0 0.0
    %4763 = vmatmul.mubr.f32.gmra.mxu0 0.0
    %v4764 = vpop.f32.mrf.mxu0
    %v4765 = vadd.f32 0.0, %v4764
    %v4766 = vpop.f32.mrf.mxu0
    %v4767 = vadd.f32 0.0, %v4766
    %4768 = vdwg.mxu0
    %v4769 = vadd.f32 %v4340, %v4694
    %v4770 = vadd.f32 %v4342, %v4696
    %v4771 = vadd.f32 %v4453, %v4765
    %v4772 = vadd.f32 %v4455, %v4767
    %v4773 = vxor.u32 %v4769, 2147483648
    %v4774 = vmul.f32 %v4773, 1.442695
    %v4775 = vpow.pop %v4774
    %v4776 = vadd.f32 %v4775, 1.0
    %v4777 = vrcp.pop %v4776
    %v4778 = vmul.f32 1.0, %v4777
    %v4779 = vxor.u32 %v4770, 2147483648
    %v4780 = vmul.f32 %v4779, 1.442695
    %v4781 = vpow.pop %v4780
    %v4782 = vadd.f32 %v4781, 1.0
    %v4783 = vrcp.pop %v4782
    %v4784 = vmul.f32 1.0, %v4783
    %v4785 = vtanh.pop %v4771
    %v4786 = vxor.u32 %v4772, 2147483648
    %v4787 = vmul.f32 %v4786, 1.442695
    %v4788 = vpow.pop %v4787
    %v4789 = vadd.f32 %v4788, 1.0
    %v4790 = vrcp.pop %v4789
    %v4791 = vmul.f32 1.0, %v4790
    %v4792 = vmul.f32 %v4784, 0.0
    %v4793 = vmul.f32 %v4778, %v4785
    %v4794 = vadd.f32 %v4792, %v4793
    %v4795 = vtanh.pop %v4794
    %v4796 = vmul.f32 %v4791, %v4795
    %4797 = vmatprep.subr.mxu0 %v3766
    %4798 = vmatpush1.msra.mxu0 %v3765
    %4799 = vmatprep.subr.mxu0 %v3762
    %4800 = vmatpush1.msra.mxu0 %v3761
    %4801 = vmatprep.subr.mxu0 %v3758
    %4802 = vmatpush1.msra.mxu0 %v3757
    %4803 = vmatprep.subr.mxu0 %v3754
    %4804 = vmatpush1.msra.mxu0 %v3753
    %4805 = vmatprep.subr.mxu0 %v3750
    %4806 = vmatpush1.msra.mxu0 %v3749
    %4807 = vmatprep.subr.mxu0 %v3746
    %4808 = vmatpush1.msra.mxu0 %v3745
    %4809 = vmatprep.subr.mxu0 %v3742
    %4810 = vmatpush1.msra.mxu0 %v3741
    %4811 = vmatprep.subr.mxu0 %v3738
    %4812 = vmatpush1.msra.mxu0 %v3737
    %4813 = vmatprep.subr.mxu0 %v3734
    %4814 = vmatpush1.msra.mxu0 %v3733
    %4815 = vmatprep.subr.mxu0 %v3730
    %4816 = vmatpush1.msra.mxu0 %v3729
    %4817 = vmatprep.subr.mxu0 %v3726
    %4818 = vmatpush1.msra.mxu0 %v3725
    %4819 = vmatprep.subr.mxu0 %v3722
    %4820 = vmatpush1.msra.mxu0 %v3721
    %4821 = vmatprep.subr.mxu0 %v3718
    %4822 = vmatpush1.msra.mxu0 %v3717
    %4823 = vmatprep.subr.mxu0 %v3714
    %4824 = vmatpush1.msra.mxu0 %v3713
    %4825 = vmatprep.subr.mxu0 %v3710
    %4826 = vmatpush1.msra.mxu0 %v3709
    %4827 = vmatprep.subr.mxu0 %v3706
    %4828 = vmatpush1.msra.mxu0 %v3705
    %4829 = vmatprep.subr.mxu0 0.0
    %4830 = vmatpush2.msra.mxu0 0.0
    %4831 = vmatprep.subr.mxu0 0.0
    %4832 = vmatpush2.msra.mxu0 0.0
    %4833 = vmatprep.subr.mxu0 0.0
    %4834 = vmatpush2.msra.mxu0 0.0
    %4835 = vmatprep.subr.mxu0 0.0
    %4836 = vmatpush2.msra.mxu0 0.0
    %4837 = vmatprep.subr.mxu0 0.0
    %4838 = vmatpush2.msra.mxu0 0.0
    %4839 = vmatprep.subr.mxu0 0.0
    %4840 = vmatpush2.msra.mxu0 0.0
    %4841 = vmatprep.subr.mxu0 0.0
    %4842 = vmatpush2.msra.mxu0 0.0
    %4843 = vmatprep.subr.mxu0 0.0
    %4844 = vmatpush2.msra.mxu0 0.0
    %4845 = vmatprep.subr.mxu0 0.0
    %4846 = vmatpush2.msra.mxu0 0.0
    %4847 = vmatprep.subr.mxu0 0.0
    %4848 = vmatpush2.msra.mxu0 0.0
    %4849 = vmatprep.subr.mxu0 0.0
    %4850 = vmatpush2.msra.mxu0 0.0
    %4851 = vmatprep.subr.mxu0 0.0
    %4852 = vmatpush2.msra.mxu0 0.0
    %4853 = vmatprep.subr.mxu0 0.0
    %4854 = vmatpush2.msra.mxu0 0.0
    %4855 = vmatprep.subr.mxu0 0.0
    %4856 = vmatpush2.msra.mxu0 0.0
    %4857 = vmatprep.subr.mxu0 0.0
    %4858 = vmatpush2.msra.mxu0 0.0
    %4859 = vmatprep.subr.mxu0 0.0
    %4860 = vmatpush2.msra.mxu0 0.0
    %4861 = vmatprep.mubr.f32.mxu0 0.0
    %4862 = vmatmul.mubr.f32.gmra.mxu0 %v4626
    %v4863 = vpop.f32.mrf.mxu0
    %v4864 = vadd.f32 0.0, %v4863
    %v4865 = vpop.f32.mrf.mxu0
    %v4866 = vadd.f32 0.0, %v4865
    %4867 = vdwg.mxu0
    %4868 = vmatprep.subr.mxu0 %v3768
    %4869 = vmatpush1.msra.mxu0 %v3767
    %4870 = vmatprep.subr.mxu0 %v3764
    %4871 = vmatpush1.msra.mxu0 %v3763
    %4872 = vmatprep.subr.mxu0 %v3760
    %4873 = vmatpush1.msra.mxu0 %v3759
    %4874 = vmatprep.subr.mxu0 %v3756
    %4875 = vmatpush1.msra.mxu0 %v3755
    %4876 = vmatprep.subr.mxu0 %v3752
    %4877 = vmatpush1.msra.mxu0 %v3751
    %4878 = vmatprep.subr.mxu0 %v3748
    %4879 = vmatpush1.msra.mxu0 %v3747
    %4880 = vmatprep.subr.mxu0 %v3744
    %4881 = vmatpush1.msra.mxu0 %v3743
    %4882 = vmatprep.subr.mxu0 %v3740
    %4883 = vmatpush1.msra.mxu0 %v3739
    %4884 = vmatprep.subr.mxu0 %v3736
    %4885 = vmatpush1.msra.mxu0 %v3735
    %4886 = vmatprep.subr.mxu0 %v3732
    %4887 = vmatpush1.msra.mxu0 %v3731
    %4888 = vmatprep.subr.mxu0 %v3728
    %4889 = vmatpush1.msra.mxu0 %v3727
    %4890 = vmatprep.subr.mxu0 %v3724
    %4891 = vmatpush1.msra.mxu0 %v3723
    %4892 = vmatprep.subr.mxu0 %v3720
    %4893 = vmatpush1.msra.mxu0 %v3719
    %4894 = vmatprep.subr.mxu0 %v3716
    %4895 = vmatpush1.msra.mxu0 %v3715
    %4896 = vmatprep.subr.mxu0 %v3712
    %4897 = vmatpush1.msra.mxu0 %v3711
    %4898 = vmatprep.subr.mxu0 %v3708
    %4899 = vmatpush1.msra.mxu0 %v3707
    %4900 = vmatprep.subr.mxu0 0.0
    %4901 = vmatpush2.msra.mxu0 0.0
    %4902 = vmatprep.subr.mxu0 0.0
    %4903 = vmatpush2.msra.mxu0 0.0
    %4904 = vmatprep.subr.mxu0 0.0
    %4905 = vmatpush2.msra.mxu0 0.0
    %4906 = vmatprep.subr.mxu0 0.0
    %4907 = vmatpush2.msra.mxu0 0.0
    %4908 = vmatprep.subr.mxu0 0.0
    %4909 = vmatpush2.msra.mxu0 0.0
    %4910 = vmatprep.subr.mxu0 0.0
    %4911 = vmatpush2.msra.mxu0 0.0
    %4912 = vmatprep.subr.mxu0 0.0
    %4913 = vmatpush2.msra.mxu0 0.0
    %4914 = vmatprep.subr.mxu0 0.0
    %4915 = vmatpush2.msra.mxu0 0.0
    %4916 = vmatprep.subr.mxu0 0.0
    %4917 = vmatpush2.msra.mxu0 0.0
    %4918 = vmatprep.subr.mxu0 0.0
    %4919 = vmatpush2.msra.mxu0 0.0
    %4920 = vmatprep.subr.mxu0 0.0
    %4921 = vmatpush2.msra.mxu0 0.0
    %4922 = vmatprep.subr.mxu0 0.0
    %4923 = vmatpush2.msra.mxu0 0.0
    %4924 = vmatprep.subr.mxu0 0.0
    %4925 = vmatpush2.msra.mxu0 0.0
    %4926 = vmatprep.subr.mxu0 0.0
    %4927 = vmatpush2.msra.mxu0 0.0
    %4928 = vmatprep.subr.mxu0 0.0
    %4929 = vmatpush2.msra.mxu0 0.0
    %4930 = vmatprep.subr.mxu0 0.0
    %4931 = vmatpush2.msra.mxu0 0.0
    %4932 = vmatprep.mubr.f32.mxu0 0.0
    %4933 = vmatmul.mubr.f32.gmra.mxu0 %v4626
    %v4934 = vpop.f32.mrf.mxu0
    %v4935 = vadd.f32 0.0, %v4934
    %v4936 = vpop.f32.mrf.mxu0
    %v4937 = vadd.f32 0.0, %v4936
    %4938 = vdwg.mxu0
    %v4939 = vadd.f32 %v4057, %v4864
    %v4940 = vadd.f32 %v4059, %v4866
    %v4941 = vadd.f32 %v4170, %v4935
    %v4942 = vadd.f32 %v4172, %v4937
    %v4943 = vxor.u32 %v4939, 2147483648
    %v4944 = vmul.f32 %v4943, 1.442695
    %v4945 = vpow.pop %v4944
    %v4946 = vadd.f32 %v4945, 1.0
    %v4947 = vrcp.pop %v4946
    %v4948 = vmul.f32 1.0, %v4947
    %v4949 = vxor.u32 %v4940, 2147483648
    %v4950 = vmul.f32 %v4949, 1.442695
    %v4951 = vpow.pop %v4950
    %v4952 = vadd.f32 %v4951, 1.0
    %v4953 = vrcp.pop %v4952
    %v4954 = vmul.f32 1.0, %v4953
    %v4955 = vtanh.pop %v4941
    %v4956 = vxor.u32 %v4942, 2147483648
    %v4957 = vmul.f32 %v4956, 1.442695
    %v4958 = vpow.pop %v4957
    %v4959 = vadd.f32 %v4958, 1.0
    %v4960 = vrcp.pop %v4959
    %v4961 = vmul.f32 1.0, %v4960
    %v4962 = vmul.f32 %v4954, %v4624
    %v4963 = vmul.f32 %v4948, %v4955
    %v4964 = vadd.f32 %v4962, %v4963
    %v4965 = vtanh.pop %v4964
    %v4966 = vmul.f32 %v4961, %v4965
    %4967 = vmatprep.subr.mxu0 %v3959
    %4968 = vmatpush1.msra.mxu0 %v3958
    %4969 = vmatprep.subr.mxu0 %v3955
    %4970 = vmatpush1.msra.mxu0 %v3954
    %4971 = vmatprep.subr.mxu0 %v3951
    %4972 = vmatpush1.msra.mxu0 %v3950
    %4973 = vmatprep.subr.mxu0 %v3947
    %4974 = vmatpush1.msra.mxu0 %v3946
    %4975 = vmatprep.subr.mxu0 %v3943
    %4976 = vmatpush1.msra.mxu0 %v3942
    %4977 = vmatprep.subr.mxu0 %v3939
    %4978 = vmatpush1.msra.mxu0 %v3938
    %4979 = vmatprep.subr.mxu0 %v3935
    %4980 = vmatpush1.msra.mxu0 %v3934
    %4981 = vmatprep.subr.mxu0 %v3931
    %4982 = vmatpush1.msra.mxu0 %v3930
    %4983 = vmatprep.subr.mxu0 %v3927
    %4984 = vmatpush1.msra.mxu0 %v3926
    %4985 = vmatprep.subr.mxu0 %v3923
    %4986 = vmatpush1.msra.mxu0 %v3922
    %4987 = vmatprep.subr.mxu0 %v3919
    %4988 = vmatpush1.msra.mxu0 %v3918
    %4989 = vmatprep.subr.mxu0 %v3915
    %4990 = vmatpush1.msra.mxu0 %v3914
    %4991 = vmatprep.subr.mxu0 %v3911
    %4992 = vmatpush1.msra.mxu0 %v3910
    %4993 = vmatprep.subr.mxu0 %v3907
    %4994 = vmatpush1.msra.mxu0 %v3906
    %4995 = vmatprep.subr.mxu0 %v3903
    %4996 = vmatpush1.msra.mxu0 %v3902
    %4997 = vmatprep.subr.mxu0 %v3899
    %4998 = vmatpush1.msra.mxu0 %v3898
    %4999 = vmatprep.subr.mxu0 0.0
    %5000 = vmatpush2.msra.mxu0 0.0
    %5001 = vmatprep.subr.mxu0 0.0
    %5002 = vmatpush2.msra.mxu0 0.0
    %5003 = vmatprep.subr.mxu0 0.0
    %5004 = vmatpush2.msra.mxu0 0.0
    %5005 = vmatprep.subr.mxu0 0.0
    %5006 = vmatpush2.msra.mxu0 0.0
    %5007 = vmatprep.subr.mxu0 0.0
    %5008 = vmatpush2.msra.mxu0 0.0
    %5009 = vmatprep.subr.mxu0 0.0
    %5010 = vmatpush2.msra.mxu0 0.0
    %5011 = vmatprep.subr.mxu0 0.0
    %5012 = vmatpush2.msra.mxu0 0.0
    %5013 = vmatprep.subr.mxu0 0.0
    %5014 = vmatpush2.msra.mxu0 0.0
    %5015 = vmatprep.subr.mxu0 0.0
    %5016 = vmatpush2.msra.mxu0 0.0
    %5017 = vmatprep.subr.mxu0 0.0
    %5018 = vmatpush2.msra.mxu0 0.0
    %5019 = vmatprep.subr.mxu0 0.0
    %5020 = vmatpush2.msra.mxu0 0.0
    %5021 = vmatprep.subr.mxu0 0.0
    %5022 = vmatpush2.msra.mxu0 0.0
    %5023 = vmatprep.subr.mxu0 0.0
    %5024 = vmatpush2.msra.mxu0 0.0
    %5025 = vmatprep.subr.mxu0 0.0
    %5026 = vmatpush2.msra.mxu0 0.0
    %5027 = vmatprep.subr.mxu0 0.0
    %5028 = vmatpush2.msra.mxu0 0.0
    %5029 = vmatprep.subr.mxu0 0.0
    %5030 = vmatpush2.msra.mxu0 0.0
    %5031 = vmatprep.mubr.f32.mxu0 0.0
    %5032 = vmatmul.mubr.f32.gmra.mxu0 %v4796
    %v5033 = vpop.f32.mrf.mxu0
    %v5034 = vadd.f32 0.0, %v5033
    %v5035 = vpop.f32.mrf.mxu0
    %v5036 = vadd.f32 0.0, %v5035
    %5037 = vdwg.mxu0
    %5038 = vmatprep.subr.mxu0 %v3961
    %5039 = vmatpush1.msra.mxu0 %v3960
    %5040 = vmatprep.subr.mxu0 %v3957
    %5041 = vmatpush1.msra.mxu0 %v3956
    %5042 = vmatprep.subr.mxu0 %v3953
    %5043 = vmatpush1.msra.mxu0 %v3952
    %5044 = vmatprep.subr.mxu0 %v3949
    %5045 = vmatpush1.msra.mxu0 %v3948
    %5046 = vmatprep.subr.mxu0 %v3945
    %5047 = vmatpush1.msra.mxu0 %v3944
    %5048 = vmatprep.subr.mxu0 %v3941
    %5049 = vmatpush1.msra.mxu0 %v3940
    %5050 = vmatprep.subr.mxu0 %v3937
    %5051 = vmatpush1.msra.mxu0 %v3936
    %5052 = vmatprep.subr.mxu0 %v3933
    %5053 = vmatpush1.msra.mxu0 %v3932
    %5054 = vmatprep.subr.mxu0 %v3929
    %5055 = vmatpush1.msra.mxu0 %v3928
    %5056 = vmatprep.subr.mxu0 %v3925
    %5057 = vmatpush1.msra.mxu0 %v3924
    %5058 = vmatprep.subr.mxu0 %v3921
    %5059 = vmatpush1.msra.mxu0 %v3920
    %5060 = vmatprep.subr.mxu0 %v3917
    %5061 = vmatpush1.msra.mxu0 %v3916
    %5062 = vmatprep.subr.mxu0 %v3913
    %5063 = vmatpush1.msra.mxu0 %v3912
    %5064 = vmatprep.subr.mxu0 %v3909
    %5065 = vmatpush1.msra.mxu0 %v3908
    %5066 = vmatprep.subr.mxu0 %v3905
    %5067 = vmatpush1.msra.mxu0 %v3904
    %5068 = vmatprep.subr.mxu0 %v3901
    %5069 = vmatpush1.msra.mxu0 %v3900
    %5070 = vmatprep.subr.mxu0 0.0
    %5071 = vmatpush2.msra.mxu0 0.0
    %5072 = vmatprep.subr.mxu0 0.0
    %5073 = vmatpush2.msra.mxu0 0.0
    %5074 = vmatprep.subr.mxu0 0.0
    %5075 = vmatpush2.msra.mxu0 0.0
    %5076 = vmatprep.subr.mxu0 0.0
    %5077 = vmatpush2.msra.mxu0 0.0
    %5078 = vmatprep.subr.mxu0 0.0
    %5079 = vmatpush2.msra.mxu0 0.0
    %5080 = vmatprep.subr.mxu0 0.0
    %5081 = vmatpush2.msra.mxu0 0.0
    %5082 = vmatprep.subr.mxu0 0.0
    %5083 = vmatpush2.msra.mxu0 0.0
    %5084 = vmatprep.subr.mxu0 0.0
    %5085 = vmatpush2.msra.mxu0 0.0
    %5086 = vmatprep.subr.mxu0 0.0
    %5087 = vmatpush2.msra.mxu0 0.0
    %5088 = vmatprep.subr.mxu0 0.0
    %5089 = vmatpush2.msra.mxu0 0.0
    %5090 = vmatprep.subr.mxu0 0.0
    %5091 = vmatpush2.msra.mxu0 0.0
    %5092 = vmatprep.subr.mxu0 0.0
    %5093 = vmatpush2.msra.mxu0 0.0
    %5094 = vmatprep.subr.mxu0 0.0
    %5095 = vmatpush2.msra.mxu0 0.0
    %5096 = vmatprep.subr.mxu0 0.0
    %5097 = vmatpush2.msra.mxu0 0.0
    %5098 = vmatprep.subr.mxu0 0.0
    %5099 = vmatpush2.msra.mxu0 0.0
    %5100 = vmatprep.subr.mxu0 0.0
    %5101 = vmatpush2.msra.mxu0 0.0
    %5102 = vmatprep.mubr.f32.mxu0 0.0
    %5103 = vmatmul.mubr.f32.gmra.mxu0 %v4796
    %v5104 = vpop.f32.mrf.mxu0
    %v5105 = vadd.f32 0.0, %v5104
    %v5106 = vpop.f32.mrf.mxu0
    %v5107 = vadd.f32 0.0, %v5106
    %5108 = vdwg.mxu0
    %v5109 = vadd.f32 %v4334, %v5034
    %v5110 = vadd.f32 %v4336, %v5036
    %v5111 = vadd.f32 %v4447, %v5105
    %v5112 = vadd.f32 %v4449, %v5107
    %v5113 = vxor.u32 %v5109, 2147483648
    %v5114 = vmul.f32 %v5113, 1.442695
    %v5115 = vpow.pop %v5114
    %v5116 = vadd.f32 %v5115, 1.0
    %v5117 = vrcp.pop %v5116
    %v5118 = vmul.f32 1.0, %v5117
    %v5119 = vxor.u32 %v5110, 2147483648
    %v5120 = vmul.f32 %v5119, 1.442695
    %v5121 = vpow.pop %v5120
    %v5122 = vadd.f32 %v5121, 1.0
    %v5123 = vrcp.pop %v5122
    %v5124 = vmul.f32 1.0, %v5123
    %v5125 = vtanh.pop %v5111
    %v5126 = vxor.u32 %v5112, 2147483648
    %v5127 = vmul.f32 %v5126, 1.442695
    %v5128 = vpow.pop %v5127
    %v5129 = vadd.f32 %v5128, 1.0
    %v5130 = vrcp.pop %v5129
    %v5131 = vmul.f32 1.0, %v5130
    %v5132 = vmul.f32 %v5124, %v4794
    %v5133 = vmul.f32 %v5118, %v5125
    %v5134 = vadd.f32 %v5132, %v5133
    %v5135 = vtanh.pop %v5134
    %v5136 = vmul.f32 %v5131, %v5135
    %5137 = vmatprep.subr.mxu0 %v3766
    %5138 = vmatpush1.msra.mxu0 %v3765
    %5139 = vmatprep.subr.mxu0 %v3762
    %5140 = vmatpush1.msra.mxu0 %v3761
    %5141 = vmatprep.subr.mxu0 %v3758
    %5142 = vmatpush1.msra.mxu0 %v3757
    %5143 = vmatprep.subr.mxu0 %v3754
    %5144 = vmatpush1.msra.mxu0 %v3753
    %5145 = vmatprep.subr.mxu0 %v3750
    %5146 = vmatpush1.msra.mxu0 %v3749
    %5147 = vmatprep.subr.mxu0 %v3746
    %5148 = vmatpush1.msra.mxu0 %v3745
    %5149 = vmatprep.subr.mxu0 %v3742
    %5150 = vmatpush1.msra.mxu0 %v3741
    %5151 = vmatprep.subr.mxu0 %v3738
    %5152 = vmatpush1.msra.mxu0 %v3737
    %5153 = vmatprep.subr.mxu0 %v3734
    %5154 = vmatpush1.msra.mxu0 %v3733
    %5155 = vmatprep.subr.mxu0 %v3730
    %5156 = vmatpush1.msra.mxu0 %v3729
    %5157 = vmatprep.subr.mxu0 %v3726
    %5158 = vmatpush1.msra.mxu0 %v3725
    %5159 = vmatprep.subr.mxu0 %v3722
    %5160 = vmatpush1.msra.mxu0 %v3721
    %5161 = vmatprep.subr.mxu0 %v3718
    %5162 = vmatpush1.msra.mxu0 %v3717
    %5163 = vmatprep.subr.mxu0 %v3714
    %5164 = vmatpush1.msra.mxu0 %v3713
    %5165 = vmatprep.subr.mxu0 %v3710
    %5166 = vmatpush1.msra.mxu0 %v3709
    %5167 = vmatprep.subr.mxu0 %v3706
    %5168 = vmatpush1.msra.mxu0 %v3705
    %5169 = vmatprep.subr.mxu0 0.0
    %5170 = vmatpush2.msra.mxu0 0.0
    %5171 = vmatprep.subr.mxu0 0.0
    %5172 = vmatpush2.msra.mxu0 0.0
    %5173 = vmatprep.subr.mxu0 0.0
    %5174 = vmatpush2.msra.mxu0 0.0
    %5175 = vmatprep.subr.mxu0 0.0
    %5176 = vmatpush2.msra.mxu0 0.0
    %5177 = vmatprep.subr.mxu0 0.0
    %5178 = vmatpush2.msra.mxu0 0.0
    %5179 = vmatprep.subr.mxu0 0.0
    %5180 = vmatpush2.msra.mxu0 0.0
    %5181 = vmatprep.subr.mxu0 0.0
    %5182 = vmatpush2.msra.mxu0 0.0
    %5183 = vmatprep.subr.mxu0 0.0
    %5184 = vmatpush2.msra.mxu0 0.0
    %5185 = vmatprep.subr.mxu0 0.0
    %5186 = vmatpush2.msra.mxu0 0.0
    %5187 = vmatprep.subr.mxu0 0.0
    %5188 = vmatpush2.msra.mxu0 0.0
    %5189 = vmatprep.subr.mxu0 0.0
    %5190 = vmatpush2.msra.mxu0 0.0
    %5191 = vmatprep.subr.mxu0 0.0
    %5192 = vmatpush2.msra.mxu0 0.0
    %5193 = vmatprep.subr.mxu0 0.0
    %5194 = vmatpush2.msra.mxu0 0.0
    %5195 = vmatprep.subr.mxu0 0.0
    %5196 = vmatpush2.msra.mxu0 0.0
    %5197 = vmatprep.subr.mxu0 0.0
    %5198 = vmatpush2.msra.mxu0 0.0
    %5199 = vmatprep.subr.mxu0 0.0
    %5200 = vmatpush2.msra.mxu0 0.0
    %5201 = vmatprep.mubr.f32.mxu0 0.0
    %5202 = vmatmul.mubr.f32.gmra.mxu0 %v4966
    %v5203 = vpop.f32.mrf.mxu0
    %v5204 = vadd.f32 0.0, %v5203
    %v5205 = vpop.f32.mrf.mxu0
    %v5206 = vadd.f32 0.0, %v5205
    %5207 = vdwg.mxu0
    %5208 = vmatprep.subr.mxu0 %v3768
    %5209 = vmatpush1.msra.mxu0 %v3767
    %5210 = vmatprep.subr.mxu0 %v3764
    %5211 = vmatpush1.msra.mxu0 %v3763
    %5212 = vmatprep.subr.mxu0 %v3760
    %5213 = vmatpush1.msra.mxu0 %v3759
    %5214 = vmatprep.subr.mxu0 %v3756
    %5215 = vmatpush1.msra.mxu0 %v3755
    %5216 = vmatprep.subr.mxu0 %v3752
    %5217 = vmatpush1.msra.mxu0 %v3751
    %5218 = vmatprep.subr.mxu0 %v3748
    %5219 = vmatpush1.msra.mxu0 %v3747
    %5220 = vmatprep.subr.mxu0 %v3744
    %5221 = vmatpush1.msra.mxu0 %v3743
    %5222 = vmatprep.subr.mxu0 %v3740
    %5223 = vmatpush1.msra.mxu0 %v3739
    %5224 = vmatprep.subr.mxu0 %v3736
    %5225 = vmatpush1.msra.mxu0 %v3735
    %5226 = vmatprep.subr.mxu0 %v3732
    %5227 = vmatpush1.msra.mxu0 %v3731
    %5228 = vmatprep.subr.mxu0 %v3728
    %5229 = vmatpush1.msra.mxu0 %v3727
    %5230 = vmatprep.subr.mxu0 %v3724
    %5231 = vmatpush1.msra.mxu0 %v3723
    %5232 = vmatprep.subr.mxu0 %v3720
    %5233 = vmatpush1.msra.mxu0 %v3719
    %5234 = vmatprep.subr.mxu0 %v3716
    %5235 = vmatpush1.msra.mxu0 %v3715
    %5236 = vmatprep.subr.mxu0 %v3712
    %5237 = vmatpush1.msra.mxu0 %v3711
    %5238 = vmatprep.subr.mxu0 %v3708
    %5239 = vmatpush1.msra.mxu0 %v3707
    %5240 = vmatprep.subr.mxu0 0.0
    %5241 = vmatpush2.msra.mxu0 0.0
    %5242 = vmatprep.subr.mxu0 0.0
    %5243 = vmatpush2.msra.mxu0 0.0
    %5244 = vmatprep.subr.mxu0 0.0
    %5245 = vmatpush2.msra.mxu0 0.0
    %5246 = vmatprep.subr.mxu0 0.0
    %5247 = vmatpush2.msra.mxu0 0.0
    %5248 = vmatprep.subr.mxu0 0.0
    %5249 = vmatpush2.msra.mxu0 0.0
    %5250 = vmatprep.subr.mxu0 0.0
    %5251 = vmatpush2.msra.mxu0 0.0
    %5252 = vmatprep.subr.mxu0 0.0
    %5253 = vmatpush2.msra.mxu0 0.0
    %5254 = vmatprep.subr.mxu0 0.0
    %5255 = vmatpush2.msra.mxu0 0.0
    %5256 = vmatprep.subr.mxu0 0.0
    %5257 = vmatpush2.msra.mxu0 0.0
    %5258 = vmatprep.subr.mxu0 0.0
    %5259 = vmatpush2.msra.mxu0 0.0
    %5260 = vmatprep.subr.mxu0 0.0
    %5261 = vmatpush2.msra.mxu0 0.0
    %5262 = vmatprep.subr.mxu0 0.0
    %5263 = vmatpush2.msra.mxu0 0.0
    %5264 = vmatprep.subr.mxu0 0.0
    %5265 = vmatpush2.msra.mxu0 0.0
    %5266 = vmatprep.subr.mxu0 0.0
    %5267 = vmatpush2.msra.mxu0 0.0
    %5268 = vmatprep.subr.mxu0 0.0
    %5269 = vmatpush2.msra.mxu0 0.0
    %5270 = vmatprep.subr.mxu0 0.0
    %5271 = vmatpush2.msra.mxu0 0.0
    %5272 = vmatprep.mubr.f32.mxu0 0.0
    %5273 = vmatmul.mubr.f32.gmra.mxu0 %v4966
    %v5274 = vpop.f32.mrf.mxu0
    %v5275 = vadd.f32 0.0, %v5274
    %v5276 = vpop.f32.mrf.mxu0
    %v5277 = vadd.f32 0.0, %v5276
    %5278 = vdwg.mxu0
    %v5279 = vadd.f32 %v4063, %v5204
    %v5280 = vadd.f32 %v4065, %v5206
    %v5281 = vadd.f32 %v4176, %v5275
    %v5282 = vadd.f32 %v4178, %v5277
    %v5283 = vxor.u32 %v5279, 2147483648
    %v5284 = vmul.f32 %v5283, 1.442695
    %v5285 = vpow.pop %v5284
    %v5286 = vadd.f32 %v5285, 1.0
    %v5287 = vrcp.pop %v5286
    %v5288 = vmul.f32 1.0, %v5287
    %v5289 = vxor.u32 %v5280, 2147483648
    %v5290 = vmul.f32 %v5289, 1.442695
    %v5291 = vpow.pop %v5290
    %v5292 = vadd.f32 %v5291, 1.0
    %v5293 = vrcp.pop %v5292
    %v5294 = vmul.f32 1.0, %v5293
    %v5295 = vtanh.pop %v5281
    %v5296 = vxor.u32 %v5282, 2147483648
    %v5297 = vmul.f32 %v5296, 1.442695
    %v5298 = vpow.pop %v5297
    %v5299 = vadd.f32 %v5298, 1.0
    %v5300 = vrcp.pop %v5299
    %v5301 = vmul.f32 1.0, %v5300
    %v5302 = vmul.f32 %v5294, %v4964
    %v5303 = vmul.f32 %v5288, %v5295
    %v5304 = vadd.f32 %v5302, %v5303
    %v5305 = vtanh.pop %v5304
    %v5306 = vmul.f32 %v5301, %v5305
    %5307 = vmatprep.subr.mxu0 %v3959
    %5308 = vmatpush1.msra.mxu0 %v3958
    %5309 = vmatprep.subr.mxu0 %v3955
    %5310 = vmatpush1.msra.mxu0 %v3954
    %5311 = vmatprep.subr.mxu0 %v3951
    %5312 = vmatpush1.msra.mxu0 %v3950
    %5313 = vmatprep.subr.mxu0 %v3947
    %5314 = vmatpush1.msra.mxu0 %v3946
    %5315 = vmatprep.subr.mxu0 %v3943
    %5316 = vmatpush1.msra.mxu0 %v3942
    %5317 = vmatprep.subr.mxu0 %v3939
    %5318 = vmatpush1.msra.mxu0 %v3938
    %5319 = vmatprep.subr.mxu0 %v3935
    %5320 = vmatpush1.msra.mxu0 %v3934
    %5321 = vmatprep.subr.mxu0 %v3931
    %5322 = vmatpush1.msra.mxu0 %v3930
    %5323 = vmatprep.subr.mxu0 %v3927
    %5324 = vmatpush1.msra.mxu0 %v3926
    %5325 = vmatprep.subr.mxu0 %v3923
    %5326 = vmatpush1.msra.mxu0 %v3922
    %5327 = vmatprep.subr.mxu0 %v3919
    %5328 = vmatpush1.msra.mxu0 %v3918
    %5329 = vmatprep.subr.mxu0 %v3915
    %5330 = vmatpush1.msra.mxu0 %v3914
    %5331 = vmatprep.subr.mxu0 %v3911
    %5332 = vmatpush1.msra.mxu0 %v3910
    %5333 = vmatprep.subr.mxu0 %v3907
    %5334 = vmatpush1.msra.mxu0 %v3906
    %5335 = vmatprep.subr.mxu0 %v3903
    %5336 = vmatpush1.msra.mxu0 %v3902
    %5337 = vmatprep.subr.mxu0 %v3899
    %5338 = vmatpush1.msra.mxu0 %v3898
    %5339 = vmatprep.subr.mxu0 0.0
    %5340 = vmatpush2.msra.mxu0 0.0
    %5341 = vmatprep.subr.mxu0 0.0
    %5342 = vmatpush2.msra.mxu0 0.0
    %5343 = vmatprep.subr.mxu0 0.0
    %5344 = vmatpush2.msra.mxu0 0.0
    %5345 = vmatprep.subr.mxu0 0.0
    %5346 = vmatpush2.msra.mxu0 0.0
    %5347 = vmatprep.subr.mxu0 0.0
    %5348 = vmatpush2.msra.mxu0 0.0
    %5349 = vmatprep.subr.mxu0 0.0
    %5350 = vmatpush2.msra.mxu0 0.0
    %5351 = vmatprep.subr.mxu0 0.0
    %5352 = vmatpush2.msra.mxu0 0.0
    %5353 = vmatprep.subr.mxu0 0.0
    %5354 = vmatpush2.msra.mxu0 0.0
    %5355 = vmatprep.subr.mxu0 0.0
    %5356 = vmatpush2.msra.mxu0 0.0
    %5357 = vmatprep.subr.mxu0 0.0
    %5358 = vmatpush2.msra.mxu0 0.0
    %5359 = vmatprep.subr.mxu0 0.0
    %5360 = vmatpush2.msra.mxu0 0.0
    %5361 = vmatprep.subr.mxu0 0.0
    %5362 = vmatpush2.msra.mxu0 0.0
    %5363 = vmatprep.subr.mxu0 0.0
    %5364 = vmatpush2.msra.mxu0 0.0
    %5365 = vmatprep.subr.mxu0 0.0
    %5366 = vmatpush2.msra.mxu0 0.0
    %5367 = vmatprep.subr.mxu0 0.0
    %5368 = vmatpush2.msra.mxu0 0.0
    %5369 = vmatprep.subr.mxu0 0.0
    %5370 = vmatpush2.msra.mxu0 0.0
    %5371 = vmatprep.mubr.f32.mxu0 0.0
    %5372 = vmatmul.mubr.f32.gmra.mxu0 %v5136
    %v5373 = vpop.f32.mrf.mxu0
    %v5374 = vadd.f32 0.0, %v5373
    %v5375 = vpop.f32.mrf.mxu0
    %v5376 = vadd.f32 0.0, %v5375
    %5377 = vdwg.mxu0
    %5378 = vmatprep.subr.mxu0 %v3961
    %5379 = vmatpush1.msra.mxu0 %v3960
    %5380 = vmatprep.subr.mxu0 %v3957
    %5381 = vmatpush1.msra.mxu0 %v3956
    %5382 = vmatprep.subr.mxu0 %v3953
    %5383 = vmatpush1.msra.mxu0 %v3952
    %5384 = vmatprep.subr.mxu0 %v3949
    %5385 = vmatpush1.msra.mxu0 %v3948
    %5386 = vmatprep.subr.mxu0 %v3945
    %5387 = vmatpush1.msra.mxu0 %v3944
    %5388 = vmatprep.subr.mxu0 %v3941
    %5389 = vmatpush1.msra.mxu0 %v3940
    %5390 = vmatprep.subr.mxu0 %v3937
    %5391 = vmatpush1.msra.mxu0 %v3936
    %5392 = vmatprep.subr.mxu0 %v3933
    %5393 = vmatpush1.msra.mxu0 %v3932
    %5394 = vmatprep.subr.mxu0 %v3929
    %5395 = vmatpush1.msra.mxu0 %v3928
    %5396 = vmatprep.subr.mxu0 %v3925
    %5397 = vmatpush1.msra.mxu0 %v3924
    %5398 = vmatprep.subr.mxu0 %v3921
    %5399 = vmatpush1.msra.mxu0 %v3920
    %5400 = vmatprep.subr.mxu0 %v3917
    %5401 = vmatpush1.msra.mxu0 %v3916
    %5402 = vmatprep.subr.mxu0 %v3913
    %5403 = vmatpush1.msra.mxu0 %v3912
    %5404 = vmatprep.subr.mxu0 %v3909
    %5405 = vmatpush1.msra.mxu0 %v3908
    %5406 = vmatprep.subr.mxu0 %v3905
    %5407 = vmatpush1.msra.mxu0 %v3904
    %5408 = vmatprep.subr.mxu0 %v3901
    %5409 = vmatpush1.msra.mxu0 %v3900
    %5410 = vmatprep.subr.mxu0 0.0
    %5411 = vmatpush2.msra.mxu0 0.0
    %5412 = vmatprep.subr.mxu0 0.0
    %5413 = vmatpush2.msra.mxu0 0.0
    %5414 = vmatprep.subr.mxu0 0.0
    %5415 = vmatpush2.msra.mxu0 0.0
    %5416 = vmatprep.subr.mxu0 0.0
    %5417 = vmatpush2.msra.mxu0 0.0
    %5418 = vmatprep.subr.mxu0 0.0
    %5419 = vmatpush2.msra.mxu0 0.0
    %5420 = vmatprep.subr.mxu0 0.0
    %5421 = vmatpush2.msra.mxu0 0.0
    %5422 = vmatprep.subr.mxu0 0.0
    %5423 = vmatpush2.msra.mxu0 0.0
    %5424 = vmatprep.subr.mxu0 0.0
    %5425 = vmatpush2.msra.mxu0 0.0
    %5426 = vmatprep.subr.mxu0 0.0
    %5427 = vmatpush2.msra.mxu0 0.0
    %5428 = vmatprep.subr.mxu0 0.0
    %5429 = vmatpush2.msra.mxu0 0.0
    %5430 = vmatprep.subr.mxu0 0.0
    %5431 = vmatpush2.msra.mxu0 0.0
    %5432 = vmatprep.subr.mxu0 0.0
    %5433 = vmatpush2.msra.mxu0 0.0
    %5434 = vmatprep.subr.mxu0 0.0
    %5435 = vmatpush2.msra.mxu0 0.0
    %5436 = vmatprep.subr.mxu0 0.0
    %5437 = vmatpush2.msra.mxu0 0.0
    %5438 = vmatprep.subr.mxu0 0.0
    %5439 = vmatpush2.msra.mxu0 0.0
    %5440 = vmatprep.subr.mxu0 0.0
    %5441 = vmatpush2.msra.mxu0 0.0
    %5442 = vmatprep.mubr.f32.mxu0 0.0
    %5443 = vmatmul.mubr.f32.gmra.mxu0 %v5136
    %v5444 = vpop.f32.mrf.mxu0
    %v5445 = vadd.f32 0.0, %v5444
    %v5446 = vpop.f32.mrf.mxu0
    %v5447 = vadd.f32 0.0, %v5446
    %5448 = vdwg.mxu0
    %v5449 = vadd.f32 %v4328, %v5374
    %v5450 = vadd.f32 %v4330, %v5376
    %v5451 = vadd.f32 %v4441, %v5445
    %v5452 = vadd.f32 %v4443, %v5447
    %v5453 = vxor.u32 %v5449, 2147483648
    %v5454 = vmul.f32 %v5453, 1.442695
    %v5455 = vpow.pop %v5454
    %v5456 = vadd.f32 %v5455, 1.0
    %v5457 = vrcp.pop %v5456
    %v5458 = vmul.f32 1.0, %v5457
    %v5459 = vxor.u32 %v5450, 2147483648
    %v5460 = vmul.f32 %v5459, 1.442695
    %v5461 = vpow.pop %v5460
    %v5462 = vadd.f32 %v5461, 1.0
    %v5463 = vrcp.pop %v5462
    %v5464 = vmul.f32 1.0, %v5463
    %v5465 = vtanh.pop %v5451
    %v5466 = vxor.u32 %v5452, 2147483648
    %v5467 = vmul.f32 %v5466, 1.442695
    %v5468 = vpow.pop %v5467
    %v5469 = vadd.f32 %v5468, 1.0
    %v5470 = vrcp.pop %v5469
    %v5471 = vmul.f32 1.0, %v5470
    %v5472 = vmul.f32 %v5464, %v5134
    %v5473 = vmul.f32 %v5458, %v5465
    %v5474 = vadd.f32 %v5472, %v5473
    %v5475 = vtanh.pop %v5474
    %v5476 = vmul.f32 %v5471, %v5475
    %5477 = vmatprep.subr.mxu0 %v3766
    %5478 = vmatpush1.msra.mxu0 %v3765
    %5479 = vmatprep.subr.mxu0 %v3762
    %5480 = vmatpush1.msra.mxu0 %v3761
    %5481 = vmatprep.subr.mxu0 %v3758
    %5482 = vmatpush1.msra.mxu0 %v3757
    %5483 = vmatprep.subr.mxu0 %v3754
    %5484 = vmatpush1.msra.mxu0 %v3753
    %5485 = vmatprep.subr.mxu0 %v3750
    %5486 = vmatpush1.msra.mxu0 %v3749
    %5487 = vmatprep.subr.mxu0 %v3746
    %5488 = vmatpush1.msra.mxu0 %v3745
    %5489 = vmatprep.subr.mxu0 %v3742
    %5490 = vmatpush1.msra.mxu0 %v3741
    %5491 = vmatprep.subr.mxu0 %v3738
    %5492 = vmatpush1.msra.mxu0 %v3737
    %5493 = vmatprep.subr.mxu0 %v3734
    %5494 = vmatpush1.msra.mxu0 %v3733
    %5495 = vmatprep.subr.mxu0 %v3730
    %5496 = vmatpush1.msra.mxu0 %v3729
    %5497 = vmatprep.subr.mxu0 %v3726
    %5498 = vmatpush1.msra.mxu0 %v3725
    %5499 = vmatprep.subr.mxu0 %v3722
    %5500 = vmatpush1.msra.mxu0 %v3721
    %5501 = vmatprep.subr.mxu0 %v3718
    %5502 = vmatpush1.msra.mxu0 %v3717
    %5503 = vmatprep.subr.mxu0 %v3714
    %5504 = vmatpush1.msra.mxu0 %v3713
    %5505 = vmatprep.subr.mxu0 %v3710
    %5506 = vmatpush1.msra.mxu0 %v3709
    %5507 = vmatprep.subr.mxu0 %v3706
    %5508 = vmatpush1.msra.mxu0 %v3705
    %5509 = vmatprep.subr.mxu0 0.0
    %5510 = vmatpush2.msra.mxu0 0.0
    %5511 = vmatprep.subr.mxu0 0.0
    %5512 = vmatpush2.msra.mxu0 0.0
    %5513 = vmatprep.subr.mxu0 0.0
    %5514 = vmatpush2.msra.mxu0 0.0
    %5515 = vmatprep.subr.mxu0 0.0
    %5516 = vmatpush2.msra.mxu0 0.0
    %5517 = vmatprep.subr.mxu0 0.0
    %5518 = vmatpush2.msra.mxu0 0.0
    %5519 = vmatprep.subr.mxu0 0.0
    %5520 = vmatpush2.msra.mxu0 0.0
    %5521 = vmatprep.subr.mxu0 0.0
    %5522 = vmatpush2.msra.mxu0 0.0
    %5523 = vmatprep.subr.mxu0 0.0
    %5524 = vmatpush2.msra.mxu0 0.0
    %5525 = vmatprep.subr.mxu0 0.0
    %5526 = vmatpush2.msra.mxu0 0.0
    %5527 = vmatprep.subr.mxu0 0.0
    %5528 = vmatpush2.msra.mxu0 0.0
    %5529 = vmatprep.subr.mxu0 0.0
    %5530 = vmatpush2.msra.mxu0 0.0
    %5531 = vmatprep.subr.mxu0 0.0
    %5532 = vmatpush2.msra.mxu0 0.0
    %5533 = vmatprep.subr.mxu0 0.0
    %5534 = vmatpush2.msra.mxu0 0.0
    %5535 = vmatprep.subr.mxu0 0.0
    %5536 = vmatpush2.msra.mxu0 0.0
    %5537 = vmatprep.subr.mxu0 0.0
    %5538 = vmatpush2.msra.mxu0 0.0
    %5539 = vmatprep.subr.mxu0 0.0
    %5540 = vmatpush2.msra.mxu0 0.0
    %5541 = vmatprep.mubr.f32.mxu0 0.0
    %5542 = vmatmul.mubr.f32.gmra.mxu0 %v5306
    %v5543 = vpop.f32.mrf.mxu0
    %v5544 = vadd.f32 0.0, %v5543
    %v5545 = vpop.f32.mrf.mxu0
    %v5546 = vadd.f32 0.0, %v5545
    %5547 = vdwg.mxu0
    %5548 = vmatprep.subr.mxu0 %v3768
    %5549 = vmatpush1.msra.mxu0 %v3767
    %5550 = vmatprep.subr.mxu0 %v3764
    %5551 = vmatpush1.msra.mxu0 %v3763
    %5552 = vmatprep.subr.mxu0 %v3760
    %5553 = vmatpush1.msra.mxu0 %v3759
    %5554 = vmatprep.subr.mxu0 %v3756
    %5555 = vmatpush1.msra.mxu0 %v3755
    %5556 = vmatprep.subr.mxu0 %v3752
    %5557 = vmatpush1.msra.mxu0 %v3751
    %5558 = vmatprep.subr.mxu0 %v3748
    %5559 = vmatpush1.msra.mxu0 %v3747
    %5560 = vmatprep.subr.mxu0 %v3744
    %5561 = vmatpush1.msra.mxu0 %v3743
    %5562 = vmatprep.subr.mxu0 %v3740
    %5563 = vmatpush1.msra.mxu0 %v3739
    %5564 = vmatprep.subr.mxu0 %v3736
    %5565 = vmatpush1.msra.mxu0 %v3735
    %5566 = vmatprep.subr.mxu0 %v3732
    %5567 = vmatpush1.msra.mxu0 %v3731
    %5568 = vmatprep.subr.mxu0 %v3728
    %5569 = vmatpush1.msra.mxu0 %v3727
    %5570 = vmatprep.subr.mxu0 %v3724
    %5571 = vmatpush1.msra.mxu0 %v3723
    %5572 = vmatprep.subr.mxu0 %v3720
    %5573 = vmatpush1.msra.mxu0 %v3719
    %5574 = vmatprep.subr.mxu0 %v3716
    %5575 = vmatpush1.msra.mxu0 %v3715
    %5576 = vmatprep.subr.mxu0 %v3712
    %5577 = vmatpush1.msra.mxu0 %v3711
    %5578 = vmatprep.subr.mxu0 %v3708
    %5579 = vmatpush1.msra.mxu0 %v3707
    %5580 = vmatprep.subr.mxu0 0.0
    %5581 = vmatpush2.msra.mxu0 0.0
    %5582 = vmatprep.subr.mxu0 0.0
    %5583 = vmatpush2.msra.mxu0 0.0
    %5584 = vmatprep.subr.mxu0 0.0
    %5585 = vmatpush2.msra.mxu0 0.0
    %5586 = vmatprep.subr.mxu0 0.0
    %5587 = vmatpush2.msra.mxu0 0.0
    %5588 = vmatprep.subr.mxu0 0.0
    %5589 = vmatpush2.msra.mxu0 0.0
    %5590 = vmatprep.subr.mxu0 0.0
    %5591 = vmatpush2.msra.mxu0 0.0
    %5592 = vmatprep.subr.mxu0 0.0
    %5593 = vmatpush2.msra.mxu0 0.0
    %5594 = vmatprep.subr.mxu0 0.0
    %5595 = vmatpush2.msra.mxu0 0.0
    %5596 = vmatprep.subr.mxu0 0.0
    %5597 = vmatpush2.msra.mxu0 0.0
    %5598 = vmatprep.subr.mxu0 0.0
    %5599 = vmatpush2.msra.mxu0 0.0
    %5600 = vmatprep.subr.mxu0 0.0
    %5601 = vmatpush2.msra.mxu0 0.0
    %5602 = vmatprep.subr.mxu0 0.0
    %5603 = vmatpush2.msra.mxu0 0.0
    %5604 = vmatprep.subr.mxu0 0.0
    %5605 = vmatpush2.msra.mxu0 0.0
    %5606 = vmatprep.subr.mxu0 0.0
    %5607 = vmatpush2.msra.mxu0 0.0
    %5608 = vmatprep.subr.mxu0 0.0
    %5609 = vmatpush2.msra.mxu0 0.0
    %5610 = vmatprep.subr.mxu0 0.0
    %5611 = vmatpush2.msra.mxu0 0.0
    %5612 = vmatprep.mubr.f32.mxu0 0.0
    %5613 = vmatmul.mubr.f32.gmra.mxu0 %v5306
    %v5614 = vpop.f32.mrf.mxu0
    %v5615 = vadd.f32 0.0, %v5614
    %v5616 = vpop.f32.mrf.mxu0
    %v5617 = vadd.f32 0.0, %v5616
    %5618 = vdwg.mxu0
    %v5619 = vadd.f32 %v4069, %v5544
    %v5620 = vadd.f32 %v4071, %v5546
    %v5621 = vadd.f32 %v4182, %v5615
    %v5622 = vadd.f32 %v4184, %v5617
    %v5623 = vxor.u32 %v5619, 2147483648
    %v5624 = vmul.f32 %v5623, 1.442695
    %v5625 = vpow.pop %v5624
    %v5626 = vadd.f32 %v5625, 1.0
    %v5627 = vrcp.pop %v5626
    %v5628 = vmul.f32 1.0, %v5627
    %v5629 = vxor.u32 %v5620, 2147483648
    %v5630 = vmul.f32 %v5629, 1.442695
    %v5631 = vpow.pop %v5630
    %v5632 = vadd.f32 %v5631, 1.0
    %v5633 = vrcp.pop %v5632
    %v5634 = vmul.f32 1.0, %v5633
    %v5635 = vtanh.pop %v5621
    %v5636 = vxor.u32 %v5622, 2147483648
    %v5637 = vmul.f32 %v5636, 1.442695
    %v5638 = vpow.pop %v5637
    %v5639 = vadd.f32 %v5638, 1.0
    %v5640 = vrcp.pop %v5639
    %v5641 = vmul.f32 1.0, %v5640
    %v5642 = vmul.f32 %v5634, %v5304
    %v5643 = vmul.f32 %v5628, %v5635
    %v5644 = vadd.f32 %v5642, %v5643
    %v5645 = vtanh.pop %v5644
    %v5646 = vmul.f32 %v5641, %v5645
    %5647 = vmatprep.subr.mxu0 %v3959
    %5648 = vmatpush1.msra.mxu0 %v3958
    %5649 = vmatprep.subr.mxu0 %v3955
    %5650 = vmatpush1.msra.mxu0 %v3954
    %5651 = vmatprep.subr.mxu0 %v3951
    %5652 = vmatpush1.msra.mxu0 %v3950
    %5653 = vmatprep.subr.mxu0 %v3947
    %5654 = vmatpush1.msra.mxu0 %v3946
    %5655 = vmatprep.subr.mxu0 %v3943
    %5656 = vmatpush1.msra.mxu0 %v3942
    %5657 = vmatprep.subr.mxu0 %v3939
    %5658 = vmatpush1.msra.mxu0 %v3938
    %5659 = vmatprep.subr.mxu0 %v3935
    %5660 = vmatpush1.msra.mxu0 %v3934
    %5661 = vmatprep.subr.mxu0 %v3931
    %5662 = vmatpush1.msra.mxu0 %v3930
    %5663 = vmatprep.subr.mxu0 %v3927
    %5664 = vmatpush1.msra.mxu0 %v3926
    %5665 = vmatprep.subr.mxu0 %v3923
    %5666 = vmatpush1.msra.mxu0 %v3922
    %5667 = vmatprep.subr.mxu0 %v3919
    %5668 = vmatpush1.msra.mxu0 %v3918
    %5669 = vmatprep.subr.mxu0 %v3915
    %5670 = vmatpush1.msra.mxu0 %v3914
    %5671 = vmatprep.subr.mxu0 %v3911
    %5672 = vmatpush1.msra.mxu0 %v3910
    %5673 = vmatprep.subr.mxu0 %v3907
    %5674 = vmatpush1.msra.mxu0 %v3906
    %5675 = vmatprep.subr.mxu0 %v3903
    %5676 = vmatpush1.msra.mxu0 %v3902
    %5677 = vmatprep.subr.mxu0 %v3899
    %5678 = vmatpush1.msra.mxu0 %v3898
    %5679 = vmatprep.subr.mxu0 0.0
    %5680 = vmatpush2.msra.mxu0 0.0
    %5681 = vmatprep.subr.mxu0 0.0
    %5682 = vmatpush2.msra.mxu0 0.0
    %5683 = vmatprep.subr.mxu0 0.0
    %5684 = vmatpush2.msra.mxu0 0.0
    %5685 = vmatprep.subr.mxu0 0.0
    %5686 = vmatpush2.msra.mxu0 0.0
    %5687 = vmatprep.subr.mxu0 0.0
    %5688 = vmatpush2.msra.mxu0 0.0
    %5689 = vmatprep.subr.mxu0 0.0
    %5690 = vmatpush2.msra.mxu0 0.0
    %5691 = vmatprep.subr.mxu0 0.0
    %5692 = vmatpush2.msra.mxu0 0.0
    %5693 = vmatprep.subr.mxu0 0.0
    %5694 = vmatpush2.msra.mxu0 0.0
    %5695 = vmatprep.subr.mxu0 0.0
    %5696 = vmatpush2.msra.mxu0 0.0
    %5697 = vmatprep.subr.mxu0 0.0
    %5698 = vmatpush2.msra.mxu0 0.0
    %5699 = vmatprep.subr.mxu0 0.0
    %5700 = vmatpush2.msra.mxu0 0.0
    %5701 = vmatprep.subr.mxu0 0.0
    %5702 = vmatpush2.msra.mxu0 0.0
    %5703 = vmatprep.subr.mxu0 0.0
    %5704 = vmatpush2.msra.mxu0 0.0
    %5705 = vmatprep.subr.mxu0 0.0
    %5706 = vmatpush2.msra.mxu0 0.0
    %5707 = vmatprep.subr.mxu0 0.0
    %5708 = vmatpush2.msra.mxu0 0.0
    %5709 = vmatprep.subr.mxu0 0.0
    %5710 = vmatpush2.msra.mxu0 0.0
    %5711 = vmatprep.mubr.f32.mxu0 0.0
    %5712 = vmatmul.mubr.f32.gmra.mxu0 %v5476
    %v5713 = vpop.f32.mrf.mxu0
    %v5714 = vadd.f32 0.0, %v5713
    %v5715 = vpop.f32.mrf.mxu0
    %v5716 = vadd.f32 0.0, %v5715
    %5717 = vdwg.mxu0
    %5718 = vmatprep.subr.mxu0 %v3961
    %5719 = vmatpush1.msra.mxu0 %v3960
    %5720 = vmatprep.subr.mxu0 %v3957
    %5721 = vmatpush1.msra.mxu0 %v3956
    %5722 = vmatprep.subr.mxu0 %v3953
    %5723 = vmatpush1.msra.mxu0 %v3952
    %5724 = vmatprep.subr.mxu0 %v3949
    %5725 = vmatpush1.msra.mxu0 %v3948
    %5726 = vmatprep.subr.mxu0 %v3945
    %5727 = vmatpush1.msra.mxu0 %v3944
    %5728 = vmatprep.subr.mxu0 %v3941
    %5729 = vmatpush1.msra.mxu0 %v3940
    %5730 = vmatprep.subr.mxu0 %v3937
    %5731 = vmatpush1.msra.mxu0 %v3936
    %5732 = vmatprep.subr.mxu0 %v3933
    %5733 = vmatpush1.msra.mxu0 %v3932
    %5734 = vmatprep.subr.mxu0 %v3929
    %5735 = vmatpush1.msra.mxu0 %v3928
    %5736 = vmatprep.subr.mxu0 %v3925
    %5737 = vmatpush1.msra.mxu0 %v3924
    %5738 = vmatprep.subr.mxu0 %v3921
    %5739 = vmatpush1.msra.mxu0 %v3920
    %5740 = vmatprep.subr.mxu0 %v3917
    %5741 = vmatpush1.msra.mxu0 %v3916
    %5742 = vmatprep.subr.mxu0 %v3913
    %5743 = vmatpush1.msra.mxu0 %v3912
    %5744 = vmatprep.subr.mxu0 %v3909
    %5745 = vmatpush1.msra.mxu0 %v3908
    %5746 = vmatprep.subr.mxu0 %v3905
    %5747 = vmatpush1.msra.mxu0 %v3904
    %5748 = vmatprep.subr.mxu0 %v3901
    %5749 = vmatpush1.msra.mxu0 %v3900
    %5750 = vmatprep.subr.mxu0 0.0
    %5751 = vmatpush2.msra.mxu0 0.0
    %5752 = vmatprep.subr.mxu0 0.0
    %5753 = vmatpush2.msra.mxu0 0.0
    %5754 = vmatprep.subr.mxu0 0.0
    %5755 = vmatpush2.msra.mxu0 0.0
    %5756 = vmatprep.subr.mxu0 0.0
    %5757 = vmatpush2.msra.mxu0 0.0
    %5758 = vmatprep.subr.mxu0 0.0
    %5759 = vmatpush2.msra.mxu0 0.0
    %5760 = vmatprep.subr.mxu0 0.0
    %5761 = vmatpush2.msra.mxu0 0.0
    %5762 = vmatprep.subr.mxu0 0.0
    %5763 = vmatpush2.msra.mxu0 0.0
    %5764 = vmatprep.subr.mxu0 0.0
    %5765 = vmatpush2.msra.mxu0 0.0
    %5766 = vmatprep.subr.mxu0 0.0
    %5767 = vmatpush2.msra.mxu0 0.0
    %5768 = vmatprep.subr.mxu0 0.0
    %5769 = vmatpush2.msra.mxu0 0.0
    %5770 = vmatprep.subr.mxu0 0.0
    %5771 = vmatpush2.msra.mxu0 0.0
    %5772 = vmatprep.subr.mxu0 0.0
    %5773 = vmatpush2.msra.mxu0 0.0
    %5774 = vmatprep.subr.mxu0 0.0
    %5775 = vmatpush2.msra.mxu0 0.0
    %5776 = vmatprep.subr.mxu0 0.0
    %5777 = vmatpush2.msra.mxu0 0.0
    %5778 = vmatprep.subr.mxu0 0.0
    %5779 = vmatpush2.msra.mxu0 0.0
    %5780 = vmatprep.subr.mxu0 0.0
    %5781 = vmatpush2.msra.mxu0 0.0
    %5782 = vmatprep.mubr.f32.mxu0 0.0
    %5783 = vmatmul.mubr.f32.gmra.mxu0 %v5476
    %v5784 = vpop.f32.mrf.mxu0
    %v5785 = vadd.f32 0.0, %v5784
    %v5786 = vpop.f32.mrf.mxu0
    %v5787 = vadd.f32 0.0, %v5786
    %5788 = vdwg.mxu0
    %v5789 = vadd.f32 %v4322, %v5714
    %v5790 = vadd.f32 %v4324, %v5716
    %v5791 = vadd.f32 %v4435, %v5785
    %v5792 = vadd.f32 %v4437, %v5787
    %v5793 = vxor.u32 %v5789, 2147483648
    %v5794 = vmul.f32 %v5793, 1.442695
    %v5795 = vpow.pop %v5794
    %v5796 = vadd.f32 %v5795, 1.0
    %v5797 = vrcp.pop %v5796
    %v5798 = vmul.f32 1.0, %v5797
    %v5799 = vxor.u32 %v5790, 2147483648
    %v5800 = vmul.f32 %v5799, 1.442695
    %v5801 = vpow.pop %v5800
    %v5802 = vadd.f32 %v5801, 1.0
    %v5803 = vrcp.pop %v5802
    %v5804 = vmul.f32 1.0, %v5803
    %v5805 = vtanh.pop %v5791
    %v5806 = vxor.u32 %v5792, 2147483648
    %v5807 = vmul.f32 %v5806, 1.442695
    %v5808 = vpow.pop %v5807
    %v5809 = vadd.f32 %v5808, 1.0
    %v5810 = vrcp.pop %v5809
    %v5811 = vmul.f32 1.0, %v5810
    %v5812 = vmul.f32 %v5804, %v5474
    %v5813 = vmul.f32 %v5798, %v5805
    %v5814 = vadd.f32 %v5812, %v5813
    %v5815 = vtanh.pop %v5814
    %v5816 = vmul.f32 %v5811, %v5815
    %5817 = vmatprep.subr.mxu0 %v3766
    %5818 = vmatpush1.msra.mxu0 %v3765
    %5819 = vmatprep.subr.mxu0 %v3762
    %5820 = vmatpush1.msra.mxu0 %v3761
    %5821 = vmatprep.subr.mxu0 %v3758
    %5822 = vmatpush1.msra.mxu0 %v3757
    %5823 = vmatprep.subr.mxu0 %v3754
    %5824 = vmatpush1.msra.mxu0 %v3753
    %5825 = vmatprep.subr.mxu0 %v3750
    %5826 = vmatpush1.msra.mxu0 %v3749
    %5827 = vmatprep.subr.mxu0 %v3746
    %5828 = vmatpush1.msra.mxu0 %v3745
    %5829 = vmatprep.subr.mxu0 %v3742
    %5830 = vmatpush1.msra.mxu0 %v3741
    %5831 = vmatprep.subr.mxu0 %v3738
    %5832 = vmatpush1.msra.mxu0 %v3737
    %5833 = vmatprep.subr.mxu0 %v3734
    %5834 = vmatpush1.msra.mxu0 %v3733
    %5835 = vmatprep.subr.mxu0 %v3730
    %5836 = vmatpush1.msra.mxu0 %v3729
    %5837 = vmatprep.subr.mxu0 %v3726
    %5838 = vmatpush1.msra.mxu0 %v3725
    %5839 = vmatprep.subr.mxu0 %v3722
    %5840 = vmatpush1.msra.mxu0 %v3721
    %5841 = vmatprep.subr.mxu0 %v3718
    %5842 = vmatpush1.msra.mxu0 %v3717
    %5843 = vmatprep.subr.mxu0 %v3714
    %5844 = vmatpush1.msra.mxu0 %v3713
    %5845 = vmatprep.subr.mxu0 %v3710
    %5846 = vmatpush1.msra.mxu0 %v3709
    %5847 = vmatprep.subr.mxu0 %v3706
    %5848 = vmatpush1.msra.mxu0 %v3705
    %5849 = vmatprep.subr.mxu0 0.0
    %5850 = vmatpush2.msra.mxu0 0.0
    %5851 = vmatprep.subr.mxu0 0.0
    %5852 = vmatpush2.msra.mxu0 0.0
    %5853 = vmatprep.subr.mxu0 0.0
    %5854 = vmatpush2.msra.mxu0 0.0
    %5855 = vmatprep.subr.mxu0 0.0
    %5856 = vmatpush2.msra.mxu0 0.0
    %5857 = vmatprep.subr.mxu0 0.0
    %5858 = vmatpush2.msra.mxu0 0.0
    %5859 = vmatprep.subr.mxu0 0.0
    %5860 = vmatpush2.msra.mxu0 0.0
    %5861 = vmatprep.subr.mxu0 0.0
    %5862 = vmatpush2.msra.mxu0 0.0
    %5863 = vmatprep.subr.mxu0 0.0
    %5864 = vmatpush2.msra.mxu0 0.0
    %5865 = vmatprep.subr.mxu0 0.0
    %5866 = vmatpush2.msra.mxu0 0.0
    %5867 = vmatprep.subr.mxu0 0.0
    %5868 = vmatpush2.msra.mxu0 0.0
    %5869 = vmatprep.subr.mxu0 0.0
    %5870 = vmatpush2.msra.mxu0 0.0
    %5871 = vmatprep.subr.mxu0 0.0
    %5872 = vmatpush2.msra.mxu0 0.0
    %5873 = vmatprep.subr.mxu0 0.0
    %5874 = vmatpush2.msra.mxu0 0.0
    %5875 = vmatprep.subr.mxu0 0.0
    %5876 = vmatpush2.msra.mxu0 0.0
    %5877 = vmatprep.subr.mxu0 0.0
    %5878 = vmatpush2.msra.mxu0 0.0
    %5879 = vmatprep.subr.mxu0 0.0
    %5880 = vmatpush2.msra.mxu0 0.0
    %5881 = vmatprep.mubr.f32.mxu0 0.0
    %5882 = vmatmul.mubr.f32.gmra.mxu0 %v5646
    %v5883 = vpop.f32.mrf.mxu0
    %v5884 = vadd.f32 0.0, %v5883
    %v5885 = vpop.f32.mrf.mxu0
    %v5886 = vadd.f32 0.0, %v5885
    %5887 = vdwg.mxu0
    %5888 = vmatprep.subr.mxu0 %v3768
    %5889 = vmatpush1.msra.mxu0 %v3767
    %5890 = vmatprep.subr.mxu0 %v3764
    %5891 = vmatpush1.msra.mxu0 %v3763
    %5892 = vmatprep.subr.mxu0 %v3760
    %5893 = vmatpush1.msra.mxu0 %v3759
    %5894 = vmatprep.subr.mxu0 %v3756
    %5895 = vmatpush1.msra.mxu0 %v3755
    %5896 = vmatprep.subr.mxu0 %v3752
    %5897 = vmatpush1.msra.mxu0 %v3751
    %5898 = vmatprep.subr.mxu0 %v3748
    %5899 = vmatpush1.msra.mxu0 %v3747
    %5900 = vmatprep.subr.mxu0 %v3744
    %5901 = vmatpush1.msra.mxu0 %v3743
    %5902 = vmatprep.subr.mxu0 %v3740
    %5903 = vmatpush1.msra.mxu0 %v3739
    %5904 = vmatprep.subr.mxu0 %v3736
    %5905 = vmatpush1.msra.mxu0 %v3735
    %5906 = vmatprep.subr.mxu0 %v3732
    %5907 = vmatpush1.msra.mxu0 %v3731
    %5908 = vmatprep.subr.mxu0 %v3728
    %5909 = vmatpush1.msra.mxu0 %v3727
    %5910 = vmatprep.subr.mxu0 %v3724
    %5911 = vmatpush1.msra.mxu0 %v3723
    %5912 = vmatprep.subr.mxu0 %v3720
    %5913 = vmatpush1.msra.mxu0 %v3719
    %5914 = vmatprep.subr.mxu0 %v3716
    %5915 = vmatpush1.msra.mxu0 %v3715
    %5916 = vmatprep.subr.mxu0 %v3712
    %5917 = vmatpush1.msra.mxu0 %v3711
    %5918 = vmatprep.subr.mxu0 %v3708
    %5919 = vmatpush1.msra.mxu0 %v3707
    %5920 = vmatprep.subr.mxu0 0.0
    %5921 = vmatpush2.msra.mxu0 0.0
    %5922 = vmatprep.subr.mxu0 0.0
    %5923 = vmatpush2.msra.mxu0 0.0
    %5924 = vmatprep.subr.mxu0 0.0
    %5925 = vmatpush2.msra.mxu0 0.0
    %5926 = vmatprep.subr.mxu0 0.0
    %5927 = vmatpush2.msra.mxu0 0.0
    %5928 = vmatprep.subr.mxu0 0.0
    %5929 = vmatpush2.msra.mxu0 0.0
    %5930 = vmatprep.subr.mxu0 0.0
    %5931 = vmatpush2.msra.mxu0 0.0
    %5932 = vmatprep.subr.mxu0 0.0
    %5933 = vmatpush2.msra.mxu0 0.0
    %5934 = vmatprep.subr.mxu0 0.0
    %5935 = vmatpush2.msra.mxu0 0.0
    %5936 = vmatprep.subr.mxu0 0.0
    %5937 = vmatpush2.msra.mxu0 0.0
    %5938 = vmatprep.subr.mxu0 0.0
    %5939 = vmatpush2.msra.mxu0 0.0
    %5940 = vmatprep.subr.mxu0 0.0
    %5941 = vmatpush2.msra.mxu0 0.0
    %5942 = vmatprep.subr.mxu0 0.0
    %5943 = vmatpush2.msra.mxu0 0.0
    %5944 = vmatprep.subr.mxu0 0.0
    %5945 = vmatpush2.msra.mxu0 0.0
    %5946 = vmatprep.subr.mxu0 0.0
    %5947 = vmatpush2.msra.mxu0 0.0
    %5948 = vmatprep.subr.mxu0 0.0
    %5949 = vmatpush2.msra.mxu0 0.0
    %5950 = vmatprep.subr.mxu0 0.0
    %5951 = vmatpush2.msra.mxu0 0.0
    %5952 = vmatprep.mubr.f32.mxu0 0.0
    %5953 = vmatmul.mubr.f32.gmra.mxu0 %v5646
    %v5954 = vpop.f32.mrf.mxu0
    %v5955 = vadd.f32 0.0, %v5954
    %v5956 = vpop.f32.mrf.mxu0
    %v5957 = vadd.f32 0.0, %v5956
    %5958 = vdwg.mxu0
    %v5959 = vadd.f32 %v4075, %v5884
    %v5960 = vadd.f32 %v4077, %v5886
    %v5961 = vadd.f32 %v4188, %v5955
    %v5962 = vadd.f32 %v4190, %v5957
    %v5963 = vxor.u32 %v5959, 2147483648
    %v5964 = vmul.f32 %v5963, 1.442695
    %v5965 = vpow.pop %v5964
    %v5966 = vadd.f32 %v5965, 1.0
    %v5967 = vrcp.pop %v5966
    %v5968 = vmul.f32 1.0, %v5967
    %v5969 = vxor.u32 %v5960, 2147483648
    %v5970 = vmul.f32 %v5969, 1.442695
    %v5971 = vpow.pop %v5970
    %v5972 = vadd.f32 %v5971, 1.0
    %v5973 = vrcp.pop %v5972
    %v5974 = vmul.f32 1.0, %v5973
    %v5975 = vtanh.pop %v5961
    %v5976 = vxor.u32 %v5962, 2147483648
    %v5977 = vmul.f32 %v5976, 1.442695
    %v5978 = vpow.pop %v5977
    %v5979 = vadd.f32 %v5978, 1.0
    %v5980 = vrcp.pop %v5979
    %v5981 = vmul.f32 1.0, %v5980
    %v5982 = vmul.f32 %v5974, %v5644
    %v5983 = vmul.f32 %v5968, %v5975
    %v5984 = vadd.f32 %v5982, %v5983
    %v5985 = vtanh.pop %v5984
    %v5986 = vmul.f32 %v5981, %v5985
    %5987 = vmatprep.subr.mxu0 %v3959
    %5988 = vmatpush1.msra.mxu0 %v3958
    %5989 = vmatprep.subr.mxu0 %v3955
    %5990 = vmatpush1.msra.mxu0 %v3954
    %5991 = vmatprep.subr.mxu0 %v3951
    %5992 = vmatpush1.msra.mxu0 %v3950
    %5993 = vmatprep.subr.mxu0 %v3947
    %5994 = vmatpush1.msra.mxu0 %v3946
    %5995 = vmatprep.subr.mxu0 %v3943
    %5996 = vmatpush1.msra.mxu0 %v3942
    %5997 = vmatprep.subr.mxu0 %v3939
    %5998 = vmatpush1.msra.mxu0 %v3938
    %5999 = vmatprep.subr.mxu0 %v3935
    %6000 = vmatpush1.msra.mxu0 %v3934
    %6001 = vmatprep.subr.mxu0 %v3931
    %6002 = vmatpush1.msra.mxu0 %v3930
    %6003 = vmatprep.subr.mxu0 %v3927
    %6004 = vmatpush1.msra.mxu0 %v3926
    %6005 = vmatprep.subr.mxu0 %v3923
    %6006 = vmatpush1.msra.mxu0 %v3922
    %6007 = vmatprep.subr.mxu0 %v3919
    %6008 = vmatpush1.msra.mxu0 %v3918
    %6009 = vmatprep.subr.mxu0 %v3915
    %6010 = vmatpush1.msra.mxu0 %v3914
    %6011 = vmatprep.subr.mxu0 %v3911
    %6012 = vmatpush1.msra.mxu0 %v3910
    %6013 = vmatprep.subr.mxu0 %v3907
    %6014 = vmatpush1.msra.mxu0 %v3906
    %6015 = vmatprep.subr.mxu0 %v3903
    %6016 = vmatpush1.msra.mxu0 %v3902
    %6017 = vmatprep.subr.mxu0 %v3899
    %6018 = vmatpush1.msra.mxu0 %v3898
    %6019 = vmatprep.subr.mxu0 0.0
    %6020 = vmatpush2.msra.mxu0 0.0
    %6021 = vmatprep.subr.mxu0 0.0
    %6022 = vmatpush2.msra.mxu0 0.0
    %6023 = vmatprep.subr.mxu0 0.0
    %6024 = vmatpush2.msra.mxu0 0.0
    %6025 = vmatprep.subr.mxu0 0.0
    %6026 = vmatpush2.msra.mxu0 0.0
    %6027 = vmatprep.subr.mxu0 0.0
    %6028 = vmatpush2.msra.mxu0 0.0
    %6029 = vmatprep.subr.mxu0 0.0
    %6030 = vmatpush2.msra.mxu0 0.0
    %6031 = vmatprep.subr.mxu0 0.0
    %6032 = vmatpush2.msra.mxu0 0.0
    %6033 = vmatprep.subr.mxu0 0.0
    %6034 = vmatpush2.msra.mxu0 0.0
    %6035 = vmatprep.subr.mxu0 0.0
    %6036 = vmatpush2.msra.mxu0 0.0
    %6037 = vmatprep.subr.mxu0 0.0
    %6038 = vmatpush2.msra.mxu0 0.0
    %6039 = vmatprep.subr.mxu0 0.0
    %6040 = vmatpush2.msra.mxu0 0.0
    %6041 = vmatprep.subr.mxu0 0.0
    %6042 = vmatpush2.msra.mxu0 0.0
    %6043 = vmatprep.subr.mxu0 0.0
    %6044 = vmatpush2.msra.mxu0 0.0
    %6045 = vmatprep.subr.mxu0 0.0
    %6046 = vmatpush2.msra.mxu0 0.0
    %6047 = vmatprep.subr.mxu0 0.0
    %6048 = vmatpush2.msra.mxu0 0.0
    %6049 = vmatprep.subr.mxu0 0.0
    %6050 = vmatpush2.msra.mxu0 0.0
    %6051 = vmatprep.mubr.f32.mxu0 0.0
    %6052 = vmatmul.mubr.f32.gmra.mxu0 %v5816
    %v6053 = vpop.f32.mrf.mxu0
    %v6054 = vadd.f32 0.0, %v6053
    %v6055 = vpop.f32.mrf.mxu0
    %v6056 = vadd.f32 0.0, %v6055
    %6057 = vdwg.mxu0
    %6058 = vmatprep.subr.mxu0 %v3961
    %6059 = vmatpush1.msra.mxu0 %v3960
    %6060 = vmatprep.subr.mxu0 %v3957
    %6061 = vmatpush1.msra.mxu0 %v3956
    %6062 = vmatprep.subr.mxu0 %v3953
    %6063 = vmatpush1.msra.mxu0 %v3952
    %6064 = vmatprep.subr.mxu0 %v3949
    %6065 = vmatpush1.msra.mxu0 %v3948
    %6066 = vmatprep.subr.mxu0 %v3945
    %6067 = vmatpush1.msra.mxu0 %v3944
    %6068 = vmatprep.subr.mxu0 %v3941
    %6069 = vmatpush1.msra.mxu0 %v3940
    %6070 = vmatprep.subr.mxu0 %v3937
    %6071 = vmatpush1.msra.mxu0 %v3936
    %6072 = vmatprep.subr.mxu0 %v3933
    %6073 = vmatpush1.msra.mxu0 %v3932
    %6074 = vmatprep.subr.mxu0 %v3929
    %6075 = vmatpush1.msra.mxu0 %v3928
    %6076 = vmatprep.subr.mxu0 %v3925
    %6077 = vmatpush1.msra.mxu0 %v3924
    %6078 = vmatprep.subr.mxu0 %v3921
    %6079 = vmatpush1.msra.mxu0 %v3920
    %6080 = vmatprep.subr.mxu0 %v3917
    %6081 = vmatpush1.msra.mxu0 %v3916
    %6082 = vmatprep.subr.mxu0 %v3913
    %6083 = vmatpush1.msra.mxu0 %v3912
    %6084 = vmatprep.subr.mxu0 %v3909
    %6085 = vmatpush1.msra.mxu0 %v3908
    %6086 = vmatprep.subr.mxu0 %v3905
    %6087 = vmatpush1.msra.mxu0 %v3904
    %6088 = vmatprep.subr.mxu0 %v3901
    %6089 = vmatpush1.msra.mxu0 %v3900
    %6090 = vmatprep.subr.mxu0 0.0
    %6091 = vmatpush2.msra.mxu0 0.0
    %6092 = vmatprep.subr.mxu0 0.0
    %6093 = vmatpush2.msra.mxu0 0.0
    %6094 = vmatprep.subr.mxu0 0.0
    %6095 = vmatpush2.msra.mxu0 0.0
    %6096 = vmatprep.subr.mxu0 0.0
    %6097 = vmatpush2.msra.mxu0 0.0
    %6098 = vmatprep.subr.mxu0 0.0
    %6099 = vmatpush2.msra.mxu0 0.0
    %6100 = vmatprep.subr.mxu0 0.0
    %6101 = vmatpush2.msra.mxu0 0.0
    %6102 = vmatprep.subr.mxu0 0.0
    %6103 = vmatpush2.msra.mxu0 0.0
    %6104 = vmatprep.subr.mxu0 0.0
    %6105 = vmatpush2.msra.mxu0 0.0
    %6106 = vmatprep.subr.mxu0 0.0
    %6107 = vmatpush2.msra.mxu0 0.0
    %6108 = vmatprep.subr.mxu0 0.0
    %6109 = vmatpush2.msra.mxu0 0.0
    %6110 = vmatprep.subr.mxu0 0.0
    %6111 = vmatpush2.msra.mxu0 0.0
    %6112 = vmatprep.subr.mxu0 0.0
    %6113 = vmatpush2.msra.mxu0 0.0
    %6114 = vmatprep.subr.mxu0 0.0
    %6115 = vmatpush2.msra.mxu0 0.0
    %6116 = vmatprep.subr.mxu0 0.0
    %6117 = vmatpush2.msra.mxu0 0.0
    %6118 = vmatprep.subr.mxu0 0.0
    %6119 = vmatpush2.msra.mxu0 0.0
    %6120 = vmatprep.subr.mxu0 0.0
    %6121 = vmatpush2.msra.mxu0 0.0
    %6122 = vmatprep.mubr.f32.mxu0 0.0
    %6123 = vmatmul.mubr.f32.gmra.mxu0 %v5816
    %v6124 = vpop.f32.mrf.mxu0
    %v6125 = vadd.f32 0.0, %v6124
    %v6126 = vpop.f32.mrf.mxu0
    %v6127 = vadd.f32 0.0, %v6126
    %6128 = vdwg.mxu0
    %v6129 = vadd.f32 %v4316, %v6054
    %v6130 = vadd.f32 %v4318, %v6056
    %v6131 = vadd.f32 %v4429, %v6125
    %v6132 = vadd.f32 %v4431, %v6127
    %v6133 = vxor.u32 %v6129, 2147483648
    %v6134 = vmul.f32 %v6133, 1.442695
    %v6135 = vpow.pop %v6134
    %v6136 = vadd.f32 %v6135, 1.0
    %v6137 = vrcp.pop %v6136
    %v6138 = vmul.f32 1.0, %v6137
    %v6139 = vxor.u32 %v6130, 2147483648
    %v6140 = vmul.f32 %v6139, 1.442695
    %v6141 = vpow.pop %v6140
    %v6142 = vadd.f32 %v6141, 1.0
    %v6143 = vrcp.pop %v6142
    %v6144 = vmul.f32 1.0, %v6143
    %v6145 = vtanh.pop %v6131
    %v6146 = vxor.u32 %v6132, 2147483648
    %v6147 = vmul.f32 %v6146, 1.442695
    %v6148 = vpow.pop %v6147
    %v6149 = vadd.f32 %v6148, 1.0
    %v6150 = vrcp.pop %v6149
    %v6151 = vmul.f32 1.0, %v6150
    %v6152 = vmul.f32 %v6144, %v5814
    %v6153 = vmul.f32 %v6138, %v6145
    %v6154 = vadd.f32 %v6152, %v6153
    %v6155 = vtanh.pop %v6154
    %v6156 = vmul.f32 %v6151, %v6155
    %6157 = vmatprep.subr.mxu0 %v3766
    %6158 = vmatpush1.msra.mxu0 %v3765
    %6159 = vmatprep.subr.mxu0 %v3762
    %6160 = vmatpush1.msra.mxu0 %v3761
    %6161 = vmatprep.subr.mxu0 %v3758
    %6162 = vmatpush1.msra.mxu0 %v3757
    %6163 = vmatprep.subr.mxu0 %v3754
    %6164 = vmatpush1.msra.mxu0 %v3753
    %6165 = vmatprep.subr.mxu0 %v3750
    %6166 = vmatpush1.msra.mxu0 %v3749
    %6167 = vmatprep.subr.mxu0 %v3746
    %6168 = vmatpush1.msra.mxu0 %v3745
    %6169 = vmatprep.subr.mxu0 %v3742
    %6170 = vmatpush1.msra.mxu0 %v3741
    %6171 = vmatprep.subr.mxu0 %v3738
    %6172 = vmatpush1.msra.mxu0 %v3737
    %6173 = vmatprep.subr.mxu0 %v3734
    %6174 = vmatpush1.msra.mxu0 %v3733
    %6175 = vmatprep.subr.mxu0 %v3730
    %6176 = vmatpush1.msra.mxu0 %v3729
    %6177 = vmatprep.subr.mxu0 %v3726
    %6178 = vmatpush1.msra.mxu0 %v3725
    %6179 = vmatprep.subr.mxu0 %v3722
    %6180 = vmatpush1.msra.mxu0 %v3721
    %6181 = vmatprep.subr.mxu0 %v3718
    %6182 = vmatpush1.msra.mxu0 %v3717
    %6183 = vmatprep.subr.mxu0 %v3714
    %6184 = vmatpush1.msra.mxu0 %v3713
    %6185 = vmatprep.subr.mxu0 %v3710
    %6186 = vmatpush1.msra.mxu0 %v3709
    %6187 = vmatprep.subr.mxu0 %v3706
    %6188 = vmatpush1.msra.mxu0 %v3705
    %6189 = vmatprep.subr.mxu0 0.0
    %6190 = vmatpush2.msra.mxu0 0.0
    %6191 = vmatprep.subr.mxu0 0.0
    %6192 = vmatpush2.msra.mxu0 0.0
    %6193 = vmatprep.subr.mxu0 0.0
    %6194 = vmatpush2.msra.mxu0 0.0
    %6195 = vmatprep.subr.mxu0 0.0
    %6196 = vmatpush2.msra.mxu0 0.0
    %6197 = vmatprep.subr.mxu0 0.0
    %6198 = vmatpush2.msra.mxu0 0.0
    %6199 = vmatprep.subr.mxu0 0.0
    %6200 = vmatpush2.msra.mxu0 0.0
    %6201 = vmatprep.subr.mxu0 0.0
    %6202 = vmatpush2.msra.mxu0 0.0
    %6203 = vmatprep.subr.mxu0 0.0
    %6204 = vmatpush2.msra.mxu0 0.0
    %6205 = vmatprep.subr.mxu0 0.0
    %6206 = vmatpush2.msra.mxu0 0.0
    %6207 = vmatprep.subr.mxu0 0.0
    %6208 = vmatpush2.msra.mxu0 0.0
    %6209 = vmatprep.subr.mxu0 0.0
    %6210 = vmatpush2.msra.mxu0 0.0
    %6211 = vmatprep.subr.mxu0 0.0
    %6212 = vmatpush2.msra.mxu0 0.0
    %6213 = vmatprep.subr.mxu0 0.0
    %6214 = vmatpush2.msra.mxu0 0.0
    %6215 = vmatprep.subr.mxu0 0.0
    %6216 = vmatpush2.msra.mxu0 0.0
    %6217 = vmatprep.subr.mxu0 0.0
    %6218 = vmatpush2.msra.mxu0 0.0
    %6219 = vmatprep.subr.mxu0 0.0
    %6220 = vmatpush2.msra.mxu0 0.0
    %6221 = vmatprep.mubr.f32.mxu0 0.0
    %6222 = vmatmul.mubr.f32.gmra.mxu0 %v5986
    %v6223 = vpop.f32.mrf.mxu0
    %v6224 = vadd.f32 0.0, %v6223
    %v6225 = vpop.f32.mrf.mxu0
    %v6226 = vadd.f32 0.0, %v6225
    %6227 = vdwg.mxu0
    %6228 = vmatprep.subr.mxu0 %v3768
    %6229 = vmatpush1.msra.mxu0 %v3767
    %6230 = vmatprep.subr.mxu0 %v3764
    %6231 = vmatpush1.msra.mxu0 %v3763
    %6232 = vmatprep.subr.mxu0 %v3760
    %6233 = vmatpush1.msra.mxu0 %v3759
    %6234 = vmatprep.subr.mxu0 %v3756
    %6235 = vmatpush1.msra.mxu0 %v3755
    %6236 = vmatprep.subr.mxu0 %v3752
    %6237 = vmatpush1.msra.mxu0 %v3751
    %6238 = vmatprep.subr.mxu0 %v3748
    %6239 = vmatpush1.msra.mxu0 %v3747
    %6240 = vmatprep.subr.mxu0 %v3744
    %6241 = vmatpush1.msra.mxu0 %v3743
    %6242 = vmatprep.subr.mxu0 %v3740
    %6243 = vmatpush1.msra.mxu0 %v3739
    %6244 = vmatprep.subr.mxu0 %v3736
    %6245 = vmatpush1.msra.mxu0 %v3735
    %6246 = vmatprep.subr.mxu0 %v3732
    %6247 = vmatpush1.msra.mxu0 %v3731
    %6248 = vmatprep.subr.mxu0 %v3728
    %6249 = vmatpush1.msra.mxu0 %v3727
    %6250 = vmatprep.subr.mxu0 %v3724
    %6251 = vmatpush1.msra.mxu0 %v3723
    %6252 = vmatprep.subr.mxu0 %v3720
    %6253 = vmatpush1.msra.mxu0 %v3719
    %6254 = vmatprep.subr.mxu0 %v3716
    %6255 = vmatpush1.msra.mxu0 %v3715
    %6256 = vmatprep.subr.mxu0 %v3712
    %6257 = vmatpush1.msra.mxu0 %v3711
    %6258 = vmatprep.subr.mxu0 %v3708
    %6259 = vmatpush1.msra.mxu0 %v3707
    %6260 = vmatprep.subr.mxu0 0.0
    %6261 = vmatpush2.msra.mxu0 0.0
    %6262 = vmatprep.subr.mxu0 0.0
    %6263 = vmatpush2.msra.mxu0 0.0
    %6264 = vmatprep.subr.mxu0 0.0
    %6265 = vmatpush2.msra.mxu0 0.0
    %6266 = vmatprep.subr.mxu0 0.0
    %6267 = vmatpush2.msra.mxu0 0.0
    %6268 = vmatprep.subr.mxu0 0.0
    %6269 = vmatpush2.msra.mxu0 0.0
    %6270 = vmatprep.subr.mxu0 0.0
    %6271 = vmatpush2.msra.mxu0 0.0
    %6272 = vmatprep.subr.mxu0 0.0
    %6273 = vmatpush2.msra.mxu0 0.0
    %6274 = vmatprep.subr.mxu0 0.0
    %6275 = vmatpush2.msra.mxu0 0.0
    %6276 = vmatprep.subr.mxu0 0.0
    %6277 = vmatpush2.msra.mxu0 0.0
    %6278 = vmatprep.subr.mxu0 0.0
    %6279 = vmatpush2.msra.mxu0 0.0
    %6280 = vmatprep.subr.mxu0 0.0
    %6281 = vmatpush2.msra.mxu0 0.0
    %6282 = vmatprep.subr.mxu0 0.0
    %6283 = vmatpush2.msra.mxu0 0.0
    %6284 = vmatprep.subr.mxu0 0.0
    %6285 = vmatpush2.msra.mxu0 0.0
    %6286 = vmatprep.subr.mxu0 0.0
    %6287 = vmatpush2.msra.mxu0 0.0
    %6288 = vmatprep.subr.mxu0 0.0
    %6289 = vmatpush2.msra.mxu0 0.0
    %6290 = vmatprep.subr.mxu0 0.0
    %6291 = vmatpush2.msra.mxu0 0.0
    %6292 = vmatprep.mubr.f32.mxu0 0.0
    %6293 = vmatmul.mubr.f32.gmra.mxu0 %v5986
    %v6294 = vpop.f32.mrf.mxu0
    %v6295 = vadd.f32 0.0, %v6294
    %v6296 = vpop.f32.mrf.mxu0
    %v6297 = vadd.f32 0.0, %v6296
    %6298 = vdwg.mxu0
    %v6299 = vadd.f32 %v4081, %v6224
    %v6300 = vadd.f32 %v4083, %v6226
    %v6301 = vadd.f32 %v4194, %v6295
    %v6302 = vadd.f32 %v4196, %v6297
    %v6303 = vxor.u32 %v6299, 2147483648
    %v6304 = vmul.f32 %v6303, 1.442695
    %v6305 = vpow.pop %v6304
    %v6306 = vadd.f32 %v6305, 1.0
    %v6307 = vrcp.pop %v6306
    %v6308 = vmul.f32 1.0, %v6307
    %v6309 = vxor.u32 %v6300, 2147483648
    %v6310 = vmul.f32 %v6309, 1.442695
    %v6311 = vpow.pop %v6310
    %v6312 = vadd.f32 %v6311, 1.0
    %v6313 = vrcp.pop %v6312
    %v6314 = vmul.f32 1.0, %v6313
    %v6315 = vtanh.pop %v6301
    %v6316 = vxor.u32 %v6302, 2147483648
    %v6317 = vmul.f32 %v6316, 1.442695
    %v6318 = vpow.pop %v6317
    %v6319 = vadd.f32 %v6318, 1.0
    %v6320 = vrcp.pop %v6319
    %v6321 = vmul.f32 1.0, %v6320
    %v6322 = vmul.f32 %v6314, %v5984
    %v6323 = vmul.f32 %v6308, %v6315
    %v6324 = vadd.f32 %v6322, %v6323
    %v6325 = vtanh.pop %v6324
    %v6326 = vmul.f32 %v6321, %v6325
    %6327 = vmatprep.subr.mxu0 %v3959
    %6328 = vmatpush1.msra.mxu0 %v3958
    %6329 = vmatprep.subr.mxu0 %v3955
    %6330 = vmatpush1.msra.mxu0 %v3954
    %6331 = vmatprep.subr.mxu0 %v3951
    %6332 = vmatpush1.msra.mxu0 %v3950
    %6333 = vmatprep.subr.mxu0 %v3947
    %6334 = vmatpush1.msra.mxu0 %v3946
    %6335 = vmatprep.subr.mxu0 %v3943
    %6336 = vmatpush1.msra.mxu0 %v3942
    %6337 = vmatprep.subr.mxu0 %v3939
    %6338 = vmatpush1.msra.mxu0 %v3938
    %6339 = vmatprep.subr.mxu0 %v3935
    %6340 = vmatpush1.msra.mxu0 %v3934
    %6341 = vmatprep.subr.mxu0 %v3931
    %6342 = vmatpush1.msra.mxu0 %v3930
    %6343 = vmatprep.subr.mxu0 %v3927
    %6344 = vmatpush1.msra.mxu0 %v3926
    %6345 = vmatprep.subr.mxu0 %v3923
    %6346 = vmatpush1.msra.mxu0 %v3922
    %6347 = vmatprep.subr.mxu0 %v3919
    %6348 = vmatpush1.msra.mxu0 %v3918
    %6349 = vmatprep.subr.mxu0 %v3915
    %6350 = vmatpush1.msra.mxu0 %v3914
    %6351 = vmatprep.subr.mxu0 %v3911
    %6352 = vmatpush1.msra.mxu0 %v3910
    %6353 = vmatprep.subr.mxu0 %v3907
    %6354 = vmatpush1.msra.mxu0 %v3906
    %6355 = vmatprep.subr.mxu0 %v3903
    %6356 = vmatpush1.msra.mxu0 %v3902
    %6357 = vmatprep.subr.mxu0 %v3899
    %6358 = vmatpush1.msra.mxu0 %v3898
    %6359 = vmatprep.subr.mxu0 0.0
    %6360 = vmatpush2.msra.mxu0 0.0
    %6361 = vmatprep.subr.mxu0 0.0
    %6362 = vmatpush2.msra.mxu0 0.0
    %6363 = vmatprep.subr.mxu0 0.0
    %6364 = vmatpush2.msra.mxu0 0.0
    %6365 = vmatprep.subr.mxu0 0.0
    %6366 = vmatpush2.msra.mxu0 0.0
    %6367 = vmatprep.subr.mxu0 0.0
    %6368 = vmatpush2.msra.mxu0 0.0
    %6369 = vmatprep.subr.mxu0 0.0
    %6370 = vmatpush2.msra.mxu0 0.0
    %6371 = vmatprep.subr.mxu0 0.0
    %6372 = vmatpush2.msra.mxu0 0.0
    %6373 = vmatprep.subr.mxu0 0.0
    %6374 = vmatpush2.msra.mxu0 0.0
    %6375 = vmatprep.subr.mxu0 0.0
    %6376 = vmatpush2.msra.mxu0 0.0
    %6377 = vmatprep.subr.mxu0 0.0
    %6378 = vmatpush2.msra.mxu0 0.0
    %6379 = vmatprep.subr.mxu0 0.0
    %6380 = vmatpush2.msra.mxu0 0.0
    %6381 = vmatprep.subr.mxu0 0.0
    %6382 = vmatpush2.msra.mxu0 0.0
    %6383 = vmatprep.subr.mxu0 0.0
    %6384 = vmatpush2.msra.mxu0 0.0
    %6385 = vmatprep.subr.mxu0 0.0
    %6386 = vmatpush2.msra.mxu0 0.0
    %6387 = vmatprep.subr.mxu0 0.0
    %6388 = vmatpush2.msra.mxu0 0.0
    %6389 = vmatprep.subr.mxu0 0.0
    %6390 = vmatpush2.msra.mxu0 0.0
    %6391 = vmatprep.mubr.f32.mxu0 0.0
    %6392 = vmatmul.mubr.f32.gmra.mxu0 %v6156
    %v6393 = vpop.f32.mrf.mxu0
    %v6394 = vadd.f32 0.0, %v6393
    %v6395 = vpop.f32.mrf.mxu0
    %v6396 = vadd.f32 0.0, %v6395
    %6397 = vdwg.mxu0
    %6398 = vmatprep.subr.mxu0 %v3961
    %6399 = vmatpush1.msra.mxu0 %v3960
    %6400 = vmatprep.subr.mxu0 %v3957
    %6401 = vmatpush1.msra.mxu0 %v3956
    %6402 = vmatprep.subr.mxu0 %v3953
    %6403 = vmatpush1.msra.mxu0 %v3952
    %6404 = vmatprep.subr.mxu0 %v3949
    %6405 = vmatpush1.msra.mxu0 %v3948
    %6406 = vmatprep.subr.mxu0 %v3945
    %6407 = vmatpush1.msra.mxu0 %v3944
    %6408 = vmatprep.subr.mxu0 %v3941
    %6409 = vmatpush1.msra.mxu0 %v3940
    %6410 = vmatprep.subr.mxu0 %v3937
    %6411 = vmatpush1.msra.mxu0 %v3936
    %6412 = vmatprep.subr.mxu0 %v3933
    %6413 = vmatpush1.msra.mxu0 %v3932
    %6414 = vmatprep.subr.mxu0 %v3929
    %6415 = vmatpush1.msra.mxu0 %v3928
    %6416 = vmatprep.subr.mxu0 %v3925
    %6417 = vmatpush1.msra.mxu0 %v3924
    %6418 = vmatprep.subr.mxu0 %v3921
    %6419 = vmatpush1.msra.mxu0 %v3920
    %6420 = vmatprep.subr.mxu0 %v3917
    %6421 = vmatpush1.msra.mxu0 %v3916
    %6422 = vmatprep.subr.mxu0 %v3913
    %6423 = vmatpush1.msra.mxu0 %v3912
    %6424 = vmatprep.subr.mxu0 %v3909
    %6425 = vmatpush1.msra.mxu0 %v3908
    %6426 = vmatprep.subr.mxu0 %v3905
    %6427 = vmatpush1.msra.mxu0 %v3904
    %6428 = vmatprep.subr.mxu0 %v3901
    %6429 = vmatpush1.msra.mxu0 %v3900
    %6430 = vmatprep.subr.mxu0 0.0
    %6431 = vmatpush2.msra.mxu0 0.0
    %6432 = vmatprep.subr.mxu0 0.0
    %6433 = vmatpush2.msra.mxu0 0.0
    %6434 = vmatprep.subr.mxu0 0.0
    %6435 = vmatpush2.msra.mxu0 0.0
    %6436 = vmatprep.subr.mxu0 0.0
    %6437 = vmatpush2.msra.mxu0 0.0
    %6438 = vmatprep.subr.mxu0 0.0
    %6439 = vmatpush2.msra.mxu0 0.0
    %6440 = vmatprep.subr.mxu0 0.0
    %6441 = vmatpush2.msra.mxu0 0.0
    %6442 = vmatprep.subr.mxu0 0.0
    %6443 = vmatpush2.msra.mxu0 0.0
    %6444 = vmatprep.subr.mxu0 0.0
    %6445 = vmatpush2.msra.mxu0 0.0
    %6446 = vmatprep.subr.mxu0 0.0
    %6447 = vmatpush2.msra.mxu0 0.0
    %6448 = vmatprep.subr.mxu0 0.0
    %6449 = vmatpush2.msra.mxu0 0.0
    %6450 = vmatprep.subr.mxu0 0.0
    %6451 = vmatpush2.msra.mxu0 0.0
    %6452 = vmatprep.subr.mxu0 0.0
    %6453 = vmatpush2.msra.mxu0 0.0
    %6454 = vmatprep.subr.mxu0 0.0
    %6455 = vmatpush2.msra.mxu0 0.0
    %6456 = vmatprep.subr.mxu0 0.0
    %6457 = vmatpush2.msra.mxu0 0.0
    %6458 = vmatprep.subr.mxu0 0.0
    %6459 = vmatpush2.msra.mxu0 0.0
    %6460 = vmatprep.subr.mxu0 0.0
    %6461 = vmatpush2.msra.mxu0 0.0
    %6462 = vmatprep.mubr.f32.mxu0 0.0
    %6463 = vmatmul.mubr.f32.gmra.mxu0 %v6156
    %v6464 = vpop.f32.mrf.mxu0
    %v6465 = vadd.f32 0.0, %v6464
    %v6466 = vpop.f32.mrf.mxu0
    %v6467 = vadd.f32 0.0, %v6466
    %6468 = vdwg.mxu0
    %v6469 = vadd.f32 %v4310, %v6394
    %v6470 = vadd.f32 %v4312, %v6396
    %v6471 = vadd.f32 %v4423, %v6465
    %v6472 = vadd.f32 %v4425, %v6467
    %v6473 = vxor.u32 %v6469, 2147483648
    %v6474 = vmul.f32 %v6473, 1.442695
    %v6475 = vpow.pop %v6474
    %v6476 = vadd.f32 %v6475, 1.0
    %v6477 = vrcp.pop %v6476
    %v6478 = vmul.f32 1.0, %v6477
    %v6479 = vxor.u32 %v6470, 2147483648
    %v6480 = vmul.f32 %v6479, 1.442695
    %v6481 = vpow.pop %v6480
    %v6482 = vadd.f32 %v6481, 1.0
    %v6483 = vrcp.pop %v6482
    %v6484 = vmul.f32 1.0, %v6483
    %v6485 = vtanh.pop %v6471
    %v6486 = vxor.u32 %v6472, 2147483648
    %v6487 = vmul.f32 %v6486, 1.442695
    %v6488 = vpow.pop %v6487
    %v6489 = vadd.f32 %v6488, 1.0
    %v6490 = vrcp.pop %v6489
    %v6491 = vmul.f32 1.0, %v6490
    %v6492 = vmul.f32 %v6484, %v6154
    %v6493 = vmul.f32 %v6478, %v6485
    %v6494 = vadd.f32 %v6492, %v6493
    %v6495 = vtanh.pop %v6494
    %v6496 = vmul.f32 %v6491, %v6495
    %6497 = vmatprep.subr.mxu0 %v3766
    %6498 = vmatpush1.msra.mxu0 %v3765
    %6499 = vmatprep.subr.mxu0 %v3762
    %6500 = vmatpush1.msra.mxu0 %v3761
    %6501 = vmatprep.subr.mxu0 %v3758
    %6502 = vmatpush1.msra.mxu0 %v3757
    %6503 = vmatprep.subr.mxu0 %v3754
    %6504 = vmatpush1.msra.mxu0 %v3753
    %6505 = vmatprep.subr.mxu0 %v3750
    %6506 = vmatpush1.msra.mxu0 %v3749
    %6507 = vmatprep.subr.mxu0 %v3746
    %6508 = vmatpush1.msra.mxu0 %v3745
    %6509 = vmatprep.subr.mxu0 %v3742
    %6510 = vmatpush1.msra.mxu0 %v3741
    %6511 = vmatprep.subr.mxu0 %v3738
    %6512 = vmatpush1.msra.mxu0 %v3737
    %6513 = vmatprep.subr.mxu0 %v3734
    %6514 = vmatpush1.msra.mxu0 %v3733
    %6515 = vmatprep.subr.mxu0 %v3730
    %6516 = vmatpush1.msra.mxu0 %v3729
    %6517 = vmatprep.subr.mxu0 %v3726
    %6518 = vmatpush1.msra.mxu0 %v3725
    %6519 = vmatprep.subr.mxu0 %v3722
    %6520 = vmatpush1.msra.mxu0 %v3721
    %6521 = vmatprep.subr.mxu0 %v3718
    %6522 = vmatpush1.msra.mxu0 %v3717
    %6523 = vmatprep.subr.mxu0 %v3714
    %6524 = vmatpush1.msra.mxu0 %v3713
    %6525 = vmatprep.subr.mxu0 %v3710
    %6526 = vmatpush1.msra.mxu0 %v3709
    %6527 = vmatprep.subr.mxu0 %v3706
    %6528 = vmatpush1.msra.mxu0 %v3705
    %6529 = vmatprep.subr.mxu0 0.0
    %6530 = vmatpush2.msra.mxu0 0.0
    %6531 = vmatprep.subr.mxu0 0.0
    %6532 = vmatpush2.msra.mxu0 0.0
    %6533 = vmatprep.subr.mxu0 0.0
    %6534 = vmatpush2.msra.mxu0 0.0
    %6535 = vmatprep.subr.mxu0 0.0
    %6536 = vmatpush2.msra.mxu0 0.0
    %6537 = vmatprep.subr.mxu0 0.0
    %6538 = vmatpush2.msra.mxu0 0.0
    %6539 = vmatprep.subr.mxu0 0.0
    %6540 = vmatpush2.msra.mxu0 0.0
    %6541 = vmatprep.subr.mxu0 0.0
    %6542 = vmatpush2.msra.mxu0 0.0
    %6543 = vmatprep.subr.mxu0 0.0
    %6544 = vmatpush2.msra.mxu0 0.0
    %6545 = vmatprep.subr.mxu0 0.0
    %6546 = vmatpush2.msra.mxu0 0.0
    %6547 = vmatprep.subr.mxu0 0.0
    %6548 = vmatpush2.msra.mxu0 0.0
    %6549 = vmatprep.subr.mxu0 0.0
    %6550 = vmatpush2.msra.mxu0 0.0
    %6551 = vmatprep.subr.mxu0 0.0
    %6552 = vmatpush2.msra.mxu0 0.0
    %6553 = vmatprep.subr.mxu0 0.0
    %6554 = vmatpush2.msra.mxu0 0.0
    %6555 = vmatprep.subr.mxu0 0.0
    %6556 = vmatpush2.msra.mxu0 0.0
    %6557 = vmatprep.subr.mxu0 0.0
    %6558 = vmatpush2.msra.mxu0 0.0
    %6559 = vmatprep.subr.mxu0 0.0
    %6560 = vmatpush2.msra.mxu0 0.0
    %6561 = vmatprep.mubr.f32.mxu0 0.0
    %6562 = vmatmul.mubr.f32.gmra.mxu0 %v6326
    %v6563 = vpop.f32.mrf.mxu0
    %v6564 = vadd.f32 0.0, %v6563
    %v6565 = vpop.f32.mrf.mxu0
    %v6566 = vadd.f32 0.0, %v6565
    %6567 = vdwg.mxu0
    %6568 = vmatprep.subr.mxu0 %v3768
    %6569 = vmatpush1.msra.mxu0 %v3767
    %6570 = vmatprep.subr.mxu0 %v3764
    %6571 = vmatpush1.msra.mxu0 %v3763
    %6572 = vmatprep.subr.mxu0 %v3760
    %6573 = vmatpush1.msra.mxu0 %v3759
    %6574 = vmatprep.subr.mxu0 %v3756
    %6575 = vmatpush1.msra.mxu0 %v3755
    %6576 = vmatprep.subr.mxu0 %v3752
    %6577 = vmatpush1.msra.mxu0 %v3751
    %6578 = vmatprep.subr.mxu0 %v3748
    %6579 = vmatpush1.msra.mxu0 %v3747
    %6580 = vmatprep.subr.mxu0 %v3744
    %6581 = vmatpush1.msra.mxu0 %v3743
    %6582 = vmatprep.subr.mxu0 %v3740
    %6583 = vmatpush1.msra.mxu0 %v3739
    %6584 = vmatprep.subr.mxu0 %v3736
    %6585 = vmatpush1.msra.mxu0 %v3735
    %6586 = vmatprep.subr.mxu0 %v3732
    %6587 = vmatpush1.msra.mxu0 %v3731
    %6588 = vmatprep.subr.mxu0 %v3728
    %6589 = vmatpush1.msra.mxu0 %v3727
    %6590 = vmatprep.subr.mxu0 %v3724
    %6591 = vmatpush1.msra.mxu0 %v3723
    %6592 = vmatprep.subr.mxu0 %v3720
    %6593 = vmatpush1.msra.mxu0 %v3719
    %6594 = vmatprep.subr.mxu0 %v3716
    %6595 = vmatpush1.msra.mxu0 %v3715
    %6596 = vmatprep.subr.mxu0 %v3712
    %6597 = vmatpush1.msra.mxu0 %v3711
    %6598 = vmatprep.subr.mxu0 %v3708
    %6599 = vmatpush1.msra.mxu0 %v3707
    %6600 = vmatprep.subr.mxu0 0.0
    %6601 = vmatpush2.msra.mxu0 0.0
    %6602 = vmatprep.subr.mxu0 0.0
    %6603 = vmatpush2.msra.mxu0 0.0
    %6604 = vmatprep.subr.mxu0 0.0
    %6605 = vmatpush2.msra.mxu0 0.0
    %6606 = vmatprep.subr.mxu0 0.0
    %6607 = vmatpush2.msra.mxu0 0.0
    %6608 = vmatprep.subr.mxu0 0.0
    %6609 = vmatpush2.msra.mxu0 0.0
    %6610 = vmatprep.subr.mxu0 0.0
    %6611 = vmatpush2.msra.mxu0 0.0
    %6612 = vmatprep.subr.mxu0 0.0
    %6613 = vmatpush2.msra.mxu0 0.0
    %6614 = vmatprep.subr.mxu0 0.0
    %6615 = vmatpush2.msra.mxu0 0.0
    %6616 = vmatprep.subr.mxu0 0.0
    %6617 = vmatpush2.msra.mxu0 0.0
    %6618 = vmatprep.subr.mxu0 0.0
    %6619 = vmatpush2.msra.mxu0 0.0
    %6620 = vmatprep.subr.mxu0 0.0
    %6621 = vmatpush2.msra.mxu0 0.0
    %6622 = vmatprep.subr.mxu0 0.0
    %6623 = vmatpush2.msra.mxu0 0.0
    %6624 = vmatprep.subr.mxu0 0.0
    %6625 = vmatpush2.msra.mxu0 0.0
    %6626 = vmatprep.subr.mxu0 0.0
    %6627 = vmatpush2.msra.mxu0 0.0
    %6628 = vmatprep.subr.mxu0 0.0
    %6629 = vmatpush2.msra.mxu0 0.0
    %6630 = vmatprep.subr.mxu0 0.0
    %6631 = vmatpush2.msra.mxu0 0.0
    %6632 = vmatprep.mubr.f32.mxu0 0.0
    %6633 = vmatmul.mubr.f32.gmra.mxu0 %v6326
    %v6634 = vpop.f32.mrf.mxu0
    %v6635 = vadd.f32 0.0, %v6634
    %v6636 = vpop.f32.mrf.mxu0
    %v6637 = vadd.f32 0.0, %v6636
    %6638 = vdwg.mxu0
    %v6639 = vadd.f32 %v4087, %v6564
    %v6640 = vadd.f32 %v4089, %v6566
    %v6641 = vadd.f32 %v4200, %v6635
    %v6642 = vadd.f32 %v4202, %v6637
    %v6643 = vxor.u32 %v6639, 2147483648
    %v6644 = vmul.f32 %v6643, 1.442695
    %v6645 = vpow.pop %v6644
    %v6646 = vadd.f32 %v6645, 1.0
    %v6647 = vrcp.pop %v6646
    %v6648 = vmul.f32 1.0, %v6647
    %v6649 = vxor.u32 %v6640, 2147483648
    %v6650 = vmul.f32 %v6649, 1.442695
    %v6651 = vpow.pop %v6650
    %v6652 = vadd.f32 %v6651, 1.0
    %v6653 = vrcp.pop %v6652
    %v6654 = vmul.f32 1.0, %v6653
    %v6655 = vtanh.pop %v6641
    %v6656 = vxor.u32 %v6642, 2147483648
    %v6657 = vmul.f32 %v6656, 1.442695
    %v6658 = vpow.pop %v6657
    %v6659 = vadd.f32 %v6658, 1.0
    %v6660 = vrcp.pop %v6659
    %v6661 = vmul.f32 1.0, %v6660
    %v6662 = vmul.f32 %v6654, %v6324
    %v6663 = vmul.f32 %v6648, %v6655
    %v6664 = vadd.f32 %v6662, %v6663
    %v6665 = vtanh.pop %v6664
    %v6666 = vmul.f32 %v6661, %v6665
    %6667 = vmatprep.subr.mxu0 %v3959
    %6668 = vmatpush1.msra.mxu0 %v3958
    %6669 = vmatprep.subr.mxu0 %v3955
    %6670 = vmatpush1.msra.mxu0 %v3954
    %6671 = vmatprep.subr.mxu0 %v3951
    %6672 = vmatpush1.msra.mxu0 %v3950
    %6673 = vmatprep.subr.mxu0 %v3947
    %6674 = vmatpush1.msra.mxu0 %v3946
    %6675 = vmatprep.subr.mxu0 %v3943
    %6676 = vmatpush1.msra.mxu0 %v3942
    %6677 = vmatprep.subr.mxu0 %v3939
    %6678 = vmatpush1.msra.mxu0 %v3938
    %6679 = vmatprep.subr.mxu0 %v3935
    %6680 = vmatpush1.msra.mxu0 %v3934
    %6681 = vmatprep.subr.mxu0 %v3931
    %6682 = vmatpush1.msra.mxu0 %v3930
    %6683 = vmatprep.subr.mxu0 %v3927
    %6684 = vmatpush1.msra.mxu0 %v3926
    %6685 = vmatprep.subr.mxu0 %v3923
    %6686 = vmatpush1.msra.mxu0 %v3922
    %6687 = vmatprep.subr.mxu0 %v3919
    %6688 = vmatpush1.msra.mxu0 %v3918
    %6689 = vmatprep.subr.mxu0 %v3915
    %6690 = vmatpush1.msra.mxu0 %v3914
    %6691 = vmatprep.subr.mxu0 %v3911
    %6692 = vmatpush1.msra.mxu0 %v3910
    %6693 = vmatprep.subr.mxu0 %v3907
    %6694 = vmatpush1.msra.mxu0 %v3906
    %6695 = vmatprep.subr.mxu0 %v3903
    %6696 = vmatpush1.msra.mxu0 %v3902
    %6697 = vmatprep.subr.mxu0 %v3899
    %6698 = vmatpush1.msra.mxu0 %v3898
    %6699 = vmatprep.subr.mxu0 0.0
    %6700 = vmatpush2.msra.mxu0 0.0
    %6701 = vmatprep.subr.mxu0 0.0
    %6702 = vmatpush2.msra.mxu0 0.0
    %6703 = vmatprep.subr.mxu0 0.0
    %6704 = vmatpush2.msra.mxu0 0.0
    %6705 = vmatprep.subr.mxu0 0.0
    %6706 = vmatpush2.msra.mxu0 0.0
    %6707 = vmatprep.subr.mxu0 0.0
    %6708 = vmatpush2.msra.mxu0 0.0
    %6709 = vmatprep.subr.mxu0 0.0
    %6710 = vmatpush2.msra.mxu0 0.0
    %6711 = vmatprep.subr.mxu0 0.0
    %6712 = vmatpush2.msra.mxu0 0.0
    %6713 = vmatprep.subr.mxu0 0.0
    %6714 = vmatpush2.msra.mxu0 0.0
    %6715 = vmatprep.subr.mxu0 0.0
    %6716 = vmatpush2.msra.mxu0 0.0
    %6717 = vmatprep.subr.mxu0 0.0
    %6718 = vmatpush2.msra.mxu0 0.0
    %6719 = vmatprep.subr.mxu0 0.0
    %6720 = vmatpush2.msra.mxu0 0.0
    %6721 = vmatprep.subr.mxu0 0.0
    %6722 = vmatpush2.msra.mxu0 0.0
    %6723 = vmatprep.subr.mxu0 0.0
    %6724 = vmatpush2.msra.mxu0 0.0
    %6725 = vmatprep.subr.mxu0 0.0
    %6726 = vmatpush2.msra.mxu0 0.0
    %6727 = vmatprep.subr.mxu0 0.0
    %6728 = vmatpush2.msra.mxu0 0.0
    %6729 = vmatprep.subr.mxu0 0.0
    %6730 = vmatpush2.msra.mxu0 0.0
    %6731 = vmatprep.mubr.f32.mxu0 0.0
    %6732 = vmatmul.mubr.f32.gmra.mxu0 %v6496
    %v6733 = vpop.f32.mrf.mxu0
    %v6734 = vadd.f32 0.0, %v6733
    %v6735 = vpop.f32.mrf.mxu0
    %v6736 = vadd.f32 0.0, %v6735
    %6737 = vdwg.mxu0
    %6738 = vmatprep.subr.mxu0 %v3961
    %6739 = vmatpush1.msra.mxu0 %v3960
    %6740 = vmatprep.subr.mxu0 %v3957
    %6741 = vmatpush1.msra.mxu0 %v3956
    %6742 = vmatprep.subr.mxu0 %v3953
    %6743 = vmatpush1.msra.mxu0 %v3952
    %6744 = vmatprep.subr.mxu0 %v3949
    %6745 = vmatpush1.msra.mxu0 %v3948
    %6746 = vmatprep.subr.mxu0 %v3945
    %6747 = vmatpush1.msra.mxu0 %v3944
    %6748 = vmatprep.subr.mxu0 %v3941
    %6749 = vmatpush1.msra.mxu0 %v3940
    %6750 = vmatprep.subr.mxu0 %v3937
    %6751 = vmatpush1.msra.mxu0 %v3936
    %6752 = vmatprep.subr.mxu0 %v3933
    %6753 = vmatpush1.msra.mxu0 %v3932
    %6754 = vmatprep.subr.mxu0 %v3929
    %6755 = vmatpush1.msra.mxu0 %v3928
    %6756 = vmatprep.subr.mxu0 %v3925
    %6757 = vmatpush1.msra.mxu0 %v3924
    %6758 = vmatprep.subr.mxu0 %v3921
    %6759 = vmatpush1.msra.mxu0 %v3920
    %6760 = vmatprep.subr.mxu0 %v3917
    %6761 = vmatpush1.msra.mxu0 %v3916
    %6762 = vmatprep.subr.mxu0 %v3913
    %6763 = vmatpush1.msra.mxu0 %v3912
    %6764 = vmatprep.subr.mxu0 %v3909
    %6765 = vmatpush1.msra.mxu0 %v3908
    %6766 = vmatprep.subr.mxu0 %v3905
    %6767 = vmatpush1.msra.mxu0 %v3904
    %6768 = vmatprep.subr.mxu0 %v3901
    %6769 = vmatpush1.msra.mxu0 %v3900
    %6770 = vmatprep.subr.mxu0 0.0
    %6771 = vmatpush2.msra.mxu0 0.0
    %6772 = vmatprep.subr.mxu0 0.0
    %6773 = vmatpush2.msra.mxu0 0.0
    %6774 = vmatprep.subr.mxu0 0.0
    %6775 = vmatpush2.msra.mxu0 0.0
    %6776 = vmatprep.subr.mxu0 0.0
    %6777 = vmatpush2.msra.mxu0 0.0
    %6778 = vmatprep.subr.mxu0 0.0
    %6779 = vmatpush2.msra.mxu0 0.0
    %6780 = vmatprep.subr.mxu0 0.0
    %6781 = vmatpush2.msra.mxu0 0.0
    %6782 = vmatprep.subr.mxu0 0.0
    %6783 = vmatpush2.msra.mxu0 0.0
    %6784 = vmatprep.subr.mxu0 0.0
    %6785 = vmatpush2.msra.mxu0 0.0
    %6786 = vmatprep.subr.mxu0 0.0
    %6787 = vmatpush2.msra.mxu0 0.0
    %6788 = vmatprep.subr.mxu0 0.0
    %6789 = vmatpush2.msra.mxu0 0.0
    %6790 = vmatprep.subr.mxu0 0.0
    %6791 = vmatpush2.msra.mxu0 0.0
    %6792 = vmatprep.subr.mxu0 0.0
    %6793 = vmatpush2.msra.mxu0 0.0
    %6794 = vmatprep.subr.mxu0 0.0
    %6795 = vmatpush2.msra.mxu0 0.0
    %6796 = vmatprep.subr.mxu0 0.0
    %6797 = vmatpush2.msra.mxu0 0.0
    %6798 = vmatprep.subr.mxu0 0.0
    %6799 = vmatpush2.msra.mxu0 0.0
    %6800 = vmatprep.subr.mxu0 0.0
    %6801 = vmatpush2.msra.mxu0 0.0
    %6802 = vmatprep.mubr.f32.mxu0 0.0
    %6803 = vmatmul.mubr.f32.gmra.mxu0 %v6496
    %v6804 = vpop.f32.mrf.mxu0
    %v6805 = vadd.f32 0.0, %v6804
    %v6806 = vpop.f32.mrf.mxu0
    %v6807 = vadd.f32 0.0, %v6806
    %6808 = vdwg.mxu0
    %v6809 = vadd.f32 %v4304, %v6734
    %v6810 = vadd.f32 %v4306, %v6736
    %v6811 = vadd.f32 %v4417, %v6805
    %v6812 = vadd.f32 %v4419, %v6807
    %v6813 = vxor.u32 %v6809, 2147483648
    %v6814 = vmul.f32 %v6813, 1.442695
    %v6815 = vpow.pop %v6814
    %v6816 = vadd.f32 %v6815, 1.0
    %v6817 = vrcp.pop %v6816
    %v6818 = vmul.f32 1.0, %v6817
    %v6819 = vxor.u32 %v6810, 2147483648
    %v6820 = vmul.f32 %v6819, 1.442695
    %v6821 = vpow.pop %v6820
    %v6822 = vadd.f32 %v6821, 1.0
    %v6823 = vrcp.pop %v6822
    %v6824 = vmul.f32 1.0, %v6823
    %v6825 = vtanh.pop %v6811
    %v6826 = vxor.u32 %v6812, 2147483648
    %v6827 = vmul.f32 %v6826, 1.442695
    %v6828 = vpow.pop %v6827
    %v6829 = vadd.f32 %v6828, 1.0
    %v6830 = vrcp.pop %v6829
    %v6831 = vmul.f32 1.0, %v6830
    %v6832 = vmul.f32 %v6824, %v6494
    %v6833 = vmul.f32 %v6818, %v6825
    %v6834 = vadd.f32 %v6832, %v6833
    %v6835 = vtanh.pop %v6834
    %v6836 = vmul.f32 %v6831, %v6835
    %6837 = vmatprep.subr.mxu0 %v3766
    %6838 = vmatpush1.msra.mxu0 %v3765
    %6839 = vmatprep.subr.mxu0 %v3762
    %6840 = vmatpush1.msra.mxu0 %v3761
    %6841 = vmatprep.subr.mxu0 %v3758
    %6842 = vmatpush1.msra.mxu0 %v3757
    %6843 = vmatprep.subr.mxu0 %v3754
    %6844 = vmatpush1.msra.mxu0 %v3753
    %6845 = vmatprep.subr.mxu0 %v3750
    %6846 = vmatpush1.msra.mxu0 %v3749
    %6847 = vmatprep.subr.mxu0 %v3746
    %6848 = vmatpush1.msra.mxu0 %v3745
    %6849 = vmatprep.subr.mxu0 %v3742
    %6850 = vmatpush1.msra.mxu0 %v3741
    %6851 = vmatprep.subr.mxu0 %v3738
    %6852 = vmatpush1.msra.mxu0 %v3737
    %6853 = vmatprep.subr.mxu0 %v3734
    %6854 = vmatpush1.msra.mxu0 %v3733
    %6855 = vmatprep.subr.mxu0 %v3730
    %6856 = vmatpush1.msra.mxu0 %v3729
    %6857 = vmatprep.subr.mxu0 %v3726
    %6858 = vmatpush1.msra.mxu0 %v3725
    %6859 = vmatprep.subr.mxu0 %v3722
    %6860 = vmatpush1.msra.mxu0 %v3721
    %6861 = vmatprep.subr.mxu0 %v3718
    %6862 = vmatpush1.msra.mxu0 %v3717
    %6863 = vmatprep.subr.mxu0 %v3714
    %6864 = vmatpush1.msra.mxu0 %v3713
    %6865 = vmatprep.subr.mxu0 %v3710
    %6866 = vmatpush1.msra.mxu0 %v3709
    %6867 = vmatprep.subr.mxu0 %v3706
    %6868 = vmatpush1.msra.mxu0 %v3705
    %6869 = vmatprep.subr.mxu0 0.0
    %6870 = vmatpush2.msra.mxu0 0.0
    %6871 = vmatprep.subr.mxu0 0.0
    %6872 = vmatpush2.msra.mxu0 0.0
    %6873 = vmatprep.subr.mxu0 0.0
    %6874 = vmatpush2.msra.mxu0 0.0
    %6875 = vmatprep.subr.mxu0 0.0
    %6876 = vmatpush2.msra.mxu0 0.0
    %6877 = vmatprep.subr.mxu0 0.0
    %6878 = vmatpush2.msra.mxu0 0.0
    %6879 = vmatprep.subr.mxu0 0.0
    %6880 = vmatpush2.msra.mxu0 0.0
    %6881 = vmatprep.subr.mxu0 0.0
    %6882 = vmatpush2.msra.mxu0 0.0
    %6883 = vmatprep.subr.mxu0 0.0
    %6884 = vmatpush2.msra.mxu0 0.0
    %6885 = vmatprep.subr.mxu0 0.0
    %6886 = vmatpush2.msra.mxu0 0.0
    %6887 = vmatprep.subr.mxu0 0.0
    %6888 = vmatpush2.msra.mxu0 0.0
    %6889 = vmatprep.subr.mxu0 0.0
    %6890 = vmatpush2.msra.mxu0 0.0
    %6891 = vmatprep.subr.mxu0 0.0
    %6892 = vmatpush2.msra.mxu0 0.0
    %6893 = vmatprep.subr.mxu0 0.0
    %6894 = vmatpush2.msra.mxu0 0.0
    %6895 = vmatprep.subr.mxu0 0.0
    %6896 = vmatpush2.msra.mxu0 0.0
    %6897 = vmatprep.subr.mxu0 0.0
    %6898 = vmatpush2.msra.mxu0 0.0
    %6899 = vmatprep.subr.mxu0 0.0
    %6900 = vmatpush2.msra.mxu0 0.0
    %6901 = vmatprep.mubr.f32.mxu0 0.0
    %6902 = vmatmul.mubr.f32.gmra.mxu0 %v6666
    %v6903 = vpop.f32.mrf.mxu0
    %v6904 = vadd.f32 0.0, %v6903
    %v6905 = vpop.f32.mrf.mxu0
    %v6906 = vadd.f32 0.0, %v6905
    %6907 = vdwg.mxu0
    %6908 = vmatprep.subr.mxu0 %v3768
    %6909 = vmatpush1.msra.mxu0 %v3767
    %6910 = vmatprep.subr.mxu0 %v3764
    %6911 = vmatpush1.msra.mxu0 %v3763
    %6912 = vmatprep.subr.mxu0 %v3760
    %6913 = vmatpush1.msra.mxu0 %v3759
    %6914 = vmatprep.subr.mxu0 %v3756
    %6915 = vmatpush1.msra.mxu0 %v3755
    %6916 = vmatprep.subr.mxu0 %v3752
    %6917 = vmatpush1.msra.mxu0 %v3751
    %6918 = vmatprep.subr.mxu0 %v3748
    %6919 = vmatpush1.msra.mxu0 %v3747
    %6920 = vmatprep.subr.mxu0 %v3744
    %6921 = vmatpush1.msra.mxu0 %v3743
    %6922 = vmatprep.subr.mxu0 %v3740
    %6923 = vmatpush1.msra.mxu0 %v3739
    %6924 = vmatprep.subr.mxu0 %v3736
    %6925 = vmatpush1.msra.mxu0 %v3735
    %6926 = vmatprep.subr.mxu0 %v3732
    %6927 = vmatpush1.msra.mxu0 %v3731
    %6928 = vmatprep.subr.mxu0 %v3728
    %6929 = vmatpush1.msra.mxu0 %v3727
    %6930 = vmatprep.subr.mxu0 %v3724
    %6931 = vmatpush1.msra.mxu0 %v3723
    %6932 = vmatprep.subr.mxu0 %v3720
    %6933 = vmatpush1.msra.mxu0 %v3719
    %6934 = vmatprep.subr.mxu0 %v3716
    %6935 = vmatpush1.msra.mxu0 %v3715
    %6936 = vmatprep.subr.mxu0 %v3712
    %6937 = vmatpush1.msra.mxu0 %v3711
    %6938 = vmatprep.subr.mxu0 %v3708
    %6939 = vmatpush1.msra.mxu0 %v3707
    %6940 = vmatprep.subr.mxu0 0.0
    %6941 = vmatpush2.msra.mxu0 0.0
    %6942 = vmatprep.subr.mxu0 0.0
    %6943 = vmatpush2.msra.mxu0 0.0
    %6944 = vmatprep.subr.mxu0 0.0
    %6945 = vmatpush2.msra.mxu0 0.0
    %6946 = vmatprep.subr.mxu0 0.0
    %6947 = vmatpush2.msra.mxu0 0.0
    %6948 = vmatprep.subr.mxu0 0.0
    %6949 = vmatpush2.msra.mxu0 0.0
    %6950 = vmatprep.subr.mxu0 0.0
    %6951 = vmatpush2.msra.mxu0 0.0
    %6952 = vmatprep.subr.mxu0 0.0
    %6953 = vmatpush2.msra.mxu0 0.0
    %6954 = vmatprep.subr.mxu0 0.0
    %6955 = vmatpush2.msra.mxu0 0.0
    %6956 = vmatprep.subr.mxu0 0.0
    %6957 = vmatpush2.msra.mxu0 0.0
    %6958 = vmatprep.subr.mxu0 0.0
    %6959 = vmatpush2.msra.mxu0 0.0
    %6960 = vmatprep.subr.mxu0 0.0
    %6961 = vmatpush2.msra.mxu0 0.0
    %6962 = vmatprep.subr.mxu0 0.0
    %6963 = vmatpush2.msra.mxu0 0.0
    %6964 = vmatprep.subr.mxu0 0.0
    %6965 = vmatpush2.msra.mxu0 0.0
    %6966 = vmatprep.subr.mxu0 0.0
    %6967 = vmatpush2.msra.mxu0 0.0
    %6968 = vmatprep.subr.mxu0 0.0
    %6969 = vmatpush2.msra.mxu0 0.0
    %6970 = vmatprep.subr.mxu0 0.0
    %6971 = vmatpush2.msra.mxu0 0.0
    %6972 = vmatprep.mubr.f32.mxu0 0.0
    %6973 = vmatmul.mubr.f32.gmra.mxu0 %v6666
    %v6974 = vpop.f32.mrf.mxu0
    %v6975 = vadd.f32 0.0, %v6974
    %v6976 = vpop.f32.mrf.mxu0
    %v6977 = vadd.f32 0.0, %v6976
    %6978 = vdwg.mxu0
    %v6979 = vadd.f32 %v4093, %v6904
    %v6980 = vadd.f32 %v4095, %v6906
    %v6981 = vadd.f32 %v4206, %v6975
    %v6982 = vadd.f32 %v4208, %v6977
    %v6983 = vxor.u32 %v6979, 2147483648
    %v6984 = vmul.f32 %v6983, 1.442695
    %v6985 = vpow.pop %v6984
    %v6986 = vadd.f32 %v6985, 1.0
    %v6987 = vrcp.pop %v6986
    %v6988 = vmul.f32 1.0, %v6987
    %v6989 = vxor.u32 %v6980, 2147483648
    %v6990 = vmul.f32 %v6989, 1.442695
    %v6991 = vpow.pop %v6990
    %v6992 = vadd.f32 %v6991, 1.0
    %v6993 = vrcp.pop %v6992
    %v6994 = vmul.f32 1.0, %v6993
    %v6995 = vtanh.pop %v6981
    %v6996 = vxor.u32 %v6982, 2147483648
    %v6997 = vmul.f32 %v6996, 1.442695
    %v6998 = vpow.pop %v6997
    %v6999 = vadd.f32 %v6998, 1.0
    %v7000 = vrcp.pop %v6999
    %v7001 = vmul.f32 1.0, %v7000
    %v7002 = vmul.f32 %v6994, %v6664
    %v7003 = vmul.f32 %v6988, %v6995
    %v7004 = vadd.f32 %v7002, %v7003
    %v7005 = vtanh.pop %v7004
    %v7006 = vmul.f32 %v7001, %v7005
    %7007 = vmatprep.subr.mxu0 %v3959
    %7008 = vmatpush1.msra.mxu0 %v3958
    %7009 = vmatprep.subr.mxu0 %v3955
    %7010 = vmatpush1.msra.mxu0 %v3954
    %7011 = vmatprep.subr.mxu0 %v3951
    %7012 = vmatpush1.msra.mxu0 %v3950
    %7013 = vmatprep.subr.mxu0 %v3947
    %7014 = vmatpush1.msra.mxu0 %v3946
    %7015 = vmatprep.subr.mxu0 %v3943
    %7016 = vmatpush1.msra.mxu0 %v3942
    %7017 = vmatprep.subr.mxu0 %v3939
    %7018 = vmatpush1.msra.mxu0 %v3938
    %7019 = vmatprep.subr.mxu0 %v3935
    %7020 = vmatpush1.msra.mxu0 %v3934
    %7021 = vmatprep.subr.mxu0 %v3931
    %7022 = vmatpush1.msra.mxu0 %v3930
    %7023 = vmatprep.subr.mxu0 %v3927
    %7024 = vmatpush1.msra.mxu0 %v3926
    %7025 = vmatprep.subr.mxu0 %v3923
    %7026 = vmatpush1.msra.mxu0 %v3922
    %7027 = vmatprep.subr.mxu0 %v3919
    %7028 = vmatpush1.msra.mxu0 %v3918
    %7029 = vmatprep.subr.mxu0 %v3915
    %7030 = vmatpush1.msra.mxu0 %v3914
    %7031 = vmatprep.subr.mxu0 %v3911
    %7032 = vmatpush1.msra.mxu0 %v3910
    %7033 = vmatprep.subr.mxu0 %v3907
    %7034 = vmatpush1.msra.mxu0 %v3906
    %7035 = vmatprep.subr.mxu0 %v3903
    %7036 = vmatpush1.msra.mxu0 %v3902
    %7037 = vmatprep.subr.mxu0 %v3899
    %7038 = vmatpush1.msra.mxu0 %v3898
    %7039 = vmatprep.subr.mxu0 0.0
    %7040 = vmatpush2.msra.mxu0 0.0
    %7041 = vmatprep.subr.mxu0 0.0
    %7042 = vmatpush2.msra.mxu0 0.0
    %7043 = vmatprep.subr.mxu0 0.0
    %7044 = vmatpush2.msra.mxu0 0.0
    %7045 = vmatprep.subr.mxu0 0.0
    %7046 = vmatpush2.msra.mxu0 0.0
    %7047 = vmatprep.subr.mxu0 0.0
    %7048 = vmatpush2.msra.mxu0 0.0
    %7049 = vmatprep.subr.mxu0 0.0
    %7050 = vmatpush2.msra.mxu0 0.0
    %7051 = vmatprep.subr.mxu0 0.0
    %7052 = vmatpush2.msra.mxu0 0.0
    %7053 = vmatprep.subr.mxu0 0.0
    %7054 = vmatpush2.msra.mxu0 0.0
    %7055 = vmatprep.subr.mxu0 0.0
    %7056 = vmatpush2.msra.mxu0 0.0
    %7057 = vmatprep.subr.mxu0 0.0
    %7058 = vmatpush2.msra.mxu0 0.0
    %7059 = vmatprep.subr.mxu0 0.0
    %7060 = vmatpush2.msra.mxu0 0.0
    %7061 = vmatprep.subr.mxu0 0.0
    %7062 = vmatpush2.msra.mxu0 0.0
    %7063 = vmatprep.subr.mxu0 0.0
    %7064 = vmatpush2.msra.mxu0 0.0
    %7065 = vmatprep.subr.mxu0 0.0
    %7066 = vmatpush2.msra.mxu0 0.0
    %7067 = vmatprep.subr.mxu0 0.0
    %7068 = vmatpush2.msra.mxu0 0.0
    %7069 = vmatprep.subr.mxu0 0.0
    %7070 = vmatpush2.msra.mxu0 0.0
    %7071 = vmatprep.mubr.f32.mxu0 0.0
    %7072 = vmatmul.mubr.f32.gmra.mxu0 %v6836
    %v7073 = vpop.f32.mrf.mxu0
    %v7074 = vadd.f32 0.0, %v7073
    %v7075 = vpop.f32.mrf.mxu0
    %v7076 = vadd.f32 0.0, %v7075
    %7077 = vdwg.mxu0
    %7078 = vmatprep.subr.mxu0 %v3961
    %7079 = vmatpush1.msra.mxu0 %v3960
    %7080 = vmatprep.subr.mxu0 %v3957
    %7081 = vmatpush1.msra.mxu0 %v3956
    %7082 = vmatprep.subr.mxu0 %v3953
    %7083 = vmatpush1.msra.mxu0 %v3952
    %7084 = vmatprep.subr.mxu0 %v3949
    %7085 = vmatpush1.msra.mxu0 %v3948
    %7086 = vmatprep.subr.mxu0 %v3945
    %7087 = vmatpush1.msra.mxu0 %v3944
    %7088 = vmatprep.subr.mxu0 %v3941
    %7089 = vmatpush1.msra.mxu0 %v3940
    %7090 = vmatprep.subr.mxu0 %v3937
    %7091 = vmatpush1.msra.mxu0 %v3936
    %7092 = vmatprep.subr.mxu0 %v3933
    %7093 = vmatpush1.msra.mxu0 %v3932
    %7094 = vmatprep.subr.mxu0 %v3929
    %7095 = vmatpush1.msra.mxu0 %v3928
    %7096 = vmatprep.subr.mxu0 %v3925
    %7097 = vmatpush1.msra.mxu0 %v3924
    %7098 = vmatprep.subr.mxu0 %v3921
    %7099 = vmatpush1.msra.mxu0 %v3920
    %7100 = vmatprep.subr.mxu0 %v3917
    %7101 = vmatpush1.msra.mxu0 %v3916
    %7102 = vmatprep.subr.mxu0 %v3913
    %7103 = vmatpush1.msra.mxu0 %v3912
    %7104 = vmatprep.subr.mxu0 %v3909
    %7105 = vmatpush1.msra.mxu0 %v3908
    %7106 = vmatprep.subr.mxu0 %v3905
    %7107 = vmatpush1.msra.mxu0 %v3904
    %7108 = vmatprep.subr.mxu0 %v3901
    %7109 = vmatpush1.msra.mxu0 %v3900
    %7110 = vmatprep.subr.mxu0 0.0
    %7111 = vmatpush2.msra.mxu0 0.0
    %7112 = vmatprep.subr.mxu0 0.0
    %7113 = vmatpush2.msra.mxu0 0.0
    %7114 = vmatprep.subr.mxu0 0.0
    %7115 = vmatpush2.msra.mxu0 0.0
    %7116 = vmatprep.subr.mxu0 0.0
    %7117 = vmatpush2.msra.mxu0 0.0
    %7118 = vmatprep.subr.mxu0 0.0
    %7119 = vmatpush2.msra.mxu0 0.0
    %7120 = vmatprep.subr.mxu0 0.0
    %7121 = vmatpush2.msra.mxu0 0.0
    %7122 = vmatprep.subr.mxu0 0.0
    %7123 = vmatpush2.msra.mxu0 0.0
    %7124 = vmatprep.subr.mxu0 0.0
    %7125 = vmatpush2.msra.mxu0 0.0
    %7126 = vmatprep.subr.mxu0 0.0
    %7127 = vmatpush2.msra.mxu0 0.0
    %7128 = vmatprep.subr.mxu0 0.0
    %7129 = vmatpush2.msra.mxu0 0.0
    %7130 = vmatprep.subr.mxu0 0.0
    %7131 = vmatpush2.msra.mxu0 0.0
    %7132 = vmatprep.subr.mxu0 0.0
    %7133 = vmatpush2.msra.mxu0 0.0
    %7134 = vmatprep.subr.mxu0 0.0
    %7135 = vmatpush2.msra.mxu0 0.0
    %7136 = vmatprep.subr.mxu0 0.0
    %7137 = vmatpush2.msra.mxu0 0.0
    %7138 = vmatprep.subr.mxu0 0.0
    %7139 = vmatpush2.msra.mxu0 0.0
    %7140 = vmatprep.subr.mxu0 0.0
    %7141 = vmatpush2.msra.mxu0 0.0
    %7142 = vmatprep.mubr.f32.mxu0 0.0
    %7143 = vmatmul.mubr.f32.gmra.mxu0 %v6836
    %v7144 = vpop.f32.mrf.mxu0
    %v7145 = vadd.f32 0.0, %v7144
    %v7146 = vpop.f32.mrf.mxu0
    %v7147 = vadd.f32 0.0, %v7146
    %7148 = vdwg.mxu0
    %v7149 = vadd.f32 %v4298, %v7074
    %v7150 = vadd.f32 %v4300, %v7076
    %v7151 = vadd.f32 %v4411, %v7145
    %v7152 = vadd.f32 %v4413, %v7147
    %v7153 = vxor.u32 %v7149, 2147483648
    %v7154 = vmul.f32 %v7153, 1.442695
    %v7155 = vpow.pop %v7154
    %v7156 = vadd.f32 %v7155, 1.0
    %v7157 = vrcp.pop %v7156
    %v7158 = vmul.f32 1.0, %v7157
    %v7159 = vxor.u32 %v7150, 2147483648
    %v7160 = vmul.f32 %v7159, 1.442695
    %v7161 = vpow.pop %v7160
    %v7162 = vadd.f32 %v7161, 1.0
    %v7163 = vrcp.pop %v7162
    %v7164 = vmul.f32 1.0, %v7163
    %v7165 = vtanh.pop %v7151
    %v7166 = vxor.u32 %v7152, 2147483648
    %v7167 = vmul.f32 %v7166, 1.442695
    %v7168 = vpow.pop %v7167
    %v7169 = vadd.f32 %v7168, 1.0
    %v7170 = vrcp.pop %v7169
    %v7171 = vmul.f32 1.0, %v7170
    %v7172 = vmul.f32 %v7164, %v6834
    %v7173 = vmul.f32 %v7158, %v7165
    %v7174 = vadd.f32 %v7172, %v7173
    %v7175 = vtanh.pop %v7174
    %v7176 = vmul.f32 %v7171, %v7175
    %7177 = vst [vmem:[%s16] sm:$0xff] %v4626
    %7178 = vst [vmem:[%s16 + $0x8] sm:$0xff] %v7176
    %7179 = vst [vmem:[%s16 + $0x10] sm:$0xff] %v4966
    %7180 = vst [vmem:[%s16 + $0x18] sm:$0xff] %v6836
    %7181 = vst [vmem:[%s16 + $0x20] sm:$0xff] %v5306
    %7182 = vst [vmem:[%s16 + $0x28] sm:$0xff] %v6496
    %7183 = vst [vmem:[%s16 + $0x30] sm:$0xff] %v5646
    %7184 = vst [vmem:[%s16 + $0x38] sm:$0xff] %v6156
    %7185 = vst [vmem:[%s16 + $0x40] sm:$0xff] %v5986
    %7186 = vst [vmem:[%s16 + $0x48] sm:$0xff] %v5816
    %7187 = vst [vmem:[%s16 + $0x50] sm:$0xff] %v6326
    %7188 = vst [vmem:[%s16 + $0x58] sm:$0xff] %v5476
    %7189 = vst [vmem:[%s16 + $0x60] sm:$0xff] %v6666
    %7190 = vst [vmem:[%s16 + $0x68] sm:$0xff] %v5136
    %7191 = vst [vmem:[%s16 + $0x70] sm:$0xff] %v7006
    %7192 = vst [vmem:[%s16 + $0x78] sm:$0xff] %v4796
    %v7193 = vld [vmem:[%s13] sm:$0xff]
    %v7194 = vld [vmem:[%s13 + $0x8] sm:$0xff]
    %v7195 = vld [vmem:[%s13 + $0x10] sm:$0xff]
    %v7196 = vld [vmem:[%s13 + $0x18] sm:$0xff]
    %v7197 = vld [vmem:[%s13 + $0x20] sm:$0xff]
    %v7198 = vld [vmem:[%s13 + $0x28] sm:$0xff]
    %v7199 = vld [vmem:[%s13 + $0x30] sm:$0xff]
    %v7200 = vld [vmem:[%s13 + $0x38] sm:$0xff]
    %v7201 = vld [vmem:[%s13 + $0x40] sm:$0xff]
    %v7202 = vld [vmem:[%s13 + $0x48] sm:$0xff]
    %v7203 = vld [vmem:[%s13 + $0x50] sm:$0xff]
    %v7204 = vld [vmem:[%s13 + $0x58] sm:$0xff]
    %v7205 = vld [vmem:[%s13 + $0x60] sm:$0xff]
    %v7206 = vld [vmem:[%s13 + $0x68] sm:$0xff]
    %v7207 = vld [vmem:[%s13 + $0x70] sm:$0xff]
    %v7208 = vld [vmem:[%s13 + $0x78] sm:$0xff]
    %v7209 = vld [vmem:[%s13 + $0x80] sm:$0xff]
    %v7210 = vld [vmem:[%s13 + $0x88] sm:$0xff]
    %v7211 = vld [vmem:[%s13 + $0x90] sm:$0xff]
    %v7212 = vld [vmem:[%s13 + $0x98] sm:$0xff]
    %v7213 = vld [vmem:[%s13 + $0xa0] sm:$0xff]
    %v7214 = vld [vmem:[%s13 + $0xa8] sm:$0xff]
    %v7215 = vld [vmem:[%s13 + $0xb0] sm:$0xff]
    %v7216 = vld [vmem:[%s13 + $0xb8] sm:$0xff]
    %v7217 = vld [vmem:[%s13 + $0xc0] sm:$0xff]
    %v7218 = vld [vmem:[%s13 + $0xc8] sm:$0xff]
    %v7219 = vld [vmem:[%s13 + $0xd0] sm:$0xff]
    %v7220 = vld [vmem:[%s13 + $0xd8] sm:$0xff]
    %v7221 = vld [vmem:[%s13 + $0xe0] sm:$0xff]
    %v7222 = vld [vmem:[%s13 + $0xe8] sm:$0xff]
    %v7223 = vld [vmem:[%s13 + $0xf0] sm:$0xff]
    %v7224 = vld [vmem:[%s13 + $0xf8] sm:$0xff]
    %v7225 = vld [vmem:[%s14] sm:$0x1]
    %v7227 = vlaneseq
    %v7228 = vshrl.u32 %v7227, 7
    %v7229 = vsub.s32 0, %v7228
    %v7230 = vrot.slane %v7225, %v7229
    %7232 = vmatprep.subr.mxu0 0.0
    %7233 = vmatpush1.msra.mxu0 %v7208
    %7234 = vmatprep.subr.mxu0 0.0
    %7235 = vmatpush1.msra.mxu0 %v7207
    %7236 = vmatprep.subr.mxu0 0.0
    %7237 = vmatpush1.msra.mxu0 %v7206
    %7238 = vmatprep.subr.mxu0 0.0
    %7239 = vmatpush1.msra.mxu0 %v7205
    %7240 = vmatprep.subr.mxu0 0.0
    %7241 = vmatpush1.msra.mxu0 %v7204
    %7242 = vmatprep.subr.mxu0 0.0
    %7243 = vmatpush1.msra.mxu0 %v7203
    %7244 = vmatprep.subr.mxu0 0.0
    %7245 = vmatpush1.msra.mxu0 %v7202
    %7246 = vmatprep.subr.mxu0 0.0
    %7247 = vmatpush1.msra.mxu0 %v7201
    %7248 = vmatprep.subr.mxu0 0.0
    %7249 = vmatpush1.msra.mxu0 %v7200
    %7250 = vmatprep.subr.mxu0 0.0
    %7251 = vmatpush1.msra.mxu0 %v7199
    %7252 = vmatprep.subr.mxu0 0.0
    %7253 = vmatpush1.msra.mxu0 %v7198
    %7254 = vmatprep.subr.mxu0 0.0
    %7255 = vmatpush1.msra.mxu0 %v7197
    %7256 = vmatprep.subr.mxu0 0.0
    %7257 = vmatpush1.msra.mxu0 %v7196
    %7258 = vmatprep.subr.mxu0 0.0
    %7259 = vmatpush1.msra.mxu0 %v7195
    %7260 = vmatprep.subr.mxu0 0.0
    %7261 = vmatpush1.msra.mxu0 %v7194
    %7262 = vmatprep.subr.mxu0 0.0
    %7263 = vmatpush1.msra.mxu0 %v7193
    %7264 = vmatprep.subr.mxu0 0.0
    %7265 = vmatpush2.msra.mxu0 %v7224
    %7266 = vmatprep.subr.mxu0 0.0
    %7267 = vmatpush2.msra.mxu0 %v7223
    %7268 = vmatprep.subr.mxu0 0.0
    %7269 = vmatpush2.msra.mxu0 %v7222
    %7270 = vmatprep.subr.mxu0 0.0
    %7271 = vmatpush2.msra.mxu0 %v7221
    %7272 = vmatprep.subr.mxu0 0.0
    %7273 = vmatpush2.msra.mxu0 %v7220
    %7274 = vmatprep.subr.mxu0 0.0
    %7275 = vmatpush2.msra.mxu0 %v7219
    %7276 = vmatprep.subr.mxu0 0.0
    %7277 = vmatpush2.msra.mxu0 %v7218
    %7278 = vmatprep.subr.mxu0 0.0
    %7279 = vmatpush2.msra.mxu0 %v7217
    %7280 = vmatprep.subr.mxu0 0.0
    %7281 = vmatpush2.msra.mxu0 %v7216
    %7282 = vmatprep.subr.mxu0 0.0
    %7283 = vmatpush2.msra.mxu0 %v7215
    %7284 = vmatprep.subr.mxu0 0.0
    %7285 = vmatpush2.msra.mxu0 %v7214
    %7286 = vmatprep.subr.mxu0 0.0
    %7287 = vmatpush2.msra.mxu0 %v7213
    %7288 = vmatprep.subr.mxu0 0.0
    %7289 = vmatpush2.msra.mxu0 %v7212
    %7290 = vmatprep.subr.mxu0 0.0
    %7291 = vmatpush2.msra.mxu0 %v7211
    %7292 = vmatprep.subr.mxu0 0.0
    %7293 = vmatpush2.msra.mxu0 %v7210
    %7294 = vmatprep.subr.mxu0 0.0
    %7295 = vmatpush2.msra.mxu0 %v7209
    %7296 = vmatprep.mubr.f32.mxu0 %v7176
    %7297 = vmatmul.mubr.f32.gmra.mxu0 %v4626
    %v7298 = vpop.f32.mrf.mxu0
    %v7299 = vadd.f32 %v7230, %v7298
    %v7300 = vpop.f32.mrf.mxu0
    %7301 = vmatprep.mubr.f32.mxu0 %v6836
    %7302 = vmatmul.mubr.f32.gmra.mxu0 %v4966
    %v7303 = vpop.f32.mrf.mxu0
    %v7304 = vadd.f32 %v7230, %v7303
    %v7305 = vpop.f32.mrf.mxu0
    %7306 = vmatprep.mubr.f32.mxu0 %v6496
    %7307 = vmatmul.mubr.f32.gmra.mxu0 %v5306
    %v7308 = vpop.f32.mrf.mxu0
    %v7309 = vadd.f32 %v7230, %v7308
    %v7310 = vpop.f32.mrf.mxu0
    %7311 = vmatprep.mubr.f32.mxu0 %v6156
    %7312 = vmatmul.mubr.f32.gmra.mxu0 %v5646
    %v7313 = vpop.f32.mrf.mxu0
    %v7314 = vadd.f32 %v7230, %v7313
    %v7315 = vpop.f32.mrf.mxu0
    %7316 = vmatprep.mubr.f32.mxu0 %v5816
    %7317 = vmatmul.mubr.f32.gmra.mxu0 %v5986
    %v7318 = vpop.f32.mrf.mxu0
    %v7319 = vadd.f32 %v7230, %v7318
    %v7320 = vpop.f32.mrf.mxu0
    %7321 = vmatprep.mubr.f32.mxu0 %v5476
    %7322 = vmatmul.mubr.f32.gmra.mxu0 %v6326
    %v7323 = vpop.f32.mrf.mxu0
    %v7324 = vadd.f32 %v7230, %v7323
    %v7325 = vpop.f32.mrf.mxu0
    %7326 = vmatprep.mubr.f32.mxu0 %v5136
    %7327 = vmatmul.mubr.f32.gmra.mxu0 %v6666
    %v7328 = vpop.f32.mrf.mxu0
    %v7329 = vadd.f32 %v7230, %v7328
    %v7330 = vpop.f32.mrf.mxu0
    %7331 = vmatprep.mubr.f32.mxu0 %v4796
    %7332 = vmatmul.mubr.f32.gmra.mxu0 %v7006
    %v7333 = vpop.f32.mrf.mxu0
    %v7334 = vadd.f32 %v7230, %v7333
    %v7335 = vpop.f32.mrf.mxu0
    %7336 = vdwg.mxu0
    %v7337 = vlaneseq
    %v7338 = vand.u32 %v7337, 127
    %7339 = vmax.xlane.f32.xlu0 %v7299
    %v7340 = vpop.xlane.xlu0 %7339
    %7341 = vmax.xlane.f32.xlu0 %v7304
    %v7342 = vpop.xlane.xlu0 %7341
    %7343 = vmax.xlane.f32.xlu0 %v7309
    %v7344 = vpop.xlane.xlu0 %7343
    %7345 = vmax.xlane.f32.xlu0 %v7314
    %v7346 = vpop.xlane.xlu0 %7345
    %7347 = vmax.xlane.f32.xlu0 %v7319
    %v7348 = vpop.xlane.xlu0 %7347
    %7349 = vmax.xlane.f32.xlu0 %v7324
    %v7350 = vpop.xlane.xlu0 %7349
    %7351 = vmax.xlane.f32.xlu0 %v7329
    %v7352 = vpop.xlane.xlu0 %7351
    %7353 = vmax.xlane.f32.xlu0 %v7334
    %v7354 = vpop.xlane.xlu0 %7353
    %vm7355 = vcmp.eq.f32.partialorder %v7299, %v7340
    %vm7356 = vcmp.eq.f32.partialorder %v7304, %v7342
    %vm7357 = vcmp.eq.f32.partialorder %v7309, %v7344
    %vm7358 = vcmp.eq.f32.partialorder %v7314, %v7346
    %vm7359 = vcmp.eq.f32.partialorder %v7319, %v7348
    %vm7360 = vcmp.eq.f32.partialorder %v7324, %v7350
    %vm7361 = vcmp.eq.f32.partialorder %v7329, %v7352
    %vm7362 = vcmp.eq.f32.partialorder %v7334, %v7354
    %v7363 = vsel %vm7355, %v7338, 128
    %v7364 = vsel %vm7356, %v7338, 128
    %v7365 = vsel %vm7357, %v7338, 128
    %v7366 = vsel %vm7358, %v7338, 128
    %v7367 = vsel %vm7359, %v7338, 128
    %v7368 = vsel %vm7360, %v7338, 128
    %v7369 = vsel %vm7361, %v7338, 128
    %v7370 = vsel %vm7362, %v7338, 128
    %v7371 = vand.u32 %v7363, 65535
    %v7372 = vshra.s32 %v7363, 16
    %v7373 = vcvt.s32.f32 %v7371
    %v7374 = vcvt.s32.f32 %v7372
    %7375 = vmin.xlane.f32.xlu0 %v7374
    %v7376 = vpop.xlane.xlu0 %7375
    %vm7377 = vcmp.eq.f32.partialorder %v7374, %v7376
    %v7378 = vsel %vm7377, %v7373, inf
    %7379 = vmin.xlane.f32.xlu0 %v7378
    %v7380 = vpop.xlane.xlu0 %7379
    %v7381 = vcvt.f32.s32 %v7380
    %v7382 = vcvt.f32.s32 %v7376
    %v7383 = vshll.u32 %v7382, 16
    %v7384 = vadd.s32 %v7383, %v7381
    %v7385 = vand.u32 %v7364, 65535
    %v7386 = vshra.s32 %v7364, 16
    %v7387 = vcvt.s32.f32 %v7385
    %v7388 = vcvt.s32.f32 %v7386
    %7389 = vmin.xlane.f32.xlu0 %v7388
    %v7390 = vpop.xlane.xlu0 %7389
    %vm7391 = vcmp.eq.f32.partialorder %v7388, %v7390
    %v7392 = vsel %vm7391, %v7387, inf
    %7393 = vmin.xlane.f32.xlu0 %v7392
    %v7394 = vpop.xlane.xlu0 %7393
    %v7395 = vcvt.f32.s32 %v7394
    %v7396 = vcvt.f32.s32 %v7390
    %v7397 = vshll.u32 %v7396, 16
    %v7398 = vadd.s32 %v7397, %v7395
    %v7399 = vand.u32 %v7365, 65535
    %v7400 = vshra.s32 %v7365, 16
    %v7401 = vcvt.s32.f32 %v7399
    %v7402 = vcvt.s32.f32 %v7400
    %7403 = vmin.xlane.f32.xlu0 %v7402
    %v7404 = vpop.xlane.xlu0 %7403
    %vm7405 = vcmp.eq.f32.partialorder %v7402, %v7404
    %v7406 = vsel %vm7405, %v7401, inf
    %7407 = vmin.xlane.f32.xlu0 %v7406
    %v7408 = vpop.xlane.xlu0 %7407
    %v7409 = vcvt.f32.s32 %v7408
    %v7410 = vcvt.f32.s32 %v7404
    %v7411 = vshll.u32 %v7410, 16
    %v7412 = vadd.s32 %v7411, %v7409
    %v7413 = vand.u32 %v7366, 65535
    %v7414 = vshra.s32 %v7366, 16
    %v7415 = vcvt.s32.f32 %v7413
    %v7416 = vcvt.s32.f32 %v7414
    %7417 = vmin.xlane.f32.xlu0 %v7416
    %v7418 = vpop.xlane.xlu0 %7417
    %vm7419 = vcmp.eq.f32.partialorder %v7416, %v7418
    %v7420 = vsel %vm7419, %v7415, inf
    %7421 = vmin.xlane.f32.xlu0 %v7420
    %v7422 = vpop.xlane.xlu0 %7421
    %v7423 = vcvt.f32.s32 %v7422
    %v7424 = vcvt.f32.s32 %v7418
    %v7425 = vshll.u32 %v7424, 16
    %v7426 = vadd.s32 %v7425, %v7423
    %v7427 = vand.u32 %v7367, 65535
    %v7428 = vshra.s32 %v7367, 16
    %v7429 = vcvt.s32.f32 %v7427
    %v7430 = vcvt.s32.f32 %v7428
    %7431 = vmin.xlane.f32.xlu0 %v7430
    %v7432 = vpop.xlane.xlu0 %7431
    %vm7433 = vcmp.eq.f32.partialorder %v7430, %v7432
    %v7434 = vsel %vm7433, %v7429, inf
    %7435 = vmin.xlane.f32.xlu0 %v7434
    %v7436 = vpop.xlane.xlu0 %7435
    %v7437 = vcvt.f32.s32 %v7436
    %v7438 = vcvt.f32.s32 %v7432
    %v7439 = vshll.u32 %v7438, 16
    %v7440 = vadd.s32 %v7439, %v7437
    %v7441 = vand.u32 %v7368, 65535
    %v7442 = vshra.s32 %v7368, 16
    %v7443 = vcvt.s32.f32 %v7441
    %v7444 = vcvt.s32.f32 %v7442
    %7445 = vmin.xlane.f32.xlu0 %v7444
    %v7446 = vpop.xlane.xlu0 %7445
    %vm7447 = vcmp.eq.f32.partialorder %v7444, %v7446
    %v7448 = vsel %vm7447, %v7443, inf
    %7449 = vmin.xlane.f32.xlu0 %v7448
    %v7450 = vpop.xlane.xlu0 %7449
    %v7451 = vcvt.f32.s32 %v7450
    %v7452 = vcvt.f32.s32 %v7446
    %v7453 = vshll.u32 %v7452, 16
    %v7454 = vadd.s32 %v7453, %v7451
    %v7455 = vand.u32 %v7369, 65535
    %v7456 = vshra.s32 %v7369, 16
    %v7457 = vcvt.s32.f32 %v7455
    %v7458 = vcvt.s32.f32 %v7456
    %7459 = vmin.xlane.f32.xlu0 %v7458
    %v7460 = vpop.xlane.xlu0 %7459
    %vm7461 = vcmp.eq.f32.partialorder %v7458, %v7460
    %v7462 = vsel %vm7461, %v7457, inf
    %7463 = vmin.xlane.f32.xlu0 %v7462
    %v7464 = vpop.xlane.xlu0 %7463
    %v7465 = vcvt.f32.s32 %v7464
    %v7466 = vcvt.f32.s32 %v7460
    %v7467 = vshll.u32 %v7466, 16
    %v7468 = vadd.s32 %v7467, %v7465
    %v7469 = vand.u32 %v7370, 65535
    %v7470 = vshra.s32 %v7370, 16
    %v7471 = vcvt.s32.f32 %v7469
    %v7472 = vcvt.s32.f32 %v7470
    %7473 = vmin.xlane.f32.xlu0 %v7472
    %v7474 = vpop.xlane.xlu0 %7473
    %vm7475 = vcmp.eq.f32.partialorder %v7472, %v7474
    %v7476 = vsel %vm7475, %v7471, inf
    %7477 = vmin.xlane.f32.xlu0 %v7476
    %v7478 = vpop.xlane.xlu0 %7477
    %v7479 = vcvt.f32.s32 %v7478
    %v7480 = vcvt.f32.s32 %v7474
    %v7481 = vshll.u32 %v7480, 16
    %v7482 = vadd.s32 %v7481, %v7479
    %vm7483 = vcmask 7168
    %7484 = vst.msk [vmem:[%s15] sm:$0xff] %vm7483, %v7384
    %7485 = vst.msk [vmem:[%s15 + $0x8] sm:$0xff] %vm7483, %v7398
    %7486 = vst.msk [vmem:[%s15 + $0x10] sm:$0xff] %vm7483, %v7412
    %7487 = vst.msk [vmem:[%s15 + $0x18] sm:$0xff] %vm7483, %v7426
    %7488 = vst.msk [vmem:[%s15 + $0x20] sm:$0xff] %vm7483, %v7440
    %7489 = vst.msk [vmem:[%s15 + $0x28] sm:$0xff] %vm7483, %v7454
    %7490 = vst.msk [vmem:[%s15 + $0x30] sm:$0xff] %vm7483, %v7468
    %7491 = vst.msk [vmem:[%s15 + $0x38] sm:$0xff] %vm7483, %v7482
    // Predicated region
    $region98: #{bilstm_forward.1} parent=1 // pred_check
      _
    $region99: #{bilstm_forward.1} parent=1 // pred_check_branch
      %7493 = sbr.rel (0) target = $region101
    $region100: #{bilstm_forward.1} parent=1 // pred_region
      _
    $region101: #{bilstm_forward.1} parent=1 // pred_fallthru
      _
    // Predicated region
    $region102: #{bilstm_forward.1} parent=1 // pred_check
      _
    $region103: #{bilstm_forward.1} parent=1 // pred_check_branch
      %7495 = sbr.rel (0) target = $region105
    $region104: #{bilstm_forward.1} parent=1 // pred_region
      _
    $region105: #{bilstm_forward.1} parent=1 // pred_fallthru
      _
    // Predicated region
    $region106: #{bilstm_forward.1} parent=1 // pred_check
      _
    $region107: #{bilstm_forward.1} parent=1 // pred_check_branch
      %7497 = sbr.rel (0) target = $region109
    $region108: #{bilstm_forward.1} parent=1 // pred_region
      _
    $region109: #{bilstm_forward.1} parent=1 // pred_fallthru
      _
    // Predicated region
    $region110: #{bilstm_forward.1} parent=1 // pred_check
      _
    $region111: #{bilstm_forward.1} parent=1 // pred_check_branch
      %7499 = sbr.rel (0) target = $region113
    $region112: #{bilstm_forward.1} parent=1 // pred_region
      _
    $region113: #{bilstm_forward.1} parent=1 // pred_fallthru
      _
    %7500 = vsyncpa [#allocation3], 1
    %7501 = vsyncpa [#allocation5], 1
    %7502 = vsyncpa [#allocation8], 1
    %7503 = vsyncpa [#allocation11], 1
    %7504 = vsyncpa [#allocation14], 1

</llo_original>
